<compile_context>
chip_gen: v7x
topology: tpu7x:2x2x1
jax: 0.10.0
libtpu: 0.0.40
codegen_flags: <defaults>
</compile_context>

<pallas_src>
import jax
import jax.numpy as jnp
from jax.experimental import pallas as pl
from jax.experimental.pallas import tpu as pltpu

EMBEDDING_DIM = 128
HIDDEN_DIM = 256
NUM_CLASSES = 10
VOCAB_SIZE = 50                    # source script's vocab set is empty; synthetic size
VOCAB_PAD = ((VOCAB_SIZE + 63) // 64) * 64   # one-hot width padded to 64
SEQ_LEN = 8
BATCH = 2

# Conv geometry fixed by the module: 3x32x32 input, 5x5 valid convs, 2x2 pools.
K = 5
IH, IW = 32, 32
OH1, OW1 = 28, 28     # conv1 output
PH1, PW1 = 14, 14     # pool1 output
OH2, OW2 = 10, 10     # conv2 output
PH2, PW2 = 5, 5       # pool2 output
C0, C1, C2 = 3, 6, 16  # channel counts


# ------------------------------------------------------------------
# Fused forward kernel (single pallas_call, everything resident in VMEM)
# ------------------------------------------------------------------
def _fused_forward_kernel(
    ids_ref,        # (T*B, 1) int32 token ids, row = t*B + b
    x_ref,          # (IH*B, C0*IW) f32 image slab, row = h*B + b, col = ci*IW + w
    embwih_ref,     # (VOCAB_PAD, 4H) bf16  = pad(emb @ W_ih^T)
    whh_ref,        # (H, 4H) bf16
    blstm_ref,      # (1, 4H) f32  = b_ih + b_hh
    r1_ref,         # (5, C0*IW, C1*OW1) bf16 banded conv1 weights (K fused over ci)
    b1_ref,         # (1, C1*OW1) f32
    s1r_ref,        # (2, B*PH1, B*OH1) bf16 even/odd row-pool selectors (pool1)
    s1c_ref,        # (2, C1*OW1, C1*PW1) bf16 even/odd col-pool selectors (pool1)
    r2_ref,         # (5, C1*PW1, C2*OW2) bf16 banded conv2 weights (K fused over ci)
    b2_ref,         # (1, C2*OW2) f32
    s2r_ref,        # (2, B*PH2, B*OH2) bf16
    s2c_ref,        # (2, C2*OW2, C2*PW2) bf16
    wfc1_ref,       # (PH2, C2*PW2, 120) bf16 per-spatial-row fc1 weights
    bfc1_ref,       # (1, 120) f32
    w2i_ref,        # (120, 84) bf16  fc2 (image half)
    w2t_ref,        # (H, 84) bf16    fc2 (text half)
    bfc2_ref,       # (1, 84) f32
    w3_ref,         # (84, NUM_CLASSES) bf16
    bfc3_ref,       # (1, NUM_CLASSES) f32
    out_ref,        # (B, NUM_CLASSES) f32
):
    f32 = jnp.float32
    bf16 = jnp.bfloat16
    B = BATCH
    H = HIDDEN_DIM
    TB = SEQ_LEN * BATCH

    def mm(a, b):
        # bf16 operands, f32 accumulation on the MXU
        return jnp.dot(a.astype(bf16), b.astype(bf16),
                       preferred_element_type=f32)

    # ---------------- text branch: one-hot embedding + LSTM ----------------
    ids = ids_ref[...]                                           # (TB, 1) int32
    iota = jax.lax.broadcasted_iota(jnp.int32, (TB, VOCAB_PAD), 1)
    onehot = jnp.where(ids == iota, 1.0, 0.0)                    # (TB, VOCAB_PAD) f32
    # embedding lookup + LSTM input projection fused into one matmul
    xproj = mm(onehot, embwih_ref[...]) + blstm_ref[...]         # (TB, 4H) f32

    whh = whh_ref[...]                                           # (H, 4H) bf16
    h = jnp.zeros((B, H), f32)
    c = jnp.zeros((B, H), f32)
    for t in range(SEQ_LEN):                                     # fully unrolled (T=8)
        gates = xproj[t * B:(t + 1) * B, :] + mm(h, whh)         # (B, 4H)
        i_g = jax.nn.sigmoid(gates[:, 0:H])
        f_g = jax.nn.sigmoid(gates[:, H:2 * H])
        g_g = jnp.tanh(gates[:, 2 * H:3 * H])
        o_g = jax.nn.sigmoid(gates[:, 3 * H:4 * H])
        c = f_g * c + i_g * g_g
        h = o_g * jnp.tanh(c)
    # h: (B, H) == hidden[-1] of the PyTorch LSTM

    # ---------------- image branch (batched over B, rows = spatial*B + b) ---
    # conv1: 5 banded matmuls, K = C0*IW = 96, M = B*OH1 = 56
    xs = x_ref[...].astype(bf16)                                 # (IH*B, 96)
    acc1 = jnp.zeros((B * OH1, C1 * OW1), f32)
    for i in range(K):
        acc1 = acc1 + mm(xs[i * B:(i + OH1) * B, :], r1_ref[i])
    a1 = jnp.maximum(acc1 + b1_ref[...], 0.0)                    # (56, 168)

    # 2x2 max-pool: even/odd row-selection matmuls, then even/odd col selection
    t1 = jnp.maximum(mm(s1r_ref[0], a1), mm(s1r_ref[1], a1))     # (B*PH1, 168)
    p1 = jnp.maximum(mm(t1, s1c_ref[0]), mm(t1, s1c_ref[1]))     # (B*PH1, 84)
    p1 = p1.astype(bf16)                                         # rows ph*B+b, cols ci*14+w

    # conv2: 5 banded matmuls, K = C1*PW1 = 84, M = B*OH2 = 20
    acc2 = jnp.zeros((B * OH2, C2 * OW2), f32)
    for i in range(K):
        acc2 = acc2 + mm(p1[i * B:(i + OH2) * B, :], r2_ref[i])
    a2 = jnp.maximum(acc2 + b2_ref[...], 0.0)                    # (20, 160)

    t2 = jnp.maximum(mm(s2r_ref[0], a2), mm(s2r_ref[1], a2))     # (B*PH2, 160)
    p2 = jnp.maximum(mm(t2, s2c_ref[0]), mm(t2, s2c_ref[1]))     # (B*PH2, 80)
    p2 = p2.astype(bf16)                                         # rows ph*B+b, cols co*5+pw

    # fc1: 5 matmuls with M=B over contiguous 2-row slices (flatten-free)
    f1 = bfc1_ref[...]                                           # (1, 120) -> broadcasts
    for ph in range(PH2):
        f1 = f1 + mm(p2[ph * B:(ph + 1) * B, :], wfc1_ref[ph])
    f1 = jnp.maximum(f1, 0.0)                                    # (B, 120)

    # fc2 over [img_feat, text_feat] (weight split -> no concat), then fc3
    f2 = jnp.maximum(mm(f1, w2i_ref[...]) + mm(h, w2t_ref[...]) + bfc2_ref[...],
                     0.0)                                        # (B, 84)
    out_ref[...] = mm(f2, w3_ref[...]) + bfc3_ref[...]           # (B, 10), single store


# ------------------------------------------------------------------
# Parameter init (PyTorch-convention layouts) and one-time repacking
# ------------------------------------------------------------------
def init_params(key):
    ks = jax.random.split(key, 16)

    def unif(k, shape, fan_in):
        bound = 1.0 / float(fan_in) ** 0.5
        return jax.random.uniform(k, shape, jnp.float32, -bound, bound)

    p = {}
    p['conv1_w'] = unif(ks[0], (C1, C0, K, K), C0 * K * K)
    p['conv1_b'] = unif(ks[1], (C1,), C0 * K * K)
    p['conv2_w'] = unif(ks[2], (C2, C1, K, K), C1 * K * K)
    p['conv2_b'] = unif(ks[3], (C2,), C1 * K * K)
    p['fc1_w'] = unif(ks[4], (120, C2 * PH2 * PW2), C2 * PH2 * PW2)
    p['fc1_b'] = unif(ks[5], (120,), C2 * PH2 * PW2)
    p['emb'] = jax.random.normal(ks[6], (VOCAB_SIZE, EMBEDDING_DIM), jnp.float32)
    p['w_ih'] = unif(ks[7], (4 * HIDDEN_DIM, EMBEDDING_DIM), HIDDEN_DIM)
    p['w_hh'] = unif(ks[8], (4 * HIDDEN_DIM, HIDDEN_DIM), HIDDEN_DIM)
    p['b_ih'] = unif(ks[9], (4 * HIDDEN_DIM,), HIDDEN_DIM)
    p['b_hh'] = unif(ks[10], (4 * HIDDEN_DIM,), HIDDEN_DIM)
    p['fc2_w'] = unif(ks[11], (84, 120 + HIDDEN_DIM), 120 + HIDDEN_DIM)
    p['fc2_b'] = unif(ks[12], (84,), 120 + HIDDEN_DIM)
    p['fc3_w'] = unif(ks[13], (NUM_CLASSES, 84), 84)
    p['fc3_b'] = unif(ks[14], (NUM_CLASSES,), 84)
    return p


def prepare_params(p):
    """One-time repack of PyTorch-layout weights into MXU-ready bf16 operands."""
    f32 = jnp.float32
    bf16 = jnp.bfloat16

    def conv_band(w, w_in, w_out):
        # w: (Co, Ci, Kh, Kw) -> (Kh, Ci*w_in, Co*w_out) with
        # band[i][ci*w_in + x, co*w_out + ow] = w[co, ci, i, x-ow] for 0 <= x-ow < Kw
        co, ci, kh, kw = w.shape
        xi = jnp.arange(w_in)
        ow = jnp.arange(w_out)
        jm = xi[:, None] - ow[None, :]
        valid = ((jm >= 0) & (jm < kw)).astype(f32)
        jc = jnp.clip(jm, 0, kw - 1)
        wp = jnp.transpose(w, (2, 1, 0, 3))                  # (Kh, Ci, Co, Kw)
        band = wp[:, :, :, jc] * valid[None, None, None]     # (Kh, Ci, Co, w_in, w_out)
        band = jnp.transpose(band, (0, 1, 3, 2, 4))          # (Kh, Ci, w_in, Co, w_out)
        return band.reshape(kh, ci * w_in, co * w_out)

    def pool_rows(ph_n, oh_n, parity, batch):
        # output rows ordered (ph, b); input rows ordered (oh, b)
        out_idx = jnp.arange(ph_n * batch)
        ph, b = out_idx // batch, out_idx % batch
        src = (2 * ph + parity) * batch + b
        return jax.nn.one_hot(src, oh_n * batch, dtype=f32)  # (ph_n*B, oh_n*B)

    def pool_cols(channels, w_in, parity):
        w_out = w_in // 2
        out_idx = jnp.arange(channels * w_out)
        co, pw = out_idx // w_out, out_idx % w_out
        src = co * w_in + 2 * pw + parity
        return jnp.transpose(jax.nn.one_hot(src, channels * w_in, dtype=f32))

    prep = {}
    # text branch: embedding lookup fused into the LSTM input projection
    embwih = jnp.dot(p['emb'], jnp.transpose(p['w_ih']))     # (V, 4H), f32 at prep time
    embwih = jnp.pad(embwih, ((0, VOCAB_PAD - VOCAB_SIZE), (0, 0)))
    prep['embwih'] = embwih.astype(bf16)                     # (VOCAB_PAD, 4H)
    prep['whh'] = jnp.transpose(p['w_hh']).astype(bf16)      # (H, 4H)
    prep['blstm'] = (p['b_ih'] + p['b_hh'])[None, :].astype(f32)
    # conv1 / pool1
    prep['r1'] = conv_band(p['conv1_w'], IW, OW1).astype(bf16)        # (5, 96, 168)
    prep['b1'] = jnp.repeat(p['conv1_b'], OW1)[None, :].astype(f32)
    prep['s1r'] = jnp.stack([pool_rows(PH1, OH1, 0, BATCH),
                             pool_rows(PH1, OH1, 1, BATCH)]).astype(bf16)
    prep['s1c'] = jnp.stack([pool_cols(C1, OW1, 0),
                             pool_cols(C1, OW1, 1)]).astype(bf16)
    # conv2 / pool2
    prep['r2'] = conv_band(p['conv2_w'], PW1, OW2).astype(bf16)       # (5, 84, 160)
    prep['b2'] = jnp.repeat(p['conv2_b'], OW2)[None, :].astype(f32)
    prep['s2r'] = jnp.stack([pool_rows(PH2, OH2, 0, BATCH),
                             pool_rows(PH2, OH2, 1, BATCH)]).astype(bf16)
    prep['s2c'] = jnp.stack([pool_cols(C2, OW2, 0),
                             pool_cols(C2, OW2, 1)]).astype(bf16)
    # fc1: per spatial row ph, columns ordered (co, pw) to match torch.flatten (C,H,W)
    prep['wfc1'] = jnp.transpose(
        p['fc1_w'].reshape(120, C2, PH2, PW2), (2, 1, 3, 0)
    ).reshape(PH2, C2 * PW2, 120).astype(bf16)
    prep['bfc1'] = p['fc1_b'][None, :].astype(f32)
    # fc2 split into image / text halves (avoids in-kernel concat); fc3
    prep['w2i'] = jnp.transpose(p['fc2_w'][:, :120]).astype(bf16)     # (120, 84)
    prep['w2t'] = jnp.transpose(p['fc2_w'][:, 120:]).astype(bf16)     # (H, 84)
    prep['bfc2'] = p['fc2_b'][None, :].astype(f32)
    prep['w3'] = jnp.transpose(p['fc3_w']).astype(bf16)               # (84, 10)
    prep['bfc3'] = p['fc3_b'][None, :].astype(f32)
    return prep


# ------------------------------------------------------------------
# Forward: a single pallas_call; only tiny layout repacks in the wrapper
# ------------------------------------------------------------------
@jax.jit
def multimodal_forward(prep, images_nchw, texts):
    B = images_nchw.shape[0]
    # image slab: row = h*B + b, col = ci*IW + w   (enables K-fused, batched conv1)
    x_slab = jnp.transpose(images_nchw, (2, 0, 1, 3)).reshape(IH * B, C0 * IW)
    # token ids, time-major rows t*B + b
    ids_tb = jnp.transpose(texts.astype(jnp.int32)).reshape(SEQ_LEN * B, 1)

    args = (ids_tb, x_slab,
            prep['embwih'], prep['whh'], prep['blstm'],
            prep['r1'], prep['b1'], prep['s1r'], prep['s1c'],
            prep['r2'], prep['b2'], prep['s2r'], prep['s2c'],
            prep['wfc1'], prep['bfc1'], prep['w2i'], prep['w2t'], prep['bfc2'],
            prep['w3'], prep['bfc3'])
    vmem = pl.BlockSpec(memory_space=pltpu.MemorySpace.VMEM)
    return pl.pallas_call(
        _fused_forward_kernel,
        out_shape=jax.ShapeDtypeStruct((B, NUM_CLASSES), jnp.float32),
        in_specs=[vmem] * len(args),
        out_specs=vmem,
    )(*args)


if __name__ == "__main__":
    key = jax.random.PRNGKey(0)
    pkey, ikey, tkey = jax.random.split(key, 3)
    params = init_params(pkey)
    prep = prepare_params(params)            # one-time MXU-ready bf16 weight repack
    images = jax.random.normal(ikey, (BATCH, C0, IH, IW), jnp.float32)   # NCHW
    texts = jax.random.randint(tkey, (BATCH, SEQ_LEN), 0, VOCAB_SIZE, jnp.int32)

    out = multimodal_forward(prep, images, texts)
    out = jax.block_until_ready(out)
    assert out.shape == (BATCH, NUM_CLASSES)
    print("KERNEL_OK")
</pallas_src>

<mosaic_0001>
module attributes {stable_mosaic.version = 11 : i64} {
  func.func @_fused_forward_kernel(%arg0: memref<16x1xi32, #tpu.memory_space<vmem>>, %arg1: memref<64x96xf32, #tpu.memory_space<vmem>>, %arg2: memref<64x1024xbf16, #tpu.memory_space<vmem>>, %arg3: memref<256x1024xbf16, #tpu.memory_space<vmem>>, %arg4: memref<1x1024xf32, #tpu.memory_space<vmem>>, %arg5: memref<5x96x168xbf16, #tpu.memory_space<vmem>>, %arg6: memref<1x168xf32, #tpu.memory_space<vmem>>, %arg7: memref<2x28x56xbf16, #tpu.memory_space<vmem>>, %arg8: memref<2x168x84xbf16, #tpu.memory_space<vmem>>, %arg9: memref<5x84x160xbf16, #tpu.memory_space<vmem>>, %arg10: memref<1x160xf32, #tpu.memory_space<vmem>>, %arg11: memref<2x10x20xbf16, #tpu.memory_space<vmem>>, %arg12: memref<2x160x80xbf16, #tpu.memory_space<vmem>>, %arg13: memref<5x80x120xbf16, #tpu.memory_space<vmem>>, %arg14: memref<1x120xf32, #tpu.memory_space<vmem>>, %arg15: memref<120x84xbf16, #tpu.memory_space<vmem>>, %arg16: memref<256x84xbf16, #tpu.memory_space<vmem>>, %arg17: memref<1x84xf32, #tpu.memory_space<vmem>>, %arg18: memref<84x10xbf16, #tpu.memory_space<vmem>>, %arg19: memref<1x10xf32, #tpu.memory_space<vmem>>, %arg20: memref<2x10xf32, #tpu.memory_space<vmem>>) attributes {dimension_semantics = [], scalar_prefetch = 0 : i64, scratch_operands = 0 : i64, tpu.core_type = #tpu.core_type<tc>} {
    %c0 = arith.constant 0 : index
    %c0_0 = arith.constant 0 : index
    %0 = vector.load %arg0[%c0, %c0_0] : memref<16x1xi32, #tpu.memory_space<vmem>>, vector<16x1xi32>
    %1 = tpu.iota {dimensions = array<i32: 1>} : vector<16x64xi32>
    %2 = vector.broadcast %0 : vector<16x1xi32> to vector<16x64xi32>
    %3 = arith.cmpi eq, %2, %1 : vector<16x64xi32>
    %cst = arith.constant 1.000000e+00 : f32
    %cst_1 = arith.constant 0.000000e+00 : f32
    %4 = vector.broadcast %cst : f32 to vector<16x64xf32>
    %5 = vector.broadcast %cst_1 : f32 to vector<16x64xf32>
    %6 = arith.select %3, %4, %5 : vector<16x64xi1>, vector<16x64xf32>
    %c0_2 = arith.constant 0 : index
    %c0_3 = arith.constant 0 : index
    %7 = vector.load %arg2[%c0_2, %c0_3] : memref<64x1024xbf16, #tpu.memory_space<vmem>>, vector<64x1024xbf16>
    %8 = arith.truncf %6 : vector<16x64xf32> to vector<16x64xbf16>
    %cst_4 = arith.constant dense<0.000000e+00> : vector<16x1024xf32>
    %9 = tpu.matmul %8, %7, %cst_4 {dimension_numbers = #tpu.dot_dimension_numbers<[1], [0], [0], [1], [0, 0, 1, 1], [], []>} : vector<16x64xbf16>, vector<64x1024xbf16>, vector<16x1024xf32> -> vector<16x1024xf32>
    %c0_5 = arith.constant 0 : index
    %c0_6 = arith.constant 0 : index
    %10 = vector.load %arg4[%c0_5, %c0_6] : memref<1x1024xf32, #tpu.memory_space<vmem>>, vector<1x1024xf32>
    %11 = vector.broadcast %10 : vector<1x1024xf32> to vector<16x1024xf32>
    %12 = arith.addf %9, %11 : vector<16x1024xf32>
    %c0_7 = arith.constant 0 : index
    %c0_8 = arith.constant 0 : index
    %13 = vector.load %arg3[%c0_7, %c0_8] : memref<256x1024xbf16, #tpu.memory_space<vmem>>, vector<256x1024xbf16>
    %cst_9 = arith.constant 0.000000e+00 : f32
    %14 = vector.broadcast %cst_9 : f32 to vector<2x256xf32>
    %cst_10 = arith.constant 0.000000e+00 : f32
    %15 = vector.broadcast %cst_10 : f32 to vector<2x256xf32>
    %16 = vector.extract_strided_slice %12 {offsets = [0, 0], sizes = [2, 1024], strides = [1, 1]} : vector<16x1024xf32> to vector<2x1024xf32>
    %17 = arith.truncf %14 : vector<2x256xf32> to vector<2x256xbf16>
    %cst_11 = arith.constant dense<0.000000e+00> : vector<2x1024xf32>
    %18 = tpu.matmul %17, %13, %cst_11 {dimension_numbers = #tpu.dot_dimension_numbers<[1], [0], [0], [1], [0, 0, 1, 1], [], []>} : vector<2x256xbf16>, vector<256x1024xbf16>, vector<2x1024xf32> -> vector<2x1024xf32>
    %19 = arith.addf %16, %18 : vector<2x1024xf32>
    %20 = vector.extract_strided_slice %19 {offsets = [0, 0], sizes = [2, 256], strides = [1, 1]} : vector<2x1024xf32> to vector<2x256xf32>
    %21 = arith.negf %20 : vector<2x256xf32>
    %22 = math.exp %21 : vector<2x256xf32>
    %cst_12 = arith.constant 1.000000e+00 : f32
    %23 = vector.broadcast %cst_12 : f32 to vector<2x256xf32>
    %24 = arith.addf %23, %22 : vector<2x256xf32>
    %25 = arith.divf %23, %24 : vector<2x256xf32>
    %26 = vector.extract_strided_slice %19 {offsets = [0, 256], sizes = [2, 256], strides = [1, 1]} : vector<2x1024xf32> to vector<2x256xf32>
    %27 = arith.negf %26 : vector<2x256xf32>
    %28 = math.exp %27 : vector<2x256xf32>
    %cst_13 = arith.constant 1.000000e+00 : f32
    %29 = vector.broadcast %cst_13 : f32 to vector<2x256xf32>
    %30 = arith.addf %29, %28 : vector<2x256xf32>
    %31 = arith.divf %29, %30 : vector<2x256xf32>
    %32 = vector.extract_strided_slice %19 {offsets = [0, 512], sizes = [2, 256], strides = [1, 1]} : vector<2x1024xf32> to vector<2x256xf32>
    %33 = math.tanh %32 : vector<2x256xf32>
    %34 = vector.extract_strided_slice %19 {offsets = [0, 768], sizes = [2, 256], strides = [1, 1]} : vector<2x1024xf32> to vector<2x256xf32>
    %35 = arith.negf %34 : vector<2x256xf32>
    %36 = math.exp %35 : vector<2x256xf32>
    %cst_14 = arith.constant 1.000000e+00 : f32
    %37 = vector.broadcast %cst_14 : f32 to vector<2x256xf32>
    %38 = arith.addf %37, %36 : vector<2x256xf32>
    %39 = arith.divf %37, %38 : vector<2x256xf32>
    %40 = arith.mulf %31, %15 : vector<2x256xf32>
    %41 = arith.mulf %25, %33 : vector<2x256xf32>
    %42 = arith.addf %40, %41 : vector<2x256xf32>
    %43 = math.tanh %42 : vector<2x256xf32>
    %44 = arith.mulf %39, %43 : vector<2x256xf32>
    %45 = vector.extract_strided_slice %12 {offsets = [2, 0], sizes = [2, 1024], strides = [1, 1]} : vector<16x1024xf32> to vector<2x1024xf32>
    %46 = arith.truncf %44 : vector<2x256xf32> to vector<2x256xbf16>
    %cst_15 = arith.constant dense<0.000000e+00> : vector<2x1024xf32>
    %47 = tpu.matmul %46, %13, %cst_15 {dimension_numbers = #tpu.dot_dimension_numbers<[1], [0], [0], [1], [0, 0, 1, 1], [], []>} : vector<2x256xbf16>, vector<256x1024xbf16>, vector<2x1024xf32> -> vector<2x1024xf32>
    %48 = arith.addf %45, %47 : vector<2x1024xf32>
    %49 = vector.extract_strided_slice %48 {offsets = [0, 0], sizes = [2, 256], strides = [1, 1]} : vector<2x1024xf32> to vector<2x256xf32>
    %50 = arith.negf %49 : vector<2x256xf32>
    %51 = math.exp %50 : vector<2x256xf32>
    %cst_16 = arith.constant 1.000000e+00 : f32
    %52 = vector.broadcast %cst_16 : f32 to vector<2x256xf32>
    %53 = arith.addf %52, %51 : vector<2x256xf32>
    %54 = arith.divf %52, %53 : vector<2x256xf32>
    %55 = vector.extract_strided_slice %48 {offsets = [0, 256], sizes = [2, 256], strides = [1, 1]} : vector<2x1024xf32> to vector<2x256xf32>
    %56 = arith.negf %55 : vector<2x256xf32>
    %57 = math.exp %56 : vector<2x256xf32>
    %cst_17 = arith.constant 1.000000e+00 : f32
    %58 = vector.broadcast %cst_17 : f32 to vector<2x256xf32>
    %59 = arith.addf %58, %57 : vector<2x256xf32>
    %60 = arith.divf %58, %59 : vector<2x256xf32>
    %61 = vector.extract_strided_slice %48 {offsets = [0, 512], sizes = [2, 256], strides = [1, 1]} : vector<2x1024xf32> to vector<2x256xf32>
    %62 = math.tanh %61 : vector<2x256xf32>
    %63 = vector.extract_strided_slice %48 {offsets = [0, 768], sizes = [2, 256], strides = [1, 1]} : vector<2x1024xf32> to vector<2x256xf32>
    %64 = arith.negf %63 : vector<2x256xf32>
    %65 = math.exp %64 : vector<2x256xf32>
    %cst_18 = arith.constant 1.000000e+00 : f32
    %66 = vector.broadcast %cst_18 : f32 to vector<2x256xf32>
    %67 = arith.addf %66, %65 : vector<2x256xf32>
    %68 = arith.divf %66, %67 : vector<2x256xf32>
    %69 = arith.mulf %60, %42 : vector<2x256xf32>
    %70 = arith.mulf %54, %62 : vector<2x256xf32>
    %71 = arith.addf %69, %70 : vector<2x256xf32>
    %72 = math.tanh %71 : vector<2x256xf32>
    %73 = arith.mulf %68, %72 : vector<2x256xf32>
    %74 = vector.extract_strided_slice %12 {offsets = [4, 0], sizes = [2, 1024], strides = [1, 1]} : vector<16x1024xf32> to vector<2x1024xf32>
    %75 = arith.truncf %73 : vector<2x256xf32> to vector<2x256xbf16>
    %cst_19 = arith.constant dense<0.000000e+00> : vector<2x1024xf32>
    %76 = tpu.matmul %75, %13, %cst_19 {dimension_numbers = #tpu.dot_dimension_numbers<[1], [0], [0], [1], [0, 0, 1, 1], [], []>} : vector<2x256xbf16>, vector<256x1024xbf16>, vector<2x1024xf32> -> vector<2x1024xf32>
    %77 = arith.addf %74, %76 : vector<2x1024xf32>
    %78 = vector.extract_strided_slice %77 {offsets = [0, 0], sizes = [2, 256], strides = [1, 1]} : vector<2x1024xf32> to vector<2x256xf32>
    %79 = arith.negf %78 : vector<2x256xf32>
    %80 = math.exp %79 : vector<2x256xf32>
    %cst_20 = arith.constant 1.000000e+00 : f32
    %81 = vector.broadcast %cst_20 : f32 to vector<2x256xf32>
    %82 = arith.addf %81, %80 : vector<2x256xf32>
    %83 = arith.divf %81, %82 : vector<2x256xf32>
    %84 = vector.extract_strided_slice %77 {offsets = [0, 256], sizes = [2, 256], strides = [1, 1]} : vector<2x1024xf32> to vector<2x256xf32>
    %85 = arith.negf %84 : vector<2x256xf32>
    %86 = math.exp %85 : vector<2x256xf32>
    %cst_21 = arith.constant 1.000000e+00 : f32
    %87 = vector.broadcast %cst_21 : f32 to vector<2x256xf32>
    %88 = arith.addf %87, %86 : vector<2x256xf32>
    %89 = arith.divf %87, %88 : vector<2x256xf32>
    %90 = vector.extract_strided_slice %77 {offsets = [0, 512], sizes = [2, 256], strides = [1, 1]} : vector<2x1024xf32> to vector<2x256xf32>
    %91 = math.tanh %90 : vector<2x256xf32>
    %92 = vector.extract_strided_slice %77 {offsets = [0, 768], sizes = [2, 256], strides = [1, 1]} : vector<2x1024xf32> to vector<2x256xf32>
    %93 = arith.negf %92 : vector<2x256xf32>
    %94 = math.exp %93 : vector<2x256xf32>
    %cst_22 = arith.constant 1.000000e+00 : f32
    %95 = vector.broadcast %cst_22 : f32 to vector<2x256xf32>
    %96 = arith.addf %95, %94 : vector<2x256xf32>
    %97 = arith.divf %95, %96 : vector<2x256xf32>
    %98 = arith.mulf %89, %71 : vector<2x256xf32>
    %99 = arith.mulf %83, %91 : vector<2x256xf32>
    %100 = arith.addf %98, %99 : vector<2x256xf32>
    %101 = math.tanh %100 : vector<2x256xf32>
    %102 = arith.mulf %97, %101 : vector<2x256xf32>
    %103 = vector.extract_strided_slice %12 {offsets = [6, 0], sizes = [2, 1024], strides = [1, 1]} : vector<16x1024xf32> to vector<2x1024xf32>
    %104 = arith.truncf %102 : vector<2x256xf32> to vector<2x256xbf16>
    %cst_23 = arith.constant dense<0.000000e+00> : vector<2x1024xf32>
    %105 = tpu.matmul %104, %13, %cst_23 {dimension_numbers = #tpu.dot_dimension_numbers<[1], [0], [0], [1], [0, 0, 1, 1], [], []>} : vector<2x256xbf16>, vector<256x1024xbf16>, vector<2x1024xf32> -> vector<2x1024xf32>
    %106 = arith.addf %103, %105 : vector<2x1024xf32>
    %107 = vector.extract_strided_slice %106 {offsets = [0, 0], sizes = [2, 256], strides = [1, 1]} : vector<2x1024xf32> to vector<2x256xf32>
    %108 = arith.negf %107 : vector<2x256xf32>
    %109 = math.exp %108 : vector<2x256xf32>
    %cst_24 = arith.constant 1.000000e+00 : f32
    %110 = vector.broadcast %cst_24 : f32 to vector<2x256xf32>
    %111 = arith.addf %110, %109 : vector<2x256xf32>
    %112 = arith.divf %110, %111 : vector<2x256xf32>
    %113 = vector.extract_strided_slice %106 {offsets = [0, 256], sizes = [2, 256], strides = [1, 1]} : vector<2x1024xf32> to vector<2x256xf32>
    %114 = arith.negf %113 : vector<2x256xf32>
    %115 = math.exp %114 : vector<2x256xf32>
    %cst_25 = arith.constant 1.000000e+00 : f32
    %116 = vector.broadcast %cst_25 : f32 to vector<2x256xf32>
    %117 = arith.addf %116, %115 : vector<2x256xf32>
    %118 = arith.divf %116, %117 : vector<2x256xf32>
    %119 = vector.extract_strided_slice %106 {offsets = [0, 512], sizes = [2, 256], strides = [1, 1]} : vector<2x1024xf32> to vector<2x256xf32>
    %120 = math.tanh %119 : vector<2x256xf32>
    %121 = vector.extract_strided_slice %106 {offsets = [0, 768], sizes = [2, 256], strides = [1, 1]} : vector<2x1024xf32> to vector<2x256xf32>
    %122 = arith.negf %121 : vector<2x256xf32>
    %123 = math.exp %122 : vector<2x256xf32>
    %cst_26 = arith.constant 1.000000e+00 : f32
    %124 = vector.broadcast %cst_26 : f32 to vector<2x256xf32>
    %125 = arith.addf %124, %123 : vector<2x256xf32>
    %126 = arith.divf %124, %125 : vector<2x256xf32>
    %127 = arith.mulf %118, %100 : vector<2x256xf32>
    %128 = arith.mulf %112, %120 : vector<2x256xf32>
    %129 = arith.addf %127, %128 : vector<2x256xf32>
    %130 = math.tanh %129 : vector<2x256xf32>
    %131 = arith.mulf %126, %130 : vector<2x256xf32>
    %132 = vector.extract_strided_slice %12 {offsets = [8, 0], sizes = [2, 1024], strides = [1, 1]} : vector<16x1024xf32> to vector<2x1024xf32>
    %133 = arith.truncf %131 : vector<2x256xf32> to vector<2x256xbf16>
    %cst_27 = arith.constant dense<0.000000e+00> : vector<2x1024xf32>
    %134 = tpu.matmul %133, %13, %cst_27 {dimension_numbers = #tpu.dot_dimension_numbers<[1], [0], [0], [1], [0, 0, 1, 1], [], []>} : vector<2x256xbf16>, vector<256x1024xbf16>, vector<2x1024xf32> -> vector<2x1024xf32>
    %135 = arith.addf %132, %134 : vector<2x1024xf32>
    %136 = vector.extract_strided_slice %135 {offsets = [0, 0], sizes = [2, 256], strides = [1, 1]} : vector<2x1024xf32> to vector<2x256xf32>
    %137 = arith.negf %136 : vector<2x256xf32>
    %138 = math.exp %137 : vector<2x256xf32>
    %cst_28 = arith.constant 1.000000e+00 : f32
    %139 = vector.broadcast %cst_28 : f32 to vector<2x256xf32>
    %140 = arith.addf %139, %138 : vector<2x256xf32>
    %141 = arith.divf %139, %140 : vector<2x256xf32>
    %142 = vector.extract_strided_slice %135 {offsets = [0, 256], sizes = [2, 256], strides = [1, 1]} : vector<2x1024xf32> to vector<2x256xf32>
    %143 = arith.negf %142 : vector<2x256xf32>
    %144 = math.exp %143 : vector<2x256xf32>
    %cst_29 = arith.constant 1.000000e+00 : f32
    %145 = vector.broadcast %cst_29 : f32 to vector<2x256xf32>
    %146 = arith.addf %145, %144 : vector<2x256xf32>
    %147 = arith.divf %145, %146 : vector<2x256xf32>
    %148 = vector.extract_strided_slice %135 {offsets = [0, 512], sizes = [2, 256], strides = [1, 1]} : vector<2x1024xf32> to vector<2x256xf32>
    %149 = math.tanh %148 : vector<2x256xf32>
    %150 = vector.extract_strided_slice %135 {offsets = [0, 768], sizes = [2, 256], strides = [1, 1]} : vector<2x1024xf32> to vector<2x256xf32>
    %151 = arith.negf %150 : vector<2x256xf32>
    %152 = math.exp %151 : vector<2x256xf32>
    %cst_30 = arith.constant 1.000000e+00 : f32
    %153 = vector.broadcast %cst_30 : f32 to vector<2x256xf32>
    %154 = arith.addf %153, %152 : vector<2x256xf32>
    %155 = arith.divf %153, %154 : vector<2x256xf32>
    %156 = arith.mulf %147, %129 : vector<2x256xf32>
    %157 = arith.mulf %141, %149 : vector<2x256xf32>
    %158 = arith.addf %156, %157 : vector<2x256xf32>
    %159 = math.tanh %158 : vector<2x256xf32>
    %160 = arith.mulf %155, %159 : vector<2x256xf32>
    %161 = vector.extract_strided_slice %12 {offsets = [10, 0], sizes = [2, 1024], strides = [1, 1]} : vector<16x1024xf32> to vector<2x1024xf32>
    %162 = arith.truncf %160 : vector<2x256xf32> to vector<2x256xbf16>
    %cst_31 = arith.constant dense<0.000000e+00> : vector<2x1024xf32>
    %163 = tpu.matmul %162, %13, %cst_31 {dimension_numbers = #tpu.dot_dimension_numbers<[1], [0], [0], [1], [0, 0, 1, 1], [], []>} : vector<2x256xbf16>, vector<256x1024xbf16>, vector<2x1024xf32> -> vector<2x1024xf32>
    %164 = arith.addf %161, %163 : vector<2x1024xf32>
    %165 = vector.extract_strided_slice %164 {offsets = [0, 0], sizes = [2, 256], strides = [1, 1]} : vector<2x1024xf32> to vector<2x256xf32>
    %166 = arith.negf %165 : vector<2x256xf32>
    %167 = math.exp %166 : vector<2x256xf32>
    %cst_32 = arith.constant 1.000000e+00 : f32
    %168 = vector.broadcast %cst_32 : f32 to vector<2x256xf32>
    %169 = arith.addf %168, %167 : vector<2x256xf32>
    %170 = arith.divf %168, %169 : vector<2x256xf32>
    %171 = vector.extract_strided_slice %164 {offsets = [0, 256], sizes = [2, 256], strides = [1, 1]} : vector<2x1024xf32> to vector<2x256xf32>
    %172 = arith.negf %171 : vector<2x256xf32>
    %173 = math.exp %172 : vector<2x256xf32>
    %cst_33 = arith.constant 1.000000e+00 : f32
    %174 = vector.broadcast %cst_33 : f32 to vector<2x256xf32>
    %175 = arith.addf %174, %173 : vector<2x256xf32>
    %176 = arith.divf %174, %175 : vector<2x256xf32>
    %177 = vector.extract_strided_slice %164 {offsets = [0, 512], sizes = [2, 256], strides = [1, 1]} : vector<2x1024xf32> to vector<2x256xf32>
    %178 = math.tanh %177 : vector<2x256xf32>
    %179 = vector.extract_strided_slice %164 {offsets = [0, 768], sizes = [2, 256], strides = [1, 1]} : vector<2x1024xf32> to vector<2x256xf32>
    %180 = arith.negf %179 : vector<2x256xf32>
    %181 = math.exp %180 : vector<2x256xf32>
    %cst_34 = arith.constant 1.000000e+00 : f32
    %182 = vector.broadcast %cst_34 : f32 to vector<2x256xf32>
    %183 = arith.addf %182, %181 : vector<2x256xf32>
    %184 = arith.divf %182, %183 : vector<2x256xf32>
    %185 = arith.mulf %176, %158 : vector<2x256xf32>
    %186 = arith.mulf %170, %178 : vector<2x256xf32>
    %187 = arith.addf %185, %186 : vector<2x256xf32>
    %188 = math.tanh %187 : vector<2x256xf32>
    %189 = arith.mulf %184, %188 : vector<2x256xf32>
    %190 = vector.extract_strided_slice %12 {offsets = [12, 0], sizes = [2, 1024], strides = [1, 1]} : vector<16x1024xf32> to vector<2x1024xf32>
    %191 = arith.truncf %189 : vector<2x256xf32> to vector<2x256xbf16>
    %cst_35 = arith.constant dense<0.000000e+00> : vector<2x1024xf32>
    %192 = tpu.matmul %191, %13, %cst_35 {dimension_numbers = #tpu.dot_dimension_numbers<[1], [0], [0], [1], [0, 0, 1, 1], [], []>} : vector<2x256xbf16>, vector<256x1024xbf16>, vector<2x1024xf32> -> vector<2x1024xf32>
    %193 = arith.addf %190, %192 : vector<2x1024xf32>
    %194 = vector.extract_strided_slice %193 {offsets = [0, 0], sizes = [2, 256], strides = [1, 1]} : vector<2x1024xf32> to vector<2x256xf32>
    %195 = arith.negf %194 : vector<2x256xf32>
    %196 = math.exp %195 : vector<2x256xf32>
    %cst_36 = arith.constant 1.000000e+00 : f32
    %197 = vector.broadcast %cst_36 : f32 to vector<2x256xf32>
    %198 = arith.addf %197, %196 : vector<2x256xf32>
    %199 = arith.divf %197, %198 : vector<2x256xf32>
    %200 = vector.extract_strided_slice %193 {offsets = [0, 256], sizes = [2, 256], strides = [1, 1]} : vector<2x1024xf32> to vector<2x256xf32>
    %201 = arith.negf %200 : vector<2x256xf32>
    %202 = math.exp %201 : vector<2x256xf32>
    %cst_37 = arith.constant 1.000000e+00 : f32
    %203 = vector.broadcast %cst_37 : f32 to vector<2x256xf32>
    %204 = arith.addf %203, %202 : vector<2x256xf32>
    %205 = arith.divf %203, %204 : vector<2x256xf32>
    %206 = vector.extract_strided_slice %193 {offsets = [0, 512], sizes = [2, 256], strides = [1, 1]} : vector<2x1024xf32> to vector<2x256xf32>
    %207 = math.tanh %206 : vector<2x256xf32>
    %208 = vector.extract_strided_slice %193 {offsets = [0, 768], sizes = [2, 256], strides = [1, 1]} : vector<2x1024xf32> to vector<2x256xf32>
    %209 = arith.negf %208 : vector<2x256xf32>
    %210 = math.exp %209 : vector<2x256xf32>
    %cst_38 = arith.constant 1.000000e+00 : f32
    %211 = vector.broadcast %cst_38 : f32 to vector<2x256xf32>
    %212 = arith.addf %211, %210 : vector<2x256xf32>
    %213 = arith.divf %211, %212 : vector<2x256xf32>
    %214 = arith.mulf %205, %187 : vector<2x256xf32>
    %215 = arith.mulf %199, %207 : vector<2x256xf32>
    %216 = arith.addf %214, %215 : vector<2x256xf32>
    %217 = math.tanh %216 : vector<2x256xf32>
    %218 = arith.mulf %213, %217 : vector<2x256xf32>
    %219 = vector.extract_strided_slice %12 {offsets = [14, 0], sizes = [2, 1024], strides = [1, 1]} : vector<16x1024xf32> to vector<2x1024xf32>
    %220 = arith.truncf %218 : vector<2x256xf32> to vector<2x256xbf16>
    %cst_39 = arith.constant dense<0.000000e+00> : vector<2x1024xf32>
    %221 = tpu.matmul %220, %13, %cst_39 {dimension_numbers = #tpu.dot_dimension_numbers<[1], [0], [0], [1], [0, 0, 1, 1], [], []>} : vector<2x256xbf16>, vector<256x1024xbf16>, vector<2x1024xf32> -> vector<2x1024xf32>
    %222 = arith.addf %219, %221 : vector<2x1024xf32>
    %223 = vector.extract_strided_slice %222 {offsets = [0, 0], sizes = [2, 256], strides = [1, 1]} : vector<2x1024xf32> to vector<2x256xf32>
    %224 = arith.negf %223 : vector<2x256xf32>
    %225 = math.exp %224 : vector<2x256xf32>
    %cst_40 = arith.constant 1.000000e+00 : f32
    %226 = vector.broadcast %cst_40 : f32 to vector<2x256xf32>
    %227 = arith.addf %226, %225 : vector<2x256xf32>
    %228 = arith.divf %226, %227 : vector<2x256xf32>
    %229 = vector.extract_strided_slice %222 {offsets = [0, 256], sizes = [2, 256], strides = [1, 1]} : vector<2x1024xf32> to vector<2x256xf32>
    %230 = arith.negf %229 : vector<2x256xf32>
    %231 = math.exp %230 : vector<2x256xf32>
    %cst_41 = arith.constant 1.000000e+00 : f32
    %232 = vector.broadcast %cst_41 : f32 to vector<2x256xf32>
    %233 = arith.addf %232, %231 : vector<2x256xf32>
    %234 = arith.divf %232, %233 : vector<2x256xf32>
    %235 = vector.extract_strided_slice %222 {offsets = [0, 512], sizes = [2, 256], strides = [1, 1]} : vector<2x1024xf32> to vector<2x256xf32>
    %236 = math.tanh %235 : vector<2x256xf32>
    %237 = vector.extract_strided_slice %222 {offsets = [0, 768], sizes = [2, 256], strides = [1, 1]} : vector<2x1024xf32> to vector<2x256xf32>
    %238 = arith.negf %237 : vector<2x256xf32>
    %239 = math.exp %238 : vector<2x256xf32>
    %cst_42 = arith.constant 1.000000e+00 : f32
    %240 = vector.broadcast %cst_42 : f32 to vector<2x256xf32>
    %241 = arith.addf %240, %239 : vector<2x256xf32>
    %242 = arith.divf %240, %241 : vector<2x256xf32>
    %243 = arith.mulf %234, %216 : vector<2x256xf32>
    %244 = arith.mulf %228, %236 : vector<2x256xf32>
    %245 = arith.addf %243, %244 : vector<2x256xf32>
    %246 = math.tanh %245 : vector<2x256xf32>
    %247 = arith.mulf %242, %246 : vector<2x256xf32>
    %c0_43 = arith.constant 0 : index
    %c0_44 = arith.constant 0 : index
    %248 = vector.load %arg1[%c0_43, %c0_44] : memref<64x96xf32, #tpu.memory_space<vmem>>, vector<64x96xf32>
    %249 = arith.truncf %248 : vector<64x96xf32> to vector<64x96xbf16>
    %cst_45 = arith.constant 0.000000e+00 : f32
    %250 = vector.broadcast %cst_45 : f32 to vector<56x168xf32>
    %251 = vector.extract_strided_slice %249 {offsets = [0, 0], sizes = [56, 96], strides = [1, 1]} : vector<64x96xbf16> to vector<56x96xbf16>
    %c0_46 = arith.constant 0 : index
    %c0_47 = arith.constant 0 : index
    %c0_48 = arith.constant 0 : index
    %252 = vector.load %arg5[%c0_46, %c0_47, %c0_48] : memref<5x96x168xbf16, #tpu.memory_space<vmem>>, vector<1x96x168xbf16>
    %253 = vector.shape_cast %252 : vector<1x96x168xbf16> to vector<96x168xbf16>
    %cst_49 = arith.constant dense<0.000000e+00> : vector<56x168xf32>
    %254 = tpu.matmul %251, %253, %cst_49 {dimension_numbers = #tpu.dot_dimension_numbers<[1], [0], [0], [1], [0, 0, 1, 1], [], []>} : vector<56x96xbf16>, vector<96x168xbf16>, vector<56x168xf32> -> vector<56x168xf32>
    %255 = arith.addf %250, %254 : vector<56x168xf32>
    %256 = vector.extract_strided_slice %249 {offsets = [2, 0], sizes = [56, 96], strides = [1, 1]} : vector<64x96xbf16> to vector<56x96xbf16>
    %c1 = arith.constant 1 : index
    %c0_50 = arith.constant 0 : index
    %c0_51 = arith.constant 0 : index
    %257 = vector.load %arg5[%c1, %c0_50, %c0_51] : memref<5x96x168xbf16, #tpu.memory_space<vmem>>, vector<1x96x168xbf16>
    %258 = vector.shape_cast %257 : vector<1x96x168xbf16> to vector<96x168xbf16>
    %cst_52 = arith.constant dense<0.000000e+00> : vector<56x168xf32>
    %259 = tpu.matmul %256, %258, %cst_52 {dimension_numbers = #tpu.dot_dimension_numbers<[1], [0], [0], [1], [0, 0, 1, 1], [], []>} : vector<56x96xbf16>, vector<96x168xbf16>, vector<56x168xf32> -> vector<56x168xf32>
    %260 = arith.addf %255, %259 : vector<56x168xf32>
    %261 = vector.extract_strided_slice %249 {offsets = [4, 0], sizes = [56, 96], strides = [1, 1]} : vector<64x96xbf16> to vector<56x96xbf16>
    %c2 = arith.constant 2 : index
    %c0_53 = arith.constant 0 : index
    %c0_54 = arith.constant 0 : index
    %262 = vector.load %arg5[%c2, %c0_53, %c0_54] : memref<5x96x168xbf16, #tpu.memory_space<vmem>>, vector<1x96x168xbf16>
    %263 = vector.shape_cast %262 : vector<1x96x168xbf16> to vector<96x168xbf16>
    %cst_55 = arith.constant dense<0.000000e+00> : vector<56x168xf32>
    %264 = tpu.matmul %261, %263, %cst_55 {dimension_numbers = #tpu.dot_dimension_numbers<[1], [0], [0], [1], [0, 0, 1, 1], [], []>} : vector<56x96xbf16>, vector<96x168xbf16>, vector<56x168xf32> -> vector<56x168xf32>
    %265 = arith.addf %260, %264 : vector<56x168xf32>
    %266 = vector.extract_strided_slice %249 {offsets = [6, 0], sizes = [56, 96], strides = [1, 1]} : vector<64x96xbf16> to vector<56x96xbf16>
    %c3 = arith.constant 3 : index
    %c0_56 = arith.constant 0 : index
    %c0_57 = arith.constant 0 : index
    %267 = vector.load %arg5[%c3, %c0_56, %c0_57] : memref<5x96x168xbf16, #tpu.memory_space<vmem>>, vector<1x96x168xbf16>
    %268 = vector.shape_cast %267 : vector<1x96x168xbf16> to vector<96x168xbf16>
    %cst_58 = arith.constant dense<0.000000e+00> : vector<56x168xf32>
    %269 = tpu.matmul %266, %268, %cst_58 {dimension_numbers = #tpu.dot_dimension_numbers<[1], [0], [0], [1], [0, 0, 1, 1], [], []>} : vector<56x96xbf16>, vector<96x168xbf16>, vector<56x168xf32> -> vector<56x168xf32>
    %270 = arith.addf %265, %269 : vector<56x168xf32>
    %271 = vector.extract_strided_slice %249 {offsets = [8, 0], sizes = [56, 96], strides = [1, 1]} : vector<64x96xbf16> to vector<56x96xbf16>
    %c4 = arith.constant 4 : index
    %c0_59 = arith.constant 0 : index
    %c0_60 = arith.constant 0 : index
    %272 = vector.load %arg5[%c4, %c0_59, %c0_60] : memref<5x96x168xbf16, #tpu.memory_space<vmem>>, vector<1x96x168xbf16>
    %273 = vector.shape_cast %272 : vector<1x96x168xbf16> to vector<96x168xbf16>
    %cst_61 = arith.constant dense<0.000000e+00> : vector<56x168xf32>
    %274 = tpu.matmul %271, %273, %cst_61 {dimension_numbers = #tpu.dot_dimension_numbers<[1], [0], [0], [1], [0, 0, 1, 1], [], []>} : vector<56x96xbf16>, vector<96x168xbf16>, vector<56x168xf32> -> vector<56x168xf32>
    %275 = arith.addf %270, %274 : vector<56x168xf32>
    %c0_62 = arith.constant 0 : index
    %c0_63 = arith.constant 0 : index
    %276 = vector.load %arg6[%c0_62, %c0_63] : memref<1x168xf32, #tpu.memory_space<vmem>>, vector<1x168xf32>
    %277 = vector.broadcast %276 : vector<1x168xf32> to vector<56x168xf32>
    %278 = arith.addf %275, %277 : vector<56x168xf32>
    %cst_64 = arith.constant 0.000000e+00 : f32
    %279 = vector.broadcast %cst_64 : f32 to vector<56x168xf32>
    %280 = arith.maximumf %278, %279 : vector<56x168xf32>
    %c0_65 = arith.constant 0 : index
    %c0_66 = arith.constant 0 : index
    %c0_67 = arith.constant 0 : index
    %281 = vector.load %arg7[%c0_65, %c0_66, %c0_67] : memref<2x28x56xbf16, #tpu.memory_space<vmem>>, vector<1x28x56xbf16>
    %282 = vector.shape_cast %281 : vector<1x28x56xbf16> to vector<28x56xbf16>
    %283 = arith.truncf %280 : vector<56x168xf32> to vector<56x168xbf16>
    %cst_68 = arith.constant dense<0.000000e+00> : vector<28x168xf32>
    %284 = tpu.matmul %282, %283, %cst_68 {dimension_numbers = #tpu.dot_dimension_numbers<[1], [0], [0], [1], [0, 0, 1, 1], [], []>} : vector<28x56xbf16>, vector<56x168xbf16>, vector<28x168xf32> -> vector<28x168xf32>
    %c1_69 = arith.constant 1 : index
    %c0_70 = arith.constant 0 : index
    %c0_71 = arith.constant 0 : index
    %285 = vector.load %arg7[%c1_69, %c0_70, %c0_71] : memref<2x28x56xbf16, #tpu.memory_space<vmem>>, vector<1x28x56xbf16>
    %286 = vector.shape_cast %285 : vector<1x28x56xbf16> to vector<28x56xbf16>
    %287 = arith.truncf %280 : vector<56x168xf32> to vector<56x168xbf16>
    %cst_72 = arith.constant dense<0.000000e+00> : vector<28x168xf32>
    %288 = tpu.matmul %286, %287, %cst_72 {dimension_numbers = #tpu.dot_dimension_numbers<[1], [0], [0], [1], [0, 0, 1, 1], [], []>} : vector<28x56xbf16>, vector<56x168xbf16>, vector<28x168xf32> -> vector<28x168xf32>
    %289 = arith.maximumf %284, %288 : vector<28x168xf32>
    %c0_73 = arith.constant 0 : index
    %c0_74 = arith.constant 0 : index
    %c0_75 = arith.constant 0 : index
    %290 = vector.load %arg8[%c0_73, %c0_74, %c0_75] : memref<2x168x84xbf16, #tpu.memory_space<vmem>>, vector<1x168x84xbf16>
    %291 = vector.shape_cast %290 : vector<1x168x84xbf16> to vector<168x84xbf16>
    %292 = arith.truncf %289 : vector<28x168xf32> to vector<28x168xbf16>
    %cst_76 = arith.constant dense<0.000000e+00> : vector<28x84xf32>
    %293 = tpu.matmul %292, %291, %cst_76 {dimension_numbers = #tpu.dot_dimension_numbers<[1], [0], [0], [1], [0, 0, 1, 1], [], []>} : vector<28x168xbf16>, vector<168x84xbf16>, vector<28x84xf32> -> vector<28x84xf32>
    %c1_77 = arith.constant 1 : index
    %c0_78 = arith.constant 0 : index
    %c0_79 = arith.constant 0 : index
    %294 = vector.load %arg8[%c1_77, %c0_78, %c0_79] : memref<2x168x84xbf16, #tpu.memory_space<vmem>>, vector<1x168x84xbf16>
    %295 = vector.shape_cast %294 : vector<1x168x84xbf16> to vector<168x84xbf16>
    %296 = arith.truncf %289 : vector<28x168xf32> to vector<28x168xbf16>
    %cst_80 = arith.constant dense<0.000000e+00> : vector<28x84xf32>
    %297 = tpu.matmul %296, %295, %cst_80 {dimension_numbers = #tpu.dot_dimension_numbers<[1], [0], [0], [1], [0, 0, 1, 1], [], []>} : vector<28x168xbf16>, vector<168x84xbf16>, vector<28x84xf32> -> vector<28x84xf32>
    %298 = arith.maximumf %293, %297 : vector<28x84xf32>
    %299 = arith.truncf %298 : vector<28x84xf32> to vector<28x84xbf16>
    %cst_81 = arith.constant 0.000000e+00 : f32
    %300 = vector.broadcast %cst_81 : f32 to vector<20x160xf32>
    %301 = vector.extract_strided_slice %299 {offsets = [0, 0], sizes = [20, 84], strides = [1, 1]} : vector<28x84xbf16> to vector<20x84xbf16>
    %c0_82 = arith.constant 0 : index
    %c0_83 = arith.constant 0 : index
    %c0_84 = arith.constant 0 : index
    %302 = vector.load %arg9[%c0_82, %c0_83, %c0_84] : memref<5x84x160xbf16, #tpu.memory_space<vmem>>, vector<1x84x160xbf16>
    %303 = vector.shape_cast %302 : vector<1x84x160xbf16> to vector<84x160xbf16>
    %cst_85 = arith.constant dense<0.000000e+00> : vector<20x160xf32>
    %304 = tpu.matmul %301, %303, %cst_85 {dimension_numbers = #tpu.dot_dimension_numbers<[1], [0], [0], [1], [0, 0, 1, 1], [], []>} : vector<20x84xbf16>, vector<84x160xbf16>, vector<20x160xf32> -> vector<20x160xf32>
    %305 = arith.addf %300, %304 : vector<20x160xf32>
    %306 = vector.extract_strided_slice %299 {offsets = [2, 0], sizes = [20, 84], strides = [1, 1]} : vector<28x84xbf16> to vector<20x84xbf16>
    %c1_86 = arith.constant 1 : index
    %c0_87 = arith.constant 0 : index
    %c0_88 = arith.constant 0 : index
    %307 = vector.load %arg9[%c1_86, %c0_87, %c0_88] : memref<5x84x160xbf16, #tpu.memory_space<vmem>>, vector<1x84x160xbf16>
    %308 = vector.shape_cast %307 : vector<1x84x160xbf16> to vector<84x160xbf16>
    %cst_89 = arith.constant dense<0.000000e+00> : vector<20x160xf32>
    %309 = tpu.matmul %306, %308, %cst_89 {dimension_numbers = #tpu.dot_dimension_numbers<[1], [0], [0], [1], [0, 0, 1, 1], [], []>} : vector<20x84xbf16>, vector<84x160xbf16>, vector<20x160xf32> -> vector<20x160xf32>
    %310 = arith.addf %305, %309 : vector<20x160xf32>
    %311 = vector.extract_strided_slice %299 {offsets = [4, 0], sizes = [20, 84], strides = [1, 1]} : vector<28x84xbf16> to vector<20x84xbf16>
    %c2_90 = arith.constant 2 : index
    %c0_91 = arith.constant 0 : index
    %c0_92 = arith.constant 0 : index
    %312 = vector.load %arg9[%c2_90, %c0_91, %c0_92] : memref<5x84x160xbf16, #tpu.memory_space<vmem>>, vector<1x84x160xbf16>
    %313 = vector.shape_cast %312 : vector<1x84x160xbf16> to vector<84x160xbf16>
    %cst_93 = arith.constant dense<0.000000e+00> : vector<20x160xf32>
    %314 = tpu.matmul %311, %313, %cst_93 {dimension_numbers = #tpu.dot_dimension_numbers<[1], [0], [0], [1], [0, 0, 1, 1], [], []>} : vector<20x84xbf16>, vector<84x160xbf16>, vector<20x160xf32> -> vector<20x160xf32>
    %315 = arith.addf %310, %314 : vector<20x160xf32>
    %316 = vector.extract_strided_slice %299 {offsets = [6, 0], sizes = [20, 84], strides = [1, 1]} : vector<28x84xbf16> to vector<20x84xbf16>
    %c3_94 = arith.constant 3 : index
    %c0_95 = arith.constant 0 : index
    %c0_96 = arith.constant 0 : index
    %317 = vector.load %arg9[%c3_94, %c0_95, %c0_96] : memref<5x84x160xbf16, #tpu.memory_space<vmem>>, vector<1x84x160xbf16>
    %318 = vector.shape_cast %317 : vector<1x84x160xbf16> to vector<84x160xbf16>
    %cst_97 = arith.constant dense<0.000000e+00> : vector<20x160xf32>
    %319 = tpu.matmul %316, %318, %cst_97 {dimension_numbers = #tpu.dot_dimension_numbers<[1], [0], [0], [1], [0, 0, 1, 1], [], []>} : vector<20x84xbf16>, vector<84x160xbf16>, vector<20x160xf32> -> vector<20x160xf32>
    %320 = arith.addf %315, %319 : vector<20x160xf32>
    %321 = vector.extract_strided_slice %299 {offsets = [8, 0], sizes = [20, 84], strides = [1, 1]} : vector<28x84xbf16> to vector<20x84xbf16>
    %c4_98 = arith.constant 4 : index
    %c0_99 = arith.constant 0 : index
    %c0_100 = arith.constant 0 : index
    %322 = vector.load %arg9[%c4_98, %c0_99, %c0_100] : memref<5x84x160xbf16, #tpu.memory_space<vmem>>, vector<1x84x160xbf16>
    %323 = vector.shape_cast %322 : vector<1x84x160xbf16> to vector<84x160xbf16>
    %cst_101 = arith.constant dense<0.000000e+00> : vector<20x160xf32>
    %324 = tpu.matmul %321, %323, %cst_101 {dimension_numbers = #tpu.dot_dimension_numbers<[1], [0], [0], [1], [0, 0, 1, 1], [], []>} : vector<20x84xbf16>, vector<84x160xbf16>, vector<20x160xf32> -> vector<20x160xf32>
    %325 = arith.addf %320, %324 : vector<20x160xf32>
    %c0_102 = arith.constant 0 : index
    %c0_103 = arith.constant 0 : index
    %326 = vector.load %arg10[%c0_102, %c0_103] : memref<1x160xf32, #tpu.memory_space<vmem>>, vector<1x160xf32>
    %327 = vector.broadcast %326 : vector<1x160xf32> to vector<20x160xf32>
    %328 = arith.addf %325, %327 : vector<20x160xf32>
    %cst_104 = arith.constant 0.000000e+00 : f32
    %329 = vector.broadcast %cst_104 : f32 to vector<20x160xf32>
    %330 = arith.maximumf %328, %329 : vector<20x160xf32>
    %c0_105 = arith.constant 0 : index
    %c0_106 = arith.constant 0 : index
    %c0_107 = arith.constant 0 : index
    %331 = vector.load %arg11[%c0_105, %c0_106, %c0_107] : memref<2x10x20xbf16, #tpu.memory_space<vmem>>, vector<1x10x20xbf16>
    %332 = vector.shape_cast %331 : vector<1x10x20xbf16> to vector<10x20xbf16>
    %333 = arith.truncf %330 : vector<20x160xf32> to vector<20x160xbf16>
    %cst_108 = arith.constant dense<0.000000e+00> : vector<10x160xf32>
    %334 = tpu.matmul %332, %333, %cst_108 {dimension_numbers = #tpu.dot_dimension_numbers<[1], [0], [0], [1], [0, 0, 1, 1], [], []>} : vector<10x20xbf16>, vector<20x160xbf16>, vector<10x160xf32> -> vector<10x160xf32>
    %c1_109 = arith.constant 1 : index
    %c0_110 = arith.constant 0 : index
    %c0_111 = arith.constant 0 : index
    %335 = vector.load %arg11[%c1_109, %c0_110, %c0_111] : memref<2x10x20xbf16, #tpu.memory_space<vmem>>, vector<1x10x20xbf16>
    %336 = vector.shape_cast %335 : vector<1x10x20xbf16> to vector<10x20xbf16>
    %337 = arith.truncf %330 : vector<20x160xf32> to vector<20x160xbf16>
    %cst_112 = arith.constant dense<0.000000e+00> : vector<10x160xf32>
    %338 = tpu.matmul %336, %337, %cst_112 {dimension_numbers = #tpu.dot_dimension_numbers<[1], [0], [0], [1], [0, 0, 1, 1], [], []>} : vector<10x20xbf16>, vector<20x160xbf16>, vector<10x160xf32> -> vector<10x160xf32>
    %339 = arith.maximumf %334, %338 : vector<10x160xf32>
    %c0_113 = arith.constant 0 : index
    %c0_114 = arith.constant 0 : index
    %c0_115 = arith.constant 0 : index
    %340 = vector.load %arg12[%c0_113, %c0_114, %c0_115] : memref<2x160x80xbf16, #tpu.memory_space<vmem>>, vector<1x160x80xbf16>
    %341 = vector.shape_cast %340 : vector<1x160x80xbf16> to vector<160x80xbf16>
    %342 = arith.truncf %339 : vector<10x160xf32> to vector<10x160xbf16>
    %cst_116 = arith.constant dense<0.000000e+00> : vector<10x80xf32>
    %343 = tpu.matmul %342, %341, %cst_116 {dimension_numbers = #tpu.dot_dimension_numbers<[1], [0], [0], [1], [0, 0, 1, 1], [], []>} : vector<10x160xbf16>, vector<160x80xbf16>, vector<10x80xf32> -> vector<10x80xf32>
    %c1_117 = arith.constant 1 : index
    %c0_118 = arith.constant 0 : index
    %c0_119 = arith.constant 0 : index
    %344 = vector.load %arg12[%c1_117, %c0_118, %c0_119] : memref<2x160x80xbf16, #tpu.memory_space<vmem>>, vector<1x160x80xbf16>
    %345 = vector.shape_cast %344 : vector<1x160x80xbf16> to vector<160x80xbf16>
    %346 = arith.truncf %339 : vector<10x160xf32> to vector<10x160xbf16>
    %cst_120 = arith.constant dense<0.000000e+00> : vector<10x80xf32>
    %347 = tpu.matmul %346, %345, %cst_120 {dimension_numbers = #tpu.dot_dimension_numbers<[1], [0], [0], [1], [0, 0, 1, 1], [], []>} : vector<10x160xbf16>, vector<160x80xbf16>, vector<10x80xf32> -> vector<10x80xf32>
    %348 = arith.maximumf %343, %347 : vector<10x80xf32>
    %349 = arith.truncf %348 : vector<10x80xf32> to vector<10x80xbf16>
    %c0_121 = arith.constant 0 : index
    %c0_122 = arith.constant 0 : index
    %350 = vector.load %arg14[%c0_121, %c0_122] : memref<1x120xf32, #tpu.memory_space<vmem>>, vector<1x120xf32>
    %351 = vector.extract_strided_slice %349 {offsets = [0, 0], sizes = [2, 80], strides = [1, 1]} : vector<10x80xbf16> to vector<2x80xbf16>
    %c0_123 = arith.constant 0 : index
    %c0_124 = arith.constant 0 : index
    %c0_125 = arith.constant 0 : index
    %352 = vector.load %arg13[%c0_123, %c0_124, %c0_125] : memref<5x80x120xbf16, #tpu.memory_space<vmem>>, vector<1x80x120xbf16>
    %353 = vector.shape_cast %352 : vector<1x80x120xbf16> to vector<80x120xbf16>
    %cst_126 = arith.constant dense<0.000000e+00> : vector<2x120xf32>
    %354 = tpu.matmul %351, %353, %cst_126 {dimension_numbers = #tpu.dot_dimension_numbers<[1], [0], [0], [1], [0, 0, 1, 1], [], []>} : vector<2x80xbf16>, vector<80x120xbf16>, vector<2x120xf32> -> vector<2x120xf32>
    %355 = vector.broadcast %350 : vector<1x120xf32> to vector<2x120xf32>
    %356 = arith.addf %355, %354 : vector<2x120xf32>
    %357 = vector.extract_strided_slice %349 {offsets = [2, 0], sizes = [2, 80], strides = [1, 1]} : vector<10x80xbf16> to vector<2x80xbf16>
    %c1_127 = arith.constant 1 : index
    %c0_128 = arith.constant 0 : index
    %c0_129 = arith.constant 0 : index
    %358 = vector.load %arg13[%c1_127, %c0_128, %c0_129] : memref<5x80x120xbf16, #tpu.memory_space<vmem>>, vector<1x80x120xbf16>
    %359 = vector.shape_cast %358 : vector<1x80x120xbf16> to vector<80x120xbf16>
    %cst_130 = arith.constant dense<0.000000e+00> : vector<2x120xf32>
    %360 = tpu.matmul %357, %359, %cst_130 {dimension_numbers = #tpu.dot_dimension_numbers<[1], [0], [0], [1], [0, 0, 1, 1], [], []>} : vector<2x80xbf16>, vector<80x120xbf16>, vector<2x120xf32> -> vector<2x120xf32>
    %361 = arith.addf %356, %360 : vector<2x120xf32>
    %362 = vector.extract_strided_slice %349 {offsets = [4, 0], sizes = [2, 80], strides = [1, 1]} : vector<10x80xbf16> to vector<2x80xbf16>
    %c2_131 = arith.constant 2 : index
    %c0_132 = arith.constant 0 : index
    %c0_133 = arith.constant 0 : index
    %363 = vector.load %arg13[%c2_131, %c0_132, %c0_133] : memref<5x80x120xbf16, #tpu.memory_space<vmem>>, vector<1x80x120xbf16>
    %364 = vector.shape_cast %363 : vector<1x80x120xbf16> to vector<80x120xbf16>
    %cst_134 = arith.constant dense<0.000000e+00> : vector<2x120xf32>
    %365 = tpu.matmul %362, %364, %cst_134 {dimension_numbers = #tpu.dot_dimension_numbers<[1], [0], [0], [1], [0, 0, 1, 1], [], []>} : vector<2x80xbf16>, vector<80x120xbf16>, vector<2x120xf32> -> vector<2x120xf32>
    %366 = arith.addf %361, %365 : vector<2x120xf32>
    %367 = vector.extract_strided_slice %349 {offsets = [6, 0], sizes = [2, 80], strides = [1, 1]} : vector<10x80xbf16> to vector<2x80xbf16>
    %c3_135 = arith.constant 3 : index
    %c0_136 = arith.constant 0 : index
    %c0_137 = arith.constant 0 : index
    %368 = vector.load %arg13[%c3_135, %c0_136, %c0_137] : memref<5x80x120xbf16, #tpu.memory_space<vmem>>, vector<1x80x120xbf16>
    %369 = vector.shape_cast %368 : vector<1x80x120xbf16> to vector<80x120xbf16>
    %cst_138 = arith.constant dense<0.000000e+00> : vector<2x120xf32>
    %370 = tpu.matmul %367, %369, %cst_138 {dimension_numbers = #tpu.dot_dimension_numbers<[1], [0], [0], [1], [0, 0, 1, 1], [], []>} : vector<2x80xbf16>, vector<80x120xbf16>, vector<2x120xf32> -> vector<2x120xf32>
    %371 = arith.addf %366, %370 : vector<2x120xf32>
    %372 = vector.extract_strided_slice %349 {offsets = [8, 0], sizes = [2, 80], strides = [1, 1]} : vector<10x80xbf16> to vector<2x80xbf16>
    %c4_139 = arith.constant 4 : index
    %c0_140 = arith.constant 0 : index
    %c0_141 = arith.constant 0 : index
    %373 = vector.load %arg13[%c4_139, %c0_140, %c0_141] : memref<5x80x120xbf16, #tpu.memory_space<vmem>>, vector<1x80x120xbf16>
    %374 = vector.shape_cast %373 : vector<1x80x120xbf16> to vector<80x120xbf16>
    %cst_142 = arith.constant dense<0.000000e+00> : vector<2x120xf32>
    %375 = tpu.matmul %372, %374, %cst_142 {dimension_numbers = #tpu.dot_dimension_numbers<[1], [0], [0], [1], [0, 0, 1, 1], [], []>} : vector<2x80xbf16>, vector<80x120xbf16>, vector<2x120xf32> -> vector<2x120xf32>
    %376 = arith.addf %371, %375 : vector<2x120xf32>
    %cst_143 = arith.constant 0.000000e+00 : f32
    %377 = vector.broadcast %cst_143 : f32 to vector<2x120xf32>
    %378 = arith.maximumf %376, %377 : vector<2x120xf32>
    %c0_144 = arith.constant 0 : index
    %c0_145 = arith.constant 0 : index
    %379 = vector.load %arg15[%c0_144, %c0_145] : memref<120x84xbf16, #tpu.memory_space<vmem>>, vector<120x84xbf16>
    %380 = arith.truncf %378 : vector<2x120xf32> to vector<2x120xbf16>
    %cst_146 = arith.constant dense<0.000000e+00> : vector<2x84xf32>
    %381 = tpu.matmul %380, %379, %cst_146 {dimension_numbers = #tpu.dot_dimension_numbers<[1], [0], [0], [1], [0, 0, 1, 1], [], []>} : vector<2x120xbf16>, vector<120x84xbf16>, vector<2x84xf32> -> vector<2x84xf32>
    %c0_147 = arith.constant 0 : index
    %c0_148 = arith.constant 0 : index
    %382 = vector.load %arg16[%c0_147, %c0_148] : memref<256x84xbf16, #tpu.memory_space<vmem>>, vector<256x84xbf16>
    %383 = arith.truncf %247 : vector<2x256xf32> to vector<2x256xbf16>
    %cst_149 = arith.constant dense<0.000000e+00> : vector<2x84xf32>
    %384 = tpu.matmul %383, %382, %cst_149 {dimension_numbers = #tpu.dot_dimension_numbers<[1], [0], [0], [1], [0, 0, 1, 1], [], []>} : vector<2x256xbf16>, vector<256x84xbf16>, vector<2x84xf32> -> vector<2x84xf32>
    %385 = arith.addf %381, %384 : vector<2x84xf32>
    %c0_150 = arith.constant 0 : index
    %c0_151 = arith.constant 0 : index
    %386 = vector.load %arg17[%c0_150, %c0_151] : memref<1x84xf32, #tpu.memory_space<vmem>>, vector<1x84xf32>
    %387 = vector.broadcast %386 : vector<1x84xf32> to vector<2x84xf32>
    %388 = arith.addf %385, %387 : vector<2x84xf32>
    %cst_152 = arith.constant 0.000000e+00 : f32
    %389 = vector.broadcast %cst_152 : f32 to vector<2x84xf32>
    %390 = arith.maximumf %388, %389 : vector<2x84xf32>
    %c0_153 = arith.constant 0 : index
    %c0_154 = arith.constant 0 : index
    %391 = vector.load %arg18[%c0_153, %c0_154] : memref<84x10xbf16, #tpu.memory_space<vmem>>, vector<84x10xbf16>
    %392 = arith.truncf %390 : vector<2x84xf32> to vector<2x84xbf16>
    %cst_155 = arith.constant dense<0.000000e+00> : vector<2x10xf32>
    %393 = tpu.matmul %392, %391, %cst_155 {dimension_numbers = #tpu.dot_dimension_numbers<[1], [0], [0], [1], [0, 0, 1, 1], [], []>} : vector<2x84xbf16>, vector<84x10xbf16>, vector<2x10xf32> -> vector<2x10xf32>
    %c0_156 = arith.constant 0 : index
    %c0_157 = arith.constant 0 : index
    %394 = vector.load %arg19[%c0_156, %c0_157] : memref<1x10xf32, #tpu.memory_space<vmem>>, vector<1x10xf32>
    %395 = vector.broadcast %394 : vector<1x10xf32> to vector<2x10xf32>
    %396 = arith.addf %393, %395 : vector<2x10xf32>
    %c0_158 = arith.constant 0 : index
    %c0_159 = arith.constant 0 : index
    %397 = vector.load %arg20[%c0_158, %c0_159] : memref<2x10xf32, #tpu.memory_space<vmem>>, vector<2x10xf32>
    tpu.vector_store %arg20[%c0_158, %c0_159], %396 {strides = array<i32>} : memref<2x10xf32, #tpu.memory_space<vmem>>, vector<2x10xf32>,
    return
  }
}

</mosaic_0001>

<llo_original>
// kernel: multimodal_forward.1
$region0: #{multimodal_forward.1}
  #allocation0 [shape = 'u32[]', space=smem, size = 0x4, offset = 0x4, fixed_abs, tag = 'smem constant byte address 0x4 - core index']
  #allocation1 [shape = 'u32[144,128]{1,0:T(1,128)}', space=vmem, size = 0x12000, scoped, tag = 'internal scratch']
  %s0 = inlined_call_operand.vmem [shape: s32[16,1], index: 0, kind: input, shape index: {}]
  %s1 = inlined_call_operand.vmem [shape: f32[64,96], index: 1, kind: input, shape index: {}]
  %s2 = inlined_call_operand.vmem [shape: bf16[64,1024], index: 2, kind: input, shape index: {}]
  %s3 = inlined_call_operand.vmem [shape: bf16[256,1024], index: 3, kind: input, shape index: {}]
  %s4 = inlined_call_operand.vmem [shape: f32[1,1024], index: 4, kind: input, shape index: {}]
  %s5 = inlined_call_operand.vmem [shape: bf16[5,96,168], index: 5, kind: input, shape index: {}]
  %s6 = inlined_call_operand.hbm [shape: f32[1,168], index: 6, kind: input, shape index: {}]
  %s7 = inlined_call_operand.vmem [shape: bf16[2,28,56], index: 7, kind: input, shape index: {}]
  %s8 = inlined_call_operand.vmem [shape: bf16[2,168,84], index: 8, kind: input, shape index: {}]
  %s9 = inlined_call_operand.vmem [shape: bf16[5,84,160], index: 9, kind: input, shape index: {}]
  %s10 = inlined_call_operand.hbm [shape: f32[1,160], index: 10, kind: input, shape index: {}]
  %s11 = inlined_call_operand.vmem [shape: bf16[2,10,20], index: 11, kind: input, shape index: {}]
  %s12 = inlined_call_operand.vmem [shape: bf16[2,160,80], index: 12, kind: input, shape index: {}]
  %s13 = inlined_call_operand.vmem [shape: bf16[5,80,120], index: 13, kind: input, shape index: {}]
  %s14 = inlined_call_operand.vmem [shape: f32[1,120], index: 14, kind: input, shape index: {}]
  %s15 = inlined_call_operand.vmem [shape: bf16[120,84], index: 15, kind: input, shape index: {}]
  %s16 = inlined_call_operand.vmem [shape: bf16[256,84], index: 16, kind: input, shape index: {}]
  %s17 = inlined_call_operand.hbm [shape: f32[1,84], index: 17, kind: input, shape index: {}]
  %s18 = inlined_call_operand.vmem [shape: bf16[84,10], index: 18, kind: input, shape index: {}]
  %s19 = inlined_call_operand.vmem [shape: f32[1,10], index: 19, kind: input, shape index: {}]
  %s20 = inlined_call_operand.hbm [shape: f32[2,10], index: 20, kind: output, shape index: {}]
  %s21 = sld [smem:[#allocation0]]
  $region102: #{multimodal_forward.1} parent=0
    _
  %s23 = ssub.s32 1, %s21
  %s24 = scalar_select 0, %s23, %s21
  $region1: #{multimodal_forward.1} parent=0
    #allocation2 [shape = 'u8[1024]{0}', space=vmem, size = 0x400, scoped, tag = 'input window, operand 6, single buffered']
    #allocation3 [shape = 's32[1]{0}', space=sflag, size = 0x4, scoped, tag = 'scoped memory for multimodal_forward.1']
    #allocation4 [shape = 's32[1]{0}', space=sflag, size = 0x4, scoped, tag = 'scoped memory for multimodal_forward.1']
    #allocation5 [shape = 'u8[1024]{0}', space=vmem, size = 0x400, scoped, tag = 'input window, operand 10, single buffered']
    #allocation6 [shape = 's32[1]{0}', space=sflag, size = 0x4, scoped, tag = 'scoped memory for multimodal_forward.1']
    #allocation7 [shape = 'u8[512]{0}', space=vmem, size = 0x400, scoped, tag = 'input window, operand 17, single buffered']
    #allocation8 [shape = 'u8[1024]{0}', space=vmem, size = 0x400, scoped, tag = 'output window, operand 0, single buffered']
    %25 = vsyncpa [#allocation3], 0
    %26 = vsyncpa [#allocation6], 0
    %27 = vsyncpa [#allocation4], 0
    // Predicated region
    $region2: #{multimodal_forward.1} parent=1 // pred_check
      _
    $region3: #{multimodal_forward.1} parent=1 // pred_check_branch
      %29 = sbr.rel (0) target = $region5
    $region4: #{multimodal_forward.1} parent=1 // pred_region
      _
    $region5: #{multimodal_forward.1} parent=1 // pred_fallthru
      _
    // Predicated region
    $region6: #{multimodal_forward.1} parent=1 // pred_check
      _
    $region7: #{multimodal_forward.1} parent=1 // pred_check_branch
      %31 = sbr.rel (0) target = $region9
    $region8: #{multimodal_forward.1} parent=1 // pred_region
      _
    $region9: #{multimodal_forward.1} parent=1 // pred_fallthru
      _
    // Predicated region
    $region10: #{multimodal_forward.1} parent=1 // pred_check
      _
    $region11: #{multimodal_forward.1} parent=1 // pred_check_branch
      %33 = sbr.rel (0) target = $region13
    $region12: #{multimodal_forward.1} parent=1 // pred_region
      _
    $region13: #{multimodal_forward.1} parent=1 // pred_fallthru
      _
    // Predicated region
    $region14: #{multimodal_forward.1} parent=1 // pred_check
      _
    $region15: #{multimodal_forward.1} parent=1 // pred_check_branch
      %35 = sbr.rel (0) target = $region17
    $region16: #{multimodal_forward.1} parent=1 // pred_region
      _
    $region17: #{multimodal_forward.1} parent=1 // pred_fallthru
      _
    // Predicated region
    $region18: #{multimodal_forward.1} parent=1 // pred_check
      _
    $region19: #{multimodal_forward.1} parent=1 // pred_check_branch
      %37 = sbr.rel (0) target = $region21
    $region20: #{multimodal_forward.1} parent=1 // pred_region
      _
    $region21: #{multimodal_forward.1} parent=1 // pred_fallthru
      _
    // Predicated region
    $region22: #{multimodal_forward.1} parent=1 // pred_check
      _
    $region23: #{multimodal_forward.1} parent=1 // pred_check_branch
      %39 = sbr.rel (0) target = $region25
    $region24: #{multimodal_forward.1} parent=1 // pred_region
      _
    $region25: #{multimodal_forward.1} parent=1 // pred_fallthru
      _
    // Predicated region
    $region26: #{multimodal_forward.1} parent=1 // pred_check
      _
    $region27: #{multimodal_forward.1} parent=1 // pred_check_branch
      %41 = sbr.rel (0) target = $region29
    $region28: #{multimodal_forward.1} parent=1 // pred_region
      %s43 = ssub.s32 32, 32
      %44 = vsyncadd [#allocation3], %s43
      %s46 = sshll.u32 [#allocation2], 4
      %s47 = int_to_ptr.vmem [resolvable:$true] %s46
      %49 = dma.hbm_to_vmem [thread:$0]  %s6, 32, %s47, [#allocation3]
    $region29: #{multimodal_forward.1} parent=1 // pred_fallthru
      _
    // Predicated region
    $region30: #{multimodal_forward.1} parent=1 // pred_check
      _
    $region31: #{multimodal_forward.1} parent=1 // pred_check_branch
      %51 = sbr.rel (0) target = $region33
    $region32: #{multimodal_forward.1} parent=1 // pred_region
      _
    $region33: #{multimodal_forward.1} parent=1 // pred_fallthru
      _
    // Predicated region
    $region34: #{multimodal_forward.1} parent=1 // pred_check
      _
    $region35: #{multimodal_forward.1} parent=1 // pred_check_branch
      %53 = sbr.rel (0) target = $region37
    $region36: #{multimodal_forward.1} parent=1 // pred_region
      _
    $region37: #{multimodal_forward.1} parent=1 // pred_fallthru
      _
    // Predicated region
    $region38: #{multimodal_forward.1} parent=1 // pred_check
      _
    $region39: #{multimodal_forward.1} parent=1 // pred_check_branch
      %55 = sbr.rel (0) target = $region41
    $region40: #{multimodal_forward.1} parent=1 // pred_region
      _
    $region41: #{multimodal_forward.1} parent=1 // pred_fallthru
      _
    // Predicated region
    $region42: #{multimodal_forward.1} parent=1 // pred_check
      _
    $region43: #{multimodal_forward.1} parent=1 // pred_check_branch
      %57 = sbr.rel (0) target = $region45
    $region44: #{multimodal_forward.1} parent=1 // pred_region
      %s59 = ssub.s32 32, 32
      %60 = vsyncadd [#allocation6], %s59
      %s62 = sshll.u32 [#allocation5], 4
      %s63 = int_to_ptr.vmem [resolvable:$true] %s62
      %65 = dma.hbm_to_vmem [thread:$0]  %s10, 32, %s63, [#allocation6]
    $region45: #{multimodal_forward.1} parent=1 // pred_fallthru
      _
    // Predicated region
    $region46: #{multimodal_forward.1} parent=1 // pred_check
      _
    $region47: #{multimodal_forward.1} parent=1 // pred_check_branch
      %67 = sbr.rel (0) target = $region49
    $region48: #{multimodal_forward.1} parent=1 // pred_region
      _
    $region49: #{multimodal_forward.1} parent=1 // pred_fallthru
      _
    // Predicated region
    $region50: #{multimodal_forward.1} parent=1 // pred_check
      _
    $region51: #{multimodal_forward.1} parent=1 // pred_check_branch
      %69 = sbr.rel (0) target = $region53
    $region52: #{multimodal_forward.1} parent=1 // pred_region
      _
    $region53: #{multimodal_forward.1} parent=1 // pred_fallthru
      _
    // Predicated region
    $region54: #{multimodal_forward.1} parent=1 // pred_check
      _
    $region55: #{multimodal_forward.1} parent=1 // pred_check_branch
      %71 = sbr.rel (0) target = $region57
    $region56: #{multimodal_forward.1} parent=1 // pred_region
      _
    $region57: #{multimodal_forward.1} parent=1 // pred_fallthru
      _
    // Predicated region
    $region58: #{multimodal_forward.1} parent=1 // pred_check
      _
    $region59: #{multimodal_forward.1} parent=1 // pred_check_branch
      %73 = sbr.rel (0) target = $region61
    $region60: #{multimodal_forward.1} parent=1 // pred_region
      _
    $region61: #{multimodal_forward.1} parent=1 // pred_fallthru
      _
    // Predicated region
    $region62: #{multimodal_forward.1} parent=1 // pred_check
      _
    $region63: #{multimodal_forward.1} parent=1 // pred_check_branch
      %75 = sbr.rel (0) target = $region65
    $region64: #{multimodal_forward.1} parent=1 // pred_region
      _
    $region65: #{multimodal_forward.1} parent=1 // pred_fallthru
      _
    // Predicated region
    $region66: #{multimodal_forward.1} parent=1 // pred_check
      _
    $region67: #{multimodal_forward.1} parent=1 // pred_check_branch
      %77 = sbr.rel (0) target = $region69
    $region68: #{multimodal_forward.1} parent=1 // pred_region
      _
    $region69: #{multimodal_forward.1} parent=1 // pred_fallthru
      _
    // Predicated region
    $region70: #{multimodal_forward.1} parent=1 // pred_check
      _
    $region71: #{multimodal_forward.1} parent=1 // pred_check_branch
      %79 = sbr.rel (0) target = $region73
    $region72: #{multimodal_forward.1} parent=1 // pred_region
      %s81 = ssub.s32 16, 16
      %82 = vsyncadd [#allocation6], %s81
      %s84 = sshll.u32 [#allocation7], 4
      %s85 = int_to_ptr.vmem [resolvable:$true] %s84
      %87 = dma.hbm_to_vmem [thread:$0]  %s17, 16, %s85, [#allocation6]
    $region73: #{multimodal_forward.1} parent=1 // pred_fallthru
      _
    // Predicated region
    $region74: #{multimodal_forward.1} parent=1 // pred_check
      _
    $region75: #{multimodal_forward.1} parent=1 // pred_check_branch
      %89 = sbr.rel (0) target = $region77
    $region76: #{multimodal_forward.1} parent=1 // pred_region
      _
    $region77: #{multimodal_forward.1} parent=1 // pred_fallthru
      _
    // Predicated region
    $region78: #{multimodal_forward.1} parent=1 // pred_check
      _
    $region79: #{multimodal_forward.1} parent=1 // pred_check_branch
      %91 = sbr.rel (0) target = $region81
    $region80: #{multimodal_forward.1} parent=1 // pred_region
      _
    $region81: #{multimodal_forward.1} parent=1 // pred_fallthru
      _
    // Predicated region
    $region82: #{multimodal_forward.1} parent=1 // pred_check
      _
    $region83: #{multimodal_forward.1} parent=1 // pred_check_branch
      %93 = sbr.rel (0) target = $region85
    $region84: #{multimodal_forward.1} parent=1 // pred_region
      %94 = dma.done [#allocation3], 32
    $region85: #{multimodal_forward.1} parent=1 // pred_fallthru
      _
    // Predicated region
    $region86: #{multimodal_forward.1} parent=1 // pred_check
      _
    $region87: #{multimodal_forward.1} parent=1 // pred_check_branch
      %96 = sbr.rel (0) target = $region89
    $region88: #{multimodal_forward.1} parent=1 // pred_region
      %97 = dma.done [#allocation6], 32
    $region89: #{multimodal_forward.1} parent=1 // pred_fallthru
      _
    // Predicated region
    $region90: #{multimodal_forward.1} parent=1 // pred_check
      _
    $region91: #{multimodal_forward.1} parent=1 // pred_check_branch
      %99 = sbr.rel (0) target = $region93
    $region92: #{multimodal_forward.1} parent=1 // pred_region
      %100 = dma.done [#allocation6], 16
    $region93: #{multimodal_forward.1} parent=1 // pred_fallthru
      _
    %v102 = vld [vmem:[%s0] sm:$0xff]
    %v103 = vld [vmem:[%s0 + $0x8] sm:$0xff]
    %v104 = vlaneseq
    %v105 = vand.u32 %v104, 127
    %106 = vset.pattern.permute.xlu0 0
    %107 = vperm.xlu0 %106, %v102
    %v108 = vpop.permute.xlu0 %107
    %109 = vset.pattern.permute.xlu0 0
    %110 = vperm.xlu0 %109, %v103
    %v111 = vpop.permute.xlu0 %110
    %vm112 = vcmp.eq.s32.totalorder %v108, %v105
    %vm113 = vcmp.eq.s32.totalorder %v111, %v105
    %v114 = vsel %vm112, 1.0, 0.0
    %v115 = vsel %vm113, 1.0, 0.0
    %v116 = vld [vmem:[%s2] sm:$0xff]
    %v117 = vld [vmem:[%s2 + $0x8] sm:$0xff]
    %v118 = vld [vmem:[%s2 + $0x10] sm:$0xff]
    %v119 = vld [vmem:[%s2 + $0x18] sm:$0xff]
    %v120 = vld [vmem:[%s2 + $0x20] sm:$0xff]
    %v121 = vld [vmem:[%s2 + $0x28] sm:$0xff]
    %v122 = vld [vmem:[%s2 + $0x30] sm:$0xff]
    %v123 = vld [vmem:[%s2 + $0x38] sm:$0xff]
    %v124 = vld [vmem:[%s2 + $0x40] sm:$0xff]
    %v125 = vld [vmem:[%s2 + $0x48] sm:$0xff]
    %v126 = vld [vmem:[%s2 + $0x50] sm:$0xff]
    %v127 = vld [vmem:[%s2 + $0x58] sm:$0xff]
    %v128 = vld [vmem:[%s2 + $0x60] sm:$0xff]
    %v129 = vld [vmem:[%s2 + $0x68] sm:$0xff]
    %v130 = vld [vmem:[%s2 + $0x70] sm:$0xff]
    %v131 = vld [vmem:[%s2 + $0x78] sm:$0xff]
    %v132 = vld [vmem:[%s2 + $0x80] sm:$0xff]
    %v133 = vld [vmem:[%s2 + $0x88] sm:$0xff]
    %v134 = vld [vmem:[%s2 + $0x90] sm:$0xff]
    %v135 = vld [vmem:[%s2 + $0x98] sm:$0xff]
    %v136 = vld [vmem:[%s2 + $0xa0] sm:$0xff]
    %v137 = vld [vmem:[%s2 + $0xa8] sm:$0xff]
    %v138 = vld [vmem:[%s2 + $0xb0] sm:$0xff]
    %v139 = vld [vmem:[%s2 + $0xb8] sm:$0xff]
    %v140 = vld [vmem:[%s2 + $0xc0] sm:$0xff]
    %v141 = vld [vmem:[%s2 + $0xc8] sm:$0xff]
    %v142 = vld [vmem:[%s2 + $0xd0] sm:$0xff]
    %v143 = vld [vmem:[%s2 + $0xd8] sm:$0xff]
    %v144 = vld [vmem:[%s2 + $0xe0] sm:$0xff]
    %v145 = vld [vmem:[%s2 + $0xe8] sm:$0xff]
    %v146 = vld [vmem:[%s2 + $0xf0] sm:$0xff]
    %v147 = vld [vmem:[%s2 + $0xf8] sm:$0xff]
    %v148 = vpack.c.bf16 %v115, %v114
    %v149 = vld [vmem:[%s4] sm:$0xff]
    %v151 = vlaneseq
    %v152 = vshrl.u32 %v151, 7
    %v153 = vsub.s32 0, %v152
    %v154 = vrot.slane %v149, %v153
    %v155 = vlaneseq
    %v156 = vshrl.u32 %v155, 7
    %v157 = vsub.s32 1, %v156
    %v158 = vrot.slane %v149, %v157
    %v159 = vlaneseq
    %v160 = vshrl.u32 %v159, 7
    %v161 = vsub.s32 2, %v160
    %v162 = vrot.slane %v149, %v161
    %v163 = vlaneseq
    %v164 = vshrl.u32 %v163, 7
    %v165 = vsub.s32 3, %v164
    %v166 = vrot.slane %v149, %v165
    %v167 = vlaneseq
    %v168 = vshrl.u32 %v167, 7
    %v169 = vsub.s32 4, %v168
    %v170 = vrot.slane %v149, %v169
    %v171 = vlaneseq
    %v172 = vshrl.u32 %v171, 7
    %v173 = vsub.s32 5, %v172
    %v174 = vrot.slane %v149, %v173
    %v175 = vlaneseq
    %v176 = vshrl.u32 %v175, 7
    %v177 = vsub.s32 6, %v176
    %v178 = vrot.slane %v149, %v177
    %v179 = vlaneseq
    %v180 = vshrl.u32 %v179, 7
    %v181 = vsub.s32 7, %v180
    %v182 = vrot.slane %v149, %v181
    %v223 = vunpack.c.l.b16 %v116
    %v224 = vunpack.c.h.b16 %v116
    %v225 = vunpack.c.l.b16 %v117
    %v226 = vunpack.c.h.b16 %v117
    %v227 = vunpack.c.l.b16 %v118
    %v228 = vunpack.c.h.b16 %v118
    %v229 = vunpack.c.l.b16 %v119
    %v230 = vunpack.c.h.b16 %v119
    %v231 = vunpack.c.l.b16 %v120
    %v232 = vunpack.c.h.b16 %v120
    %v233 = vunpack.c.l.b16 %v121
    %v234 = vunpack.c.h.b16 %v121
    %v235 = vunpack.c.l.b16 %v122
    %v236 = vunpack.c.h.b16 %v122
    %v237 = vunpack.c.l.b16 %v123
    %v238 = vunpack.c.h.b16 %v123
    %v239 = vunpack.c.l.b16 %v124
    %v240 = vunpack.c.h.b16 %v124
    %v241 = vunpack.c.l.b16 %v125
    %v242 = vunpack.c.h.b16 %v125
    %v243 = vunpack.c.l.b16 %v126
    %v244 = vunpack.c.h.b16 %v126
    %v245 = vunpack.c.l.b16 %v127
    %v246 = vunpack.c.h.b16 %v127
    %v247 = vunpack.c.l.b16 %v128
    %v248 = vunpack.c.h.b16 %v128
    %v249 = vunpack.c.l.b16 %v129
    %v250 = vunpack.c.h.b16 %v129
    %v251 = vunpack.c.l.b16 %v130
    %v252 = vunpack.c.h.b16 %v130
    %v253 = vunpack.c.l.b16 %v131
    %v254 = vunpack.c.h.b16 %v131
    %v255 = vunpack.c.l.b16 %v132
    %v256 = vunpack.c.h.b16 %v132
    %v257 = vunpack.c.l.b16 %v133
    %v258 = vunpack.c.h.b16 %v133
    %v259 = vunpack.c.l.b16 %v134
    %v260 = vunpack.c.h.b16 %v134
    %v261 = vunpack.c.l.b16 %v135
    %v262 = vunpack.c.h.b16 %v135
    %v263 = vunpack.c.l.b16 %v136
    %v264 = vunpack.c.h.b16 %v136
    %v265 = vunpack.c.l.b16 %v137
    %v266 = vunpack.c.h.b16 %v137
    %v267 = vunpack.c.l.b16 %v138
    %v268 = vunpack.c.h.b16 %v138
    %v269 = vunpack.c.l.b16 %v139
    %v270 = vunpack.c.h.b16 %v139
    %v271 = vunpack.c.l.b16 %v140
    %v272 = vunpack.c.h.b16 %v140
    %v273 = vunpack.c.l.b16 %v141
    %v274 = vunpack.c.h.b16 %v141
    %v275 = vunpack.c.l.b16 %v142
    %v276 = vunpack.c.h.b16 %v142
    %v277 = vunpack.c.l.b16 %v143
    %v278 = vunpack.c.h.b16 %v143
    %v279 = vunpack.c.l.b16 %v144
    %v280 = vunpack.c.h.b16 %v144
    %v281 = vunpack.c.l.b16 %v145
    %v282 = vunpack.c.h.b16 %v145
    %v283 = vunpack.c.l.b16 %v146
    %v284 = vunpack.c.h.b16 %v146
    %v285 = vunpack.c.l.b16 %v147
    %v286 = vunpack.c.h.b16 %v147
    %v287 = vpack.c.b16 %v231, %v223
    %v288 = vpack.c.b16 %v232, %v224
    %v289 = vpack.c.b16 %v233, %v225
    %v290 = vpack.c.b16 %v234, %v226
    %v291 = vpack.c.b16 %v235, %v227
    %v292 = vpack.c.b16 %v236, %v228
    %v293 = vpack.c.b16 %v237, %v229
    %v294 = vpack.c.b16 %v238, %v230
    %v295 = vpack.c.b16 %v247, %v239
    %v296 = vpack.c.b16 %v248, %v240
    %v297 = vpack.c.b16 %v249, %v241
    %v298 = vpack.c.b16 %v250, %v242
    %v299 = vpack.c.b16 %v251, %v243
    %v300 = vpack.c.b16 %v252, %v244
    %v301 = vpack.c.b16 %v253, %v245
    %v302 = vpack.c.b16 %v254, %v246
    %v303 = vpack.c.b16 %v263, %v255
    %v304 = vpack.c.b16 %v264, %v256
    %v305 = vpack.c.b16 %v265, %v257
    %v306 = vpack.c.b16 %v266, %v258
    %v307 = vpack.c.b16 %v267, %v259
    %v308 = vpack.c.b16 %v268, %v260
    %v309 = vpack.c.b16 %v269, %v261
    %v310 = vpack.c.b16 %v270, %v262
    %v311 = vpack.c.b16 %v279, %v271
    %v312 = vpack.c.b16 %v280, %v272
    %v313 = vpack.c.b16 %v281, %v273
    %v314 = vpack.c.b16 %v282, %v274
    %v315 = vpack.c.b16 %v283, %v275
    %v316 = vpack.c.b16 %v284, %v276
    %v317 = vpack.c.b16 %v285, %v277
    %v318 = vpack.c.b16 %v286, %v278
    %vm351 = vcmask 523264
    %v353 = vsel %vm351, %v148, 0
    %355 = vmatprep.subr.bf16.mxu0 %v288
    %356 = vmatpush1.bf16.msra.mxu0 %v287
    %357 = vmatprep.subr.bf16.mxu0 %v296
    %358 = vmatpush1.bf16.msra.mxu0 %v295
    %359 = vmatprep.subr.bf16.mxu0 %v304
    %360 = vmatpush1.bf16.msra.mxu0 %v303
    %361 = vmatprep.subr.bf16.mxu0 %v312
    %362 = vmatpush1.bf16.msra.mxu0 %v311
    %363 = vmatprep.subr.bf16.mxu0 0
    %364 = vmatpush1.bf16.msra.mxu0 0
    %365 = vmatprep.subr.bf16.mxu0 0
    %366 = vmatpush1.bf16.msra.mxu0 0
    %367 = vmatprep.subr.bf16.mxu0 0
    %368 = vmatpush1.bf16.msra.mxu0 0
    %369 = vmatprep.subr.bf16.mxu0 0
    %370 = vmatpush1.bf16.msra.mxu0 0
    %371 = vmatprep.subr.bf16.mxu0 0
    %372 = vmatpush1.bf16.msra.mxu0 0
    %373 = vmatprep.subr.bf16.mxu0 0
    %374 = vmatpush1.bf16.msra.mxu0 0
    %375 = vmatprep.subr.bf16.mxu0 0
    %376 = vmatpush1.bf16.msra.mxu0 0
    %377 = vmatprep.subr.bf16.mxu0 0
    %378 = vmatpush1.bf16.msra.mxu0 0
    %379 = vmatprep.subr.bf16.mxu0 0
    %380 = vmatpush1.bf16.msra.mxu0 0
    %381 = vmatprep.subr.bf16.mxu0 0
    %382 = vmatpush1.bf16.msra.mxu0 0
    %383 = vmatprep.subr.bf16.mxu0 0
    %384 = vmatpush1.bf16.msra.mxu0 0
    %385 = vmatprep.subr.bf16.mxu0 0
    %386 = vmatpush1.bf16.msra.mxu0 0
    %387 = vmatprep.mubr.bf16.mxu0 0
    %388 = vmatmul.mubr.bf16.gmra.mrb[0].mxu0 %v353
    %v389 = vpop.f32.mrb[0].mxu0
    %v390 = vadd.f32 %v154, %v389
    %v391 = vpop.f32.mrb[0].mxu0
    %v392 = vadd.f32 %v158, %v391
    %v393 = vpop.f32.mrb[0].mxu0
    %v394 = vadd.f32 %v154, %v393
    %v395 = vpop.f32.mrb[0].mxu0
    %v396 = vadd.f32 %v158, %v395
    %397 = vdwg.mxu0
    %398 = vmatprep.subr.bf16.mxu0 %v290
    %399 = vmatpush1.bf16.msra.mxu0 %v289
    %400 = vmatprep.subr.bf16.mxu0 %v298
    %401 = vmatpush1.bf16.msra.mxu0 %v297
    %402 = vmatprep.subr.bf16.mxu0 %v306
    %403 = vmatpush1.bf16.msra.mxu0 %v305
    %404 = vmatprep.subr.bf16.mxu0 %v314
    %405 = vmatpush1.bf16.msra.mxu0 %v313
    %406 = vmatprep.subr.bf16.mxu0 0
    %407 = vmatpush1.bf16.msra.mxu0 0
    %408 = vmatprep.subr.bf16.mxu0 0
    %409 = vmatpush1.bf16.msra.mxu0 0
    %410 = vmatprep.subr.bf16.mxu0 0
    %411 = vmatpush1.bf16.msra.mxu0 0
    %412 = vmatprep.subr.bf16.mxu0 0
    %413 = vmatpush1.bf16.msra.mxu0 0
    %414 = vmatprep.subr.bf16.mxu0 0
    %415 = vmatpush1.bf16.msra.mxu0 0
    %416 = vmatprep.subr.bf16.mxu0 0
    %417 = vmatpush1.bf16.msra.mxu0 0
    %418 = vmatprep.subr.bf16.mxu0 0
    %419 = vmatpush1.bf16.msra.mxu0 0
    %420 = vmatprep.subr.bf16.mxu0 0
    %421 = vmatpush1.bf16.msra.mxu0 0
    %422 = vmatprep.subr.bf16.mxu0 0
    %423 = vmatpush1.bf16.msra.mxu0 0
    %424 = vmatprep.subr.bf16.mxu0 0
    %425 = vmatpush1.bf16.msra.mxu0 0
    %426 = vmatprep.subr.bf16.mxu0 0
    %427 = vmatpush1.bf16.msra.mxu0 0
    %428 = vmatprep.subr.bf16.mxu0 0
    %429 = vmatpush1.bf16.msra.mxu0 0
    %430 = vmatprep.mubr.bf16.mxu0 0
    %431 = vmatmul.mubr.bf16.gmra.mrb[0].mxu0 %v353
    %v432 = vpop.f32.mrb[0].mxu0
    %v433 = vadd.f32 %v162, %v432
    %v434 = vpop.f32.mrb[0].mxu0
    %v435 = vadd.f32 %v166, %v434
    %v436 = vpop.f32.mrb[0].mxu0
    %v437 = vadd.f32 %v162, %v436
    %v438 = vpop.f32.mrb[0].mxu0
    %v439 = vadd.f32 %v166, %v438
    %440 = vdwg.mxu0
    %441 = vmatprep.subr.bf16.mxu0 %v292
    %442 = vmatpush1.bf16.msra.mxu0 %v291
    %443 = vmatprep.subr.bf16.mxu0 %v300
    %444 = vmatpush1.bf16.msra.mxu0 %v299
    %445 = vmatprep.subr.bf16.mxu0 %v308
    %446 = vmatpush1.bf16.msra.mxu0 %v307
    %447 = vmatprep.subr.bf16.mxu0 %v316
    %448 = vmatpush1.bf16.msra.mxu0 %v315
    %449 = vmatprep.subr.bf16.mxu0 0
    %450 = vmatpush1.bf16.msra.mxu0 0
    %451 = vmatprep.subr.bf16.mxu0 0
    %452 = vmatpush1.bf16.msra.mxu0 0
    %453 = vmatprep.subr.bf16.mxu0 0
    %454 = vmatpush1.bf16.msra.mxu0 0
    %455 = vmatprep.subr.bf16.mxu0 0
    %456 = vmatpush1.bf16.msra.mxu0 0
    %457 = vmatprep.subr.bf16.mxu0 0
    %458 = vmatpush1.bf16.msra.mxu0 0
    %459 = vmatprep.subr.bf16.mxu0 0
    %460 = vmatpush1.bf16.msra.mxu0 0
    %461 = vmatprep.subr.bf16.mxu0 0
    %462 = vmatpush1.bf16.msra.mxu0 0
    %463 = vmatprep.subr.bf16.mxu0 0
    %464 = vmatpush1.bf16.msra.mxu0 0
    %465 = vmatprep.subr.bf16.mxu0 0
    %466 = vmatpush1.bf16.msra.mxu0 0
    %467 = vmatprep.subr.bf16.mxu0 0
    %468 = vmatpush1.bf16.msra.mxu0 0
    %469 = vmatprep.subr.bf16.mxu0 0
    %470 = vmatpush1.bf16.msra.mxu0 0
    %471 = vmatprep.subr.bf16.mxu0 0
    %472 = vmatpush1.bf16.msra.mxu0 0
    %473 = vmatprep.mubr.bf16.mxu0 0
    %474 = vmatmul.mubr.bf16.gmra.mrb[0].mxu0 %v353
    %v475 = vpop.f32.mrb[0].mxu0
    %v476 = vadd.f32 %v170, %v475
    %v477 = vpop.f32.mrb[0].mxu0
    %v478 = vadd.f32 %v174, %v477
    %v479 = vpop.f32.mrb[0].mxu0
    %v480 = vadd.f32 %v170, %v479
    %v481 = vpop.f32.mrb[0].mxu0
    %v482 = vadd.f32 %v174, %v481
    %483 = vdwg.mxu0
    %484 = vmatprep.subr.bf16.mxu0 %v294
    %485 = vmatpush1.bf16.msra.mxu0 %v293
    %486 = vmatprep.subr.bf16.mxu0 %v302
    %487 = vmatpush1.bf16.msra.mxu0 %v301
    %488 = vmatprep.subr.bf16.mxu0 %v310
    %489 = vmatpush1.bf16.msra.mxu0 %v309
    %490 = vmatprep.subr.bf16.mxu0 %v318
    %491 = vmatpush1.bf16.msra.mxu0 %v317
    %492 = vmatprep.subr.bf16.mxu0 0
    %493 = vmatpush1.bf16.msra.mxu0 0
    %494 = vmatprep.subr.bf16.mxu0 0
    %495 = vmatpush1.bf16.msra.mxu0 0
    %496 = vmatprep.subr.bf16.mxu0 0
    %497 = vmatpush1.bf16.msra.mxu0 0
    %498 = vmatprep.subr.bf16.mxu0 0
    %499 = vmatpush1.bf16.msra.mxu0 0
    %500 = vmatprep.subr.bf16.mxu0 0
    %501 = vmatpush1.bf16.msra.mxu0 0
    %502 = vmatprep.subr.bf16.mxu0 0
    %503 = vmatpush1.bf16.msra.mxu0 0
    %504 = vmatprep.subr.bf16.mxu0 0
    %505 = vmatpush1.bf16.msra.mxu0 0
    %506 = vmatprep.subr.bf16.mxu0 0
    %507 = vmatpush1.bf16.msra.mxu0 0
    %508 = vmatprep.subr.bf16.mxu0 0
    %509 = vmatpush1.bf16.msra.mxu0 0
    %510 = vmatprep.subr.bf16.mxu0 0
    %511 = vmatpush1.bf16.msra.mxu0 0
    %512 = vmatprep.subr.bf16.mxu0 0
    %513 = vmatpush1.bf16.msra.mxu0 0
    %514 = vmatprep.subr.bf16.mxu0 0
    %515 = vmatpush1.bf16.msra.mxu0 0
    %516 = vmatprep.mubr.bf16.mxu0 0
    %517 = vmatmul.mubr.bf16.gmra.mrb[0].mxu0 %v353
    %v518 = vpop.f32.mrb[0].mxu0
    %v519 = vadd.f32 %v178, %v518
    %v520 = vpop.f32.mrb[0].mxu0
    %v521 = vadd.f32 %v182, %v520
    %v522 = vpop.f32.mrb[0].mxu0
    %v523 = vadd.f32 %v178, %v522
    %v524 = vpop.f32.mrb[0].mxu0
    %v525 = vadd.f32 %v182, %v524
    %526 = vdwg.mxu0
    %v527 = vld [vmem:[%s3] sm:$0xff]
    %v528 = vld [vmem:[%s3 + $0x8] sm:$0xff]
    %v529 = vld [vmem:[%s3 + $0x10] sm:$0xff]
    %v530 = vld [vmem:[%s3 + $0x18] sm:$0xff]
    %v531 = vld [vmem:[%s3 + $0x20] sm:$0xff]
    %v532 = vld [vmem:[%s3 + $0x28] sm:$0xff]
    %v533 = vld [vmem:[%s3 + $0x30] sm:$0xff]
    %v534 = vld [vmem:[%s3 + $0x38] sm:$0xff]
    %v535 = vld [vmem:[%s3 + $0x40] sm:$0xff]
    %v536 = vld [vmem:[%s3 + $0x48] sm:$0xff]
    %v537 = vld [vmem:[%s3 + $0x50] sm:$0xff]
    %v538 = vld [vmem:[%s3 + $0x58] sm:$0xff]
    %v539 = vld [vmem:[%s3 + $0x60] sm:$0xff]
    %v540 = vld [vmem:[%s3 + $0x68] sm:$0xff]
    %v541 = vld [vmem:[%s3 + $0x70] sm:$0xff]
    %v542 = vld [vmem:[%s3 + $0x78] sm:$0xff]
    %v543 = vld [vmem:[%s3 + $0x80] sm:$0xff]
    %v544 = vld [vmem:[%s3 + $0x88] sm:$0xff]
    %v545 = vld [vmem:[%s3 + $0x90] sm:$0xff]
    %v546 = vld [vmem:[%s3 + $0x98] sm:$0xff]
    %v547 = vld [vmem:[%s3 + $0xa0] sm:$0xff]
    %v548 = vld [vmem:[%s3 + $0xa8] sm:$0xff]
    %v549 = vld [vmem:[%s3 + $0xb0] sm:$0xff]
    %v550 = vld [vmem:[%s3 + $0xb8] sm:$0xff]
    %v551 = vld [vmem:[%s3 + $0xc0] sm:$0xff]
    %v552 = vld [vmem:[%s3 + $0xc8] sm:$0xff]
    %v553 = vld [vmem:[%s3 + $0xd0] sm:$0xff]
    %v554 = vld [vmem:[%s3 + $0xd8] sm:$0xff]
    %v555 = vld [vmem:[%s3 + $0xe0] sm:$0xff]
    %v556 = vld [vmem:[%s3 + $0xe8] sm:$0xff]
    %v557 = vld [vmem:[%s3 + $0xf0] sm:$0xff]
    %v558 = vld [vmem:[%s3 + $0xf8] sm:$0xff]
    %v559 = vld [vmem:[%s3 + $0x100] sm:$0xff]
    %v560 = vld [vmem:[%s3 + $0x108] sm:$0xff]
    %v561 = vld [vmem:[%s3 + $0x110] sm:$0xff]
    %v562 = vld [vmem:[%s3 + $0x118] sm:$0xff]
    %v563 = vld [vmem:[%s3 + $0x120] sm:$0xff]
    %v564 = vld [vmem:[%s3 + $0x128] sm:$0xff]
    %v565 = vld [vmem:[%s3 + $0x130] sm:$0xff]
    %v566 = vld [vmem:[%s3 + $0x138] sm:$0xff]
    %v567 = vld [vmem:[%s3 + $0x140] sm:$0xff]
    %v568 = vld [vmem:[%s3 + $0x148] sm:$0xff]
    %v569 = vld [vmem:[%s3 + $0x150] sm:$0xff]
    %v570 = vld [vmem:[%s3 + $0x158] sm:$0xff]
    %v571 = vld [vmem:[%s3 + $0x160] sm:$0xff]
    %v572 = vld [vmem:[%s3 + $0x168] sm:$0xff]
    %v573 = vld [vmem:[%s3 + $0x170] sm:$0xff]
    %v574 = vld [vmem:[%s3 + $0x178] sm:$0xff]
    %v575 = vld [vmem:[%s3 + $0x180] sm:$0xff]
    %v576 = vld [vmem:[%s3 + $0x188] sm:$0xff]
    %v577 = vld [vmem:[%s3 + $0x190] sm:$0xff]
    %v578 = vld [vmem:[%s3 + $0x198] sm:$0xff]
    %v579 = vld [vmem:[%s3 + $0x1a0] sm:$0xff]
    %v580 = vld [vmem:[%s3 + $0x1a8] sm:$0xff]
    %v581 = vld [vmem:[%s3 + $0x1b0] sm:$0xff]
    %v582 = vld [vmem:[%s3 + $0x1b8] sm:$0xff]
    %v583 = vld [vmem:[%s3 + $0x1c0] sm:$0xff]
    %v584 = vld [vmem:[%s3 + $0x1c8] sm:$0xff]
    %v585 = vld [vmem:[%s3 + $0x1d0] sm:$0xff]
    %v586 = vld [vmem:[%s3 + $0x1d8] sm:$0xff]
    %v587 = vld [vmem:[%s3 + $0x1e0] sm:$0xff]
    %v588 = vld [vmem:[%s3 + $0x1e8] sm:$0xff]
    %v589 = vld [vmem:[%s3 + $0x1f0] sm:$0xff]
    %v590 = vld [vmem:[%s3 + $0x1f8] sm:$0xff]
    %v591 = vld [vmem:[%s3 + $0x200] sm:$0xff]
    %v592 = vld [vmem:[%s3 + $0x208] sm:$0xff]
    %v593 = vld [vmem:[%s3 + $0x210] sm:$0xff]
    %v594 = vld [vmem:[%s3 + $0x218] sm:$0xff]
    %v595 = vld [vmem:[%s3 + $0x220] sm:$0xff]
    %v596 = vld [vmem:[%s3 + $0x228] sm:$0xff]
    %v597 = vld [vmem:[%s3 + $0x230] sm:$0xff]
    %v598 = vld [vmem:[%s3 + $0x238] sm:$0xff]
    %v599 = vld [vmem:[%s3 + $0x240] sm:$0xff]
    %v600 = vld [vmem:[%s3 + $0x248] sm:$0xff]
    %v601 = vld [vmem:[%s3 + $0x250] sm:$0xff]
    %v602 = vld [vmem:[%s3 + $0x258] sm:$0xff]
    %v603 = vld [vmem:[%s3 + $0x260] sm:$0xff]
    %v604 = vld [vmem:[%s3 + $0x268] sm:$0xff]
    %v605 = vld [vmem:[%s3 + $0x270] sm:$0xff]
    %v606 = vld [vmem:[%s3 + $0x278] sm:$0xff]
    %v607 = vld [vmem:[%s3 + $0x280] sm:$0xff]
    %v608 = vld [vmem:[%s3 + $0x288] sm:$0xff]
    %v609 = vld [vmem:[%s3 + $0x290] sm:$0xff]
    %v610 = vld [vmem:[%s3 + $0x298] sm:$0xff]
    %v611 = vld [vmem:[%s3 + $0x2a0] sm:$0xff]
    %v612 = vld [vmem:[%s3 + $0x2a8] sm:$0xff]
    %v613 = vld [vmem:[%s3 + $0x2b0] sm:$0xff]
    %v614 = vld [vmem:[%s3 + $0x2b8] sm:$0xff]
    %v615 = vld [vmem:[%s3 + $0x2c0] sm:$0xff]
    %v616 = vld [vmem:[%s3 + $0x2c8] sm:$0xff]
    %v617 = vld [vmem:[%s3 + $0x2d0] sm:$0xff]
    %v618 = vld [vmem:[%s3 + $0x2d8] sm:$0xff]
    %v619 = vld [vmem:[%s3 + $0x2e0] sm:$0xff]
    %v620 = vld [vmem:[%s3 + $0x2e8] sm:$0xff]
    %v621 = vld [vmem:[%s3 + $0x2f0] sm:$0xff]
    %v622 = vld [vmem:[%s3 + $0x2f8] sm:$0xff]
    %v623 = vld [vmem:[%s3 + $0x300] sm:$0xff]
    %v624 = vld [vmem:[%s3 + $0x308] sm:$0xff]
    %v625 = vld [vmem:[%s3 + $0x310] sm:$0xff]
    %v626 = vld [vmem:[%s3 + $0x318] sm:$0xff]
    %v627 = vld [vmem:[%s3 + $0x320] sm:$0xff]
    %v628 = vld [vmem:[%s3 + $0x328] sm:$0xff]
    %v629 = vld [vmem:[%s3 + $0x330] sm:$0xff]
    %v630 = vld [vmem:[%s3 + $0x338] sm:$0xff]
    %v631 = vld [vmem:[%s3 + $0x340] sm:$0xff]
    %v632 = vld [vmem:[%s3 + $0x348] sm:$0xff]
    %v633 = vld [vmem:[%s3 + $0x350] sm:$0xff]
    %v634 = vld [vmem:[%s3 + $0x358] sm:$0xff]
    %v635 = vld [vmem:[%s3 + $0x360] sm:$0xff]
    %v636 = vld [vmem:[%s3 + $0x368] sm:$0xff]
    %v637 = vld [vmem:[%s3 + $0x370] sm:$0xff]
    %v638 = vld [vmem:[%s3 + $0x378] sm:$0xff]
    %v639 = vld [vmem:[%s3 + $0x380] sm:$0xff]
    %v640 = vld [vmem:[%s3 + $0x388] sm:$0xff]
    %v641 = vld [vmem:[%s3 + $0x390] sm:$0xff]
    %v642 = vld [vmem:[%s3 + $0x398] sm:$0xff]
    %v643 = vld [vmem:[%s3 + $0x3a0] sm:$0xff]
    %v644 = vld [vmem:[%s3 + $0x3a8] sm:$0xff]
    %v645 = vld [vmem:[%s3 + $0x3b0] sm:$0xff]
    %v646 = vld [vmem:[%s3 + $0x3b8] sm:$0xff]
    %v647 = vld [vmem:[%s3 + $0x3c0] sm:$0xff]
    %v648 = vld [vmem:[%s3 + $0x3c8] sm:$0xff]
    %v649 = vld [vmem:[%s3 + $0x3d0] sm:$0xff]
    %v650 = vld [vmem:[%s3 + $0x3d8] sm:$0xff]
    %v651 = vld [vmem:[%s3 + $0x3e0] sm:$0xff]
    %v652 = vld [vmem:[%s3 + $0x3e8] sm:$0xff]
    %v653 = vld [vmem:[%s3 + $0x3f0] sm:$0xff]
    %v654 = vld [vmem:[%s3 + $0x3f8] sm:$0xff]
    %v783 = vunpack.c.l.b16 %v527
    %v784 = vunpack.c.h.b16 %v527
    %v785 = vunpack.c.l.b16 %v528
    %v786 = vunpack.c.h.b16 %v528
    %v787 = vunpack.c.l.b16 %v529
    %v788 = vunpack.c.h.b16 %v529
    %v789 = vunpack.c.l.b16 %v530
    %v790 = vunpack.c.h.b16 %v530
    %v791 = vunpack.c.l.b16 %v531
    %v792 = vunpack.c.h.b16 %v531
    %v793 = vunpack.c.l.b16 %v532
    %v794 = vunpack.c.h.b16 %v532
    %v795 = vunpack.c.l.b16 %v533
    %v796 = vunpack.c.h.b16 %v533
    %v797 = vunpack.c.l.b16 %v534
    %v798 = vunpack.c.h.b16 %v534
    %v799 = vunpack.c.l.b16 %v535
    %v800 = vunpack.c.h.b16 %v535
    %v801 = vunpack.c.l.b16 %v536
    %v802 = vunpack.c.h.b16 %v536
    %v803 = vunpack.c.l.b16 %v537
    %v804 = vunpack.c.h.b16 %v537
    %v805 = vunpack.c.l.b16 %v538
    %v806 = vunpack.c.h.b16 %v538
    %v807 = vunpack.c.l.b16 %v539
    %v808 = vunpack.c.h.b16 %v539
    %v809 = vunpack.c.l.b16 %v540
    %v810 = vunpack.c.h.b16 %v540
    %v811 = vunpack.c.l.b16 %v541
    %v812 = vunpack.c.h.b16 %v541
    %v813 = vunpack.c.l.b16 %v542
    %v814 = vunpack.c.h.b16 %v542
    %v815 = vunpack.c.l.b16 %v543
    %v816 = vunpack.c.h.b16 %v543
    %v817 = vunpack.c.l.b16 %v544
    %v818 = vunpack.c.h.b16 %v544
    %v819 = vunpack.c.l.b16 %v545
    %v820 = vunpack.c.h.b16 %v545
    %v821 = vunpack.c.l.b16 %v546
    %v822 = vunpack.c.h.b16 %v546
    %v823 = vunpack.c.l.b16 %v547
    %v824 = vunpack.c.h.b16 %v547
    %v825 = vunpack.c.l.b16 %v548
    %v826 = vunpack.c.h.b16 %v548
    %v827 = vunpack.c.l.b16 %v549
    %v828 = vunpack.c.h.b16 %v549
    %v829 = vunpack.c.l.b16 %v550
    %v830 = vunpack.c.h.b16 %v550
    %v831 = vunpack.c.l.b16 %v551
    %v832 = vunpack.c.h.b16 %v551
    %v833 = vunpack.c.l.b16 %v552
    %v834 = vunpack.c.h.b16 %v552
    %v835 = vunpack.c.l.b16 %v553
    %v836 = vunpack.c.h.b16 %v553
    %v837 = vunpack.c.l.b16 %v554
    %v838 = vunpack.c.h.b16 %v554
    %v839 = vunpack.c.l.b16 %v555
    %v840 = vunpack.c.h.b16 %v555
    %v841 = vunpack.c.l.b16 %v556
    %v842 = vunpack.c.h.b16 %v556
    %v843 = vunpack.c.l.b16 %v557
    %v844 = vunpack.c.h.b16 %v557
    %v845 = vunpack.c.l.b16 %v558
    %v846 = vunpack.c.h.b16 %v558
    %v847 = vunpack.c.l.b16 %v559
    %v848 = vunpack.c.h.b16 %v559
    %v849 = vunpack.c.l.b16 %v560
    %v850 = vunpack.c.h.b16 %v560
    %v851 = vunpack.c.l.b16 %v561
    %v852 = vunpack.c.h.b16 %v561
    %v853 = vunpack.c.l.b16 %v562
    %v854 = vunpack.c.h.b16 %v562
    %v855 = vunpack.c.l.b16 %v563
    %v856 = vunpack.c.h.b16 %v563
    %v857 = vunpack.c.l.b16 %v564
    %v858 = vunpack.c.h.b16 %v564
    %v859 = vunpack.c.l.b16 %v565
    %v860 = vunpack.c.h.b16 %v565
    %v861 = vunpack.c.l.b16 %v566
    %v862 = vunpack.c.h.b16 %v566
    %v863 = vunpack.c.l.b16 %v567
    %v864 = vunpack.c.h.b16 %v567
    %v865 = vunpack.c.l.b16 %v568
    %v866 = vunpack.c.h.b16 %v568
    %v867 = vunpack.c.l.b16 %v569
    %v868 = vunpack.c.h.b16 %v569
    %v869 = vunpack.c.l.b16 %v570
    %v870 = vunpack.c.h.b16 %v570
    %v871 = vunpack.c.l.b16 %v571
    %v872 = vunpack.c.h.b16 %v571
    %v873 = vunpack.c.l.b16 %v572
    %v874 = vunpack.c.h.b16 %v572
    %v875 = vunpack.c.l.b16 %v573
    %v876 = vunpack.c.h.b16 %v573
    %v877 = vunpack.c.l.b16 %v574
    %v878 = vunpack.c.h.b16 %v574
    %v879 = vunpack.c.l.b16 %v575
    %v880 = vunpack.c.h.b16 %v575
    %v881 = vunpack.c.l.b16 %v576
    %v882 = vunpack.c.h.b16 %v576
    %v883 = vunpack.c.l.b16 %v577
    %v884 = vunpack.c.h.b16 %v577
    %v885 = vunpack.c.l.b16 %v578
    %v886 = vunpack.c.h.b16 %v578
    %v887 = vunpack.c.l.b16 %v579
    %v888 = vunpack.c.h.b16 %v579
    %v889 = vunpack.c.l.b16 %v580
    %v890 = vunpack.c.h.b16 %v580
    %v891 = vunpack.c.l.b16 %v581
    %v892 = vunpack.c.h.b16 %v581
    %v893 = vunpack.c.l.b16 %v582
    %v894 = vunpack.c.h.b16 %v582
    %v895 = vunpack.c.l.b16 %v583
    %v896 = vunpack.c.h.b16 %v583
    %v897 = vunpack.c.l.b16 %v584
    %v898 = vunpack.c.h.b16 %v584
    %v899 = vunpack.c.l.b16 %v585
    %v900 = vunpack.c.h.b16 %v585
    %v901 = vunpack.c.l.b16 %v586
    %v902 = vunpack.c.h.b16 %v586
    %v903 = vunpack.c.l.b16 %v587
    %v904 = vunpack.c.h.b16 %v587
    %v905 = vunpack.c.l.b16 %v588
    %v906 = vunpack.c.h.b16 %v588
    %v907 = vunpack.c.l.b16 %v589
    %v908 = vunpack.c.h.b16 %v589
    %v909 = vunpack.c.l.b16 %v590
    %v910 = vunpack.c.h.b16 %v590
    %v911 = vunpack.c.l.b16 %v591
    %v912 = vunpack.c.h.b16 %v591
    %v913 = vunpack.c.l.b16 %v592
    %v914 = vunpack.c.h.b16 %v592
    %v915 = vunpack.c.l.b16 %v593
    %v916 = vunpack.c.h.b16 %v593
    %v917 = vunpack.c.l.b16 %v594
    %v918 = vunpack.c.h.b16 %v594
    %v919 = vunpack.c.l.b16 %v595
    %v920 = vunpack.c.h.b16 %v595
    %v921 = vunpack.c.l.b16 %v596
    %v922 = vunpack.c.h.b16 %v596
    %v923 = vunpack.c.l.b16 %v597
    %v924 = vunpack.c.h.b16 %v597
    %v925 = vunpack.c.l.b16 %v598
    %v926 = vunpack.c.h.b16 %v598
    %v927 = vunpack.c.l.b16 %v599
    %v928 = vunpack.c.h.b16 %v599
    %v929 = vunpack.c.l.b16 %v600
    %v930 = vunpack.c.h.b16 %v600
    %v931 = vunpack.c.l.b16 %v601
    %v932 = vunpack.c.h.b16 %v601
    %v933 = vunpack.c.l.b16 %v602
    %v934 = vunpack.c.h.b16 %v602
    %v935 = vunpack.c.l.b16 %v603
    %v936 = vunpack.c.h.b16 %v603
    %v937 = vunpack.c.l.b16 %v604
    %v938 = vunpack.c.h.b16 %v604
    %v939 = vunpack.c.l.b16 %v605
    %v940 = vunpack.c.h.b16 %v605
    %v941 = vunpack.c.l.b16 %v606
    %v942 = vunpack.c.h.b16 %v606
    %v943 = vunpack.c.l.b16 %v607
    %v944 = vunpack.c.h.b16 %v607
    %v945 = vunpack.c.l.b16 %v608
    %v946 = vunpack.c.h.b16 %v608
    %v947 = vunpack.c.l.b16 %v609
    %v948 = vunpack.c.h.b16 %v609
    %v949 = vunpack.c.l.b16 %v610
    %v950 = vunpack.c.h.b16 %v610
    %v951 = vunpack.c.l.b16 %v611
    %v952 = vunpack.c.h.b16 %v611
    %v953 = vunpack.c.l.b16 %v612
    %v954 = vunpack.c.h.b16 %v612
    %v955 = vunpack.c.l.b16 %v613
    %v956 = vunpack.c.h.b16 %v613
    %v957 = vunpack.c.l.b16 %v614
    %v958 = vunpack.c.h.b16 %v614
    %v959 = vunpack.c.l.b16 %v615
    %v960 = vunpack.c.h.b16 %v615
    %v961 = vunpack.c.l.b16 %v616
    %v962 = vunpack.c.h.b16 %v616
    %v963 = vunpack.c.l.b16 %v617
    %v964 = vunpack.c.h.b16 %v617
    %v965 = vunpack.c.l.b16 %v618
    %v966 = vunpack.c.h.b16 %v618
    %v967 = vunpack.c.l.b16 %v619
    %v968 = vunpack.c.h.b16 %v619
    %v969 = vunpack.c.l.b16 %v620
    %v970 = vunpack.c.h.b16 %v620
    %v971 = vunpack.c.l.b16 %v621
    %v972 = vunpack.c.h.b16 %v621
    %v973 = vunpack.c.l.b16 %v622
    %v974 = vunpack.c.h.b16 %v622
    %v975 = vunpack.c.l.b16 %v623
    %v976 = vunpack.c.h.b16 %v623
    %v977 = vunpack.c.l.b16 %v624
    %v978 = vunpack.c.h.b16 %v624
    %v979 = vunpack.c.l.b16 %v625
    %v980 = vunpack.c.h.b16 %v625
    %v981 = vunpack.c.l.b16 %v626
    %v982 = vunpack.c.h.b16 %v626
    %v983 = vunpack.c.l.b16 %v627
    %v984 = vunpack.c.h.b16 %v627
    %v985 = vunpack.c.l.b16 %v628
    %v986 = vunpack.c.h.b16 %v628
    %v987 = vunpack.c.l.b16 %v629
    %v988 = vunpack.c.h.b16 %v629
    %v989 = vunpack.c.l.b16 %v630
    %v990 = vunpack.c.h.b16 %v630
    %v991 = vunpack.c.l.b16 %v631
    %v992 = vunpack.c.h.b16 %v631
    %v993 = vunpack.c.l.b16 %v632
    %v994 = vunpack.c.h.b16 %v632
    %v995 = vunpack.c.l.b16 %v633
    %v996 = vunpack.c.h.b16 %v633
    %v997 = vunpack.c.l.b16 %v634
    %v998 = vunpack.c.h.b16 %v634
    %v999 = vunpack.c.l.b16 %v635
    %v1000 = vunpack.c.h.b16 %v635
    %v1001 = vunpack.c.l.b16 %v636
    %v1002 = vunpack.c.h.b16 %v636
    %v1003 = vunpack.c.l.b16 %v637
    %v1004 = vunpack.c.h.b16 %v637
    %v1005 = vunpack.c.l.b16 %v638
    %v1006 = vunpack.c.h.b16 %v638
    %v1007 = vunpack.c.l.b16 %v639
    %v1008 = vunpack.c.h.b16 %v639
    %v1009 = vunpack.c.l.b16 %v640
    %v1010 = vunpack.c.h.b16 %v640
    %v1011 = vunpack.c.l.b16 %v641
    %v1012 = vunpack.c.h.b16 %v641
    %v1013 = vunpack.c.l.b16 %v642
    %v1014 = vunpack.c.h.b16 %v642
    %v1015 = vunpack.c.l.b16 %v643
    %v1016 = vunpack.c.h.b16 %v643
    %v1017 = vunpack.c.l.b16 %v644
    %v1018 = vunpack.c.h.b16 %v644
    %v1019 = vunpack.c.l.b16 %v645
    %v1020 = vunpack.c.h.b16 %v645
    %v1021 = vunpack.c.l.b16 %v646
    %v1022 = vunpack.c.h.b16 %v646
    %v1023 = vunpack.c.l.b16 %v647
    %v1024 = vunpack.c.h.b16 %v647
    %v1025 = vunpack.c.l.b16 %v648
    %v1026 = vunpack.c.h.b16 %v648
    %v1027 = vunpack.c.l.b16 %v649
    %v1028 = vunpack.c.h.b16 %v649
    %v1029 = vunpack.c.l.b16 %v650
    %v1030 = vunpack.c.h.b16 %v650
    %v1031 = vunpack.c.l.b16 %v651
    %v1032 = vunpack.c.h.b16 %v651
    %v1033 = vunpack.c.l.b16 %v652
    %v1034 = vunpack.c.h.b16 %v652
    %v1035 = vunpack.c.l.b16 %v653
    %v1036 = vunpack.c.h.b16 %v653
    %v1037 = vunpack.c.l.b16 %v654
    %v1038 = vunpack.c.h.b16 %v654
    %v1039 = vpack.c.b16 %v791, %v783
    %v1040 = vpack.c.b16 %v792, %v784
    %v1041 = vpack.c.b16 %v793, %v785
    %v1042 = vpack.c.b16 %v794, %v786
    %v1043 = vpack.c.b16 %v795, %v787
    %v1044 = vpack.c.b16 %v796, %v788
    %v1045 = vpack.c.b16 %v797, %v789
    %v1046 = vpack.c.b16 %v798, %v790
    %v1047 = vpack.c.b16 %v807, %v799
    %v1048 = vpack.c.b16 %v808, %v800
    %v1049 = vpack.c.b16 %v809, %v801
    %v1050 = vpack.c.b16 %v810, %v802
    %v1051 = vpack.c.b16 %v811, %v803
    %v1052 = vpack.c.b16 %v812, %v804
    %v1053 = vpack.c.b16 %v813, %v805
    %v1054 = vpack.c.b16 %v814, %v806
    %v1055 = vpack.c.b16 %v823, %v815
    %v1056 = vpack.c.b16 %v824, %v816
    %v1057 = vpack.c.b16 %v825, %v817
    %v1058 = vpack.c.b16 %v826, %v818
    %v1059 = vpack.c.b16 %v827, %v819
    %v1060 = vpack.c.b16 %v828, %v820
    %v1061 = vpack.c.b16 %v829, %v821
    %v1062 = vpack.c.b16 %v830, %v822
    %v1063 = vpack.c.b16 %v839, %v831
    %v1064 = vpack.c.b16 %v840, %v832
    %v1065 = vpack.c.b16 %v841, %v833
    %v1066 = vpack.c.b16 %v842, %v834
    %v1067 = vpack.c.b16 %v843, %v835
    %v1068 = vpack.c.b16 %v844, %v836
    %v1069 = vpack.c.b16 %v845, %v837
    %v1070 = vpack.c.b16 %v846, %v838
    %v1071 = vpack.c.b16 %v855, %v847
    %v1072 = vpack.c.b16 %v856, %v848
    %v1073 = vpack.c.b16 %v857, %v849
    %v1074 = vpack.c.b16 %v858, %v850
    %v1075 = vpack.c.b16 %v859, %v851
    %v1076 = vpack.c.b16 %v860, %v852
    %v1077 = vpack.c.b16 %v861, %v853
    %v1078 = vpack.c.b16 %v862, %v854
    %v1079 = vpack.c.b16 %v871, %v863
    %v1080 = vpack.c.b16 %v872, %v864
    %v1081 = vpack.c.b16 %v873, %v865
    %v1082 = vpack.c.b16 %v874, %v866
    %v1083 = vpack.c.b16 %v875, %v867
    %v1084 = vpack.c.b16 %v876, %v868
    %v1085 = vpack.c.b16 %v877, %v869
    %v1086 = vpack.c.b16 %v878, %v870
    %v1087 = vpack.c.b16 %v887, %v879
    %v1088 = vpack.c.b16 %v888, %v880
    %v1089 = vpack.c.b16 %v889, %v881
    %v1090 = vpack.c.b16 %v890, %v882
    %v1091 = vpack.c.b16 %v891, %v883
    %v1092 = vpack.c.b16 %v892, %v884
    %v1093 = vpack.c.b16 %v893, %v885
    %v1094 = vpack.c.b16 %v894, %v886
    %v1095 = vpack.c.b16 %v903, %v895
    %v1096 = vpack.c.b16 %v904, %v896
    %v1097 = vpack.c.b16 %v905, %v897
    %v1098 = vpack.c.b16 %v906, %v898
    %v1099 = vpack.c.b16 %v907, %v899
    %v1100 = vpack.c.b16 %v908, %v900
    %v1101 = vpack.c.b16 %v909, %v901
    %v1102 = vpack.c.b16 %v910, %v902
    %v1103 = vpack.c.b16 %v919, %v911
    %v1104 = vpack.c.b16 %v920, %v912
    %v1105 = vpack.c.b16 %v921, %v913
    %v1106 = vpack.c.b16 %v922, %v914
    %v1107 = vpack.c.b16 %v923, %v915
    %v1108 = vpack.c.b16 %v924, %v916
    %v1109 = vpack.c.b16 %v925, %v917
    %v1110 = vpack.c.b16 %v926, %v918
    %v1111 = vpack.c.b16 %v935, %v927
    %v1112 = vpack.c.b16 %v936, %v928
    %v1113 = vpack.c.b16 %v937, %v929
    %v1114 = vpack.c.b16 %v938, %v930
    %v1115 = vpack.c.b16 %v939, %v931
    %v1116 = vpack.c.b16 %v940, %v932
    %v1117 = vpack.c.b16 %v941, %v933
    %v1118 = vpack.c.b16 %v942, %v934
    %v1119 = vpack.c.b16 %v951, %v943
    %v1120 = vpack.c.b16 %v952, %v944
    %v1121 = vpack.c.b16 %v953, %v945
    %v1122 = vpack.c.b16 %v954, %v946
    %v1123 = vpack.c.b16 %v955, %v947
    %v1124 = vpack.c.b16 %v956, %v948
    %v1125 = vpack.c.b16 %v957, %v949
    %v1126 = vpack.c.b16 %v958, %v950
    %v1127 = vpack.c.b16 %v967, %v959
    %v1128 = vpack.c.b16 %v968, %v960
    %v1129 = vpack.c.b16 %v969, %v961
    %v1130 = vpack.c.b16 %v970, %v962
    %v1131 = vpack.c.b16 %v971, %v963
    %v1132 = vpack.c.b16 %v972, %v964
    %v1133 = vpack.c.b16 %v973, %v965
    %v1134 = vpack.c.b16 %v974, %v966
    %v1135 = vpack.c.b16 %v983, %v975
    %v1136 = vpack.c.b16 %v984, %v976
    %v1137 = vpack.c.b16 %v985, %v977
    %v1138 = vpack.c.b16 %v986, %v978
    %v1139 = vpack.c.b16 %v987, %v979
    %v1140 = vpack.c.b16 %v988, %v980
    %v1141 = vpack.c.b16 %v989, %v981
    %v1142 = vpack.c.b16 %v990, %v982
    %v1143 = vpack.c.b16 %v999, %v991
    %v1144 = vpack.c.b16 %v1000, %v992
    %v1145 = vpack.c.b16 %v1001, %v993
    %v1146 = vpack.c.b16 %v1002, %v994
    %v1147 = vpack.c.b16 %v1003, %v995
    %v1148 = vpack.c.b16 %v1004, %v996
    %v1149 = vpack.c.b16 %v1005, %v997
    %v1150 = vpack.c.b16 %v1006, %v998
    %v1151 = vpack.c.b16 %v1015, %v1007
    %v1152 = vpack.c.b16 %v1016, %v1008
    %v1153 = vpack.c.b16 %v1017, %v1009
    %v1154 = vpack.c.b16 %v1018, %v1010
    %v1155 = vpack.c.b16 %v1019, %v1011
    %v1156 = vpack.c.b16 %v1020, %v1012
    %v1157 = vpack.c.b16 %v1021, %v1013
    %v1158 = vpack.c.b16 %v1022, %v1014
    %v1159 = vpack.c.b16 %v1031, %v1023
    %v1160 = vpack.c.b16 %v1032, %v1024
    %v1161 = vpack.c.b16 %v1033, %v1025
    %v1162 = vpack.c.b16 %v1034, %v1026
    %v1163 = vpack.c.b16 %v1035, %v1027
    %v1164 = vpack.c.b16 %v1036, %v1028
    %v1165 = vpack.c.b16 %v1037, %v1029
    %v1166 = vpack.c.b16 %v1038, %v1030
    %1295 = vmatprep.subr.bf16.mxu0 %v1040
    %1296 = vmatpush1.bf16.msra.mxu0 %v1039
    %1297 = vmatprep.subr.bf16.mxu0 %v1048
    %1298 = vmatpush1.bf16.msra.mxu0 %v1047
    %1299 = vmatprep.subr.bf16.mxu0 %v1056
    %1300 = vmatpush1.bf16.msra.mxu0 %v1055
    %1301 = vmatprep.subr.bf16.mxu0 %v1064
    %1302 = vmatpush1.bf16.msra.mxu0 %v1063
    %1303 = vmatprep.subr.bf16.mxu0 %v1072
    %1304 = vmatpush1.bf16.msra.mxu0 %v1071
    %1305 = vmatprep.subr.bf16.mxu0 %v1080
    %1306 = vmatpush1.bf16.msra.mxu0 %v1079
    %1307 = vmatprep.subr.bf16.mxu0 %v1088
    %1308 = vmatpush1.bf16.msra.mxu0 %v1087
    %1309 = vmatprep.subr.bf16.mxu0 %v1096
    %1310 = vmatpush1.bf16.msra.mxu0 %v1095
    %1311 = vmatprep.subr.bf16.mxu0 %v1104
    %1312 = vmatpush1.bf16.msra.mxu0 %v1103
    %1313 = vmatprep.subr.bf16.mxu0 %v1112
    %1314 = vmatpush1.bf16.msra.mxu0 %v1111
    %1315 = vmatprep.subr.bf16.mxu0 %v1120
    %1316 = vmatpush1.bf16.msra.mxu0 %v1119
    %1317 = vmatprep.subr.bf16.mxu0 %v1128
    %1318 = vmatpush1.bf16.msra.mxu0 %v1127
    %1319 = vmatprep.subr.bf16.mxu0 %v1136
    %1320 = vmatpush1.bf16.msra.mxu0 %v1135
    %1321 = vmatprep.subr.bf16.mxu0 %v1144
    %1322 = vmatpush1.bf16.msra.mxu0 %v1143
    %1323 = vmatprep.subr.bf16.mxu0 %v1152
    %1324 = vmatpush1.bf16.msra.mxu0 %v1151
    %1325 = vmatprep.subr.bf16.mxu0 %v1160
    %1326 = vmatpush1.bf16.msra.mxu0 %v1159
    %1327 = vmatprep.mubr.bf16.mxu0 0
    %1328 = vmatmul.mubr.bf16.gmra.mrb[0].mxu0 0
    %v1329 = vpop.f32.mrb[0].mxu0
    %v1330 = vadd.f32 0.0, %v1329
    %v1331 = vpop.f32.mrb[0].mxu0
    %v1332 = vadd.f32 0.0, %v1331
    %v1333 = vpop.f32.mrb[0].mxu0
    %v1334 = vpop.f32.mrb[0].mxu0
    %1335 = vdwg.mxu0
    %1336 = vmatprep.subr.bf16.mxu0 %v1042
    %1337 = vmatpush1.bf16.msra.mxu0 %v1041
    %1338 = vmatprep.subr.bf16.mxu0 %v1050
    %1339 = vmatpush1.bf16.msra.mxu0 %v1049
    %1340 = vmatprep.subr.bf16.mxu0 %v1058
    %1341 = vmatpush1.bf16.msra.mxu0 %v1057
    %1342 = vmatprep.subr.bf16.mxu0 %v1066
    %1343 = vmatpush1.bf16.msra.mxu0 %v1065
    %1344 = vmatprep.subr.bf16.mxu0 %v1074
    %1345 = vmatpush1.bf16.msra.mxu0 %v1073
    %1346 = vmatprep.subr.bf16.mxu0 %v1082
    %1347 = vmatpush1.bf16.msra.mxu0 %v1081
    %1348 = vmatprep.subr.bf16.mxu0 %v1090
    %1349 = vmatpush1.bf16.msra.mxu0 %v1089
    %1350 = vmatprep.subr.bf16.mxu0 %v1098
    %1351 = vmatpush1.bf16.msra.mxu0 %v1097
    %1352 = vmatprep.subr.bf16.mxu0 %v1106
    %1353 = vmatpush1.bf16.msra.mxu0 %v1105
    %1354 = vmatprep.subr.bf16.mxu0 %v1114
    %1355 = vmatpush1.bf16.msra.mxu0 %v1113
    %1356 = vmatprep.subr.bf16.mxu0 %v1122
    %1357 = vmatpush1.bf16.msra.mxu0 %v1121
    %1358 = vmatprep.subr.bf16.mxu0 %v1130
    %1359 = vmatpush1.bf16.msra.mxu0 %v1129
    %1360 = vmatprep.subr.bf16.mxu0 %v1138
    %1361 = vmatpush1.bf16.msra.mxu0 %v1137
    %1362 = vmatprep.subr.bf16.mxu0 %v1146
    %1363 = vmatpush1.bf16.msra.mxu0 %v1145
    %1364 = vmatprep.subr.bf16.mxu0 %v1154
    %1365 = vmatpush1.bf16.msra.mxu0 %v1153
    %1366 = vmatprep.subr.bf16.mxu0 %v1162
    %1367 = vmatpush1.bf16.msra.mxu0 %v1161
    %1368 = vmatprep.mubr.bf16.mxu0 0
    %1369 = vmatmul.mubr.bf16.gmra.mrb[0].mxu0 0
    %v1370 = vpop.f32.mrb[0].mxu0
    %v1371 = vadd.f32 0.0, %v1370
    %v1372 = vpop.f32.mrb[0].mxu0
    %v1373 = vadd.f32 0.0, %v1372
    %v1374 = vpop.f32.mrb[0].mxu0
    %v1375 = vpop.f32.mrb[0].mxu0
    %1376 = vdwg.mxu0
    %1377 = vmatprep.subr.bf16.mxu0 %v1044
    %1378 = vmatpush1.bf16.msra.mxu0 %v1043
    %1379 = vmatprep.subr.bf16.mxu0 %v1052
    %1380 = vmatpush1.bf16.msra.mxu0 %v1051
    %1381 = vmatprep.subr.bf16.mxu0 %v1060
    %1382 = vmatpush1.bf16.msra.mxu0 %v1059
    %1383 = vmatprep.subr.bf16.mxu0 %v1068
    %1384 = vmatpush1.bf16.msra.mxu0 %v1067
    %1385 = vmatprep.subr.bf16.mxu0 %v1076
    %1386 = vmatpush1.bf16.msra.mxu0 %v1075
    %1387 = vmatprep.subr.bf16.mxu0 %v1084
    %1388 = vmatpush1.bf16.msra.mxu0 %v1083
    %1389 = vmatprep.subr.bf16.mxu0 %v1092
    %1390 = vmatpush1.bf16.msra.mxu0 %v1091
    %1391 = vmatprep.subr.bf16.mxu0 %v1100
    %1392 = vmatpush1.bf16.msra.mxu0 %v1099
    %1393 = vmatprep.subr.bf16.mxu0 %v1108
    %1394 = vmatpush1.bf16.msra.mxu0 %v1107
    %1395 = vmatprep.subr.bf16.mxu0 %v1116
    %1396 = vmatpush1.bf16.msra.mxu0 %v1115
    %1397 = vmatprep.subr.bf16.mxu0 %v1124
    %1398 = vmatpush1.bf16.msra.mxu0 %v1123
    %1399 = vmatprep.subr.bf16.mxu0 %v1132
    %1400 = vmatpush1.bf16.msra.mxu0 %v1131
    %1401 = vmatprep.subr.bf16.mxu0 %v1140
    %1402 = vmatpush1.bf16.msra.mxu0 %v1139
    %1403 = vmatprep.subr.bf16.mxu0 %v1148
    %1404 = vmatpush1.bf16.msra.mxu0 %v1147
    %1405 = vmatprep.subr.bf16.mxu0 %v1156
    %1406 = vmatpush1.bf16.msra.mxu0 %v1155
    %1407 = vmatprep.subr.bf16.mxu0 %v1164
    %1408 = vmatpush1.bf16.msra.mxu0 %v1163
    %1409 = vmatprep.mubr.bf16.mxu0 0
    %1410 = vmatmul.mubr.bf16.gmra.mrb[0].mxu0 0
    %v1411 = vpop.f32.mrb[0].mxu0
    %v1412 = vadd.f32 0.0, %v1411
    %v1413 = vpop.f32.mrb[0].mxu0
    %v1414 = vadd.f32 0.0, %v1413
    %v1415 = vpop.f32.mrb[0].mxu0
    %v1416 = vpop.f32.mrb[0].mxu0
    %1417 = vdwg.mxu0
    %1418 = vmatprep.subr.bf16.mxu0 %v1046
    %1419 = vmatpush1.bf16.msra.mxu0 %v1045
    %1420 = vmatprep.subr.bf16.mxu0 %v1054
    %1421 = vmatpush1.bf16.msra.mxu0 %v1053
    %1422 = vmatprep.subr.bf16.mxu0 %v1062
    %1423 = vmatpush1.bf16.msra.mxu0 %v1061
    %1424 = vmatprep.subr.bf16.mxu0 %v1070
    %1425 = vmatpush1.bf16.msra.mxu0 %v1069
    %1426 = vmatprep.subr.bf16.mxu0 %v1078
    %1427 = vmatpush1.bf16.msra.mxu0 %v1077
    %1428 = vmatprep.subr.bf16.mxu0 %v1086
    %1429 = vmatpush1.bf16.msra.mxu0 %v1085
    %1430 = vmatprep.subr.bf16.mxu0 %v1094
    %1431 = vmatpush1.bf16.msra.mxu0 %v1093
    %1432 = vmatprep.subr.bf16.mxu0 %v1102
    %1433 = vmatpush1.bf16.msra.mxu0 %v1101
    %1434 = vmatprep.subr.bf16.mxu0 %v1110
    %1435 = vmatpush1.bf16.msra.mxu0 %v1109
    %1436 = vmatprep.subr.bf16.mxu0 %v1118
    %1437 = vmatpush1.bf16.msra.mxu0 %v1117
    %1438 = vmatprep.subr.bf16.mxu0 %v1126
    %1439 = vmatpush1.bf16.msra.mxu0 %v1125
    %1440 = vmatprep.subr.bf16.mxu0 %v1134
    %1441 = vmatpush1.bf16.msra.mxu0 %v1133
    %1442 = vmatprep.subr.bf16.mxu0 %v1142
    %1443 = vmatpush1.bf16.msra.mxu0 %v1141
    %1444 = vmatprep.subr.bf16.mxu0 %v1150
    %1445 = vmatpush1.bf16.msra.mxu0 %v1149
    %1446 = vmatprep.subr.bf16.mxu0 %v1158
    %1447 = vmatpush1.bf16.msra.mxu0 %v1157
    %1448 = vmatprep.subr.bf16.mxu0 %v1166
    %1449 = vmatpush1.bf16.msra.mxu0 %v1165
    %1450 = vmatprep.mubr.bf16.mxu0 0
    %1451 = vmatmul.mubr.bf16.gmra.mrb[0].mxu0 0
    %v1452 = vpop.f32.mrb[0].mxu0
    %v1453 = vadd.f32 0.0, %v1452
    %v1454 = vpop.f32.mrb[0].mxu0
    %v1455 = vadd.f32 0.0, %v1454
    %v1456 = vpop.f32.mrb[0].mxu0
    %v1457 = vpop.f32.mrb[0].mxu0
    %1458 = vdwg.mxu0
    %v1459 = vadd.f32 %v390, %v1330
    %v1460 = vadd.f32 %v392, %v1332
    %v1461 = vadd.f32 %v433, %v1371
    %v1462 = vadd.f32 %v435, %v1373
    %v1463 = vadd.f32 %v476, %v1412
    %v1464 = vadd.f32 %v478, %v1414
    %v1465 = vadd.f32 %v519, %v1453
    %v1466 = vadd.f32 %v521, %v1455
    %v1467 = vxor.u32 %v1459, 2147483648
    %v1468 = vxor.u32 %v1460, 2147483648
    %v1469 = vmul.f32 %v1467, 1.442695
    %v1470 = vpow.pop %v1469
    %v1471 = vmul.f32 %v1468, 1.442695
    %v1472 = vpow.pop %v1471
    %v1473 = vadd.f32 %v1470, 1.0
    %v1474 = vadd.f32 %v1472, 1.0
    %v1475 = vrcp.pop %v1473
    %v1476 = vmul.f32 1.0, %v1475
    %v1477 = vrcp.pop %v1474
    %v1478 = vmul.f32 1.0, %v1477
    %v1479 = vxor.u32 %v1461, 2147483648
    %v1480 = vxor.u32 %v1462, 2147483648
    %v1481 = vmul.f32 %v1479, 1.442695
    %v1482 = vpow.pop %v1481
    %v1483 = vmul.f32 %v1480, 1.442695
    %v1484 = vpow.pop %v1483
    %v1485 = vadd.f32 %v1482, 1.0
    %v1486 = vadd.f32 %v1484, 1.0
    %v1487 = vrcp.pop %v1485
    %v1488 = vmul.f32 1.0, %v1487
    %v1489 = vrcp.pop %v1486
    %v1490 = vmul.f32 1.0, %v1489
    %v1491 = vtanh.pop %v1463
    %v1492 = vtanh.pop %v1464
    %v1493 = vxor.u32 %v1465, 2147483648
    %v1494 = vxor.u32 %v1466, 2147483648
    %v1495 = vmul.f32 %v1493, 1.442695
    %v1496 = vpow.pop %v1495
    %v1497 = vmul.f32 %v1494, 1.442695
    %v1498 = vpow.pop %v1497
    %v1499 = vadd.f32 %v1496, 1.0
    %v1500 = vadd.f32 %v1498, 1.0
    %v1501 = vrcp.pop %v1499
    %v1502 = vmul.f32 1.0, %v1501
    %v1503 = vrcp.pop %v1500
    %v1504 = vmul.f32 1.0, %v1503
    %v1505 = vmul.f32 %v1488, 0.0
    %v1506 = vmul.f32 %v1490, 0.0
    %v1507 = vmul.f32 %v1476, %v1491
    %v1508 = vmul.f32 %v1478, %v1492
    %v1509 = vadd.f32 %v1505, %v1507
    %v1510 = vadd.f32 %v1506, %v1508
    %v1511 = vtanh.pop %v1509
    %v1512 = vtanh.pop %v1510
    %v1513 = vmul.f32 %v1502, %v1511
    %v1514 = vmul.f32 %v1504, %v1512
    %v1515 = vpack.c.bf16 %v1513, %v1513
    %v1516 = vpack.c.bf16 %v1514, %v1514
    %1517 = vmatprep.subr.bf16.mxu0 %v1040
    %1518 = vmatpush1.bf16.msra.mxu0 %v1039
    %1519 = vmatprep.subr.bf16.mxu0 %v1048
    %1520 = vmatpush1.bf16.msra.mxu0 %v1047
    %1521 = vmatprep.subr.bf16.mxu0 %v1056
    %1522 = vmatpush1.bf16.msra.mxu0 %v1055
    %1523 = vmatprep.subr.bf16.mxu0 %v1064
    %1524 = vmatpush1.bf16.msra.mxu0 %v1063
    %1525 = vmatprep.subr.bf16.mxu0 %v1072
    %1526 = vmatpush1.bf16.msra.mxu0 %v1071
    %1527 = vmatprep.subr.bf16.mxu0 %v1080
    %1528 = vmatpush1.bf16.msra.mxu0 %v1079
    %1529 = vmatprep.subr.bf16.mxu0 %v1088
    %1530 = vmatpush1.bf16.msra.mxu0 %v1087
    %1531 = vmatprep.subr.bf16.mxu0 %v1096
    %1532 = vmatpush1.bf16.msra.mxu0 %v1095
    %1533 = vmatprep.subr.bf16.mxu0 %v1104
    %1534 = vmatpush1.bf16.msra.mxu0 %v1103
    %1535 = vmatprep.subr.bf16.mxu0 %v1112
    %1536 = vmatpush1.bf16.msra.mxu0 %v1111
    %1537 = vmatprep.subr.bf16.mxu0 %v1120
    %1538 = vmatpush1.bf16.msra.mxu0 %v1119
    %1539 = vmatprep.subr.bf16.mxu0 %v1128
    %1540 = vmatpush1.bf16.msra.mxu0 %v1127
    %1541 = vmatprep.subr.bf16.mxu0 %v1136
    %1542 = vmatpush1.bf16.msra.mxu0 %v1135
    %1543 = vmatprep.subr.bf16.mxu0 %v1144
    %1544 = vmatpush1.bf16.msra.mxu0 %v1143
    %1545 = vmatprep.subr.bf16.mxu0 %v1152
    %1546 = vmatpush1.bf16.msra.mxu0 %v1151
    %1547 = vmatprep.subr.bf16.mxu0 %v1160
    %1548 = vmatpush1.bf16.msra.mxu0 %v1159
    %1549 = vmatprep.mubr.bf16.mxu0 %v1516
    %1550 = vmatmul.mubr.bf16.gmra.mrb[0].mxu0 %v1515
    %v1551 = vpop.f32.mrb[0].mxu0
    %v1552 = vadd.f32 0.0, %v1551
    %v1553 = vpop.f32.mrb[0].mxu0
    %v1554 = vadd.f32 0.0, %v1553
    %v1555 = vpop.f32.mrb[0].mxu0
    %v1556 = vpop.f32.mrb[0].mxu0
    %1557 = vdwg.mxu0
    %1558 = vmatprep.subr.bf16.mxu0 %v1042
    %1559 = vmatpush1.bf16.msra.mxu0 %v1041
    %1560 = vmatprep.subr.bf16.mxu0 %v1050
    %1561 = vmatpush1.bf16.msra.mxu0 %v1049
    %1562 = vmatprep.subr.bf16.mxu0 %v1058
    %1563 = vmatpush1.bf16.msra.mxu0 %v1057
    %1564 = vmatprep.subr.bf16.mxu0 %v1066
    %1565 = vmatpush1.bf16.msra.mxu0 %v1065
    %1566 = vmatprep.subr.bf16.mxu0 %v1074
    %1567 = vmatpush1.bf16.msra.mxu0 %v1073
    %1568 = vmatprep.subr.bf16.mxu0 %v1082
    %1569 = vmatpush1.bf16.msra.mxu0 %v1081
    %1570 = vmatprep.subr.bf16.mxu0 %v1090
    %1571 = vmatpush1.bf16.msra.mxu0 %v1089
    %1572 = vmatprep.subr.bf16.mxu0 %v1098
    %1573 = vmatpush1.bf16.msra.mxu0 %v1097
    %1574 = vmatprep.subr.bf16.mxu0 %v1106
    %1575 = vmatpush1.bf16.msra.mxu0 %v1105
    %1576 = vmatprep.subr.bf16.mxu0 %v1114
    %1577 = vmatpush1.bf16.msra.mxu0 %v1113
    %1578 = vmatprep.subr.bf16.mxu0 %v1122
    %1579 = vmatpush1.bf16.msra.mxu0 %v1121
    %1580 = vmatprep.subr.bf16.mxu0 %v1130
    %1581 = vmatpush1.bf16.msra.mxu0 %v1129
    %1582 = vmatprep.subr.bf16.mxu0 %v1138
    %1583 = vmatpush1.bf16.msra.mxu0 %v1137
    %1584 = vmatprep.subr.bf16.mxu0 %v1146
    %1585 = vmatpush1.bf16.msra.mxu0 %v1145
    %1586 = vmatprep.subr.bf16.mxu0 %v1154
    %1587 = vmatpush1.bf16.msra.mxu0 %v1153
    %1588 = vmatprep.subr.bf16.mxu0 %v1162
    %1589 = vmatpush1.bf16.msra.mxu0 %v1161
    %1590 = vmatprep.mubr.bf16.mxu0 %v1516
    %1591 = vmatmul.mubr.bf16.gmra.mrb[0].mxu0 %v1515
    %v1592 = vpop.f32.mrb[0].mxu0
    %v1593 = vadd.f32 0.0, %v1592
    %v1594 = vpop.f32.mrb[0].mxu0
    %v1595 = vadd.f32 0.0, %v1594
    %v1596 = vpop.f32.mrb[0].mxu0
    %v1597 = vpop.f32.mrb[0].mxu0
    %1598 = vdwg.mxu0
    %1599 = vmatprep.subr.bf16.mxu0 %v1044
    %1600 = vmatpush1.bf16.msra.mxu0 %v1043
    %1601 = vmatprep.subr.bf16.mxu0 %v1052
    %1602 = vmatpush1.bf16.msra.mxu0 %v1051
    %1603 = vmatprep.subr.bf16.mxu0 %v1060
    %1604 = vmatpush1.bf16.msra.mxu0 %v1059
    %1605 = vmatprep.subr.bf16.mxu0 %v1068
    %1606 = vmatpush1.bf16.msra.mxu0 %v1067
    %1607 = vmatprep.subr.bf16.mxu0 %v1076
    %1608 = vmatpush1.bf16.msra.mxu0 %v1075
    %1609 = vmatprep.subr.bf16.mxu0 %v1084
    %1610 = vmatpush1.bf16.msra.mxu0 %v1083
    %1611 = vmatprep.subr.bf16.mxu0 %v1092
    %1612 = vmatpush1.bf16.msra.mxu0 %v1091
    %1613 = vmatprep.subr.bf16.mxu0 %v1100
    %1614 = vmatpush1.bf16.msra.mxu0 %v1099
    %1615 = vmatprep.subr.bf16.mxu0 %v1108
    %1616 = vmatpush1.bf16.msra.mxu0 %v1107
    %1617 = vmatprep.subr.bf16.mxu0 %v1116
    %1618 = vmatpush1.bf16.msra.mxu0 %v1115
    %1619 = vmatprep.subr.bf16.mxu0 %v1124
    %1620 = vmatpush1.bf16.msra.mxu0 %v1123
    %1621 = vmatprep.subr.bf16.mxu0 %v1132
    %1622 = vmatpush1.bf16.msra.mxu0 %v1131
    %1623 = vmatprep.subr.bf16.mxu0 %v1140
    %1624 = vmatpush1.bf16.msra.mxu0 %v1139
    %1625 = vmatprep.subr.bf16.mxu0 %v1148
    %1626 = vmatpush1.bf16.msra.mxu0 %v1147
    %1627 = vmatprep.subr.bf16.mxu0 %v1156
    %1628 = vmatpush1.bf16.msra.mxu0 %v1155
    %1629 = vmatprep.subr.bf16.mxu0 %v1164
    %1630 = vmatpush1.bf16.msra.mxu0 %v1163
    %1631 = vmatprep.mubr.bf16.mxu0 %v1516
    %1632 = vmatmul.mubr.bf16.gmra.mrb[0].mxu0 %v1515
    %v1633 = vpop.f32.mrb[0].mxu0
    %v1634 = vadd.f32 0.0, %v1633
    %v1635 = vpop.f32.mrb[0].mxu0
    %v1636 = vadd.f32 0.0, %v1635
    %v1637 = vpop.f32.mrb[0].mxu0
    %v1638 = vpop.f32.mrb[0].mxu0
    %1639 = vdwg.mxu0
    %1640 = vmatprep.subr.bf16.mxu0 %v1046
    %1641 = vmatpush1.bf16.msra.mxu0 %v1045
    %1642 = vmatprep.subr.bf16.mxu0 %v1054
    %1643 = vmatpush1.bf16.msra.mxu0 %v1053
    %1644 = vmatprep.subr.bf16.mxu0 %v1062
    %1645 = vmatpush1.bf16.msra.mxu0 %v1061
    %1646 = vmatprep.subr.bf16.mxu0 %v1070
    %1647 = vmatpush1.bf16.msra.mxu0 %v1069
    %1648 = vmatprep.subr.bf16.mxu0 %v1078
    %1649 = vmatpush1.bf16.msra.mxu0 %v1077
    %1650 = vmatprep.subr.bf16.mxu0 %v1086
    %1651 = vmatpush1.bf16.msra.mxu0 %v1085
    %1652 = vmatprep.subr.bf16.mxu0 %v1094
    %1653 = vmatpush1.bf16.msra.mxu0 %v1093
    %1654 = vmatprep.subr.bf16.mxu0 %v1102
    %1655 = vmatpush1.bf16.msra.mxu0 %v1101
    %1656 = vmatprep.subr.bf16.mxu0 %v1110
    %1657 = vmatpush1.bf16.msra.mxu0 %v1109
    %1658 = vmatprep.subr.bf16.mxu0 %v1118
    %1659 = vmatpush1.bf16.msra.mxu0 %v1117
    %1660 = vmatprep.subr.bf16.mxu0 %v1126
    %1661 = vmatpush1.bf16.msra.mxu0 %v1125
    %1662 = vmatprep.subr.bf16.mxu0 %v1134
    %1663 = vmatpush1.bf16.msra.mxu0 %v1133
    %1664 = vmatprep.subr.bf16.mxu0 %v1142
    %1665 = vmatpush1.bf16.msra.mxu0 %v1141
    %1666 = vmatprep.subr.bf16.mxu0 %v1150
    %1667 = vmatpush1.bf16.msra.mxu0 %v1149
    %1668 = vmatprep.subr.bf16.mxu0 %v1158
    %1669 = vmatpush1.bf16.msra.mxu0 %v1157
    %1670 = vmatprep.subr.bf16.mxu0 %v1166
    %1671 = vmatpush1.bf16.msra.mxu0 %v1165
    %1672 = vmatprep.mubr.bf16.mxu0 %v1516
    %1673 = vmatmul.mubr.bf16.gmra.mrb[0].mxu0 %v1515
    %v1674 = vpop.f32.mrb[0].mxu0
    %v1675 = vadd.f32 0.0, %v1674
    %v1676 = vpop.f32.mrb[0].mxu0
    %v1677 = vadd.f32 0.0, %v1676
    %v1678 = vpop.f32.mrb[0].mxu0
    %v1679 = vpop.f32.mrb[0].mxu0
    %1680 = vdwg.mxu0
    %v1689 = vrot.slane %v1552, 6
    %v1690 = vrot.slane %v1554, 6
    %v1691 = vrot.slane %v1593, 6
    %v1692 = vrot.slane %v1595, 6
    %v1693 = vrot.slane %v1634, 6
    %v1694 = vrot.slane %v1636, 6
    %v1695 = vrot.slane %v1675, 6
    %v1696 = vrot.slane %v1677, 6
    %v1705 = vadd.f32 %v390, %v1689
    %v1706 = vadd.f32 %v392, %v1690
    %v1707 = vadd.f32 %v433, %v1691
    %v1708 = vadd.f32 %v435, %v1692
    %v1709 = vadd.f32 %v476, %v1693
    %v1710 = vadd.f32 %v478, %v1694
    %v1711 = vadd.f32 %v519, %v1695
    %v1712 = vadd.f32 %v521, %v1696
    %v1713 = vxor.u32 %v1705, 2147483648
    %v1714 = vxor.u32 %v1706, 2147483648
    %v1715 = vmul.f32 %v1713, 1.442695
    %v1716 = vpow.pop %v1715
    %v1717 = vmul.f32 %v1714, 1.442695
    %v1718 = vpow.pop %v1717
    %v1719 = vadd.f32 %v1716, 1.0
    %v1720 = vadd.f32 %v1718, 1.0
    %v1721 = vrcp.pop %v1719
    %v1722 = vmul.f32 1.0, %v1721
    %v1723 = vrcp.pop %v1720
    %v1724 = vmul.f32 1.0, %v1723
    %v1725 = vxor.u32 %v1707, 2147483648
    %v1726 = vxor.u32 %v1708, 2147483648
    %v1727 = vmul.f32 %v1725, 1.442695
    %v1728 = vpow.pop %v1727
    %v1729 = vmul.f32 %v1726, 1.442695
    %v1730 = vpow.pop %v1729
    %v1731 = vadd.f32 %v1728, 1.0
    %v1732 = vadd.f32 %v1730, 1.0
    %v1733 = vrcp.pop %v1731
    %v1734 = vmul.f32 1.0, %v1733
    %v1735 = vrcp.pop %v1732
    %v1736 = vmul.f32 1.0, %v1735
    %v1737 = vtanh.pop %v1709
    %v1738 = vtanh.pop %v1710
    %v1739 = vxor.u32 %v1711, 2147483648
    %v1740 = vxor.u32 %v1712, 2147483648
    %v1741 = vmul.f32 %v1739, 1.442695
    %v1742 = vpow.pop %v1741
    %v1743 = vmul.f32 %v1740, 1.442695
    %v1744 = vpow.pop %v1743
    %v1745 = vadd.f32 %v1742, 1.0
    %v1746 = vadd.f32 %v1744, 1.0
    %v1747 = vrcp.pop %v1745
    %v1748 = vmul.f32 1.0, %v1747
    %v1749 = vrcp.pop %v1746
    %v1750 = vmul.f32 1.0, %v1749
    %v1753 = vrot.slane %v1509, 6
    %v1754 = vrot.slane %v1510, 6
    %v1757 = vmul.f32 %v1734, %v1753
    %v1758 = vmul.f32 %v1736, %v1754
    %v1759 = vmul.f32 %v1722, %v1737
    %v1760 = vmul.f32 %v1724, %v1738
    %v1761 = vadd.f32 %v1757, %v1759
    %v1762 = vadd.f32 %v1758, %v1760
    %v1763 = vtanh.pop %v1761
    %v1764 = vtanh.pop %v1762
    %v1765 = vmul.f32 %v1748, %v1763
    %v1766 = vmul.f32 %v1750, %v1764
    %v1767 = vpack.c.bf16 %v1765, %v1765
    %v1768 = vpack.c.bf16 %v1766, %v1766
    %v1771 = vrot.slane %v1767, 1
    %v1772 = vrot.slane %v1768, 1
    %1775 = vmatprep.subr.bf16.mxu0 %v1040
    %1776 = vmatpush1.bf16.msra.mxu0 %v1039
    %1777 = vmatprep.subr.bf16.mxu0 %v1048
    %1778 = vmatpush1.bf16.msra.mxu0 %v1047
    %1779 = vmatprep.subr.bf16.mxu0 %v1056
    %1780 = vmatpush1.bf16.msra.mxu0 %v1055
    %1781 = vmatprep.subr.bf16.mxu0 %v1064
    %1782 = vmatpush1.bf16.msra.mxu0 %v1063
    %1783 = vmatprep.subr.bf16.mxu0 %v1072
    %1784 = vmatpush1.bf16.msra.mxu0 %v1071
    %1785 = vmatprep.subr.bf16.mxu0 %v1080
    %1786 = vmatpush1.bf16.msra.mxu0 %v1079
    %1787 = vmatprep.subr.bf16.mxu0 %v1088
    %1788 = vmatpush1.bf16.msra.mxu0 %v1087
    %1789 = vmatprep.subr.bf16.mxu0 %v1096
    %1790 = vmatpush1.bf16.msra.mxu0 %v1095
    %1791 = vmatprep.subr.bf16.mxu0 %v1104
    %1792 = vmatpush1.bf16.msra.mxu0 %v1103
    %1793 = vmatprep.subr.bf16.mxu0 %v1112
    %1794 = vmatpush1.bf16.msra.mxu0 %v1111
    %1795 = vmatprep.subr.bf16.mxu0 %v1120
    %1796 = vmatpush1.bf16.msra.mxu0 %v1119
    %1797 = vmatprep.subr.bf16.mxu0 %v1128
    %1798 = vmatpush1.bf16.msra.mxu0 %v1127
    %1799 = vmatprep.subr.bf16.mxu0 %v1136
    %1800 = vmatpush1.bf16.msra.mxu0 %v1135
    %1801 = vmatprep.subr.bf16.mxu0 %v1144
    %1802 = vmatpush1.bf16.msra.mxu0 %v1143
    %1803 = vmatprep.subr.bf16.mxu0 %v1152
    %1804 = vmatpush1.bf16.msra.mxu0 %v1151
    %1805 = vmatprep.subr.bf16.mxu0 %v1160
    %1806 = vmatpush1.bf16.msra.mxu0 %v1159
    %1807 = vmatprep.mubr.bf16.mxu0 %v1772
    %1808 = vmatmul.mubr.bf16.gmra.mrb[0].mxu0 %v1771
    %v1809 = vpop.f32.mrb[0].mxu0
    %v1810 = vadd.f32 0.0, %v1809
    %v1811 = vpop.f32.mrb[0].mxu0
    %v1812 = vadd.f32 0.0, %v1811
    %v1813 = vpop.f32.mrb[0].mxu0
    %v1814 = vpop.f32.mrb[0].mxu0
    %1815 = vdwg.mxu0
    %1816 = vmatprep.subr.bf16.mxu0 %v1042
    %1817 = vmatpush1.bf16.msra.mxu0 %v1041
    %1818 = vmatprep.subr.bf16.mxu0 %v1050
    %1819 = vmatpush1.bf16.msra.mxu0 %v1049
    %1820 = vmatprep.subr.bf16.mxu0 %v1058
    %1821 = vmatpush1.bf16.msra.mxu0 %v1057
    %1822 = vmatprep.subr.bf16.mxu0 %v1066
    %1823 = vmatpush1.bf16.msra.mxu0 %v1065
    %1824 = vmatprep.subr.bf16.mxu0 %v1074
    %1825 = vmatpush1.bf16.msra.mxu0 %v1073
    %1826 = vmatprep.subr.bf16.mxu0 %v1082
    %1827 = vmatpush1.bf16.msra.mxu0 %v1081
    %1828 = vmatprep.subr.bf16.mxu0 %v1090
    %1829 = vmatpush1.bf16.msra.mxu0 %v1089
    %1830 = vmatprep.subr.bf16.mxu0 %v1098
    %1831 = vmatpush1.bf16.msra.mxu0 %v1097
    %1832 = vmatprep.subr.bf16.mxu0 %v1106
    %1833 = vmatpush1.bf16.msra.mxu0 %v1105
    %1834 = vmatprep.subr.bf16.mxu0 %v1114
    %1835 = vmatpush1.bf16.msra.mxu0 %v1113
    %1836 = vmatprep.subr.bf16.mxu0 %v1122
    %1837 = vmatpush1.bf16.msra.mxu0 %v1121
    %1838 = vmatprep.subr.bf16.mxu0 %v1130
    %1839 = vmatpush1.bf16.msra.mxu0 %v1129
    %1840 = vmatprep.subr.bf16.mxu0 %v1138
    %1841 = vmatpush1.bf16.msra.mxu0 %v1137
    %1842 = vmatprep.subr.bf16.mxu0 %v1146
    %1843 = vmatpush1.bf16.msra.mxu0 %v1145
    %1844 = vmatprep.subr.bf16.mxu0 %v1154
    %1845 = vmatpush1.bf16.msra.mxu0 %v1153
    %1846 = vmatprep.subr.bf16.mxu0 %v1162
    %1847 = vmatpush1.bf16.msra.mxu0 %v1161
    %1848 = vmatprep.mubr.bf16.mxu0 %v1772
    %1849 = vmatmul.mubr.bf16.gmra.mrb[0].mxu0 %v1771
    %v1850 = vpop.f32.mrb[0].mxu0
    %v1851 = vadd.f32 0.0, %v1850
    %v1852 = vpop.f32.mrb[0].mxu0
    %v1853 = vadd.f32 0.0, %v1852
    %v1854 = vpop.f32.mrb[0].mxu0
    %v1855 = vpop.f32.mrb[0].mxu0
    %1856 = vdwg.mxu0
    %1857 = vmatprep.subr.bf16.mxu0 %v1044
    %1858 = vmatpush1.bf16.msra.mxu0 %v1043
    %1859 = vmatprep.subr.bf16.mxu0 %v1052
    %1860 = vmatpush1.bf16.msra.mxu0 %v1051
    %1861 = vmatprep.subr.bf16.mxu0 %v1060
    %1862 = vmatpush1.bf16.msra.mxu0 %v1059
    %1863 = vmatprep.subr.bf16.mxu0 %v1068
    %1864 = vmatpush1.bf16.msra.mxu0 %v1067
    %1865 = vmatprep.subr.bf16.mxu0 %v1076
    %1866 = vmatpush1.bf16.msra.mxu0 %v1075
    %1867 = vmatprep.subr.bf16.mxu0 %v1084
    %1868 = vmatpush1.bf16.msra.mxu0 %v1083
    %1869 = vmatprep.subr.bf16.mxu0 %v1092
    %1870 = vmatpush1.bf16.msra.mxu0 %v1091
    %1871 = vmatprep.subr.bf16.mxu0 %v1100
    %1872 = vmatpush1.bf16.msra.mxu0 %v1099
    %1873 = vmatprep.subr.bf16.mxu0 %v1108
    %1874 = vmatpush1.bf16.msra.mxu0 %v1107
    %1875 = vmatprep.subr.bf16.mxu0 %v1116
    %1876 = vmatpush1.bf16.msra.mxu0 %v1115
    %1877 = vmatprep.subr.bf16.mxu0 %v1124
    %1878 = vmatpush1.bf16.msra.mxu0 %v1123
    %1879 = vmatprep.subr.bf16.mxu0 %v1132
    %1880 = vmatpush1.bf16.msra.mxu0 %v1131
    %1881 = vmatprep.subr.bf16.mxu0 %v1140
    %1882 = vmatpush1.bf16.msra.mxu0 %v1139
    %1883 = vmatprep.subr.bf16.mxu0 %v1148
    %1884 = vmatpush1.bf16.msra.mxu0 %v1147
    %1885 = vmatprep.subr.bf16.mxu0 %v1156
    %1886 = vmatpush1.bf16.msra.mxu0 %v1155
    %1887 = vmatprep.subr.bf16.mxu0 %v1164
    %1888 = vmatpush1.bf16.msra.mxu0 %v1163
    %1889 = vmatprep.mubr.bf16.mxu0 %v1772
    %1890 = vmatmul.mubr.bf16.gmra.mrb[0].mxu0 %v1771
    %v1891 = vpop.f32.mrb[0].mxu0
    %v1892 = vadd.f32 0.0, %v1891
    %v1893 = vpop.f32.mrb[0].mxu0
    %v1894 = vadd.f32 0.0, %v1893
    %v1895 = vpop.f32.mrb[0].mxu0
    %v1896 = vpop.f32.mrb[0].mxu0
    %1897 = vdwg.mxu0
    %1898 = vmatprep.subr.bf16.mxu0 %v1046
    %1899 = vmatpush1.bf16.msra.mxu0 %v1045
    %1900 = vmatprep.subr.bf16.mxu0 %v1054
    %1901 = vmatpush1.bf16.msra.mxu0 %v1053
    %1902 = vmatprep.subr.bf16.mxu0 %v1062
    %1903 = vmatpush1.bf16.msra.mxu0 %v1061
    %1904 = vmatprep.subr.bf16.mxu0 %v1070
    %1905 = vmatpush1.bf16.msra.mxu0 %v1069
    %1906 = vmatprep.subr.bf16.mxu0 %v1078
    %1907 = vmatpush1.bf16.msra.mxu0 %v1077
    %1908 = vmatprep.subr.bf16.mxu0 %v1086
    %1909 = vmatpush1.bf16.msra.mxu0 %v1085
    %1910 = vmatprep.subr.bf16.mxu0 %v1094
    %1911 = vmatpush1.bf16.msra.mxu0 %v1093
    %1912 = vmatprep.subr.bf16.mxu0 %v1102
    %1913 = vmatpush1.bf16.msra.mxu0 %v1101
    %1914 = vmatprep.subr.bf16.mxu0 %v1110
    %1915 = vmatpush1.bf16.msra.mxu0 %v1109
    %1916 = vmatprep.subr.bf16.mxu0 %v1118
    %1917 = vmatpush1.bf16.msra.mxu0 %v1117
    %1918 = vmatprep.subr.bf16.mxu0 %v1126
    %1919 = vmatpush1.bf16.msra.mxu0 %v1125
    %1920 = vmatprep.subr.bf16.mxu0 %v1134
    %1921 = vmatpush1.bf16.msra.mxu0 %v1133
    %1922 = vmatprep.subr.bf16.mxu0 %v1142
    %1923 = vmatpush1.bf16.msra.mxu0 %v1141
    %1924 = vmatprep.subr.bf16.mxu0 %v1150
    %1925 = vmatpush1.bf16.msra.mxu0 %v1149
    %1926 = vmatprep.subr.bf16.mxu0 %v1158
    %1927 = vmatpush1.bf16.msra.mxu0 %v1157
    %1928 = vmatprep.subr.bf16.mxu0 %v1166
    %1929 = vmatpush1.bf16.msra.mxu0 %v1165
    %1930 = vmatprep.mubr.bf16.mxu0 %v1772
    %1931 = vmatmul.mubr.bf16.gmra.mrb[0].mxu0 %v1771
    %v1932 = vpop.f32.mrb[0].mxu0
    %v1933 = vadd.f32 0.0, %v1932
    %v1934 = vpop.f32.mrb[0].mxu0
    %v1935 = vadd.f32 0.0, %v1934
    %v1936 = vpop.f32.mrb[0].mxu0
    %v1937 = vpop.f32.mrb[0].mxu0
    %1938 = vdwg.mxu0
    %v1947 = vrot.slane %v1810, 4
    %v1948 = vrot.slane %v1812, 4
    %v1949 = vrot.slane %v1851, 4
    %v1950 = vrot.slane %v1853, 4
    %v1951 = vrot.slane %v1892, 4
    %v1952 = vrot.slane %v1894, 4
    %v1953 = vrot.slane %v1933, 4
    %v1954 = vrot.slane %v1935, 4
    %v1963 = vadd.f32 %v390, %v1947
    %v1964 = vadd.f32 %v392, %v1948
    %v1965 = vadd.f32 %v433, %v1949
    %v1966 = vadd.f32 %v435, %v1950
    %v1967 = vadd.f32 %v476, %v1951
    %v1968 = vadd.f32 %v478, %v1952
    %v1969 = vadd.f32 %v519, %v1953
    %v1970 = vadd.f32 %v521, %v1954
    %v1971 = vxor.u32 %v1963, 2147483648
    %v1972 = vxor.u32 %v1964, 2147483648
    %v1973 = vmul.f32 %v1971, 1.442695
    %v1974 = vpow.pop %v1973
    %v1975 = vmul.f32 %v1972, 1.442695
    %v1976 = vpow.pop %v1975
    %v1977 = vadd.f32 %v1974, 1.0
    %v1978 = vadd.f32 %v1976, 1.0
    %v1979 = vrcp.pop %v1977
    %v1980 = vmul.f32 1.0, %v1979
    %v1981 = vrcp.pop %v1978
    %v1982 = vmul.f32 1.0, %v1981
    %v1983 = vxor.u32 %v1965, 2147483648
    %v1984 = vxor.u32 %v1966, 2147483648
    %v1985 = vmul.f32 %v1983, 1.442695
    %v1986 = vpow.pop %v1985
    %v1987 = vmul.f32 %v1984, 1.442695
    %v1988 = vpow.pop %v1987
    %v1989 = vadd.f32 %v1986, 1.0
    %v1990 = vadd.f32 %v1988, 1.0
    %v1991 = vrcp.pop %v1989
    %v1992 = vmul.f32 1.0, %v1991
    %v1993 = vrcp.pop %v1990
    %v1994 = vmul.f32 1.0, %v1993
    %v1995 = vtanh.pop %v1967
    %v1996 = vtanh.pop %v1968
    %v1997 = vxor.u32 %v1969, 2147483648
    %v1998 = vxor.u32 %v1970, 2147483648
    %v1999 = vmul.f32 %v1997, 1.442695
    %v2000 = vpow.pop %v1999
    %v2001 = vmul.f32 %v1998, 1.442695
    %v2002 = vpow.pop %v2001
    %v2003 = vadd.f32 %v2000, 1.0
    %v2004 = vadd.f32 %v2002, 1.0
    %v2005 = vrcp.pop %v2003
    %v2006 = vmul.f32 1.0, %v2005
    %v2007 = vrcp.pop %v2004
    %v2008 = vmul.f32 1.0, %v2007
    %v2011 = vrot.slane %v1761, 6
    %v2012 = vrot.slane %v1762, 6
    %v2015 = vmul.f32 %v1992, %v2011
    %v2016 = vmul.f32 %v1994, %v2012
    %v2017 = vmul.f32 %v1980, %v1995
    %v2018 = vmul.f32 %v1982, %v1996
    %v2019 = vadd.f32 %v2015, %v2017
    %v2020 = vadd.f32 %v2016, %v2018
    %v2021 = vtanh.pop %v2019
    %v2022 = vtanh.pop %v2020
    %v2023 = vmul.f32 %v2006, %v2021
    %v2024 = vmul.f32 %v2008, %v2022
    %v2025 = vpack.c.bf16 %v2023, %v2023
    %v2026 = vpack.c.bf16 %v2024, %v2024
    %v2029 = vrot.slane %v2025, 2
    %v2030 = vrot.slane %v2026, 2
    %2033 = vmatprep.subr.bf16.mxu0 %v1040
    %2034 = vmatpush1.bf16.msra.mxu0 %v1039
    %2035 = vmatprep.subr.bf16.mxu0 %v1048
    %2036 = vmatpush1.bf16.msra.mxu0 %v1047
    %2037 = vmatprep.subr.bf16.mxu0 %v1056
    %2038 = vmatpush1.bf16.msra.mxu0 %v1055
    %2039 = vmatprep.subr.bf16.mxu0 %v1064
    %2040 = vmatpush1.bf16.msra.mxu0 %v1063
    %2041 = vmatprep.subr.bf16.mxu0 %v1072
    %2042 = vmatpush1.bf16.msra.mxu0 %v1071
    %2043 = vmatprep.subr.bf16.mxu0 %v1080
    %2044 = vmatpush1.bf16.msra.mxu0 %v1079
    %2045 = vmatprep.subr.bf16.mxu0 %v1088
    %2046 = vmatpush1.bf16.msra.mxu0 %v1087
    %2047 = vmatprep.subr.bf16.mxu0 %v1096
    %2048 = vmatpush1.bf16.msra.mxu0 %v1095
    %2049 = vmatprep.subr.bf16.mxu0 %v1104
    %2050 = vmatpush1.bf16.msra.mxu0 %v1103
    %2051 = vmatprep.subr.bf16.mxu0 %v1112
    %2052 = vmatpush1.bf16.msra.mxu0 %v1111
    %2053 = vmatprep.subr.bf16.mxu0 %v1120
    %2054 = vmatpush1.bf16.msra.mxu0 %v1119
    %2055 = vmatprep.subr.bf16.mxu0 %v1128
    %2056 = vmatpush1.bf16.msra.mxu0 %v1127
    %2057 = vmatprep.subr.bf16.mxu0 %v1136
    %2058 = vmatpush1.bf16.msra.mxu0 %v1135
    %2059 = vmatprep.subr.bf16.mxu0 %v1144
    %2060 = vmatpush1.bf16.msra.mxu0 %v1143
    %2061 = vmatprep.subr.bf16.mxu0 %v1152
    %2062 = vmatpush1.bf16.msra.mxu0 %v1151
    %2063 = vmatprep.subr.bf16.mxu0 %v1160
    %2064 = vmatpush1.bf16.msra.mxu0 %v1159
    %2065 = vmatprep.mubr.bf16.mxu0 %v2030
    %2066 = vmatmul.mubr.bf16.gmra.mrb[0].mxu0 %v2029
    %v2067 = vpop.f32.mrb[0].mxu0
    %v2068 = vadd.f32 0.0, %v2067
    %v2069 = vpop.f32.mrb[0].mxu0
    %v2070 = vadd.f32 0.0, %v2069
    %v2071 = vpop.f32.mrb[0].mxu0
    %v2072 = vpop.f32.mrb[0].mxu0
    %2073 = vdwg.mxu0
    %2074 = vmatprep.subr.bf16.mxu0 %v1042
    %2075 = vmatpush1.bf16.msra.mxu0 %v1041
    %2076 = vmatprep.subr.bf16.mxu0 %v1050
    %2077 = vmatpush1.bf16.msra.mxu0 %v1049
    %2078 = vmatprep.subr.bf16.mxu0 %v1058
    %2079 = vmatpush1.bf16.msra.mxu0 %v1057
    %2080 = vmatprep.subr.bf16.mxu0 %v1066
    %2081 = vmatpush1.bf16.msra.mxu0 %v1065
    %2082 = vmatprep.subr.bf16.mxu0 %v1074
    %2083 = vmatpush1.bf16.msra.mxu0 %v1073
    %2084 = vmatprep.subr.bf16.mxu0 %v1082
    %2085 = vmatpush1.bf16.msra.mxu0 %v1081
    %2086 = vmatprep.subr.bf16.mxu0 %v1090
    %2087 = vmatpush1.bf16.msra.mxu0 %v1089
    %2088 = vmatprep.subr.bf16.mxu0 %v1098
    %2089 = vmatpush1.bf16.msra.mxu0 %v1097
    %2090 = vmatprep.subr.bf16.mxu0 %v1106
    %2091 = vmatpush1.bf16.msra.mxu0 %v1105
    %2092 = vmatprep.subr.bf16.mxu0 %v1114
    %2093 = vmatpush1.bf16.msra.mxu0 %v1113
    %2094 = vmatprep.subr.bf16.mxu0 %v1122
    %2095 = vmatpush1.bf16.msra.mxu0 %v1121
    %2096 = vmatprep.subr.bf16.mxu0 %v1130
    %2097 = vmatpush1.bf16.msra.mxu0 %v1129
    %2098 = vmatprep.subr.bf16.mxu0 %v1138
    %2099 = vmatpush1.bf16.msra.mxu0 %v1137
    %2100 = vmatprep.subr.bf16.mxu0 %v1146
    %2101 = vmatpush1.bf16.msra.mxu0 %v1145
    %2102 = vmatprep.subr.bf16.mxu0 %v1154
    %2103 = vmatpush1.bf16.msra.mxu0 %v1153
    %2104 = vmatprep.subr.bf16.mxu0 %v1162
    %2105 = vmatpush1.bf16.msra.mxu0 %v1161
    %2106 = vmatprep.mubr.bf16.mxu0 %v2030
    %2107 = vmatmul.mubr.bf16.gmra.mrb[0].mxu0 %v2029
    %v2108 = vpop.f32.mrb[0].mxu0
    %v2109 = vadd.f32 0.0, %v2108
    %v2110 = vpop.f32.mrb[0].mxu0
    %v2111 = vadd.f32 0.0, %v2110
    %v2112 = vpop.f32.mrb[0].mxu0
    %v2113 = vpop.f32.mrb[0].mxu0
    %2114 = vdwg.mxu0
    %2115 = vmatprep.subr.bf16.mxu0 %v1044
    %2116 = vmatpush1.bf16.msra.mxu0 %v1043
    %2117 = vmatprep.subr.bf16.mxu0 %v1052
    %2118 = vmatpush1.bf16.msra.mxu0 %v1051
    %2119 = vmatprep.subr.bf16.mxu0 %v1060
    %2120 = vmatpush1.bf16.msra.mxu0 %v1059
    %2121 = vmatprep.subr.bf16.mxu0 %v1068
    %2122 = vmatpush1.bf16.msra.mxu0 %v1067
    %2123 = vmatprep.subr.bf16.mxu0 %v1076
    %2124 = vmatpush1.bf16.msra.mxu0 %v1075
    %2125 = vmatprep.subr.bf16.mxu0 %v1084
    %2126 = vmatpush1.bf16.msra.mxu0 %v1083
    %2127 = vmatprep.subr.bf16.mxu0 %v1092
    %2128 = vmatpush1.bf16.msra.mxu0 %v1091
    %2129 = vmatprep.subr.bf16.mxu0 %v1100
    %2130 = vmatpush1.bf16.msra.mxu0 %v1099
    %2131 = vmatprep.subr.bf16.mxu0 %v1108
    %2132 = vmatpush1.bf16.msra.mxu0 %v1107
    %2133 = vmatprep.subr.bf16.mxu0 %v1116
    %2134 = vmatpush1.bf16.msra.mxu0 %v1115
    %2135 = vmatprep.subr.bf16.mxu0 %v1124
    %2136 = vmatpush1.bf16.msra.mxu0 %v1123
    %2137 = vmatprep.subr.bf16.mxu0 %v1132
    %2138 = vmatpush1.bf16.msra.mxu0 %v1131
    %2139 = vmatprep.subr.bf16.mxu0 %v1140
    %2140 = vmatpush1.bf16.msra.mxu0 %v1139
    %2141 = vmatprep.subr.bf16.mxu0 %v1148
    %2142 = vmatpush1.bf16.msra.mxu0 %v1147
    %2143 = vmatprep.subr.bf16.mxu0 %v1156
    %2144 = vmatpush1.bf16.msra.mxu0 %v1155
    %2145 = vmatprep.subr.bf16.mxu0 %v1164
    %2146 = vmatpush1.bf16.msra.mxu0 %v1163
    %2147 = vmatprep.mubr.bf16.mxu0 %v2030
    %2148 = vmatmul.mubr.bf16.gmra.mrb[0].mxu0 %v2029
    %v2149 = vpop.f32.mrb[0].mxu0
    %v2150 = vadd.f32 0.0, %v2149
    %v2151 = vpop.f32.mrb[0].mxu0
    %v2152 = vadd.f32 0.0, %v2151
    %v2153 = vpop.f32.mrb[0].mxu0
    %v2154 = vpop.f32.mrb[0].mxu0
    %2155 = vdwg.mxu0
    %2156 = vmatprep.subr.bf16.mxu0 %v1046
    %2157 = vmatpush1.bf16.msra.mxu0 %v1045
    %2158 = vmatprep.subr.bf16.mxu0 %v1054
    %2159 = vmatpush1.bf16.msra.mxu0 %v1053
    %2160 = vmatprep.subr.bf16.mxu0 %v1062
    %2161 = vmatpush1.bf16.msra.mxu0 %v1061
    %2162 = vmatprep.subr.bf16.mxu0 %v1070
    %2163 = vmatpush1.bf16.msra.mxu0 %v1069
    %2164 = vmatprep.subr.bf16.mxu0 %v1078
    %2165 = vmatpush1.bf16.msra.mxu0 %v1077
    %2166 = vmatprep.subr.bf16.mxu0 %v1086
    %2167 = vmatpush1.bf16.msra.mxu0 %v1085
    %2168 = vmatprep.subr.bf16.mxu0 %v1094
    %2169 = vmatpush1.bf16.msra.mxu0 %v1093
    %2170 = vmatprep.subr.bf16.mxu0 %v1102
    %2171 = vmatpush1.bf16.msra.mxu0 %v1101
    %2172 = vmatprep.subr.bf16.mxu0 %v1110
    %2173 = vmatpush1.bf16.msra.mxu0 %v1109
    %2174 = vmatprep.subr.bf16.mxu0 %v1118
    %2175 = vmatpush1.bf16.msra.mxu0 %v1117
    %2176 = vmatprep.subr.bf16.mxu0 %v1126
    %2177 = vmatpush1.bf16.msra.mxu0 %v1125
    %2178 = vmatprep.subr.bf16.mxu0 %v1134
    %2179 = vmatpush1.bf16.msra.mxu0 %v1133
    %2180 = vmatprep.subr.bf16.mxu0 %v1142
    %2181 = vmatpush1.bf16.msra.mxu0 %v1141
    %2182 = vmatprep.subr.bf16.mxu0 %v1150
    %2183 = vmatpush1.bf16.msra.mxu0 %v1149
    %2184 = vmatprep.subr.bf16.mxu0 %v1158
    %2185 = vmatpush1.bf16.msra.mxu0 %v1157
    %2186 = vmatprep.subr.bf16.mxu0 %v1166
    %2187 = vmatpush1.bf16.msra.mxu0 %v1165
    %2188 = vmatprep.mubr.bf16.mxu0 %v2030
    %2189 = vmatmul.mubr.bf16.gmra.mrb[0].mxu0 %v2029
    %v2190 = vpop.f32.mrb[0].mxu0
    %v2191 = vadd.f32 0.0, %v2190
    %v2192 = vpop.f32.mrb[0].mxu0
    %v2193 = vadd.f32 0.0, %v2192
    %v2194 = vpop.f32.mrb[0].mxu0
    %v2195 = vpop.f32.mrb[0].mxu0
    %2196 = vdwg.mxu0
    %v2205 = vrot.slane %v2068, 2
    %v2206 = vrot.slane %v2070, 2
    %v2207 = vrot.slane %v2109, 2
    %v2208 = vrot.slane %v2111, 2
    %v2209 = vrot.slane %v2150, 2
    %v2210 = vrot.slane %v2152, 2
    %v2211 = vrot.slane %v2191, 2
    %v2212 = vrot.slane %v2193, 2
    %v2221 = vadd.f32 %v390, %v2205
    %v2222 = vadd.f32 %v392, %v2206
    %v2223 = vadd.f32 %v433, %v2207
    %v2224 = vadd.f32 %v435, %v2208
    %v2225 = vadd.f32 %v476, %v2209
    %v2226 = vadd.f32 %v478, %v2210
    %v2227 = vadd.f32 %v519, %v2211
    %v2228 = vadd.f32 %v521, %v2212
    %v2229 = vxor.u32 %v2221, 2147483648
    %v2230 = vxor.u32 %v2222, 2147483648
    %v2231 = vmul.f32 %v2229, 1.442695
    %v2232 = vpow.pop %v2231
    %v2233 = vmul.f32 %v2230, 1.442695
    %v2234 = vpow.pop %v2233
    %v2235 = vadd.f32 %v2232, 1.0
    %v2236 = vadd.f32 %v2234, 1.0
    %v2237 = vrcp.pop %v2235
    %v2238 = vmul.f32 1.0, %v2237
    %v2239 = vrcp.pop %v2236
    %v2240 = vmul.f32 1.0, %v2239
    %v2241 = vxor.u32 %v2223, 2147483648
    %v2242 = vxor.u32 %v2224, 2147483648
    %v2243 = vmul.f32 %v2241, 1.442695
    %v2244 = vpow.pop %v2243
    %v2245 = vmul.f32 %v2242, 1.442695
    %v2246 = vpow.pop %v2245
    %v2247 = vadd.f32 %v2244, 1.0
    %v2248 = vadd.f32 %v2246, 1.0
    %v2249 = vrcp.pop %v2247
    %v2250 = vmul.f32 1.0, %v2249
    %v2251 = vrcp.pop %v2248
    %v2252 = vmul.f32 1.0, %v2251
    %v2253 = vtanh.pop %v2225
    %v2254 = vtanh.pop %v2226
    %v2255 = vxor.u32 %v2227, 2147483648
    %v2256 = vxor.u32 %v2228, 2147483648
    %v2257 = vmul.f32 %v2255, 1.442695
    %v2258 = vpow.pop %v2257
    %v2259 = vmul.f32 %v2256, 1.442695
    %v2260 = vpow.pop %v2259
    %v2261 = vadd.f32 %v2258, 1.0
    %v2262 = vadd.f32 %v2260, 1.0
    %v2263 = vrcp.pop %v2261
    %v2264 = vmul.f32 1.0, %v2263
    %v2265 = vrcp.pop %v2262
    %v2266 = vmul.f32 1.0, %v2265
    %v2269 = vrot.slane %v2019, 6
    %v2270 = vrot.slane %v2020, 6
    %v2273 = vmul.f32 %v2250, %v2269
    %v2274 = vmul.f32 %v2252, %v2270
    %v2275 = vmul.f32 %v2238, %v2253
    %v2276 = vmul.f32 %v2240, %v2254
    %v2277 = vadd.f32 %v2273, %v2275
    %v2278 = vadd.f32 %v2274, %v2276
    %v2279 = vtanh.pop %v2277
    %v2280 = vtanh.pop %v2278
    %v2281 = vmul.f32 %v2264, %v2279
    %v2282 = vmul.f32 %v2266, %v2280
    %v2283 = vpack.c.bf16 %v2281, %v2281
    %v2284 = vpack.c.bf16 %v2282, %v2282
    %v2287 = vrot.slane %v2283, 3
    %v2288 = vrot.slane %v2284, 3
    %2291 = vmatprep.subr.bf16.mxu0 %v1040
    %2292 = vmatpush1.bf16.msra.mxu0 %v1039
    %2293 = vmatprep.subr.bf16.mxu0 %v1048
    %2294 = vmatpush1.bf16.msra.mxu0 %v1047
    %2295 = vmatprep.subr.bf16.mxu0 %v1056
    %2296 = vmatpush1.bf16.msra.mxu0 %v1055
    %2297 = vmatprep.subr.bf16.mxu0 %v1064
    %2298 = vmatpush1.bf16.msra.mxu0 %v1063
    %2299 = vmatprep.subr.bf16.mxu0 %v1072
    %2300 = vmatpush1.bf16.msra.mxu0 %v1071
    %2301 = vmatprep.subr.bf16.mxu0 %v1080
    %2302 = vmatpush1.bf16.msra.mxu0 %v1079
    %2303 = vmatprep.subr.bf16.mxu0 %v1088
    %2304 = vmatpush1.bf16.msra.mxu0 %v1087
    %2305 = vmatprep.subr.bf16.mxu0 %v1096
    %2306 = vmatpush1.bf16.msra.mxu0 %v1095
    %2307 = vmatprep.subr.bf16.mxu0 %v1104
    %2308 = vmatpush1.bf16.msra.mxu0 %v1103
    %2309 = vmatprep.subr.bf16.mxu0 %v1112
    %2310 = vmatpush1.bf16.msra.mxu0 %v1111
    %2311 = vmatprep.subr.bf16.mxu0 %v1120
    %2312 = vmatpush1.bf16.msra.mxu0 %v1119
    %2313 = vmatprep.subr.bf16.mxu0 %v1128
    %2314 = vmatpush1.bf16.msra.mxu0 %v1127
    %2315 = vmatprep.subr.bf16.mxu0 %v1136
    %2316 = vmatpush1.bf16.msra.mxu0 %v1135
    %2317 = vmatprep.subr.bf16.mxu0 %v1144
    %2318 = vmatpush1.bf16.msra.mxu0 %v1143
    %2319 = vmatprep.subr.bf16.mxu0 %v1152
    %2320 = vmatpush1.bf16.msra.mxu0 %v1151
    %2321 = vmatprep.subr.bf16.mxu0 %v1160
    %2322 = vmatpush1.bf16.msra.mxu0 %v1159
    %2323 = vmatprep.mubr.bf16.mxu0 %v2288
    %2324 = vmatmul.mubr.bf16.gmra.mrb[0].mxu0 %v2287
    %v2325 = vpop.f32.mrb[0].mxu0
    %v2326 = vadd.f32 0.0, %v2325
    %v2327 = vpop.f32.mrb[0].mxu0
    %v2328 = vadd.f32 0.0, %v2327
    %v2329 = vpop.f32.mrb[0].mxu0
    %v2330 = vpop.f32.mrb[0].mxu0
    %2331 = vdwg.mxu0
    %2332 = vmatprep.subr.bf16.mxu0 %v1042
    %2333 = vmatpush1.bf16.msra.mxu0 %v1041
    %2334 = vmatprep.subr.bf16.mxu0 %v1050
    %2335 = vmatpush1.bf16.msra.mxu0 %v1049
    %2336 = vmatprep.subr.bf16.mxu0 %v1058
    %2337 = vmatpush1.bf16.msra.mxu0 %v1057
    %2338 = vmatprep.subr.bf16.mxu0 %v1066
    %2339 = vmatpush1.bf16.msra.mxu0 %v1065
    %2340 = vmatprep.subr.bf16.mxu0 %v1074
    %2341 = vmatpush1.bf16.msra.mxu0 %v1073
    %2342 = vmatprep.subr.bf16.mxu0 %v1082
    %2343 = vmatpush1.bf16.msra.mxu0 %v1081
    %2344 = vmatprep.subr.bf16.mxu0 %v1090
    %2345 = vmatpush1.bf16.msra.mxu0 %v1089
    %2346 = vmatprep.subr.bf16.mxu0 %v1098
    %2347 = vmatpush1.bf16.msra.mxu0 %v1097
    %2348 = vmatprep.subr.bf16.mxu0 %v1106
    %2349 = vmatpush1.bf16.msra.mxu0 %v1105
    %2350 = vmatprep.subr.bf16.mxu0 %v1114
    %2351 = vmatpush1.bf16.msra.mxu0 %v1113
    %2352 = vmatprep.subr.bf16.mxu0 %v1122
    %2353 = vmatpush1.bf16.msra.mxu0 %v1121
    %2354 = vmatprep.subr.bf16.mxu0 %v1130
    %2355 = vmatpush1.bf16.msra.mxu0 %v1129
    %2356 = vmatprep.subr.bf16.mxu0 %v1138
    %2357 = vmatpush1.bf16.msra.mxu0 %v1137
    %2358 = vmatprep.subr.bf16.mxu0 %v1146
    %2359 = vmatpush1.bf16.msra.mxu0 %v1145
    %2360 = vmatprep.subr.bf16.mxu0 %v1154
    %2361 = vmatpush1.bf16.msra.mxu0 %v1153
    %2362 = vmatprep.subr.bf16.mxu0 %v1162
    %2363 = vmatpush1.bf16.msra.mxu0 %v1161
    %2364 = vmatprep.mubr.bf16.mxu0 %v2288
    %2365 = vmatmul.mubr.bf16.gmra.mrb[0].mxu0 %v2287
    %v2366 = vpop.f32.mrb[0].mxu0
    %v2367 = vadd.f32 0.0, %v2366
    %v2368 = vpop.f32.mrb[0].mxu0
    %v2369 = vadd.f32 0.0, %v2368
    %v2370 = vpop.f32.mrb[0].mxu0
    %v2371 = vpop.f32.mrb[0].mxu0
    %2372 = vdwg.mxu0
    %2373 = vmatprep.subr.bf16.mxu0 %v1044
    %2374 = vmatpush1.bf16.msra.mxu0 %v1043
    %2375 = vmatprep.subr.bf16.mxu0 %v1052
    %2376 = vmatpush1.bf16.msra.mxu0 %v1051
    %2377 = vmatprep.subr.bf16.mxu0 %v1060
    %2378 = vmatpush1.bf16.msra.mxu0 %v1059
    %2379 = vmatprep.subr.bf16.mxu0 %v1068
    %2380 = vmatpush1.bf16.msra.mxu0 %v1067
    %2381 = vmatprep.subr.bf16.mxu0 %v1076
    %2382 = vmatpush1.bf16.msra.mxu0 %v1075
    %2383 = vmatprep.subr.bf16.mxu0 %v1084
    %2384 = vmatpush1.bf16.msra.mxu0 %v1083
    %2385 = vmatprep.subr.bf16.mxu0 %v1092
    %2386 = vmatpush1.bf16.msra.mxu0 %v1091
    %2387 = vmatprep.subr.bf16.mxu0 %v1100
    %2388 = vmatpush1.bf16.msra.mxu0 %v1099
    %2389 = vmatprep.subr.bf16.mxu0 %v1108
    %2390 = vmatpush1.bf16.msra.mxu0 %v1107
    %2391 = vmatprep.subr.bf16.mxu0 %v1116
    %2392 = vmatpush1.bf16.msra.mxu0 %v1115
    %2393 = vmatprep.subr.bf16.mxu0 %v1124
    %2394 = vmatpush1.bf16.msra.mxu0 %v1123
    %2395 = vmatprep.subr.bf16.mxu0 %v1132
    %2396 = vmatpush1.bf16.msra.mxu0 %v1131
    %2397 = vmatprep.subr.bf16.mxu0 %v1140
    %2398 = vmatpush1.bf16.msra.mxu0 %v1139
    %2399 = vmatprep.subr.bf16.mxu0 %v1148
    %2400 = vmatpush1.bf16.msra.mxu0 %v1147
    %2401 = vmatprep.subr.bf16.mxu0 %v1156
    %2402 = vmatpush1.bf16.msra.mxu0 %v1155
    %2403 = vmatprep.subr.bf16.mxu0 %v1164
    %2404 = vmatpush1.bf16.msra.mxu0 %v1163
    %2405 = vmatprep.mubr.bf16.mxu0 %v2288
    %2406 = vmatmul.mubr.bf16.gmra.mrb[0].mxu0 %v2287
    %v2407 = vpop.f32.mrb[0].mxu0
    %v2408 = vadd.f32 0.0, %v2407
    %v2409 = vpop.f32.mrb[0].mxu0
    %v2410 = vadd.f32 0.0, %v2409
    %v2411 = vpop.f32.mrb[0].mxu0
    %v2412 = vpop.f32.mrb[0].mxu0
    %2413 = vdwg.mxu0
    %2414 = vmatprep.subr.bf16.mxu0 %v1046
    %2415 = vmatpush1.bf16.msra.mxu0 %v1045
    %2416 = vmatprep.subr.bf16.mxu0 %v1054
    %2417 = vmatpush1.bf16.msra.mxu0 %v1053
    %2418 = vmatprep.subr.bf16.mxu0 %v1062
    %2419 = vmatpush1.bf16.msra.mxu0 %v1061
    %2420 = vmatprep.subr.bf16.mxu0 %v1070
    %2421 = vmatpush1.bf16.msra.mxu0 %v1069
    %2422 = vmatprep.subr.bf16.mxu0 %v1078
    %2423 = vmatpush1.bf16.msra.mxu0 %v1077
    %2424 = vmatprep.subr.bf16.mxu0 %v1086
    %2425 = vmatpush1.bf16.msra.mxu0 %v1085
    %2426 = vmatprep.subr.bf16.mxu0 %v1094
    %2427 = vmatpush1.bf16.msra.mxu0 %v1093
    %2428 = vmatprep.subr.bf16.mxu0 %v1102
    %2429 = vmatpush1.bf16.msra.mxu0 %v1101
    %2430 = vmatprep.subr.bf16.mxu0 %v1110
    %2431 = vmatpush1.bf16.msra.mxu0 %v1109
    %2432 = vmatprep.subr.bf16.mxu0 %v1118
    %2433 = vmatpush1.bf16.msra.mxu0 %v1117
    %2434 = vmatprep.subr.bf16.mxu0 %v1126
    %2435 = vmatpush1.bf16.msra.mxu0 %v1125
    %2436 = vmatprep.subr.bf16.mxu0 %v1134
    %2437 = vmatpush1.bf16.msra.mxu0 %v1133
    %2438 = vmatprep.subr.bf16.mxu0 %v1142
    %2439 = vmatpush1.bf16.msra.mxu0 %v1141
    %2440 = vmatprep.subr.bf16.mxu0 %v1150
    %2441 = vmatpush1.bf16.msra.mxu0 %v1149
    %2442 = vmatprep.subr.bf16.mxu0 %v1158
    %2443 = vmatpush1.bf16.msra.mxu0 %v1157
    %2444 = vmatprep.subr.bf16.mxu0 %v1166
    %2445 = vmatpush1.bf16.msra.mxu0 %v1165
    %2446 = vmatprep.mubr.bf16.mxu0 %v2288
    %2447 = vmatmul.mubr.bf16.gmra.mrb[0].mxu0 %v2287
    %v2448 = vpop.f32.mrb[0].mxu0
    %v2449 = vadd.f32 0.0, %v2448
    %v2450 = vpop.f32.mrb[0].mxu0
    %v2451 = vadd.f32 0.0, %v2450
    %v2452 = vpop.f32.mrb[0].mxu0
    %v2453 = vpop.f32.mrb[0].mxu0
    %2454 = vdwg.mxu0
    %v2455 = vadd.f32 %v394, %v2326
    %v2456 = vadd.f32 %v396, %v2328
    %v2457 = vadd.f32 %v437, %v2367
    %v2458 = vadd.f32 %v439, %v2369
    %v2459 = vadd.f32 %v480, %v2408
    %v2460 = vadd.f32 %v482, %v2410
    %v2461 = vadd.f32 %v523, %v2449
    %v2462 = vadd.f32 %v525, %v2451
    %v2463 = vxor.u32 %v2455, 2147483648
    %v2464 = vxor.u32 %v2456, 2147483648
    %v2465 = vmul.f32 %v2463, 1.442695
    %v2466 = vpow.pop %v2465
    %v2467 = vmul.f32 %v2464, 1.442695
    %v2468 = vpow.pop %v2467
    %v2469 = vadd.f32 %v2466, 1.0
    %v2470 = vadd.f32 %v2468, 1.0
    %v2471 = vrcp.pop %v2469
    %v2472 = vmul.f32 1.0, %v2471
    %v2473 = vrcp.pop %v2470
    %v2474 = vmul.f32 1.0, %v2473
    %v2475 = vxor.u32 %v2457, 2147483648
    %v2476 = vxor.u32 %v2458, 2147483648
    %v2477 = vmul.f32 %v2475, 1.442695
    %v2478 = vpow.pop %v2477
    %v2479 = vmul.f32 %v2476, 1.442695
    %v2480 = vpow.pop %v2479
    %v2481 = vadd.f32 %v2478, 1.0
    %v2482 = vadd.f32 %v2480, 1.0
    %v2483 = vrcp.pop %v2481
    %v2484 = vmul.f32 1.0, %v2483
    %v2485 = vrcp.pop %v2482
    %v2486 = vmul.f32 1.0, %v2485
    %v2487 = vtanh.pop %v2459
    %v2488 = vtanh.pop %v2460
    %v2489 = vxor.u32 %v2461, 2147483648
    %v2490 = vxor.u32 %v2462, 2147483648
    %v2491 = vmul.f32 %v2489, 1.442695
    %v2492 = vpow.pop %v2491
    %v2493 = vmul.f32 %v2490, 1.442695
    %v2494 = vpow.pop %v2493
    %v2495 = vadd.f32 %v2492, 1.0
    %v2496 = vadd.f32 %v2494, 1.0
    %v2497 = vrcp.pop %v2495
    %v2498 = vmul.f32 1.0, %v2497
    %v2499 = vrcp.pop %v2496
    %v2500 = vmul.f32 1.0, %v2499
    %v2503 = vrot.slane %v2277, 6
    %v2504 = vrot.slane %v2278, 6
    %v2507 = vmul.f32 %v2484, %v2503
    %v2508 = vmul.f32 %v2486, %v2504
    %v2509 = vmul.f32 %v2472, %v2487
    %v2510 = vmul.f32 %v2474, %v2488
    %v2511 = vadd.f32 %v2507, %v2509
    %v2512 = vadd.f32 %v2508, %v2510
    %v2513 = vtanh.pop %v2511
    %v2514 = vtanh.pop %v2512
    %v2515 = vmul.f32 %v2498, %v2513
    %v2516 = vmul.f32 %v2500, %v2514
    %v2517 = vpack.c.bf16 %v2515, %v2515
    %v2518 = vpack.c.bf16 %v2516, %v2516
    %2519 = vmatprep.subr.bf16.mxu0 %v1040
    %2520 = vmatpush1.bf16.msra.mxu0 %v1039
    %2521 = vmatprep.subr.bf16.mxu0 %v1048
    %2522 = vmatpush1.bf16.msra.mxu0 %v1047
    %2523 = vmatprep.subr.bf16.mxu0 %v1056
    %2524 = vmatpush1.bf16.msra.mxu0 %v1055
    %2525 = vmatprep.subr.bf16.mxu0 %v1064
    %2526 = vmatpush1.bf16.msra.mxu0 %v1063
    %2527 = vmatprep.subr.bf16.mxu0 %v1072
    %2528 = vmatpush1.bf16.msra.mxu0 %v1071
    %2529 = vmatprep.subr.bf16.mxu0 %v1080
    %2530 = vmatpush1.bf16.msra.mxu0 %v1079
    %2531 = vmatprep.subr.bf16.mxu0 %v1088
    %2532 = vmatpush1.bf16.msra.mxu0 %v1087
    %2533 = vmatprep.subr.bf16.mxu0 %v1096
    %2534 = vmatpush1.bf16.msra.mxu0 %v1095
    %2535 = vmatprep.subr.bf16.mxu0 %v1104
    %2536 = vmatpush1.bf16.msra.mxu0 %v1103
    %2537 = vmatprep.subr.bf16.mxu0 %v1112
    %2538 = vmatpush1.bf16.msra.mxu0 %v1111
    %2539 = vmatprep.subr.bf16.mxu0 %v1120
    %2540 = vmatpush1.bf16.msra.mxu0 %v1119
    %2541 = vmatprep.subr.bf16.mxu0 %v1128
    %2542 = vmatpush1.bf16.msra.mxu0 %v1127
    %2543 = vmatprep.subr.bf16.mxu0 %v1136
    %2544 = vmatpush1.bf16.msra.mxu0 %v1135
    %2545 = vmatprep.subr.bf16.mxu0 %v1144
    %2546 = vmatpush1.bf16.msra.mxu0 %v1143
    %2547 = vmatprep.subr.bf16.mxu0 %v1152
    %2548 = vmatpush1.bf16.msra.mxu0 %v1151
    %2549 = vmatprep.subr.bf16.mxu0 %v1160
    %2550 = vmatpush1.bf16.msra.mxu0 %v1159
    %2551 = vmatprep.mubr.bf16.mxu0 %v2518
    %2552 = vmatmul.mubr.bf16.gmra.mrb[0].mxu0 %v2517
    %v2553 = vpop.f32.mrb[0].mxu0
    %v2554 = vadd.f32 0.0, %v2553
    %v2555 = vpop.f32.mrb[0].mxu0
    %v2556 = vadd.f32 0.0, %v2555
    %v2557 = vpop.f32.mrb[0].mxu0
    %v2558 = vpop.f32.mrb[0].mxu0
    %2559 = vdwg.mxu0
    %2560 = vmatprep.subr.bf16.mxu0 %v1042
    %2561 = vmatpush1.bf16.msra.mxu0 %v1041
    %2562 = vmatprep.subr.bf16.mxu0 %v1050
    %2563 = vmatpush1.bf16.msra.mxu0 %v1049
    %2564 = vmatprep.subr.bf16.mxu0 %v1058
    %2565 = vmatpush1.bf16.msra.mxu0 %v1057
    %2566 = vmatprep.subr.bf16.mxu0 %v1066
    %2567 = vmatpush1.bf16.msra.mxu0 %v1065
    %2568 = vmatprep.subr.bf16.mxu0 %v1074
    %2569 = vmatpush1.bf16.msra.mxu0 %v1073
    %2570 = vmatprep.subr.bf16.mxu0 %v1082
    %2571 = vmatpush1.bf16.msra.mxu0 %v1081
    %2572 = vmatprep.subr.bf16.mxu0 %v1090
    %2573 = vmatpush1.bf16.msra.mxu0 %v1089
    %2574 = vmatprep.subr.bf16.mxu0 %v1098
    %2575 = vmatpush1.bf16.msra.mxu0 %v1097
    %2576 = vmatprep.subr.bf16.mxu0 %v1106
    %2577 = vmatpush1.bf16.msra.mxu0 %v1105
    %2578 = vmatprep.subr.bf16.mxu0 %v1114
    %2579 = vmatpush1.bf16.msra.mxu0 %v1113
    %2580 = vmatprep.subr.bf16.mxu0 %v1122
    %2581 = vmatpush1.bf16.msra.mxu0 %v1121
    %2582 = vmatprep.subr.bf16.mxu0 %v1130
    %2583 = vmatpush1.bf16.msra.mxu0 %v1129
    %2584 = vmatprep.subr.bf16.mxu0 %v1138
    %2585 = vmatpush1.bf16.msra.mxu0 %v1137
    %2586 = vmatprep.subr.bf16.mxu0 %v1146
    %2587 = vmatpush1.bf16.msra.mxu0 %v1145
    %2588 = vmatprep.subr.bf16.mxu0 %v1154
    %2589 = vmatpush1.bf16.msra.mxu0 %v1153
    %2590 = vmatprep.subr.bf16.mxu0 %v1162
    %2591 = vmatpush1.bf16.msra.mxu0 %v1161
    %2592 = vmatprep.mubr.bf16.mxu0 %v2518
    %2593 = vmatmul.mubr.bf16.gmra.mrb[0].mxu0 %v2517
    %v2594 = vpop.f32.mrb[0].mxu0
    %v2595 = vadd.f32 0.0, %v2594
    %v2596 = vpop.f32.mrb[0].mxu0
    %v2597 = vadd.f32 0.0, %v2596
    %v2598 = vpop.f32.mrb[0].mxu0
    %v2599 = vpop.f32.mrb[0].mxu0
    %2600 = vdwg.mxu0
    %2601 = vmatprep.subr.bf16.mxu0 %v1044
    %2602 = vmatpush1.bf16.msra.mxu0 %v1043
    %2603 = vmatprep.subr.bf16.mxu0 %v1052
    %2604 = vmatpush1.bf16.msra.mxu0 %v1051
    %2605 = vmatprep.subr.bf16.mxu0 %v1060
    %2606 = vmatpush1.bf16.msra.mxu0 %v1059
    %2607 = vmatprep.subr.bf16.mxu0 %v1068
    %2608 = vmatpush1.bf16.msra.mxu0 %v1067
    %2609 = vmatprep.subr.bf16.mxu0 %v1076
    %2610 = vmatpush1.bf16.msra.mxu0 %v1075
    %2611 = vmatprep.subr.bf16.mxu0 %v1084
    %2612 = vmatpush1.bf16.msra.mxu0 %v1083
    %2613 = vmatprep.subr.bf16.mxu0 %v1092
    %2614 = vmatpush1.bf16.msra.mxu0 %v1091
    %2615 = vmatprep.subr.bf16.mxu0 %v1100
    %2616 = vmatpush1.bf16.msra.mxu0 %v1099
    %2617 = vmatprep.subr.bf16.mxu0 %v1108
    %2618 = vmatpush1.bf16.msra.mxu0 %v1107
    %2619 = vmatprep.subr.bf16.mxu0 %v1116
    %2620 = vmatpush1.bf16.msra.mxu0 %v1115
    %2621 = vmatprep.subr.bf16.mxu0 %v1124
    %2622 = vmatpush1.bf16.msra.mxu0 %v1123
    %2623 = vmatprep.subr.bf16.mxu0 %v1132
    %2624 = vmatpush1.bf16.msra.mxu0 %v1131
    %2625 = vmatprep.subr.bf16.mxu0 %v1140
    %2626 = vmatpush1.bf16.msra.mxu0 %v1139
    %2627 = vmatprep.subr.bf16.mxu0 %v1148
    %2628 = vmatpush1.bf16.msra.mxu0 %v1147
    %2629 = vmatprep.subr.bf16.mxu0 %v1156
    %2630 = vmatpush1.bf16.msra.mxu0 %v1155
    %2631 = vmatprep.subr.bf16.mxu0 %v1164
    %2632 = vmatpush1.bf16.msra.mxu0 %v1163
    %2633 = vmatprep.mubr.bf16.mxu0 %v2518
    %2634 = vmatmul.mubr.bf16.gmra.mrb[0].mxu0 %v2517
    %v2635 = vpop.f32.mrb[0].mxu0
    %v2636 = vadd.f32 0.0, %v2635
    %v2637 = vpop.f32.mrb[0].mxu0
    %v2638 = vadd.f32 0.0, %v2637
    %v2639 = vpop.f32.mrb[0].mxu0
    %v2640 = vpop.f32.mrb[0].mxu0
    %2641 = vdwg.mxu0
    %2642 = vmatprep.subr.bf16.mxu0 %v1046
    %2643 = vmatpush1.bf16.msra.mxu0 %v1045
    %2644 = vmatprep.subr.bf16.mxu0 %v1054
    %2645 = vmatpush1.bf16.msra.mxu0 %v1053
    %2646 = vmatprep.subr.bf16.mxu0 %v1062
    %2647 = vmatpush1.bf16.msra.mxu0 %v1061
    %2648 = vmatprep.subr.bf16.mxu0 %v1070
    %2649 = vmatpush1.bf16.msra.mxu0 %v1069
    %2650 = vmatprep.subr.bf16.mxu0 %v1078
    %2651 = vmatpush1.bf16.msra.mxu0 %v1077
    %2652 = vmatprep.subr.bf16.mxu0 %v1086
    %2653 = vmatpush1.bf16.msra.mxu0 %v1085
    %2654 = vmatprep.subr.bf16.mxu0 %v1094
    %2655 = vmatpush1.bf16.msra.mxu0 %v1093
    %2656 = vmatprep.subr.bf16.mxu0 %v1102
    %2657 = vmatpush1.bf16.msra.mxu0 %v1101
    %2658 = vmatprep.subr.bf16.mxu0 %v1110
    %2659 = vmatpush1.bf16.msra.mxu0 %v1109
    %2660 = vmatprep.subr.bf16.mxu0 %v1118
    %2661 = vmatpush1.bf16.msra.mxu0 %v1117
    %2662 = vmatprep.subr.bf16.mxu0 %v1126
    %2663 = vmatpush1.bf16.msra.mxu0 %v1125
    %2664 = vmatprep.subr.bf16.mxu0 %v1134
    %2665 = vmatpush1.bf16.msra.mxu0 %v1133
    %2666 = vmatprep.subr.bf16.mxu0 %v1142
    %2667 = vmatpush1.bf16.msra.mxu0 %v1141
    %2668 = vmatprep.subr.bf16.mxu0 %v1150
    %2669 = vmatpush1.bf16.msra.mxu0 %v1149
    %2670 = vmatprep.subr.bf16.mxu0 %v1158
    %2671 = vmatpush1.bf16.msra.mxu0 %v1157
    %2672 = vmatprep.subr.bf16.mxu0 %v1166
    %2673 = vmatpush1.bf16.msra.mxu0 %v1165
    %2674 = vmatprep.mubr.bf16.mxu0 %v2518
    %2675 = vmatmul.mubr.bf16.gmra.mrb[0].mxu0 %v2517
    %v2676 = vpop.f32.mrb[0].mxu0
    %v2677 = vadd.f32 0.0, %v2676
    %v2678 = vpop.f32.mrb[0].mxu0
    %v2679 = vadd.f32 0.0, %v2678
    %v2680 = vpop.f32.mrb[0].mxu0
    %v2681 = vpop.f32.mrb[0].mxu0
    %2682 = vdwg.mxu0
    %v2691 = vrot.slane %v2554, 6
    %v2692 = vrot.slane %v2556, 6
    %v2693 = vrot.slane %v2595, 6
    %v2694 = vrot.slane %v2597, 6
    %v2695 = vrot.slane %v2636, 6
    %v2696 = vrot.slane %v2638, 6
    %v2697 = vrot.slane %v2677, 6
    %v2698 = vrot.slane %v2679, 6
    %v2707 = vadd.f32 %v394, %v2691
    %v2708 = vadd.f32 %v396, %v2692
    %v2709 = vadd.f32 %v437, %v2693
    %v2710 = vadd.f32 %v439, %v2694
    %v2711 = vadd.f32 %v480, %v2695
    %v2712 = vadd.f32 %v482, %v2696
    %v2713 = vadd.f32 %v523, %v2697
    %v2714 = vadd.f32 %v525, %v2698
    %v2715 = vxor.u32 %v2707, 2147483648
    %v2716 = vxor.u32 %v2708, 2147483648
    %v2717 = vmul.f32 %v2715, 1.442695
    %v2718 = vpow.pop %v2717
    %v2719 = vmul.f32 %v2716, 1.442695
    %v2720 = vpow.pop %v2719
    %v2721 = vadd.f32 %v2718, 1.0
    %v2722 = vadd.f32 %v2720, 1.0
    %v2723 = vrcp.pop %v2721
    %v2724 = vmul.f32 1.0, %v2723
    %v2725 = vrcp.pop %v2722
    %v2726 = vmul.f32 1.0, %v2725
    %v2727 = vxor.u32 %v2709, 2147483648
    %v2728 = vxor.u32 %v2710, 2147483648
    %v2729 = vmul.f32 %v2727, 1.442695
    %v2730 = vpow.pop %v2729
    %v2731 = vmul.f32 %v2728, 1.442695
    %v2732 = vpow.pop %v2731
    %v2733 = vadd.f32 %v2730, 1.0
    %v2734 = vadd.f32 %v2732, 1.0
    %v2735 = vrcp.pop %v2733
    %v2736 = vmul.f32 1.0, %v2735
    %v2737 = vrcp.pop %v2734
    %v2738 = vmul.f32 1.0, %v2737
    %v2739 = vtanh.pop %v2711
    %v2740 = vtanh.pop %v2712
    %v2741 = vxor.u32 %v2713, 2147483648
    %v2742 = vxor.u32 %v2714, 2147483648
    %v2743 = vmul.f32 %v2741, 1.442695
    %v2744 = vpow.pop %v2743
    %v2745 = vmul.f32 %v2742, 1.442695
    %v2746 = vpow.pop %v2745
    %v2747 = vadd.f32 %v2744, 1.0
    %v2748 = vadd.f32 %v2746, 1.0
    %v2749 = vrcp.pop %v2747
    %v2750 = vmul.f32 1.0, %v2749
    %v2751 = vrcp.pop %v2748
    %v2752 = vmul.f32 1.0, %v2751
    %v2755 = vrot.slane %v2511, 6
    %v2756 = vrot.slane %v2512, 6
    %v2759 = vmul.f32 %v2736, %v2755
    %v2760 = vmul.f32 %v2738, %v2756
    %v2761 = vmul.f32 %v2724, %v2739
    %v2762 = vmul.f32 %v2726, %v2740
    %v2763 = vadd.f32 %v2759, %v2761
    %v2764 = vadd.f32 %v2760, %v2762
    %v2765 = vtanh.pop %v2763
    %v2766 = vtanh.pop %v2764
    %v2767 = vmul.f32 %v2750, %v2765
    %v2768 = vmul.f32 %v2752, %v2766
    %v2769 = vpack.c.bf16 %v2767, %v2767
    %v2770 = vpack.c.bf16 %v2768, %v2768
    %v2773 = vrot.slane %v2769, 1
    %v2774 = vrot.slane %v2770, 1
    %2777 = vmatprep.subr.bf16.mxu0 %v1040
    %2778 = vmatpush1.bf16.msra.mxu0 %v1039
    %2779 = vmatprep.subr.bf16.mxu0 %v1048
    %2780 = vmatpush1.bf16.msra.mxu0 %v1047
    %2781 = vmatprep.subr.bf16.mxu0 %v1056
    %2782 = vmatpush1.bf16.msra.mxu0 %v1055
    %2783 = vmatprep.subr.bf16.mxu0 %v1064
    %2784 = vmatpush1.bf16.msra.mxu0 %v1063
    %2785 = vmatprep.subr.bf16.mxu0 %v1072
    %2786 = vmatpush1.bf16.msra.mxu0 %v1071
    %2787 = vmatprep.subr.bf16.mxu0 %v1080
    %2788 = vmatpush1.bf16.msra.mxu0 %v1079
    %2789 = vmatprep.subr.bf16.mxu0 %v1088
    %2790 = vmatpush1.bf16.msra.mxu0 %v1087
    %2791 = vmatprep.subr.bf16.mxu0 %v1096
    %2792 = vmatpush1.bf16.msra.mxu0 %v1095
    %2793 = vmatprep.subr.bf16.mxu0 %v1104
    %2794 = vmatpush1.bf16.msra.mxu0 %v1103
    %2795 = vmatprep.subr.bf16.mxu0 %v1112
    %2796 = vmatpush1.bf16.msra.mxu0 %v1111
    %2797 = vmatprep.subr.bf16.mxu0 %v1120
    %2798 = vmatpush1.bf16.msra.mxu0 %v1119
    %2799 = vmatprep.subr.bf16.mxu0 %v1128
    %2800 = vmatpush1.bf16.msra.mxu0 %v1127
    %2801 = vmatprep.subr.bf16.mxu0 %v1136
    %2802 = vmatpush1.bf16.msra.mxu0 %v1135
    %2803 = vmatprep.subr.bf16.mxu0 %v1144
    %2804 = vmatpush1.bf16.msra.mxu0 %v1143
    %2805 = vmatprep.subr.bf16.mxu0 %v1152
    %2806 = vmatpush1.bf16.msra.mxu0 %v1151
    %2807 = vmatprep.subr.bf16.mxu0 %v1160
    %2808 = vmatpush1.bf16.msra.mxu0 %v1159
    %2809 = vmatprep.mubr.bf16.mxu0 %v2774
    %2810 = vmatmul.mubr.bf16.gmra.mrb[0].mxu0 %v2773
    %v2811 = vpop.f32.mrb[0].mxu0
    %v2812 = vadd.f32 0.0, %v2811
    %v2813 = vpop.f32.mrb[0].mxu0
    %v2814 = vadd.f32 0.0, %v2813
    %v2815 = vpop.f32.mrb[0].mxu0
    %v2816 = vpop.f32.mrb[0].mxu0
    %2817 = vdwg.mxu0
    %2818 = vmatprep.subr.bf16.mxu0 %v1042
    %2819 = vmatpush1.bf16.msra.mxu0 %v1041
    %2820 = vmatprep.subr.bf16.mxu0 %v1050
    %2821 = vmatpush1.bf16.msra.mxu0 %v1049
    %2822 = vmatprep.subr.bf16.mxu0 %v1058
    %2823 = vmatpush1.bf16.msra.mxu0 %v1057
    %2824 = vmatprep.subr.bf16.mxu0 %v1066
    %2825 = vmatpush1.bf16.msra.mxu0 %v1065
    %2826 = vmatprep.subr.bf16.mxu0 %v1074
    %2827 = vmatpush1.bf16.msra.mxu0 %v1073
    %2828 = vmatprep.subr.bf16.mxu0 %v1082
    %2829 = vmatpush1.bf16.msra.mxu0 %v1081
    %2830 = vmatprep.subr.bf16.mxu0 %v1090
    %2831 = vmatpush1.bf16.msra.mxu0 %v1089
    %2832 = vmatprep.subr.bf16.mxu0 %v1098
    %2833 = vmatpush1.bf16.msra.mxu0 %v1097
    %2834 = vmatprep.subr.bf16.mxu0 %v1106
    %2835 = vmatpush1.bf16.msra.mxu0 %v1105
    %2836 = vmatprep.subr.bf16.mxu0 %v1114
    %2837 = vmatpush1.bf16.msra.mxu0 %v1113
    %2838 = vmatprep.subr.bf16.mxu0 %v1122
    %2839 = vmatpush1.bf16.msra.mxu0 %v1121
    %2840 = vmatprep.subr.bf16.mxu0 %v1130
    %2841 = vmatpush1.bf16.msra.mxu0 %v1129
    %2842 = vmatprep.subr.bf16.mxu0 %v1138
    %2843 = vmatpush1.bf16.msra.mxu0 %v1137
    %2844 = vmatprep.subr.bf16.mxu0 %v1146
    %2845 = vmatpush1.bf16.msra.mxu0 %v1145
    %2846 = vmatprep.subr.bf16.mxu0 %v1154
    %2847 = vmatpush1.bf16.msra.mxu0 %v1153
    %2848 = vmatprep.subr.bf16.mxu0 %v1162
    %2849 = vmatpush1.bf16.msra.mxu0 %v1161
    %2850 = vmatprep.mubr.bf16.mxu0 %v2774
    %2851 = vmatmul.mubr.bf16.gmra.mrb[0].mxu0 %v2773
    %v2852 = vpop.f32.mrb[0].mxu0
    %v2853 = vadd.f32 0.0, %v2852
    %v2854 = vpop.f32.mrb[0].mxu0
    %v2855 = vadd.f32 0.0, %v2854
    %v2856 = vpop.f32.mrb[0].mxu0
    %v2857 = vpop.f32.mrb[0].mxu0
    %2858 = vdwg.mxu0
    %2859 = vmatprep.subr.bf16.mxu0 %v1044
    %2860 = vmatpush1.bf16.msra.mxu0 %v1043
    %2861 = vmatprep.subr.bf16.mxu0 %v1052
    %2862 = vmatpush1.bf16.msra.mxu0 %v1051
    %2863 = vmatprep.subr.bf16.mxu0 %v1060
    %2864 = vmatpush1.bf16.msra.mxu0 %v1059
    %2865 = vmatprep.subr.bf16.mxu0 %v1068
    %2866 = vmatpush1.bf16.msra.mxu0 %v1067
    %2867 = vmatprep.subr.bf16.mxu0 %v1076
    %2868 = vmatpush1.bf16.msra.mxu0 %v1075
    %2869 = vmatprep.subr.bf16.mxu0 %v1084
    %2870 = vmatpush1.bf16.msra.mxu0 %v1083
    %2871 = vmatprep.subr.bf16.mxu0 %v1092
    %2872 = vmatpush1.bf16.msra.mxu0 %v1091
    %2873 = vmatprep.subr.bf16.mxu0 %v1100
    %2874 = vmatpush1.bf16.msra.mxu0 %v1099
    %2875 = vmatprep.subr.bf16.mxu0 %v1108
    %2876 = vmatpush1.bf16.msra.mxu0 %v1107
    %2877 = vmatprep.subr.bf16.mxu0 %v1116
    %2878 = vmatpush1.bf16.msra.mxu0 %v1115
    %2879 = vmatprep.subr.bf16.mxu0 %v1124
    %2880 = vmatpush1.bf16.msra.mxu0 %v1123
    %2881 = vmatprep.subr.bf16.mxu0 %v1132
    %2882 = vmatpush1.bf16.msra.mxu0 %v1131
    %2883 = vmatprep.subr.bf16.mxu0 %v1140
    %2884 = vmatpush1.bf16.msra.mxu0 %v1139
    %2885 = vmatprep.subr.bf16.mxu0 %v1148
    %2886 = vmatpush1.bf16.msra.mxu0 %v1147
    %2887 = vmatprep.subr.bf16.mxu0 %v1156
    %2888 = vmatpush1.bf16.msra.mxu0 %v1155
    %2889 = vmatprep.subr.bf16.mxu0 %v1164
    %2890 = vmatpush1.bf16.msra.mxu0 %v1163
    %2891 = vmatprep.mubr.bf16.mxu0 %v2774
    %2892 = vmatmul.mubr.bf16.gmra.mrb[0].mxu0 %v2773
    %v2893 = vpop.f32.mrb[0].mxu0
    %v2894 = vadd.f32 0.0, %v2893
    %v2895 = vpop.f32.mrb[0].mxu0
    %v2896 = vadd.f32 0.0, %v2895
    %v2897 = vpop.f32.mrb[0].mxu0
    %v2898 = vpop.f32.mrb[0].mxu0
    %2899 = vdwg.mxu0
    %2900 = vmatprep.subr.bf16.mxu0 %v1046
    %2901 = vmatpush1.bf16.msra.mxu0 %v1045
    %2902 = vmatprep.subr.bf16.mxu0 %v1054
    %2903 = vmatpush1.bf16.msra.mxu0 %v1053
    %2904 = vmatprep.subr.bf16.mxu0 %v1062
    %2905 = vmatpush1.bf16.msra.mxu0 %v1061
    %2906 = vmatprep.subr.bf16.mxu0 %v1070
    %2907 = vmatpush1.bf16.msra.mxu0 %v1069
    %2908 = vmatprep.subr.bf16.mxu0 %v1078
    %2909 = vmatpush1.bf16.msra.mxu0 %v1077
    %2910 = vmatprep.subr.bf16.mxu0 %v1086
    %2911 = vmatpush1.bf16.msra.mxu0 %v1085
    %2912 = vmatprep.subr.bf16.mxu0 %v1094
    %2913 = vmatpush1.bf16.msra.mxu0 %v1093
    %2914 = vmatprep.subr.bf16.mxu0 %v1102
    %2915 = vmatpush1.bf16.msra.mxu0 %v1101
    %2916 = vmatprep.subr.bf16.mxu0 %v1110
    %2917 = vmatpush1.bf16.msra.mxu0 %v1109
    %2918 = vmatprep.subr.bf16.mxu0 %v1118
    %2919 = vmatpush1.bf16.msra.mxu0 %v1117
    %2920 = vmatprep.subr.bf16.mxu0 %v1126
    %2921 = vmatpush1.bf16.msra.mxu0 %v1125
    %2922 = vmatprep.subr.bf16.mxu0 %v1134
    %2923 = vmatpush1.bf16.msra.mxu0 %v1133
    %2924 = vmatprep.subr.bf16.mxu0 %v1142
    %2925 = vmatpush1.bf16.msra.mxu0 %v1141
    %2926 = vmatprep.subr.bf16.mxu0 %v1150
    %2927 = vmatpush1.bf16.msra.mxu0 %v1149
    %2928 = vmatprep.subr.bf16.mxu0 %v1158
    %2929 = vmatpush1.bf16.msra.mxu0 %v1157
    %2930 = vmatprep.subr.bf16.mxu0 %v1166
    %2931 = vmatpush1.bf16.msra.mxu0 %v1165
    %2932 = vmatprep.mubr.bf16.mxu0 %v2774
    %2933 = vmatmul.mubr.bf16.gmra.mrb[0].mxu0 %v2773
    %v2934 = vpop.f32.mrb[0].mxu0
    %v2935 = vadd.f32 0.0, %v2934
    %v2936 = vpop.f32.mrb[0].mxu0
    %v2937 = vadd.f32 0.0, %v2936
    %v2938 = vpop.f32.mrb[0].mxu0
    %v2939 = vpop.f32.mrb[0].mxu0
    %2940 = vdwg.mxu0
    %v2949 = vrot.slane %v2812, 4
    %v2950 = vrot.slane %v2814, 4
    %v2951 = vrot.slane %v2853, 4
    %v2952 = vrot.slane %v2855, 4
    %v2953 = vrot.slane %v2894, 4
    %v2954 = vrot.slane %v2896, 4
    %v2955 = vrot.slane %v2935, 4
    %v2956 = vrot.slane %v2937, 4
    %v2965 = vadd.f32 %v394, %v2949
    %v2966 = vadd.f32 %v396, %v2950
    %v2967 = vadd.f32 %v437, %v2951
    %v2968 = vadd.f32 %v439, %v2952
    %v2969 = vadd.f32 %v480, %v2953
    %v2970 = vadd.f32 %v482, %v2954
    %v2971 = vadd.f32 %v523, %v2955
    %v2972 = vadd.f32 %v525, %v2956
    %v2973 = vxor.u32 %v2965, 2147483648
    %v2974 = vxor.u32 %v2966, 2147483648
    %v2975 = vmul.f32 %v2973, 1.442695
    %v2976 = vpow.pop %v2975
    %v2977 = vmul.f32 %v2974, 1.442695
    %v2978 = vpow.pop %v2977
    %v2979 = vadd.f32 %v2976, 1.0
    %v2980 = vadd.f32 %v2978, 1.0
    %v2981 = vrcp.pop %v2979
    %v2982 = vmul.f32 1.0, %v2981
    %v2983 = vrcp.pop %v2980
    %v2984 = vmul.f32 1.0, %v2983
    %v2985 = vxor.u32 %v2967, 2147483648
    %v2986 = vxor.u32 %v2968, 2147483648
    %v2987 = vmul.f32 %v2985, 1.442695
    %v2988 = vpow.pop %v2987
    %v2989 = vmul.f32 %v2986, 1.442695
    %v2990 = vpow.pop %v2989
    %v2991 = vadd.f32 %v2988, 1.0
    %v2992 = vadd.f32 %v2990, 1.0
    %v2993 = vrcp.pop %v2991
    %v2994 = vmul.f32 1.0, %v2993
    %v2995 = vrcp.pop %v2992
    %v2996 = vmul.f32 1.0, %v2995
    %v2997 = vtanh.pop %v2969
    %v2998 = vtanh.pop %v2970
    %v2999 = vxor.u32 %v2971, 2147483648
    %v3000 = vxor.u32 %v2972, 2147483648
    %v3001 = vmul.f32 %v2999, 1.442695
    %v3002 = vpow.pop %v3001
    %v3003 = vmul.f32 %v3000, 1.442695
    %v3004 = vpow.pop %v3003
    %v3005 = vadd.f32 %v3002, 1.0
    %v3006 = vadd.f32 %v3004, 1.0
    %v3007 = vrcp.pop %v3005
    %v3008 = vmul.f32 1.0, %v3007
    %v3009 = vrcp.pop %v3006
    %v3010 = vmul.f32 1.0, %v3009
    %v3013 = vrot.slane %v2763, 6
    %v3014 = vrot.slane %v2764, 6
    %v3017 = vmul.f32 %v2994, %v3013
    %v3018 = vmul.f32 %v2996, %v3014
    %v3019 = vmul.f32 %v2982, %v2997
    %v3020 = vmul.f32 %v2984, %v2998
    %v3021 = vadd.f32 %v3017, %v3019
    %v3022 = vadd.f32 %v3018, %v3020
    %v3023 = vtanh.pop %v3021
    %v3024 = vtanh.pop %v3022
    %v3025 = vmul.f32 %v3008, %v3023
    %v3026 = vmul.f32 %v3010, %v3024
    %v3027 = vpack.c.bf16 %v3025, %v3025
    %v3028 = vpack.c.bf16 %v3026, %v3026
    %v3031 = vrot.slane %v3027, 2
    %v3032 = vrot.slane %v3028, 2
    %3035 = vmatprep.subr.bf16.mxu0 %v1040
    %3036 = vmatpush1.bf16.msra.mxu0 %v1039
    %3037 = vmatprep.subr.bf16.mxu0 %v1048
    %3038 = vmatpush1.bf16.msra.mxu0 %v1047
    %3039 = vmatprep.subr.bf16.mxu0 %v1056
    %3040 = vmatpush1.bf16.msra.mxu0 %v1055
    %3041 = vmatprep.subr.bf16.mxu0 %v1064
    %3042 = vmatpush1.bf16.msra.mxu0 %v1063
    %3043 = vmatprep.subr.bf16.mxu0 %v1072
    %3044 = vmatpush1.bf16.msra.mxu0 %v1071
    %3045 = vmatprep.subr.bf16.mxu0 %v1080
    %3046 = vmatpush1.bf16.msra.mxu0 %v1079
    %3047 = vmatprep.subr.bf16.mxu0 %v1088
    %3048 = vmatpush1.bf16.msra.mxu0 %v1087
    %3049 = vmatprep.subr.bf16.mxu0 %v1096
    %3050 = vmatpush1.bf16.msra.mxu0 %v1095
    %3051 = vmatprep.subr.bf16.mxu0 %v1104
    %3052 = vmatpush1.bf16.msra.mxu0 %v1103
    %3053 = vmatprep.subr.bf16.mxu0 %v1112
    %3054 = vmatpush1.bf16.msra.mxu0 %v1111
    %3055 = vmatprep.subr.bf16.mxu0 %v1120
    %3056 = vmatpush1.bf16.msra.mxu0 %v1119
    %3057 = vmatprep.subr.bf16.mxu0 %v1128
    %3058 = vmatpush1.bf16.msra.mxu0 %v1127
    %3059 = vmatprep.subr.bf16.mxu0 %v1136
    %3060 = vmatpush1.bf16.msra.mxu0 %v1135
    %3061 = vmatprep.subr.bf16.mxu0 %v1144
    %3062 = vmatpush1.bf16.msra.mxu0 %v1143
    %3063 = vmatprep.subr.bf16.mxu0 %v1152
    %3064 = vmatpush1.bf16.msra.mxu0 %v1151
    %3065 = vmatprep.subr.bf16.mxu0 %v1160
    %3066 = vmatpush1.bf16.msra.mxu0 %v1159
    %3067 = vmatprep.mubr.bf16.mxu0 %v3032
    %3068 = vmatmul.mubr.bf16.gmra.mrb[0].mxu0 %v3031
    %v3069 = vpop.f32.mrb[0].mxu0
    %v3070 = vadd.f32 0.0, %v3069
    %v3071 = vpop.f32.mrb[0].mxu0
    %v3072 = vadd.f32 0.0, %v3071
    %v3073 = vpop.f32.mrb[0].mxu0
    %v3074 = vpop.f32.mrb[0].mxu0
    %3075 = vdwg.mxu0
    %3076 = vmatprep.subr.bf16.mxu0 %v1042
    %3077 = vmatpush1.bf16.msra.mxu0 %v1041
    %3078 = vmatprep.subr.bf16.mxu0 %v1050
    %3079 = vmatpush1.bf16.msra.mxu0 %v1049
    %3080 = vmatprep.subr.bf16.mxu0 %v1058
    %3081 = vmatpush1.bf16.msra.mxu0 %v1057
    %3082 = vmatprep.subr.bf16.mxu0 %v1066
    %3083 = vmatpush1.bf16.msra.mxu0 %v1065
    %3084 = vmatprep.subr.bf16.mxu0 %v1074
    %3085 = vmatpush1.bf16.msra.mxu0 %v1073
    %3086 = vmatprep.subr.bf16.mxu0 %v1082
    %3087 = vmatpush1.bf16.msra.mxu0 %v1081
    %3088 = vmatprep.subr.bf16.mxu0 %v1090
    %3089 = vmatpush1.bf16.msra.mxu0 %v1089
    %3090 = vmatprep.subr.bf16.mxu0 %v1098
    %3091 = vmatpush1.bf16.msra.mxu0 %v1097
    %3092 = vmatprep.subr.bf16.mxu0 %v1106
    %3093 = vmatpush1.bf16.msra.mxu0 %v1105
    %3094 = vmatprep.subr.bf16.mxu0 %v1114
    %3095 = vmatpush1.bf16.msra.mxu0 %v1113
    %3096 = vmatprep.subr.bf16.mxu0 %v1122
    %3097 = vmatpush1.bf16.msra.mxu0 %v1121
    %3098 = vmatprep.subr.bf16.mxu0 %v1130
    %3099 = vmatpush1.bf16.msra.mxu0 %v1129
    %3100 = vmatprep.subr.bf16.mxu0 %v1138
    %3101 = vmatpush1.bf16.msra.mxu0 %v1137
    %3102 = vmatprep.subr.bf16.mxu0 %v1146
    %3103 = vmatpush1.bf16.msra.mxu0 %v1145
    %3104 = vmatprep.subr.bf16.mxu0 %v1154
    %3105 = vmatpush1.bf16.msra.mxu0 %v1153
    %3106 = vmatprep.subr.bf16.mxu0 %v1162
    %3107 = vmatpush1.bf16.msra.mxu0 %v1161
    %3108 = vmatprep.mubr.bf16.mxu0 %v3032
    %3109 = vmatmul.mubr.bf16.gmra.mrb[0].mxu0 %v3031
    %v3110 = vpop.f32.mrb[0].mxu0
    %v3111 = vadd.f32 0.0, %v3110
    %v3112 = vpop.f32.mrb[0].mxu0
    %v3113 = vadd.f32 0.0, %v3112
    %v3114 = vpop.f32.mrb[0].mxu0
    %v3115 = vpop.f32.mrb[0].mxu0
    %3116 = vdwg.mxu0
    %3117 = vmatprep.subr.bf16.mxu0 %v1044
    %3118 = vmatpush1.bf16.msra.mxu0 %v1043
    %3119 = vmatprep.subr.bf16.mxu0 %v1052
    %3120 = vmatpush1.bf16.msra.mxu0 %v1051
    %3121 = vmatprep.subr.bf16.mxu0 %v1060
    %3122 = vmatpush1.bf16.msra.mxu0 %v1059
    %3123 = vmatprep.subr.bf16.mxu0 %v1068
    %3124 = vmatpush1.bf16.msra.mxu0 %v1067
    %3125 = vmatprep.subr.bf16.mxu0 %v1076
    %3126 = vmatpush1.bf16.msra.mxu0 %v1075
    %3127 = vmatprep.subr.bf16.mxu0 %v1084
    %3128 = vmatpush1.bf16.msra.mxu0 %v1083
    %3129 = vmatprep.subr.bf16.mxu0 %v1092
    %3130 = vmatpush1.bf16.msra.mxu0 %v1091
    %3131 = vmatprep.subr.bf16.mxu0 %v1100
    %3132 = vmatpush1.bf16.msra.mxu0 %v1099
    %3133 = vmatprep.subr.bf16.mxu0 %v1108
    %3134 = vmatpush1.bf16.msra.mxu0 %v1107
    %3135 = vmatprep.subr.bf16.mxu0 %v1116
    %3136 = vmatpush1.bf16.msra.mxu0 %v1115
    %3137 = vmatprep.subr.bf16.mxu0 %v1124
    %3138 = vmatpush1.bf16.msra.mxu0 %v1123
    %3139 = vmatprep.subr.bf16.mxu0 %v1132
    %3140 = vmatpush1.bf16.msra.mxu0 %v1131
    %3141 = vmatprep.subr.bf16.mxu0 %v1140
    %3142 = vmatpush1.bf16.msra.mxu0 %v1139
    %3143 = vmatprep.subr.bf16.mxu0 %v1148
    %3144 = vmatpush1.bf16.msra.mxu0 %v1147
    %3145 = vmatprep.subr.bf16.mxu0 %v1156
    %3146 = vmatpush1.bf16.msra.mxu0 %v1155
    %3147 = vmatprep.subr.bf16.mxu0 %v1164
    %3148 = vmatpush1.bf16.msra.mxu0 %v1163
    %3149 = vmatprep.mubr.bf16.mxu0 %v3032
    %3150 = vmatmul.mubr.bf16.gmra.mrb[0].mxu0 %v3031
    %v3151 = vpop.f32.mrb[0].mxu0
    %v3152 = vadd.f32 0.0, %v3151
    %v3153 = vpop.f32.mrb[0].mxu0
    %v3154 = vadd.f32 0.0, %v3153
    %v3155 = vpop.f32.mrb[0].mxu0
    %v3156 = vpop.f32.mrb[0].mxu0
    %3157 = vdwg.mxu0
    %3158 = vmatprep.subr.bf16.mxu0 %v1046
    %3159 = vmatpush1.bf16.msra.mxu0 %v1045
    %3160 = vmatprep.subr.bf16.mxu0 %v1054
    %3161 = vmatpush1.bf16.msra.mxu0 %v1053
    %3162 = vmatprep.subr.bf16.mxu0 %v1062
    %3163 = vmatpush1.bf16.msra.mxu0 %v1061
    %3164 = vmatprep.subr.bf16.mxu0 %v1070
    %3165 = vmatpush1.bf16.msra.mxu0 %v1069
    %3166 = vmatprep.subr.bf16.mxu0 %v1078
    %3167 = vmatpush1.bf16.msra.mxu0 %v1077
    %3168 = vmatprep.subr.bf16.mxu0 %v1086
    %3169 = vmatpush1.bf16.msra.mxu0 %v1085
    %3170 = vmatprep.subr.bf16.mxu0 %v1094
    %3171 = vmatpush1.bf16.msra.mxu0 %v1093
    %3172 = vmatprep.subr.bf16.mxu0 %v1102
    %3173 = vmatpush1.bf16.msra.mxu0 %v1101
    %3174 = vmatprep.subr.bf16.mxu0 %v1110
    %3175 = vmatpush1.bf16.msra.mxu0 %v1109
    %3176 = vmatprep.subr.bf16.mxu0 %v1118
    %3177 = vmatpush1.bf16.msra.mxu0 %v1117
    %3178 = vmatprep.subr.bf16.mxu0 %v1126
    %3179 = vmatpush1.bf16.msra.mxu0 %v1125
    %3180 = vmatprep.subr.bf16.mxu0 %v1134
    %3181 = vmatpush1.bf16.msra.mxu0 %v1133
    %3182 = vmatprep.subr.bf16.mxu0 %v1142
    %3183 = vmatpush1.bf16.msra.mxu0 %v1141
    %3184 = vmatprep.subr.bf16.mxu0 %v1150
    %3185 = vmatpush1.bf16.msra.mxu0 %v1149
    %3186 = vmatprep.subr.bf16.mxu0 %v1158
    %3187 = vmatpush1.bf16.msra.mxu0 %v1157
    %3188 = vmatprep.subr.bf16.mxu0 %v1166
    %3189 = vmatpush1.bf16.msra.mxu0 %v1165
    %3190 = vmatprep.mubr.bf16.mxu0 %v3032
    %3191 = vmatmul.mubr.bf16.gmra.mrb[0].mxu0 %v3031
    %v3192 = vpop.f32.mrb[0].mxu0
    %v3193 = vadd.f32 0.0, %v3192
    %v3194 = vpop.f32.mrb[0].mxu0
    %v3195 = vadd.f32 0.0, %v3194
    %v3196 = vpop.f32.mrb[0].mxu0
    %v3197 = vpop.f32.mrb[0].mxu0
    %3198 = vdwg.mxu0
    %v3207 = vrot.slane %v3070, 2
    %v3208 = vrot.slane %v3072, 2
    %v3209 = vrot.slane %v3111, 2
    %v3210 = vrot.slane %v3113, 2
    %v3211 = vrot.slane %v3152, 2
    %v3212 = vrot.slane %v3154, 2
    %v3213 = vrot.slane %v3193, 2
    %v3214 = vrot.slane %v3195, 2
    %v3223 = vadd.f32 %v394, %v3207
    %v3224 = vadd.f32 %v396, %v3208
    %v3225 = vadd.f32 %v437, %v3209
    %v3226 = vadd.f32 %v439, %v3210
    %v3227 = vadd.f32 %v480, %v3211
    %v3228 = vadd.f32 %v482, %v3212
    %v3229 = vadd.f32 %v523, %v3213
    %v3230 = vadd.f32 %v525, %v3214
    %v3231 = vxor.u32 %v3223, 2147483648
    %v3232 = vxor.u32 %v3224, 2147483648
    %v3233 = vmul.f32 %v3231, 1.442695
    %v3234 = vpow.pop %v3233
    %v3235 = vmul.f32 %v3232, 1.442695
    %v3236 = vpow.pop %v3235
    %v3237 = vadd.f32 %v3234, 1.0
    %v3238 = vadd.f32 %v3236, 1.0
    %v3239 = vrcp.pop %v3237
    %v3240 = vmul.f32 1.0, %v3239
    %v3241 = vrcp.pop %v3238
    %v3242 = vmul.f32 1.0, %v3241
    %v3243 = vxor.u32 %v3225, 2147483648
    %v3244 = vxor.u32 %v3226, 2147483648
    %v3245 = vmul.f32 %v3243, 1.442695
    %v3246 = vpow.pop %v3245
    %v3247 = vmul.f32 %v3244, 1.442695
    %v3248 = vpow.pop %v3247
    %v3249 = vadd.f32 %v3246, 1.0
    %v3250 = vadd.f32 %v3248, 1.0
    %v3251 = vrcp.pop %v3249
    %v3252 = vmul.f32 1.0, %v3251
    %v3253 = vrcp.pop %v3250
    %v3254 = vmul.f32 1.0, %v3253
    %v3255 = vtanh.pop %v3227
    %v3256 = vtanh.pop %v3228
    %v3257 = vxor.u32 %v3229, 2147483648
    %v3258 = vxor.u32 %v3230, 2147483648
    %v3259 = vmul.f32 %v3257, 1.442695
    %v3260 = vpow.pop %v3259
    %v3261 = vmul.f32 %v3258, 1.442695
    %v3262 = vpow.pop %v3261
    %v3263 = vadd.f32 %v3260, 1.0
    %v3264 = vadd.f32 %v3262, 1.0
    %v3265 = vrcp.pop %v3263
    %v3266 = vmul.f32 1.0, %v3265
    %v3267 = vrcp.pop %v3264
    %v3268 = vmul.f32 1.0, %v3267
    %v3271 = vrot.slane %v3021, 6
    %v3272 = vrot.slane %v3022, 6
    %v3275 = vmul.f32 %v3252, %v3271
    %v3276 = vmul.f32 %v3254, %v3272
    %v3277 = vmul.f32 %v3240, %v3255
    %v3278 = vmul.f32 %v3242, %v3256
    %v3279 = vadd.f32 %v3275, %v3277
    %v3280 = vadd.f32 %v3276, %v3278
    %v3281 = vtanh.pop %v3279
    %v3282 = vtanh.pop %v3280
    %v3283 = vmul.f32 %v3266, %v3281
    %v3284 = vmul.f32 %v3268, %v3282
    %v3285 = vld [vmem:[%s1] sm:$0xff]
    %v3286 = vld [vmem:[%s1 + $0x8] sm:$0xff]
    %v3287 = vld [vmem:[%s1 + $0x10] sm:$0xff]
    %v3288 = vld [vmem:[%s1 + $0x18] sm:$0xff]
    %v3289 = vld [vmem:[%s1 + $0x20] sm:$0xff]
    %v3290 = vld [vmem:[%s1 + $0x28] sm:$0xff]
    %v3291 = vld [vmem:[%s1 + $0x30] sm:$0xff]
    %v3292 = vld [vmem:[%s1 + $0x38] sm:$0xff]
    %v3293 = vpack.c.bf16 %v3286, %v3285
    %v3294 = vpack.c.bf16 %v3288, %v3287
    %v3295 = vpack.c.bf16 %v3290, %v3289
    %v3296 = vpack.c.bf16 %v3292, %v3291
    %v3297 = vld [vmem:[%s5] sm:$0xff]
    %v3298 = vld [vmem:[%s5 + $0x8] sm:$0xff]
    %v3299 = vld [vmem:[%s5 + $0x10] sm:$0xff]
    %v3300 = vld [vmem:[%s5 + $0x18] sm:$0xff]
    %v3301 = vld [vmem:[%s5 + $0x20] sm:$0xff]
    %v3302 = vld [vmem:[%s5 + $0x28] sm:$0xff]
    %v3303 = vld [vmem:[%s5 + $0x30] sm:$0xff]
    %v3304 = vld [vmem:[%s5 + $0x38] sm:$0xff]
    %v3305 = vld [vmem:[%s5 + $0x40] sm:$0xff]
    %v3306 = vld [vmem:[%s5 + $0x48] sm:$0xff]
    %v3307 = vld [vmem:[%s5 + $0x50] sm:$0xff]
    %v3308 = vld [vmem:[%s5 + $0x58] sm:$0xff]
    %s3309 = scalar_lea.vmem %s5, 96
    %v3310 = vld [vmem:[%s3309] sm:$0xff]
    %v3311 = vld [vmem:[%s3309 + $0x8] sm:$0xff]
    %v3312 = vld [vmem:[%s3309 + $0x10] sm:$0xff]
    %v3313 = vld [vmem:[%s3309 + $0x18] sm:$0xff]
    %v3314 = vld [vmem:[%s3309 + $0x20] sm:$0xff]
    %v3315 = vld [vmem:[%s3309 + $0x28] sm:$0xff]
    %v3316 = vld [vmem:[%s3309 + $0x30] sm:$0xff]
    %v3317 = vld [vmem:[%s3309 + $0x38] sm:$0xff]
    %v3318 = vld [vmem:[%s3309 + $0x40] sm:$0xff]
    %v3319 = vld [vmem:[%s3309 + $0x48] sm:$0xff]
    %v3320 = vld [vmem:[%s3309 + $0x50] sm:$0xff]
    %v3321 = vld [vmem:[%s3309 + $0x58] sm:$0xff]
    %vm3326 = vcmask 1046528
    %v3327 = vrot.slane %v3293, 1
    %v3328 = vrot.slane %v3294, 1
    %v3329 = vsel %vm3326, %v3327, %v3328
    %v3330 = vrot.slane %v3295, 1
    %v3331 = vsel %vm3326, %v3328, %v3330
    %v3332 = vrot.slane %v3296, 1
    %v3333 = vsel %vm3326, %v3330, %v3332
    %v3346 = vunpack.c.l.b16 %v3310
    %v3347 = vunpack.c.h.b16 %v3310
    %v3348 = vunpack.c.l.b16 %v3311
    %v3349 = vunpack.c.h.b16 %v3311
    %v3350 = vunpack.c.l.b16 %v3312
    %v3351 = vunpack.c.h.b16 %v3312
    %v3352 = vunpack.c.l.b16 %v3313
    %v3353 = vunpack.c.h.b16 %v3313
    %v3354 = vunpack.c.l.b16 %v3314
    %v3355 = vunpack.c.h.b16 %v3314
    %v3356 = vunpack.c.l.b16 %v3315
    %v3357 = vunpack.c.h.b16 %v3315
    %v3358 = vunpack.c.l.b16 %v3316
    %v3359 = vunpack.c.h.b16 %v3316
    %v3360 = vunpack.c.l.b16 %v3317
    %v3361 = vunpack.c.h.b16 %v3317
    %v3362 = vunpack.c.l.b16 %v3318
    %v3363 = vunpack.c.h.b16 %v3318
    %v3364 = vunpack.c.l.b16 %v3319
    %v3365 = vunpack.c.h.b16 %v3319
    %v3366 = vunpack.c.l.b16 %v3320
    %v3367 = vunpack.c.h.b16 %v3320
    %v3368 = vunpack.c.l.b16 %v3321
    %v3369 = vunpack.c.h.b16 %v3321
    %v3370 = vpack.c.b16 %v3348, %v3346
    %v3371 = vpack.c.b16 %v3349, %v3347
    %v3372 = vpack.c.b16 %v3352, %v3350
    %v3373 = vpack.c.b16 %v3353, %v3351
    %v3374 = vpack.c.b16 %v3356, %v3354
    %v3375 = vpack.c.b16 %v3357, %v3355
    %v3376 = vpack.c.b16 %v3360, %v3358
    %v3377 = vpack.c.b16 %v3361, %v3359
    %v3378 = vpack.c.b16 %v3364, %v3362
    %v3379 = vpack.c.b16 %v3365, %v3363
    %v3380 = vpack.c.b16 %v3368, %v3366
    %v3381 = vpack.c.b16 %v3369, %v3367
    %vm3394 = vcmask 785408
    %v3396 = vsel %vm3394, %v3329, 0
    %v3399 = vsel %vm3394, %v3331, 0
    %v3402 = vsel %vm3394, %v3333, 0
    %v3405 = vsel %vm3394, %v3332, 0
    %3407 = vmatprep.subr.bf16.mxu0 %v3371
    %3408 = vmatpush1.bf16.msra.mxu0 %v3370
    %3409 = vmatprep.subr.bf16.mxu0 %v3373
    %3410 = vmatpush1.bf16.msra.mxu0 %v3372
    %3411 = vmatprep.subr.bf16.mxu0 %v3375
    %3412 = vmatpush1.bf16.msra.mxu0 %v3374
    %3413 = vmatprep.subr.bf16.mxu0 %v3377
    %3414 = vmatpush1.bf16.msra.mxu0 %v3376
    %3415 = vmatprep.subr.bf16.mxu0 %v3379
    %3416 = vmatpush1.bf16.msra.mxu0 %v3378
    %3417 = vmatprep.subr.bf16.mxu0 %v3381
    %3418 = vmatpush1.bf16.msra.mxu0 %v3380
    %3419 = vmatprep.subr.bf16.mxu0 0
    %3420 = vmatpush1.bf16.msra.mxu0 0
    %3421 = vmatprep.subr.bf16.mxu0 0
    %3422 = vmatpush1.bf16.msra.mxu0 0
    %3423 = vmatprep.subr.bf16.mxu0 0
    %3424 = vmatpush1.bf16.msra.mxu0 0
    %3425 = vmatprep.subr.bf16.mxu0 0
    %3426 = vmatpush1.bf16.msra.mxu0 0
    %3427 = vmatprep.subr.bf16.mxu0 0
    %3428 = vmatpush1.bf16.msra.mxu0 0
    %3429 = vmatprep.subr.bf16.mxu0 0
    %3430 = vmatpush1.bf16.msra.mxu0 0
    %3431 = vmatprep.subr.bf16.mxu0 0
    %3432 = vmatpush1.bf16.msra.mxu0 0
    %3433 = vmatprep.subr.bf16.mxu0 0
    %3434 = vmatpush1.bf16.msra.mxu0 0
    %3435 = vmatprep.subr.bf16.mxu0 0
    %3436 = vmatpush1.bf16.msra.mxu0 0
    %3437 = vmatprep.subr.bf16.mxu0 0
    %3438 = vmatpush1.bf16.msra.mxu0 0
    %3439 = vmatprep.mubr.bf16.mxu0 0
    %3440 = vmatmul.mubr.bf16.gmra.mrb[0].mxu0 %v3396
    %v3441 = vpop.f32.mrb[0].mxu0
    %v3442 = vadd.f32 0.0, %v3441
    %v3443 = vpop.f32.mrb[0].mxu0
    %v3444 = vadd.f32 0.0, %v3443
    %v3445 = vpop.f32.mrb[0].mxu0
    %v3446 = vadd.f32 0.0, %v3445
    %v3447 = vpop.f32.mrb[0].mxu0
    %v3448 = vadd.f32 0.0, %v3447
    %3449 = vmatprep.mubr.bf16.mxu0 0
    %3450 = vmatmul.mubr.bf16.gmra.mrb[0].mxu0 %v3399
    %v3451 = vpop.f32.mrb[0].mxu0
    %v3452 = vadd.f32 0.0, %v3451
    %v3453 = vpop.f32.mrb[0].mxu0
    %v3454 = vadd.f32 0.0, %v3453
    %v3455 = vpop.f32.mrb[0].mxu0
    %v3456 = vadd.f32 0.0, %v3455
    %v3457 = vpop.f32.mrb[0].mxu0
    %v3458 = vadd.f32 0.0, %v3457
    %3459 = vmatprep.mubr.bf16.mxu0 0
    %3460 = vmatmul.mubr.bf16.gmra.mrb[0].mxu0 %v3402
    %v3461 = vpop.f32.mrb[0].mxu0
    %v3462 = vadd.f32 0.0, %v3461
    %v3463 = vpop.f32.mrb[0].mxu0
    %v3464 = vadd.f32 0.0, %v3463
    %v3465 = vpop.f32.mrb[0].mxu0
    %v3466 = vadd.f32 0.0, %v3465
    %v3467 = vpop.f32.mrb[0].mxu0
    %v3468 = vadd.f32 0.0, %v3467
    %3469 = vmatprep.mubr.bf16.mxu0 0
    %3470 = vmatmul.mubr.bf16.gmra.mrb[0].mxu0 %v3405
    %v3471 = vpop.f32.mrb[0].mxu0
    %v3472 = vadd.f32 0.0, %v3471
    %v3473 = vpop.f32.mrb[0].mxu0
    %v3474 = vadd.f32 0.0, %v3473
    %v3475 = vpop.f32.mrb[0].mxu0
    %v3476 = vpop.f32.mrb[0].mxu0
    %3477 = vdwg.mxu0
    %v3490 = vunpack.c.l.b16 %v3297
    %v3491 = vunpack.c.h.b16 %v3297
    %v3492 = vunpack.c.l.b16 %v3298
    %v3493 = vunpack.c.h.b16 %v3298
    %v3494 = vunpack.c.l.b16 %v3299
    %v3495 = vunpack.c.h.b16 %v3299
    %v3496 = vunpack.c.l.b16 %v3300
    %v3497 = vunpack.c.h.b16 %v3300
    %v3498 = vunpack.c.l.b16 %v3301
    %v3499 = vunpack.c.h.b16 %v3301
    %v3500 = vunpack.c.l.b16 %v3302
    %v3501 = vunpack.c.h.b16 %v3302
    %v3502 = vunpack.c.l.b16 %v3303
    %v3503 = vunpack.c.h.b16 %v3303
    %v3504 = vunpack.c.l.b16 %v3304
    %v3505 = vunpack.c.h.b16 %v3304
    %v3506 = vunpack.c.l.b16 %v3305
    %v3507 = vunpack.c.h.b16 %v3305
    %v3508 = vunpack.c.l.b16 %v3306
    %v3509 = vunpack.c.h.b16 %v3306
    %v3510 = vunpack.c.l.b16 %v3307
    %v3511 = vunpack.c.h.b16 %v3307
    %v3512 = vunpack.c.l.b16 %v3308
    %v3513 = vunpack.c.h.b16 %v3308
    %v3514 = vpack.c.b16 %v3492, %v3490
    %v3515 = vpack.c.b16 %v3493, %v3491
    %v3516 = vpack.c.b16 %v3496, %v3494
    %v3517 = vpack.c.b16 %v3497, %v3495
    %v3518 = vpack.c.b16 %v3500, %v3498
    %v3519 = vpack.c.b16 %v3501, %v3499
    %v3520 = vpack.c.b16 %v3504, %v3502
    %v3521 = vpack.c.b16 %v3505, %v3503
    %v3522 = vpack.c.b16 %v3508, %v3506
    %v3523 = vpack.c.b16 %v3509, %v3507
    %v3524 = vpack.c.b16 %v3512, %v3510
    %v3525 = vpack.c.b16 %v3513, %v3511
    %v3539 = vsel %vm3394, %v3293, 0
    %v3542 = vsel %vm3394, %v3294, 0
    %v3545 = vsel %vm3394, %v3295, 0
    %v3548 = vsel %vm3394, %v3296, 0
    %3550 = vmatprep.subr.bf16.mxu0 %v3515
    %3551 = vmatpush1.bf16.msra.mxu0 %v3514
    %3552 = vmatprep.subr.bf16.mxu0 %v3517
    %3553 = vmatpush1.bf16.msra.mxu0 %v3516
    %3554 = vmatprep.subr.bf16.mxu0 %v3519
    %3555 = vmatpush1.bf16.msra.mxu0 %v3518
    %3556 = vmatprep.subr.bf16.mxu0 %v3521
    %3557 = vmatpush1.bf16.msra.mxu0 %v3520
    %3558 = vmatprep.subr.bf16.mxu0 %v3523
    %3559 = vmatpush1.bf16.msra.mxu0 %v3522
    %3560 = vmatprep.subr.bf16.mxu0 %v3525
    %3561 = vmatpush1.bf16.msra.mxu0 %v3524
    %3562 = vmatprep.subr.bf16.mxu0 0
    %3563 = vmatpush1.bf16.msra.mxu0 0
    %3564 = vmatprep.subr.bf16.mxu0 0
    %3565 = vmatpush1.bf16.msra.mxu0 0
    %3566 = vmatprep.subr.bf16.mxu0 0
    %3567 = vmatpush1.bf16.msra.mxu0 0
    %3568 = vmatprep.subr.bf16.mxu0 0
    %3569 = vmatpush1.bf16.msra.mxu0 0
    %3570 = vmatprep.subr.bf16.mxu0 0
    %3571 = vmatpush1.bf16.msra.mxu0 0
    %3572 = vmatprep.subr.bf16.mxu0 0
    %3573 = vmatpush1.bf16.msra.mxu0 0
    %3574 = vmatprep.subr.bf16.mxu0 0
    %3575 = vmatpush1.bf16.msra.mxu0 0
    %3576 = vmatprep.subr.bf16.mxu0 0
    %3577 = vmatpush1.bf16.msra.mxu0 0
    %3578 = vmatprep.subr.bf16.mxu0 0
    %3579 = vmatpush1.bf16.msra.mxu0 0
    %3580 = vmatprep.subr.bf16.mxu0 0
    %3581 = vmatpush1.bf16.msra.mxu0 0
    %3582 = vmatprep.mubr.bf16.mxu0 0
    %3583 = vmatmul.mubr.bf16.gmra.mrb[0].mxu0 %v3539
    %v3584 = vpop.f32.mrb[0].mxu0
    %v3585 = vadd.f32 %v3442, %v3584
    %v3586 = vpop.f32.mrb[0].mxu0
    %v3587 = vadd.f32 %v3444, %v3586
    %v3588 = vpop.f32.mrb[0].mxu0
    %v3589 = vadd.f32 %v3446, %v3588
    %v3590 = vpop.f32.mrb[0].mxu0
    %v3591 = vadd.f32 %v3448, %v3590
    %3592 = vmatprep.mubr.bf16.mxu0 0
    %3593 = vmatmul.mubr.bf16.gmra.mrb[0].mxu0 %v3542
    %v3594 = vpop.f32.mrb[0].mxu0
    %v3595 = vadd.f32 %v3452, %v3594
    %v3596 = vpop.f32.mrb[0].mxu0
    %v3597 = vadd.f32 %v3454, %v3596
    %v3598 = vpop.f32.mrb[0].mxu0
    %v3599 = vadd.f32 %v3456, %v3598
    %v3600 = vpop.f32.mrb[0].mxu0
    %v3601 = vadd.f32 %v3458, %v3600
    %3602 = vmatprep.mubr.bf16.mxu0 0
    %3603 = vmatmul.mubr.bf16.gmra.mrb[0].mxu0 %v3545
    %v3604 = vpop.f32.mrb[0].mxu0
    %v3605 = vadd.f32 %v3462, %v3604
    %v3606 = vpop.f32.mrb[0].mxu0
    %v3607 = vadd.f32 %v3464, %v3606
    %v3608 = vpop.f32.mrb[0].mxu0
    %v3609 = vadd.f32 %v3466, %v3608
    %v3610 = vpop.f32.mrb[0].mxu0
    %v3611 = vadd.f32 %v3468, %v3610
    %3612 = vmatprep.mubr.bf16.mxu0 0
    %3613 = vmatmul.mubr.bf16.gmra.mrb[0].mxu0 %v3548
    %v3614 = vpop.f32.mrb[0].mxu0
    %v3615 = vadd.f32 %v3472, %v3614
    %v3616 = vpop.f32.mrb[0].mxu0
    %v3617 = vadd.f32 %v3474, %v3616
    %v3618 = vpop.f32.mrb[0].mxu0
    %v3619 = vpop.f32.mrb[0].mxu0
    %3620 = vdwg.mxu0
    %s3621 = scalar_lea.vmem %s5, 192
    %v3622 = vld [vmem:[%s3621] sm:$0xff]
    %v3623 = vld [vmem:[%s3621 + $0x8] sm:$0xff]
    %v3624 = vld [vmem:[%s3621 + $0x10] sm:$0xff]
    %v3625 = vld [vmem:[%s3621 + $0x18] sm:$0xff]
    %v3626 = vld [vmem:[%s3621 + $0x20] sm:$0xff]
    %v3627 = vld [vmem:[%s3621 + $0x28] sm:$0xff]
    %v3628 = vld [vmem:[%s3621 + $0x30] sm:$0xff]
    %v3629 = vld [vmem:[%s3621 + $0x38] sm:$0xff]
    %v3630 = vld [vmem:[%s3621 + $0x40] sm:$0xff]
    %v3631 = vld [vmem:[%s3621 + $0x48] sm:$0xff]
    %v3632 = vld [vmem:[%s3621 + $0x50] sm:$0xff]
    %v3633 = vld [vmem:[%s3621 + $0x58] sm:$0xff]
    %vm3634 = vcmask 1045504
    %v3635 = vrot.slane %v3293, 2
    %v3636 = vrot.slane %v3294, 2
    %v3637 = vsel %vm3634, %v3635, %v3636
    %v3638 = vrot.slane %v3295, 2
    %v3639 = vsel %vm3634, %v3636, %v3638
    %v3640 = vrot.slane %v3296, 2
    %v3641 = vsel %vm3634, %v3638, %v3640
    %v3654 = vunpack.c.l.b16 %v3622
    %v3655 = vunpack.c.h.b16 %v3622
    %v3656 = vunpack.c.l.b16 %v3623
    %v3657 = vunpack.c.h.b16 %v3623
    %v3658 = vunpack.c.l.b16 %v3624
    %v3659 = vunpack.c.h.b16 %v3624
    %v3660 = vunpack.c.l.b16 %v3625
    %v3661 = vunpack.c.h.b16 %v3625
    %v3662 = vunpack.c.l.b16 %v3626
    %v3663 = vunpack.c.h.b16 %v3626
    %v3664 = vunpack.c.l.b16 %v3627
    %v3665 = vunpack.c.h.b16 %v3627
    %v3666 = vunpack.c.l.b16 %v3628
    %v3667 = vunpack.c.h.b16 %v3628
    %v3668 = vunpack.c.l.b16 %v3629
    %v3669 = vunpack.c.h.b16 %v3629
    %v3670 = vunpack.c.l.b16 %v3630
    %v3671 = vunpack.c.h.b16 %v3630
    %v3672 = vunpack.c.l.b16 %v3631
    %v3673 = vunpack.c.h.b16 %v3631
    %v3674 = vunpack.c.l.b16 %v3632
    %v3675 = vunpack.c.h.b16 %v3632
    %v3676 = vunpack.c.l.b16 %v3633
    %v3677 = vunpack.c.h.b16 %v3633
    %v3678 = vpack.c.b16 %v3656, %v3654
    %v3679 = vpack.c.b16 %v3657, %v3655
    %v3680 = vpack.c.b16 %v3660, %v3658
    %v3681 = vpack.c.b16 %v3661, %v3659
    %v3682 = vpack.c.b16 %v3664, %v3662
    %v3683 = vpack.c.b16 %v3665, %v3663
    %v3684 = vpack.c.b16 %v3668, %v3666
    %v3685 = vpack.c.b16 %v3669, %v3667
    %v3686 = vpack.c.b16 %v3672, %v3670
    %v3687 = vpack.c.b16 %v3673, %v3671
    %v3688 = vpack.c.b16 %v3676, %v3674
    %v3689 = vpack.c.b16 %v3677, %v3675
    %v3703 = vsel %vm3394, %v3637, 0
    %v3706 = vsel %vm3394, %v3639, 0
    %v3709 = vsel %vm3394, %v3641, 0
    %v3712 = vsel %vm3394, %v3640, 0
    %3714 = vmatprep.subr.bf16.mxu0 %v3679
    %3715 = vmatpush1.bf16.msra.mxu0 %v3678
    %3716 = vmatprep.subr.bf16.mxu0 %v3681
    %3717 = vmatpush1.bf16.msra.mxu0 %v3680
    %3718 = vmatprep.subr.bf16.mxu0 %v3683
    %3719 = vmatpush1.bf16.msra.mxu0 %v3682
    %3720 = vmatprep.subr.bf16.mxu0 %v3685
    %3721 = vmatpush1.bf16.msra.mxu0 %v3684
    %3722 = vmatprep.subr.bf16.mxu0 %v3687
    %3723 = vmatpush1.bf16.msra.mxu0 %v3686
    %3724 = vmatprep.subr.bf16.mxu0 %v3689
    %3725 = vmatpush1.bf16.msra.mxu0 %v3688
    %3726 = vmatprep.subr.bf16.mxu0 0
    %3727 = vmatpush1.bf16.msra.mxu0 0
    %3728 = vmatprep.subr.bf16.mxu0 0
    %3729 = vmatpush1.bf16.msra.mxu0 0
    %3730 = vmatprep.subr.bf16.mxu0 0
    %3731 = vmatpush1.bf16.msra.mxu0 0
    %3732 = vmatprep.subr.bf16.mxu0 0
    %3733 = vmatpush1.bf16.msra.mxu0 0
    %3734 = vmatprep.subr.bf16.mxu0 0
    %3735 = vmatpush1.bf16.msra.mxu0 0
    %3736 = vmatprep.subr.bf16.mxu0 0
    %3737 = vmatpush1.bf16.msra.mxu0 0
    %3738 = vmatprep.subr.bf16.mxu0 0
    %3739 = vmatpush1.bf16.msra.mxu0 0
    %3740 = vmatprep.subr.bf16.mxu0 0
    %3741 = vmatpush1.bf16.msra.mxu0 0
    %3742 = vmatprep.subr.bf16.mxu0 0
    %3743 = vmatpush1.bf16.msra.mxu0 0
    %3744 = vmatprep.subr.bf16.mxu0 0
    %3745 = vmatpush1.bf16.msra.mxu0 0
    %3746 = vmatprep.mubr.bf16.mxu0 0
    %3747 = vmatmul.mubr.bf16.gmra.mrb[0].mxu0 %v3703
    %v3748 = vpop.f32.mrb[0].mxu0
    %v3749 = vadd.f32 0.0, %v3748
    %v3750 = vpop.f32.mrb[0].mxu0
    %v3751 = vadd.f32 0.0, %v3750
    %v3752 = vpop.f32.mrb[0].mxu0
    %v3753 = vadd.f32 0.0, %v3752
    %v3754 = vpop.f32.mrb[0].mxu0
    %v3755 = vadd.f32 0.0, %v3754
    %3756 = vmatprep.mubr.bf16.mxu0 0
    %3757 = vmatmul.mubr.bf16.gmra.mrb[0].mxu0 %v3706
    %v3758 = vpop.f32.mrb[0].mxu0
    %v3759 = vadd.f32 0.0, %v3758
    %v3760 = vpop.f32.mrb[0].mxu0
    %v3761 = vadd.f32 0.0, %v3760
    %v3762 = vpop.f32.mrb[0].mxu0
    %v3763 = vadd.f32 0.0, %v3762
    %v3764 = vpop.f32.mrb[0].mxu0
    %v3765 = vadd.f32 0.0, %v3764
    %3766 = vmatprep.mubr.bf16.mxu0 0
    %3767 = vmatmul.mubr.bf16.gmra.mrb[0].mxu0 %v3709
    %v3768 = vpop.f32.mrb[0].mxu0
    %v3769 = vadd.f32 0.0, %v3768
    %v3770 = vpop.f32.mrb[0].mxu0
    %v3771 = vadd.f32 0.0, %v3770
    %v3772 = vpop.f32.mrb[0].mxu0
    %v3773 = vadd.f32 0.0, %v3772
    %v3774 = vpop.f32.mrb[0].mxu0
    %v3775 = vadd.f32 0.0, %v3774
    %3776 = vmatprep.mubr.bf16.mxu0 0
    %3777 = vmatmul.mubr.bf16.gmra.mrb[0].mxu0 %v3712
    %v3778 = vpop.f32.mrb[0].mxu0
    %v3779 = vadd.f32 0.0, %v3778
    %v3780 = vpop.f32.mrb[0].mxu0
    %v3781 = vadd.f32 0.0, %v3780
    %v3782 = vpop.f32.mrb[0].mxu0
    %v3783 = vpop.f32.mrb[0].mxu0
    %3784 = vdwg.mxu0
    %v3785 = vadd.f32 %v3585, %v3749
    %v3786 = vadd.f32 %v3587, %v3751
    %v3787 = vadd.f32 %v3589, %v3753
    %v3788 = vadd.f32 %v3591, %v3755
    %v3789 = vadd.f32 %v3595, %v3759
    %v3790 = vadd.f32 %v3597, %v3761
    %v3791 = vadd.f32 %v3599, %v3763
    %v3792 = vadd.f32 %v3601, %v3765
    %v3793 = vadd.f32 %v3605, %v3769
    %v3794 = vadd.f32 %v3607, %v3771
    %v3795 = vadd.f32 %v3609, %v3773
    %v3796 = vadd.f32 %v3611, %v3775
    %v3797 = vadd.f32 %v3615, %v3779
    %v3798 = vadd.f32 %v3617, %v3781
    %s3799 = scalar_lea.vmem %s5, 288
    %v3800 = vld [vmem:[%s3799] sm:$0xff]
    %v3801 = vld [vmem:[%s3799 + $0x8] sm:$0xff]
    %v3802 = vld [vmem:[%s3799 + $0x10] sm:$0xff]
    %v3803 = vld [vmem:[%s3799 + $0x18] sm:$0xff]
    %v3804 = vld [vmem:[%s3799 + $0x20] sm:$0xff]
    %v3805 = vld [vmem:[%s3799 + $0x28] sm:$0xff]
    %v3806 = vld [vmem:[%s3799 + $0x30] sm:$0xff]
    %v3807 = vld [vmem:[%s3799 + $0x38] sm:$0xff]
    %v3808 = vld [vmem:[%s3799 + $0x40] sm:$0xff]
    %v3809 = vld [vmem:[%s3799 + $0x48] sm:$0xff]
    %v3810 = vld [vmem:[%s3799 + $0x50] sm:$0xff]
    %v3811 = vld [vmem:[%s3799 + $0x58] sm:$0xff]
    %vm3812 = vcmask 1044480
    %v3813 = vrot.slane %v3293, 3
    %v3814 = vrot.slane %v3294, 3
    %v3815 = vsel %vm3812, %v3813, %v3814
    %v3816 = vrot.slane %v3295, 3
    %v3817 = vsel %vm3812, %v3814, %v3816
    %v3818 = vrot.slane %v3296, 3
    %v3819 = vsel %vm3812, %v3816, %v3818
    %v3832 = vunpack.c.l.b16 %v3800
    %v3833 = vunpack.c.h.b16 %v3800
    %v3834 = vunpack.c.l.b16 %v3801
    %v3835 = vunpack.c.h.b16 %v3801
    %v3836 = vunpack.c.l.b16 %v3802
    %v3837 = vunpack.c.h.b16 %v3802
    %v3838 = vunpack.c.l.b16 %v3803
    %v3839 = vunpack.c.h.b16 %v3803
    %v3840 = vunpack.c.l.b16 %v3804
    %v3841 = vunpack.c.h.b16 %v3804
    %v3842 = vunpack.c.l.b16 %v3805
    %v3843 = vunpack.c.h.b16 %v3805
    %v3844 = vunpack.c.l.b16 %v3806
    %v3845 = vunpack.c.h.b16 %v3806
    %v3846 = vunpack.c.l.b16 %v3807
    %v3847 = vunpack.c.h.b16 %v3807
    %v3848 = vunpack.c.l.b16 %v3808
    %v3849 = vunpack.c.h.b16 %v3808
    %v3850 = vunpack.c.l.b16 %v3809
    %v3851 = vunpack.c.h.b16 %v3809
    %v3852 = vunpack.c.l.b16 %v3810
    %v3853 = vunpack.c.h.b16 %v3810
    %v3854 = vunpack.c.l.b16 %v3811
    %v3855 = vunpack.c.h.b16 %v3811
    %v3856 = vpack.c.b16 %v3834, %v3832
    %v3857 = vpack.c.b16 %v3835, %v3833
    %v3858 = vpack.c.b16 %v3838, %v3836
    %v3859 = vpack.c.b16 %v3839, %v3837
    %v3860 = vpack.c.b16 %v3842, %v3840
    %v3861 = vpack.c.b16 %v3843, %v3841
    %v3862 = vpack.c.b16 %v3846, %v3844
    %v3863 = vpack.c.b16 %v3847, %v3845
    %v3864 = vpack.c.b16 %v3850, %v3848
    %v3865 = vpack.c.b16 %v3851, %v3849
    %v3866 = vpack.c.b16 %v3854, %v3852
    %v3867 = vpack.c.b16 %v3855, %v3853
    %v3881 = vsel %vm3394, %v3815, 0
    %v3884 = vsel %vm3394, %v3817, 0
    %v3887 = vsel %vm3394, %v3819, 0
    %v3890 = vsel %vm3394, %v3818, 0
    %3892 = vmatprep.subr.bf16.mxu0 %v3857
    %3893 = vmatpush1.bf16.msra.mxu0 %v3856
    %3894 = vmatprep.subr.bf16.mxu0 %v3859
    %3895 = vmatpush1.bf16.msra.mxu0 %v3858
    %3896 = vmatprep.subr.bf16.mxu0 %v3861
    %3897 = vmatpush1.bf16.msra.mxu0 %v3860
    %3898 = vmatprep.subr.bf16.mxu0 %v3863
    %3899 = vmatpush1.bf16.msra.mxu0 %v3862
    %3900 = vmatprep.subr.bf16.mxu0 %v3865
    %3901 = vmatpush1.bf16.msra.mxu0 %v3864
    %3902 = vmatprep.subr.bf16.mxu0 %v3867
    %3903 = vmatpush1.bf16.msra.mxu0 %v3866
    %3904 = vmatprep.subr.bf16.mxu0 0
    %3905 = vmatpush1.bf16.msra.mxu0 0
    %3906 = vmatprep.subr.bf16.mxu0 0
    %3907 = vmatpush1.bf16.msra.mxu0 0
    %3908 = vmatprep.subr.bf16.mxu0 0
    %3909 = vmatpush1.bf16.msra.mxu0 0
    %3910 = vmatprep.subr.bf16.mxu0 0
    %3911 = vmatpush1.bf16.msra.mxu0 0
    %3912 = vmatprep.subr.bf16.mxu0 0
    %3913 = vmatpush1.bf16.msra.mxu0 0
    %3914 = vmatprep.subr.bf16.mxu0 0
    %3915 = vmatpush1.bf16.msra.mxu0 0
    %3916 = vmatprep.subr.bf16.mxu0 0
    %3917 = vmatpush1.bf16.msra.mxu0 0
    %3918 = vmatprep.subr.bf16.mxu0 0
    %3919 = vmatpush1.bf16.msra.mxu0 0
    %3920 = vmatprep.subr.bf16.mxu0 0
    %3921 = vmatpush1.bf16.msra.mxu0 0
    %3922 = vmatprep.subr.bf16.mxu0 0
    %3923 = vmatpush1.bf16.msra.mxu0 0
    %3924 = vmatprep.mubr.bf16.mxu0 0
    %3925 = vmatmul.mubr.bf16.gmra.mrb[0].mxu0 %v3881
    %v3926 = vpop.f32.mrb[0].mxu0
    %v3927 = vadd.f32 0.0, %v3926
    %v3928 = vpop.f32.mrb[0].mxu0
    %v3929 = vadd.f32 0.0, %v3928
    %v3930 = vpop.f32.mrb[0].mxu0
    %v3931 = vadd.f32 0.0, %v3930
    %v3932 = vpop.f32.mrb[0].mxu0
    %v3933 = vadd.f32 0.0, %v3932
    %3934 = vmatprep.mubr.bf16.mxu0 0
    %3935 = vmatmul.mubr.bf16.gmra.mrb[0].mxu0 %v3884
    %v3936 = vpop.f32.mrb[0].mxu0
    %v3937 = vadd.f32 0.0, %v3936
    %v3938 = vpop.f32.mrb[0].mxu0
    %v3939 = vadd.f32 0.0, %v3938
    %v3940 = vpop.f32.mrb[0].mxu0
    %v3941 = vadd.f32 0.0, %v3940
    %v3942 = vpop.f32.mrb[0].mxu0
    %v3943 = vadd.f32 0.0, %v3942
    %3944 = vmatprep.mubr.bf16.mxu0 0
    %3945 = vmatmul.mubr.bf16.gmra.mrb[0].mxu0 %v3887
    %v3946 = vpop.f32.mrb[0].mxu0
    %v3947 = vadd.f32 0.0, %v3946
    %v3948 = vpop.f32.mrb[0].mxu0
    %v3949 = vadd.f32 0.0, %v3948
    %v3950 = vpop.f32.mrb[0].mxu0
    %v3951 = vadd.f32 0.0, %v3950
    %v3952 = vpop.f32.mrb[0].mxu0
    %v3953 = vadd.f32 0.0, %v3952
    %3954 = vmatprep.mubr.bf16.mxu0 0
    %3955 = vmatmul.mubr.bf16.gmra.mrb[0].mxu0 %v3890
    %v3956 = vpop.f32.mrb[0].mxu0
    %v3957 = vadd.f32 0.0, %v3956
    %v3958 = vpop.f32.mrb[0].mxu0
    %v3959 = vadd.f32 0.0, %v3958
    %v3960 = vpop.f32.mrb[0].mxu0
    %v3961 = vpop.f32.mrb[0].mxu0
    %3962 = vdwg.mxu0
    %v3963 = vadd.f32 %v3785, %v3927
    %v3964 = vadd.f32 %v3786, %v3929
    %v3965 = vadd.f32 %v3787, %v3931
    %v3966 = vadd.f32 %v3788, %v3933
    %v3967 = vadd.f32 %v3789, %v3937
    %v3968 = vadd.f32 %v3790, %v3939
    %v3969 = vadd.f32 %v3791, %v3941
    %v3970 = vadd.f32 %v3792, %v3943
    %v3971 = vadd.f32 %v3793, %v3947
    %v3972 = vadd.f32 %v3794, %v3949
    %v3973 = vadd.f32 %v3795, %v3951
    %v3974 = vadd.f32 %v3796, %v3953
    %v3975 = vadd.f32 %v3797, %v3957
    %v3976 = vadd.f32 %v3798, %v3959
    %s3977 = scalar_lea.vmem %s5, 384
    %v3978 = vld [vmem:[%s3977] sm:$0xff]
    %v3979 = vld [vmem:[%s3977 + $0x8] sm:$0xff]
    %v3980 = vld [vmem:[%s3977 + $0x10] sm:$0xff]
    %v3981 = vld [vmem:[%s3977 + $0x18] sm:$0xff]
    %v3982 = vld [vmem:[%s3977 + $0x20] sm:$0xff]
    %v3983 = vld [vmem:[%s3977 + $0x28] sm:$0xff]
    %v3984 = vld [vmem:[%s3977 + $0x30] sm:$0xff]
    %v3985 = vld [vmem:[%s3977 + $0x38] sm:$0xff]
    %v3986 = vld [vmem:[%s3977 + $0x40] sm:$0xff]
    %v3987 = vld [vmem:[%s3977 + $0x48] sm:$0xff]
    %v3988 = vld [vmem:[%s3977 + $0x50] sm:$0xff]
    %v3989 = vld [vmem:[%s3977 + $0x58] sm:$0xff]
    %vm3990 = vcmask 1043456
    %v3991 = vrot.slane %v3293, 4
    %v3992 = vrot.slane %v3294, 4
    %v3993 = vsel %vm3990, %v3991, %v3992
    %v3994 = vrot.slane %v3295, 4
    %v3995 = vsel %vm3990, %v3992, %v3994
    %v3996 = vrot.slane %v3296, 4
    %v3997 = vsel %vm3990, %v3994, %v3996
    %v4010 = vunpack.c.l.b16 %v3978
    %v4011 = vunpack.c.h.b16 %v3978
    %v4012 = vunpack.c.l.b16 %v3979
    %v4013 = vunpack.c.h.b16 %v3979
    %v4014 = vunpack.c.l.b16 %v3980
    %v4015 = vunpack.c.h.b16 %v3980
    %v4016 = vunpack.c.l.b16 %v3981
    %v4017 = vunpack.c.h.b16 %v3981
    %v4018 = vunpack.c.l.b16 %v3982
    %v4019 = vunpack.c.h.b16 %v3982
    %v4020 = vunpack.c.l.b16 %v3983
    %v4021 = vunpack.c.h.b16 %v3983
    %v4022 = vunpack.c.l.b16 %v3984
    %v4023 = vunpack.c.h.b16 %v3984
    %v4024 = vunpack.c.l.b16 %v3985
    %v4025 = vunpack.c.h.b16 %v3985
    %v4026 = vunpack.c.l.b16 %v3986
    %v4027 = vunpack.c.h.b16 %v3986
    %v4028 = vunpack.c.l.b16 %v3987
    %v4029 = vunpack.c.h.b16 %v3987
    %v4030 = vunpack.c.l.b16 %v3988
    %v4031 = vunpack.c.h.b16 %v3988
    %v4032 = vunpack.c.l.b16 %v3989
    %v4033 = vunpack.c.h.b16 %v3989
    %v4034 = vpack.c.b16 %v4012, %v4010
    %v4035 = vpack.c.b16 %v4013, %v4011
    %v4036 = vpack.c.b16 %v4016, %v4014
    %v4037 = vpack.c.b16 %v4017, %v4015
    %v4038 = vpack.c.b16 %v4020, %v4018
    %v4039 = vpack.c.b16 %v4021, %v4019
    %v4040 = vpack.c.b16 %v4024, %v4022
    %v4041 = vpack.c.b16 %v4025, %v4023
    %v4042 = vpack.c.b16 %v4028, %v4026
    %v4043 = vpack.c.b16 %v4029, %v4027
    %v4044 = vpack.c.b16 %v4032, %v4030
    %v4045 = vpack.c.b16 %v4033, %v4031
    %v4059 = vsel %vm3394, %v3993, 0
    %v4062 = vsel %vm3394, %v3995, 0
    %v4065 = vsel %vm3394, %v3997, 0
    %v4068 = vsel %vm3394, %v3996, 0
    %4070 = vmatprep.subr.bf16.mxu0 %v4035
    %4071 = vmatpush1.bf16.msra.mxu0 %v4034
    %4072 = vmatprep.subr.bf16.mxu0 %v4037
    %4073 = vmatpush1.bf16.msra.mxu0 %v4036
    %4074 = vmatprep.subr.bf16.mxu0 %v4039
    %4075 = vmatpush1.bf16.msra.mxu0 %v4038
    %4076 = vmatprep.subr.bf16.mxu0 %v4041
    %4077 = vmatpush1.bf16.msra.mxu0 %v4040
    %4078 = vmatprep.subr.bf16.mxu0 %v4043
    %4079 = vmatpush1.bf16.msra.mxu0 %v4042
    %4080 = vmatprep.subr.bf16.mxu0 %v4045
    %4081 = vmatpush1.bf16.msra.mxu0 %v4044
    %4082 = vmatprep.subr.bf16.mxu0 0
    %4083 = vmatpush1.bf16.msra.mxu0 0
    %4084 = vmatprep.subr.bf16.mxu0 0
    %4085 = vmatpush1.bf16.msra.mxu0 0
    %4086 = vmatprep.subr.bf16.mxu0 0
    %4087 = vmatpush1.bf16.msra.mxu0 0
    %4088 = vmatprep.subr.bf16.mxu0 0
    %4089 = vmatpush1.bf16.msra.mxu0 0
    %4090 = vmatprep.subr.bf16.mxu0 0
    %4091 = vmatpush1.bf16.msra.mxu0 0
    %4092 = vmatprep.subr.bf16.mxu0 0
    %4093 = vmatpush1.bf16.msra.mxu0 0
    %4094 = vmatprep.subr.bf16.mxu0 0
    %4095 = vmatpush1.bf16.msra.mxu0 0
    %4096 = vmatprep.subr.bf16.mxu0 0
    %4097 = vmatpush1.bf16.msra.mxu0 0
    %4098 = vmatprep.subr.bf16.mxu0 0
    %4099 = vmatpush1.bf16.msra.mxu0 0
    %4100 = vmatprep.subr.bf16.mxu0 0
    %4101 = vmatpush1.bf16.msra.mxu0 0
    %4102 = vmatprep.mubr.bf16.mxu0 0
    %4103 = vmatmul.mubr.bf16.gmra.mrb[0].mxu0 %v4059
    %v4104 = vpop.f32.mrb[0].mxu0
    %v4105 = vadd.f32 0.0, %v4104
    %v4106 = vpop.f32.mrb[0].mxu0
    %v4107 = vadd.f32 0.0, %v4106
    %v4108 = vpop.f32.mrb[0].mxu0
    %v4109 = vadd.f32 0.0, %v4108
    %v4110 = vpop.f32.mrb[0].mxu0
    %v4111 = vadd.f32 0.0, %v4110
    %4112 = vmatprep.mubr.bf16.mxu0 0
    %4113 = vmatmul.mubr.bf16.gmra.mrb[0].mxu0 %v4062
    %v4114 = vpop.f32.mrb[0].mxu0
    %v4115 = vadd.f32 0.0, %v4114
    %v4116 = vpop.f32.mrb[0].mxu0
    %v4117 = vadd.f32 0.0, %v4116
    %v4118 = vpop.f32.mrb[0].mxu0
    %v4119 = vadd.f32 0.0, %v4118
    %v4120 = vpop.f32.mrb[0].mxu0
    %v4121 = vadd.f32 0.0, %v4120
    %4122 = vmatprep.mubr.bf16.mxu0 0
    %4123 = vmatmul.mubr.bf16.gmra.mrb[0].mxu0 %v4065
    %v4124 = vpop.f32.mrb[0].mxu0
    %v4125 = vadd.f32 0.0, %v4124
    %v4126 = vpop.f32.mrb[0].mxu0
    %v4127 = vadd.f32 0.0, %v4126
    %v4128 = vpop.f32.mrb[0].mxu0
    %v4129 = vadd.f32 0.0, %v4128
    %v4130 = vpop.f32.mrb[0].mxu0
    %v4131 = vadd.f32 0.0, %v4130
    %4132 = vmatprep.mubr.bf16.mxu0 0
    %4133 = vmatmul.mubr.bf16.gmra.mrb[0].mxu0 %v4068
    %v4134 = vpop.f32.mrb[0].mxu0
    %v4135 = vadd.f32 0.0, %v4134
    %v4136 = vpop.f32.mrb[0].mxu0
    %v4137 = vadd.f32 0.0, %v4136
    %v4138 = vpop.f32.mrb[0].mxu0
    %v4139 = vpop.f32.mrb[0].mxu0
    %4140 = vdwg.mxu0
    %v4141 = vadd.f32 %v3963, %v4105
    %v4142 = vadd.f32 %v3964, %v4107
    %v4143 = vadd.f32 %v3965, %v4109
    %v4144 = vadd.f32 %v3966, %v4111
    %v4145 = vadd.f32 %v3967, %v4115
    %v4146 = vadd.f32 %v3968, %v4117
    %v4147 = vadd.f32 %v3969, %v4119
    %v4148 = vadd.f32 %v3970, %v4121
    %v4149 = vadd.f32 %v3971, %v4125
    %v4150 = vadd.f32 %v3972, %v4127
    %v4151 = vadd.f32 %v3973, %v4129
    %v4152 = vadd.f32 %v3974, %v4131
    %v4153 = vadd.f32 %v3975, %v4135
    %v4154 = vadd.f32 %v3976, %v4137
    %v4155 = vld [vmem:[#allocation2] sm:$0x3]
    %v4157 = vlaneseq
    %v4158 = vshrl.u32 %v4157, 7
    %v4159 = vsub.s32 0, %v4158
    %v4160 = vrot.slane %v4155, %v4159
    %v4161 = vlaneseq
    %v4162 = vshrl.u32 %v4161, 7
    %v4163 = vsub.s32 1, %v4162
    %v4164 = vrot.slane %v4155, %v4163
    %v4167 = vadd.f32 %v4141, %v4160
    %v4168 = vadd.f32 %v4142, %v4164
    %v4169 = vadd.f32 %v4143, %v4160
    %v4170 = vadd.f32 %v4144, %v4164
    %v4171 = vadd.f32 %v4145, %v4160
    %v4172 = vadd.f32 %v4146, %v4164
    %v4173 = vadd.f32 %v4147, %v4160
    %v4174 = vadd.f32 %v4148, %v4164
    %v4175 = vadd.f32 %v4149, %v4160
    %v4176 = vadd.f32 %v4150, %v4164
    %v4177 = vadd.f32 %v4151, %v4160
    %v4178 = vadd.f32 %v4152, %v4164
    %v4179 = vadd.f32 %v4153, %v4160
    %v4180 = vadd.f32 %v4154, %v4164
    %v4181 = vmax.f32 %v4167, 0.0
    %v4182 = vmax.f32 %v4168, 0.0
    %v4183 = vmax.f32 %v4169, 0.0
    %v4184 = vmax.f32 %v4170, 0.0
    %v4185 = vmax.f32 %v4171, 0.0
    %v4186 = vmax.f32 %v4172, 0.0
    %v4187 = vmax.f32 %v4173, 0.0
    %v4188 = vmax.f32 %v4174, 0.0
    %v4189 = vmax.f32 %v4175, 0.0
    %v4190 = vmax.f32 %v4176, 0.0
    %v4191 = vmax.f32 %v4177, 0.0
    %v4192 = vmax.f32 %v4178, 0.0
    %v4193 = vmax.f32 %v4179, 0.0
    %v4194 = vmax.f32 %v4180, 0.0
    %v4195 = vld [vmem:[%s7] sm:$0xf]
    %v4196 = vld [vmem:[%s7 + $0x4] sm:$0xf]
    %v4197 = vld [vmem:[%s7 + $0x8] sm:$0xf]
    %v4198 = vld [vmem:[%s7 + $0xc] sm:$0x3]
    %v4199 = vpack.c.bf16 %v4183, %v4181
    %v4200 = vpack.c.bf16 %v4184, %v4182
    %v4201 = vpack.c.bf16 %v4187, %v4185
    %v4202 = vpack.c.bf16 %v4188, %v4186
    %v4203 = vpack.c.bf16 %v4191, %v4189
    %v4204 = vpack.c.bf16 %v4192, %v4190
    %v4205 = vpack.c.bf16 %v4193, %v4193
    %v4206 = vpack.c.bf16 %v4194, %v4194
    %v4211 = vunpack.c.l.b16 %v4195
    %v4212 = vunpack.c.l.b16 %v4196
    %v4213 = vunpack.c.l.b16 %v4197
    %v4214 = vunpack.c.l.b16 %v4198
    %v4215 = vpack.c.b16 %v4212, %v4211
    %v4216 = vpack.c.b16 %v4214, %v4213
    %vm4217 = vcmask 457728
    %v4219 = vsel %vm4217, %v4215, 0
    %v4222 = vsel %vm4217, %v4216, 0
    %vm4224 = vcmask 1043456
    %v4226 = vsel %vm4224, %v4205, 0
    %v4229 = vsel %vm4224, %v4206, 0
    %4231 = vmatprep.subr.bf16.mxu0 %v4200
    %4232 = vmatpush1.bf16.msra.mxu0 %v4199
    %4233 = vmatprep.subr.bf16.mxu0 %v4202
    %4234 = vmatpush1.bf16.msra.mxu0 %v4201
    %4235 = vmatprep.subr.bf16.mxu0 %v4204
    %4236 = vmatpush1.bf16.msra.mxu0 %v4203
    %4237 = vmatprep.subr.bf16.mxu0 %v4229
    %4238 = vmatpush1.bf16.msra.mxu0 %v4226
    %4239 = vmatprep.subr.bf16.mxu0 0
    %4240 = vmatpush1.bf16.msra.mxu0 0
    %4241 = vmatprep.subr.bf16.mxu0 0
    %4242 = vmatpush1.bf16.msra.mxu0 0
    %4243 = vmatprep.subr.bf16.mxu0 0
    %4244 = vmatpush1.bf16.msra.mxu0 0
    %4245 = vmatprep.subr.bf16.mxu0 0
    %4246 = vmatpush1.bf16.msra.mxu0 0
    %4247 = vmatprep.subr.bf16.mxu0 0
    %4248 = vmatpush1.bf16.msra.mxu0 0
    %4249 = vmatprep.subr.bf16.mxu0 0
    %4250 = vmatpush1.bf16.msra.mxu0 0
    %4251 = vmatprep.subr.bf16.mxu0 0
    %4252 = vmatpush1.bf16.msra.mxu0 0
    %4253 = vmatprep.subr.bf16.mxu0 0
    %4254 = vmatpush1.bf16.msra.mxu0 0
    %4255 = vmatprep.subr.bf16.mxu0 0
    %4256 = vmatpush1.bf16.msra.mxu0 0
    %4257 = vmatprep.subr.bf16.mxu0 0
    %4258 = vmatpush1.bf16.msra.mxu0 0
    %4259 = vmatprep.subr.bf16.mxu0 0
    %4260 = vmatpush1.bf16.msra.mxu0 0
    %4261 = vmatprep.subr.bf16.mxu0 0
    %4262 = vmatpush1.bf16.msra.mxu0 0
    %4263 = vmatprep.mubr.bf16.mxu0 0
    %4264 = vmatmul.mubr.bf16.gmra.mrb[0].mxu0 %v4219
    %v4265 = vpop.f32.mrb[0].mxu0
    %v4266 = vadd.f32 0.0, %v4265
    %v4267 = vpop.f32.mrb[0].mxu0
    %v4268 = vadd.f32 0.0, %v4267
    %v4269 = vpop.f32.mrb[0].mxu0
    %v4270 = vadd.f32 0.0, %v4269
    %v4271 = vpop.f32.mrb[0].mxu0
    %v4272 = vadd.f32 0.0, %v4271
    %4273 = vmatprep.mubr.bf16.mxu0 0
    %4274 = vmatmul.mubr.bf16.gmra.mrb[0].mxu0 %v4222
    %v4275 = vpop.f32.mrb[0].mxu0
    %v4276 = vadd.f32 0.0, %v4275
    %v4277 = vpop.f32.mrb[0].mxu0
    %v4278 = vadd.f32 0.0, %v4277
    %v4279 = vpop.f32.mrb[0].mxu0
    %v4280 = vadd.f32 0.0, %v4279
    %v4281 = vpop.f32.mrb[0].mxu0
    %v4282 = vadd.f32 0.0, %v4281
    %4283 = vdwg.mxu0
    %s4284 = scalar_lea.vmem %s7, 16
    %v4285 = vld [vmem:[%s4284] sm:$0xf]
    %v4286 = vld [vmem:[%s4284 + $0x4] sm:$0xf]
    %v4287 = vld [vmem:[%s4284 + $0x8] sm:$0xf]
    %v4288 = vld [vmem:[%s4284 + $0xc] sm:$0x3]
    %v4293 = vunpack.c.l.b16 %v4285
    %v4294 = vunpack.c.l.b16 %v4286
    %v4295 = vunpack.c.l.b16 %v4287
    %v4296 = vunpack.c.l.b16 %v4288
    %v4297 = vpack.c.b16 %v4294, %v4293
    %v4298 = vpack.c.b16 %v4296, %v4295
    %v4300 = vsel %vm4217, %v4297, 0
    %v4303 = vsel %vm4217, %v4298, 0
    %4305 = vmatprep.subr.bf16.mxu0 %v4200
    %4306 = vmatpush1.bf16.msra.mxu0 %v4199
    %4307 = vmatprep.subr.bf16.mxu0 %v4202
    %4308 = vmatpush1.bf16.msra.mxu0 %v4201
    %4309 = vmatprep.subr.bf16.mxu0 %v4204
    %4310 = vmatpush1.bf16.msra.mxu0 %v4203
    %4311 = vmatprep.subr.bf16.mxu0 %v4229
    %4312 = vmatpush1.bf16.msra.mxu0 %v4226
    %4313 = vmatprep.subr.bf16.mxu0 0
    %4314 = vmatpush1.bf16.msra.mxu0 0
    %4315 = vmatprep.subr.bf16.mxu0 0
    %4316 = vmatpush1.bf16.msra.mxu0 0
    %4317 = vmatprep.subr.bf16.mxu0 0
    %4318 = vmatpush1.bf16.msra.mxu0 0
    %4319 = vmatprep.subr.bf16.mxu0 0
    %4320 = vmatpush1.bf16.msra.mxu0 0
    %4321 = vmatprep.subr.bf16.mxu0 0
    %4322 = vmatpush1.bf16.msra.mxu0 0
    %4323 = vmatprep.subr.bf16.mxu0 0
    %4324 = vmatpush1.bf16.msra.mxu0 0
    %4325 = vmatprep.subr.bf16.mxu0 0
    %4326 = vmatpush1.bf16.msra.mxu0 0
    %4327 = vmatprep.subr.bf16.mxu0 0
    %4328 = vmatpush1.bf16.msra.mxu0 0
    %4329 = vmatprep.subr.bf16.mxu0 0
    %4330 = vmatpush1.bf16.msra.mxu0 0
    %4331 = vmatprep.subr.bf16.mxu0 0
    %4332 = vmatpush1.bf16.msra.mxu0 0
    %4333 = vmatprep.subr.bf16.mxu0 0
    %4334 = vmatpush1.bf16.msra.mxu0 0
    %4335 = vmatprep.subr.bf16.mxu0 0
    %4336 = vmatpush1.bf16.msra.mxu0 0
    %4337 = vmatprep.mubr.bf16.mxu0 0
    %4338 = vmatmul.mubr.bf16.gmra.mrb[0].mxu0 %v4300
    %v4339 = vpop.f32.mrb[0].mxu0
    %v4340 = vadd.f32 0.0, %v4339
    %v4341 = vpop.f32.mrb[0].mxu0
    %v4342 = vadd.f32 0.0, %v4341
    %v4343 = vpop.f32.mrb[0].mxu0
    %v4344 = vadd.f32 0.0, %v4343
    %v4345 = vpop.f32.mrb[0].mxu0
    %v4346 = vadd.f32 0.0, %v4345
    %4347 = vmatprep.mubr.bf16.mxu0 0
    %4348 = vmatmul.mubr.bf16.gmra.mrb[0].mxu0 %v4303
    %v4349 = vpop.f32.mrb[0].mxu0
    %v4350 = vadd.f32 0.0, %v4349
    %v4351 = vpop.f32.mrb[0].mxu0
    %v4352 = vadd.f32 0.0, %v4351
    %v4353 = vpop.f32.mrb[0].mxu0
    %v4354 = vadd.f32 0.0, %v4353
    %v4355 = vpop.f32.mrb[0].mxu0
    %v4356 = vadd.f32 0.0, %v4355
    %4357 = vdwg.mxu0
    %v4358 = vmax.f32 %v4266, %v4340
    %v4359 = vmax.f32 %v4268, %v4342
    %v4360 = vmax.f32 %v4270, %v4344
    %v4361 = vmax.f32 %v4272, %v4346
    %v4362 = vmax.f32 %v4276, %v4350
    %v4363 = vmax.f32 %v4278, %v4352
    %v4364 = vmax.f32 %v4280, %v4354
    %v4365 = vmax.f32 %v4282, %v4356
    %v4366 = vld [vmem:[%s8] sm:$0xf]
    %v4367 = vld [vmem:[%s8 + $0x4] sm:$0xf]
    %v4368 = vld [vmem:[%s8 + $0x8] sm:$0xf]
    %v4369 = vld [vmem:[%s8 + $0xc] sm:$0xf]
    %v4370 = vld [vmem:[%s8 + $0x10] sm:$0xf]
    %v4371 = vld [vmem:[%s8 + $0x14] sm:$0xf]
    %v4372 = vld [vmem:[%s8 + $0x18] sm:$0xf]
    %v4373 = vld [vmem:[%s8 + $0x1c] sm:$0xf]
    %v4374 = vld [vmem:[%s8 + $0x20] sm:$0xf]
    %v4375 = vld [vmem:[%s8 + $0x24] sm:$0xf]
    %v4376 = vld [vmem:[%s8 + $0x28] sm:$0xf]
    %v4377 = vld [vmem:[%s8 + $0x2c] sm:$0xf]
    %v4378 = vld [vmem:[%s8 + $0x30] sm:$0xf]
    %v4379 = vld [vmem:[%s8 + $0x34] sm:$0xf]
    %v4380 = vld [vmem:[%s8 + $0x38] sm:$0xf]
    %v4381 = vld [vmem:[%s8 + $0x3c] sm:$0xf]
    %v4382 = vld [vmem:[%s8 + $0x40] sm:$0xf]
    %v4383 = vld [vmem:[%s8 + $0x44] sm:$0xf]
    %v4384 = vld [vmem:[%s8 + $0x48] sm:$0xf]
    %v4385 = vld [vmem:[%s8 + $0x4c] sm:$0xf]
    %v4386 = vld [vmem:[%s8 + $0x50] sm:$0xf]
    %v4387 = vpack.c.bf16 %v4360, %v4358
    %v4388 = vpack.c.bf16 %v4361, %v4359
    %v4389 = vpack.c.bf16 %v4364, %v4362
    %v4390 = vpack.c.bf16 %v4365, %v4363
    %v4412 = vunpack.c.l.b16 %v4366
    %v4413 = vunpack.c.l.b16 %v4367
    %v4414 = vunpack.c.l.b16 %v4368
    %v4415 = vunpack.c.l.b16 %v4369
    %v4416 = vunpack.c.l.b16 %v4370
    %v4417 = vunpack.c.l.b16 %v4371
    %v4418 = vunpack.c.l.b16 %v4372
    %v4419 = vunpack.c.l.b16 %v4373
    %v4420 = vunpack.c.l.b16 %v4374
    %v4421 = vunpack.c.l.b16 %v4375
    %v4422 = vunpack.c.l.b16 %v4376
    %v4423 = vunpack.c.l.b16 %v4377
    %v4424 = vunpack.c.l.b16 %v4378
    %v4425 = vunpack.c.l.b16 %v4379
    %v4426 = vunpack.c.l.b16 %v4380
    %v4427 = vunpack.c.l.b16 %v4381
    %v4428 = vunpack.c.l.b16 %v4382
    %v4429 = vunpack.c.l.b16 %v4383
    %v4430 = vunpack.c.l.b16 %v4384
    %v4431 = vunpack.c.l.b16 %v4385
    %v4432 = vunpack.c.l.b16 %v4386
    %v4433 = vpack.c.b16 %v4413, %v4412
    %v4434 = vpack.c.b16 %v4415, %v4414
    %v4435 = vpack.c.b16 %v4417, %v4416
    %v4436 = vpack.c.b16 %v4419, %v4418
    %v4437 = vpack.c.b16 %v4421, %v4420
    %v4438 = vpack.c.b16 %v4423, %v4422
    %v4439 = vpack.c.b16 %v4425, %v4424
    %v4440 = vpack.c.b16 %v4427, %v4426
    %v4441 = vpack.c.b16 %v4429, %v4428
    %v4442 = vpack.c.b16 %v4431, %v4430
    %v4443 = vpack.c.b16 %v4432, %v4432
    %vm4454 = vcmask 326656
    %v4456 = vsel %vm4454, %v4388, 0
    %v4459 = vsel %vm4454, %v4390, 0
    %v4462 = vsel %vm4224, %v4443, 0
    %4464 = vmatprep.subr.bf16.mxu0 0
    %4465 = vmatpush1.bf16.msra.mxu0 %v4433
    %4466 = vmatprep.subr.bf16.mxu0 0
    %4467 = vmatpush1.bf16.msra.mxu0 %v4434
    %4468 = vmatprep.subr.bf16.mxu0 0
    %4469 = vmatpush1.bf16.msra.mxu0 %v4435
    %4470 = vmatprep.subr.bf16.mxu0 0
    %4471 = vmatpush1.bf16.msra.mxu0 %v4436
    %4472 = vmatprep.subr.bf16.mxu0 0
    %4473 = vmatpush1.bf16.msra.mxu0 %v4437
    %4474 = vmatprep.subr.bf16.mxu0 0
    %4475 = vmatpush1.bf16.msra.mxu0 %v4438
    %4476 = vmatprep.subr.bf16.mxu0 0
    %4477 = vmatpush1.bf16.msra.mxu0 %v4439
    %4478 = vmatprep.subr.bf16.mxu0 0
    %4479 = vmatpush1.bf16.msra.mxu0 %v4440
    %4480 = vmatprep.subr.bf16.mxu0 0
    %4481 = vmatpush1.bf16.msra.mxu0 %v4441
    %4482 = vmatprep.subr.bf16.mxu0 0
    %4483 = vmatpush1.bf16.msra.mxu0 %v4442
    %4484 = vmatprep.subr.bf16.mxu0 0
    %4485 = vmatpush1.bf16.msra.mxu0 %v4462
    %4486 = vmatprep.subr.bf16.mxu0 0
    %4487 = vmatpush1.bf16.msra.mxu0 0
    %4488 = vmatprep.subr.bf16.mxu0 0
    %4489 = vmatpush1.bf16.msra.mxu0 0
    %4490 = vmatprep.subr.bf16.mxu0 0
    %4491 = vmatpush1.bf16.msra.mxu0 0
    %4492 = vmatprep.subr.bf16.mxu0 0
    %4493 = vmatpush1.bf16.msra.mxu0 0
    %4494 = vmatprep.subr.bf16.mxu0 0
    %4495 = vmatpush1.bf16.msra.mxu0 0
    %4496 = vmatprep.mubr.bf16.mxu0 %v4456
    %4497 = vmatmul.mubr.bf16.gmra.mrb[0].mxu0 %v4387
    %v4498 = vpop.f32.mrb[0].mxu0
    %v4499 = vadd.f32 0.0, %v4498
    %v4500 = vpop.f32.mrb[0].mxu0
    %v4501 = vpop.f32.mrb[0].mxu0
    %v4502 = vadd.f32 0.0, %v4501
    %v4503 = vpop.f32.mrb[0].mxu0
    %4504 = vmatprep.mubr.bf16.mxu0 %v4459
    %4505 = vmatmul.mubr.bf16.gmra.mrb[0].mxu0 %v4389
    %v4506 = vpop.f32.mrb[0].mxu0
    %v4507 = vadd.f32 0.0, %v4506
    %v4508 = vpop.f32.mrb[0].mxu0
    %v4509 = vpop.f32.mrb[0].mxu0
    %v4510 = vadd.f32 0.0, %v4509
    %v4511 = vpop.f32.mrb[0].mxu0
    %4512 = vdwg.mxu0
    %s4513 = scalar_lea.vmem %s8, 84
    %v4514 = vld [vmem:[%s4513] sm:$0xf]
    %v4515 = vld [vmem:[%s4513 + $0x4] sm:$0xf]
    %v4516 = vld [vmem:[%s4513 + $0x8] sm:$0xf]
    %v4517 = vld [vmem:[%s4513 + $0xc] sm:$0xf]
    %v4518 = vld [vmem:[%s4513 + $0x10] sm:$0xf]
    %v4519 = vld [vmem:[%s4513 + $0x14] sm:$0xf]
    %v4520 = vld [vmem:[%s4513 + $0x18] sm:$0xf]
    %v4521 = vld [vmem:[%s4513 + $0x1c] sm:$0xf]
    %v4522 = vld [vmem:[%s4513 + $0x20] sm:$0xf]
    %v4523 = vld [vmem:[%s4513 + $0x24] sm:$0xf]
    %v4524 = vld [vmem:[%s4513 + $0x28] sm:$0xf]
    %v4525 = vld [vmem:[%s4513 + $0x2c] sm:$0xf]
    %v4526 = vld [vmem:[%s4513 + $0x30] sm:$0xf]
    %v4527 = vld [vmem:[%s4513 + $0x34] sm:$0xf]
    %v4528 = vld [vmem:[%s4513 + $0x38] sm:$0xf]
    %v4529 = vld [vmem:[%s4513 + $0x3c] sm:$0xf]
    %v4530 = vld [vmem:[%s4513 + $0x40] sm:$0xf]
    %v4531 = vld [vmem:[%s4513 + $0x44] sm:$0xf]
    %v4532 = vld [vmem:[%s4513 + $0x48] sm:$0xf]
    %v4533 = vld [vmem:[%s4513 + $0x4c] sm:$0xf]
    %v4534 = vld [vmem:[%s4513 + $0x50] sm:$0xf]
    %v4556 = vunpack.c.l.b16 %v4514
    %v4557 = vunpack.c.l.b16 %v4515
    %v4558 = vunpack.c.l.b16 %v4516
    %v4559 = vunpack.c.l.b16 %v4517
    %v4560 = vunpack.c.l.b16 %v4518
    %v4561 = vunpack.c.l.b16 %v4519
    %v4562 = vunpack.c.l.b16 %v4520
    %v4563 = vunpack.c.l.b16 %v4521
    %v4564 = vunpack.c.l.b16 %v4522
    %v4565 = vunpack.c.l.b16 %v4523
    %v4566 = vunpack.c.l.b16 %v4524
    %v4567 = vunpack.c.l.b16 %v4525
    %v4568 = vunpack.c.l.b16 %v4526
    %v4569 = vunpack.c.l.b16 %v4527
    %v4570 = vunpack.c.l.b16 %v4528
    %v4571 = vunpack.c.l.b16 %v4529
    %v4572 = vunpack.c.l.b16 %v4530
    %v4573 = vunpack.c.l.b16 %v4531
    %v4574 = vunpack.c.l.b16 %v4532
    %v4575 = vunpack.c.l.b16 %v4533
    %v4576 = vunpack.c.l.b16 %v4534
    %v4577 = vpack.c.b16 %v4557, %v4556
    %v4578 = vpack.c.b16 %v4559, %v4558
    %v4579 = vpack.c.b16 %v4561, %v4560
    %v4580 = vpack.c.b16 %v4563, %v4562
    %v4581 = vpack.c.b16 %v4565, %v4564
    %v4582 = vpack.c.b16 %v4567, %v4566
    %v4583 = vpack.c.b16 %v4569, %v4568
    %v4584 = vpack.c.b16 %v4571, %v4570
    %v4585 = vpack.c.b16 %v4573, %v4572
    %v4586 = vpack.c.b16 %v4575, %v4574
    %v4587 = vpack.c.b16 %v4576, %v4576
    %v4599 = vsel %vm4224, %v4587, 0
    %4601 = vmatprep.subr.bf16.mxu0 0
    %4602 = vmatpush1.bf16.msra.mxu0 %v4577
    %4603 = vmatprep.subr.bf16.mxu0 0
    %4604 = vmatpush1.bf16.msra.mxu0 %v4578
    %4605 = vmatprep.subr.bf16.mxu0 0
    %4606 = vmatpush1.bf16.msra.mxu0 %v4579
    %4607 = vmatprep.subr.bf16.mxu0 0
    %4608 = vmatpush1.bf16.msra.mxu0 %v4580
    %4609 = vmatprep.subr.bf16.mxu0 0
    %4610 = vmatpush1.bf16.msra.mxu0 %v4581
    %4611 = vmatprep.subr.bf16.mxu0 0
    %4612 = vmatpush1.bf16.msra.mxu0 %v4582
    %4613 = vmatprep.subr.bf16.mxu0 0
    %4614 = vmatpush1.bf16.msra.mxu0 %v4583
    %4615 = vmatprep.subr.bf16.mxu0 0
    %4616 = vmatpush1.bf16.msra.mxu0 %v4584
    %4617 = vmatprep.subr.bf16.mxu0 0
    %4618 = vmatpush1.bf16.msra.mxu0 %v4585
    %4619 = vmatprep.subr.bf16.mxu0 0
    %4620 = vmatpush1.bf16.msra.mxu0 %v4586
    %4621 = vmatprep.subr.bf16.mxu0 0
    %4622 = vmatpush1.bf16.msra.mxu0 %v4599
    %4623 = vmatprep.subr.bf16.mxu0 0
    %4624 = vmatpush1.bf16.msra.mxu0 0
    %4625 = vmatprep.subr.bf16.mxu0 0
    %4626 = vmatpush1.bf16.msra.mxu0 0
    %4627 = vmatprep.subr.bf16.mxu0 0
    %4628 = vmatpush1.bf16.msra.mxu0 0
    %4629 = vmatprep.subr.bf16.mxu0 0
    %4630 = vmatpush1.bf16.msra.mxu0 0
    %4631 = vmatprep.subr.bf16.mxu0 0
    %4632 = vmatpush1.bf16.msra.mxu0 0
    %4633 = vmatprep.mubr.bf16.mxu0 %v4456
    %4634 = vmatmul.mubr.bf16.gmra.mrb[0].mxu0 %v4387
    %v4635 = vpop.f32.mrb[0].mxu0
    %v4636 = vadd.f32 0.0, %v4635
    %v4637 = vpop.f32.mrb[0].mxu0
    %v4638 = vpop.f32.mrb[0].mxu0
    %v4639 = vadd.f32 0.0, %v4638
    %v4640 = vpop.f32.mrb[0].mxu0
    %4641 = vmatprep.mubr.bf16.mxu0 %v4459
    %4642 = vmatmul.mubr.bf16.gmra.mrb[0].mxu0 %v4389
    %v4643 = vpop.f32.mrb[0].mxu0
    %v4644 = vadd.f32 0.0, %v4643
    %v4645 = vpop.f32.mrb[0].mxu0
    %v4646 = vpop.f32.mrb[0].mxu0
    %v4647 = vadd.f32 0.0, %v4646
    %v4648 = vpop.f32.mrb[0].mxu0
    %4649 = vdwg.mxu0
    %v4650 = vmax.f32 %v4499, %v4636
    %v4651 = vmax.f32 %v4502, %v4639
    %v4652 = vmax.f32 %v4507, %v4644
    %v4653 = vmax.f32 %v4510, %v4647
    %v4654 = vpack.c.bf16 %v4651, %v4650
    %v4655 = vpack.c.bf16 %v4653, %v4652
    %v4656 = vld [vmem:[%s9] sm:$0xff]
    %v4657 = vld [vmem:[%s9 + $0x8] sm:$0xff]
    %v4658 = vld [vmem:[%s9 + $0x10] sm:$0xff]
    %v4659 = vld [vmem:[%s9 + $0x18] sm:$0xff]
    %v4660 = vld [vmem:[%s9 + $0x20] sm:$0xff]
    %v4661 = vld [vmem:[%s9 + $0x28] sm:$0xff]
    %v4662 = vld [vmem:[%s9 + $0x30] sm:$0xff]
    %v4663 = vld [vmem:[%s9 + $0x38] sm:$0xff]
    %v4664 = vld [vmem:[%s9 + $0x40] sm:$0xff]
    %v4665 = vld [vmem:[%s9 + $0x48] sm:$0xff]
    %v4666 = vld [vmem:[%s9 + $0x50] sm:$0x33]
    %s4667 = scalar_lea.vmem %s9, 88
    %v4668 = vld [vmem:[%s4667] sm:$0xff]
    %v4669 = vld [vmem:[%s4667 + $0x8] sm:$0xff]
    %v4670 = vld [vmem:[%s4667 + $0x10] sm:$0xff]
    %v4671 = vld [vmem:[%s4667 + $0x18] sm:$0xff]
    %v4672 = vld [vmem:[%s4667 + $0x20] sm:$0xff]
    %v4673 = vld [vmem:[%s4667 + $0x28] sm:$0xff]
    %v4674 = vld [vmem:[%s4667 + $0x30] sm:$0xff]
    %v4675 = vld [vmem:[%s4667 + $0x38] sm:$0xff]
    %v4676 = vld [vmem:[%s4667 + $0x40] sm:$0xff]
    %v4677 = vld [vmem:[%s4667 + $0x48] sm:$0xff]
    %v4678 = vld [vmem:[%s4667 + $0x50] sm:$0x33]
    %v4681 = vrot.slane %v4654, 1
    %v4682 = vrot.slane %v4655, 1
    %v4683 = vsel %vm3326, %v4681, %v4682
    %v4695 = vunpack.c.l.b16 %v4668
    %v4696 = vunpack.c.h.b16 %v4668
    %v4697 = vunpack.c.l.b16 %v4669
    %v4698 = vunpack.c.h.b16 %v4669
    %v4699 = vunpack.c.l.b16 %v4670
    %v4700 = vunpack.c.h.b16 %v4670
    %v4701 = vunpack.c.l.b16 %v4671
    %v4702 = vunpack.c.h.b16 %v4671
    %v4703 = vunpack.c.l.b16 %v4672
    %v4704 = vunpack.c.h.b16 %v4672
    %v4705 = vunpack.c.l.b16 %v4673
    %v4706 = vunpack.c.h.b16 %v4673
    %v4707 = vunpack.c.l.b16 %v4674
    %v4708 = vunpack.c.h.b16 %v4674
    %v4709 = vunpack.c.l.b16 %v4675
    %v4710 = vunpack.c.h.b16 %v4675
    %v4711 = vunpack.c.l.b16 %v4676
    %v4712 = vunpack.c.h.b16 %v4676
    %v4713 = vunpack.c.l.b16 %v4677
    %v4714 = vunpack.c.h.b16 %v4677
    %v4715 = vunpack.c.l.b16 %v4678
    %v4716 = vunpack.c.h.b16 %v4678
    %v4717 = vpack.c.b16 %v4697, %v4695
    %v4718 = vpack.c.b16 %v4698, %v4696
    %v4719 = vpack.c.b16 %v4701, %v4699
    %v4720 = vpack.c.b16 %v4702, %v4700
    %v4721 = vpack.c.b16 %v4705, %v4703
    %v4722 = vpack.c.b16 %v4706, %v4704
    %v4723 = vpack.c.b16 %v4709, %v4707
    %v4724 = vpack.c.b16 %v4710, %v4708
    %v4725 = vpack.c.b16 %v4713, %v4711
    %v4726 = vpack.c.b16 %v4714, %v4712
    %v4727 = vpack.c.b16 %v4715, %v4715
    %v4728 = vpack.c.b16 %v4716, %v4716
    %vm4739 = vcmask 687104
    %v4741 = vsel %vm4739, %v4683, 0
    %v4744 = vsel %vm4739, %v4682, 0
    %vm4746 = vcmask 1041408
    %v4748 = vsel %vm4746, %v4727, 0
    %v4751 = vsel %vm4746, %v4728, 0
    %4753 = vmatprep.subr.bf16.mxu0 %v4718
    %4754 = vmatpush1.bf16.msra.mxu0 %v4717
    %4755 = vmatprep.subr.bf16.mxu0 %v4720
    %4756 = vmatpush1.bf16.msra.mxu0 %v4719
    %4757 = vmatprep.subr.bf16.mxu0 %v4722
    %4758 = vmatpush1.bf16.msra.mxu0 %v4721
    %4759 = vmatprep.subr.bf16.mxu0 %v4724
    %4760 = vmatpush1.bf16.msra.mxu0 %v4723
    %4761 = vmatprep.subr.bf16.mxu0 %v4726
    %4762 = vmatpush1.bf16.msra.mxu0 %v4725
    %4763 = vmatprep.subr.bf16.mxu0 %v4751
    %4764 = vmatpush1.bf16.msra.mxu0 %v4748
    %4765 = vmatprep.subr.bf16.mxu0 0
    %4766 = vmatpush1.bf16.msra.mxu0 0
    %4767 = vmatprep.subr.bf16.mxu0 0
    %4768 = vmatpush1.bf16.msra.mxu0 0
    %4769 = vmatprep.subr.bf16.mxu0 0
    %4770 = vmatpush1.bf16.msra.mxu0 0
    %4771 = vmatprep.subr.bf16.mxu0 0
    %4772 = vmatpush1.bf16.msra.mxu0 0
    %4773 = vmatprep.subr.bf16.mxu0 0
    %4774 = vmatpush1.bf16.msra.mxu0 0
    %4775 = vmatprep.subr.bf16.mxu0 0
    %4776 = vmatpush1.bf16.msra.mxu0 0
    %4777 = vmatprep.subr.bf16.mxu0 0
    %4778 = vmatpush1.bf16.msra.mxu0 0
    %4779 = vmatprep.subr.bf16.mxu0 0
    %4780 = vmatpush1.bf16.msra.mxu0 0
    %4781 = vmatprep.subr.bf16.mxu0 0
    %4782 = vmatpush1.bf16.msra.mxu0 0
    %4783 = vmatprep.subr.bf16.mxu0 0
    %4784 = vmatpush1.bf16.msra.mxu0 0
    %4785 = vmatprep.mubr.bf16.mxu0 0
    %4786 = vmatmul.mubr.bf16.gmra.mrb[0].mxu0 %v4741
    %v4787 = vpop.f32.mrb[0].mxu0
    %v4788 = vadd.f32 0.0, %v4787
    %v4789 = vpop.f32.mrb[0].mxu0
    %v4790 = vadd.f32 0.0, %v4789
    %v4791 = vpop.f32.mrb[0].mxu0
    %v4792 = vadd.f32 0.0, %v4791
    %v4793 = vpop.f32.mrb[0].mxu0
    %v4794 = vadd.f32 0.0, %v4793
    %4795 = vmatprep.mubr.bf16.mxu0 0
    %4796 = vmatmul.mubr.bf16.gmra.mrb[0].mxu0 %v4744
    %v4797 = vpop.f32.mrb[0].mxu0
    %v4798 = vadd.f32 0.0, %v4797
    %v4799 = vpop.f32.mrb[0].mxu0
    %v4800 = vadd.f32 0.0, %v4799
    %v4801 = vpop.f32.mrb[0].mxu0
    %v4802 = vpop.f32.mrb[0].mxu0
    %4803 = vdwg.mxu0
    %v4815 = vunpack.c.l.b16 %v4656
    %v4816 = vunpack.c.h.b16 %v4656
    %v4817 = vunpack.c.l.b16 %v4657
    %v4818 = vunpack.c.h.b16 %v4657
    %v4819 = vunpack.c.l.b16 %v4658
    %v4820 = vunpack.c.h.b16 %v4658
    %v4821 = vunpack.c.l.b16 %v4659
    %v4822 = vunpack.c.h.b16 %v4659
    %v4823 = vunpack.c.l.b16 %v4660
    %v4824 = vunpack.c.h.b16 %v4660
    %v4825 = vunpack.c.l.b16 %v4661
    %v4826 = vunpack.c.h.b16 %v4661
    %v4827 = vunpack.c.l.b16 %v4662
    %v4828 = vunpack.c.h.b16 %v4662
    %v4829 = vunpack.c.l.b16 %v4663
    %v4830 = vunpack.c.h.b16 %v4663
    %v4831 = vunpack.c.l.b16 %v4664
    %v4832 = vunpack.c.h.b16 %v4664
    %v4833 = vunpack.c.l.b16 %v4665
    %v4834 = vunpack.c.h.b16 %v4665
    %v4835 = vunpack.c.l.b16 %v4666
    %v4836 = vunpack.c.h.b16 %v4666
    %v4837 = vpack.c.b16 %v4817, %v4815
    %v4838 = vpack.c.b16 %v4818, %v4816
    %v4839 = vpack.c.b16 %v4821, %v4819
    %v4840 = vpack.c.b16 %v4822, %v4820
    %v4841 = vpack.c.b16 %v4825, %v4823
    %v4842 = vpack.c.b16 %v4826, %v4824
    %v4843 = vpack.c.b16 %v4829, %v4827
    %v4844 = vpack.c.b16 %v4830, %v4828
    %v4845 = vpack.c.b16 %v4833, %v4831
    %v4846 = vpack.c.b16 %v4834, %v4832
    %v4847 = vpack.c.b16 %v4835, %v4835
    %v4848 = vpack.c.b16 %v4836, %v4836
    %v4860 = vsel %vm4739, %v4654, 0
    %v4863 = vsel %vm4739, %v4655, 0
    %v4866 = vsel %vm4746, %v4847, 0
    %v4869 = vsel %vm4746, %v4848, 0
    %4871 = vmatprep.subr.bf16.mxu0 %v4838
    %4872 = vmatpush1.bf16.msra.mxu0 %v4837
    %4873 = vmatprep.subr.bf16.mxu0 %v4840
    %4874 = vmatpush1.bf16.msra.mxu0 %v4839
    %4875 = vmatprep.subr.bf16.mxu0 %v4842
    %4876 = vmatpush1.bf16.msra.mxu0 %v4841
    %4877 = vmatprep.subr.bf16.mxu0 %v4844
    %4878 = vmatpush1.bf16.msra.mxu0 %v4843
    %4879 = vmatprep.subr.bf16.mxu0 %v4846
    %4880 = vmatpush1.bf16.msra.mxu0 %v4845
    %4881 = vmatprep.subr.bf16.mxu0 %v4869
    %4882 = vmatpush1.bf16.msra.mxu0 %v4866
    %4883 = vmatprep.subr.bf16.mxu0 0
    %4884 = vmatpush1.bf16.msra.mxu0 0
    %4885 = vmatprep.subr.bf16.mxu0 0
    %4886 = vmatpush1.bf16.msra.mxu0 0
    %4887 = vmatprep.subr.bf16.mxu0 0
    %4888 = vmatpush1.bf16.msra.mxu0 0
    %4889 = vmatprep.subr.bf16.mxu0 0
    %4890 = vmatpush1.bf16.msra.mxu0 0
    %4891 = vmatprep.subr.bf16.mxu0 0
    %4892 = vmatpush1.bf16.msra.mxu0 0
    %4893 = vmatprep.subr.bf16.mxu0 0
    %4894 = vmatpush1.bf16.msra.mxu0 0
    %4895 = vmatprep.subr.bf16.mxu0 0
    %4896 = vmatpush1.bf16.msra.mxu0 0
    %4897 = vmatprep.subr.bf16.mxu0 0
    %4898 = vmatpush1.bf16.msra.mxu0 0
    %4899 = vmatprep.subr.bf16.mxu0 0
    %4900 = vmatpush1.bf16.msra.mxu0 0
    %4901 = vmatprep.subr.bf16.mxu0 0
    %4902 = vmatpush1.bf16.msra.mxu0 0
    %4903 = vmatprep.mubr.bf16.mxu0 0
    %4904 = vmatmul.mubr.bf16.gmra.mrb[0].mxu0 %v4860
    %v4905 = vpop.f32.mrb[0].mxu0
    %v4906 = vadd.f32 %v4788, %v4905
    %v4907 = vpop.f32.mrb[0].mxu0
    %v4908 = vadd.f32 %v4790, %v4907
    %v4909 = vpop.f32.mrb[0].mxu0
    %v4910 = vadd.f32 %v4792, %v4909
    %v4911 = vpop.f32.mrb[0].mxu0
    %v4912 = vadd.f32 %v4794, %v4911
    %4913 = vmatprep.mubr.bf16.mxu0 0
    %4914 = vmatmul.mubr.bf16.gmra.mrb[0].mxu0 %v4863
    %v4915 = vpop.f32.mrb[0].mxu0
    %v4916 = vadd.f32 %v4798, %v4915
    %v4917 = vpop.f32.mrb[0].mxu0
    %v4918 = vadd.f32 %v4800, %v4917
    %v4919 = vpop.f32.mrb[0].mxu0
    %v4920 = vpop.f32.mrb[0].mxu0
    %4921 = vdwg.mxu0
    %s4922 = scalar_lea.vmem %s9, 176
    %v4923 = vld [vmem:[%s4922] sm:$0xff]
    %v4924 = vld [vmem:[%s4922 + $0x8] sm:$0xff]
    %v4925 = vld [vmem:[%s4922 + $0x10] sm:$0xff]
    %v4926 = vld [vmem:[%s4922 + $0x18] sm:$0xff]
    %v4927 = vld [vmem:[%s4922 + $0x20] sm:$0xff]
    %v4928 = vld [vmem:[%s4922 + $0x28] sm:$0xff]
    %v4929 = vld [vmem:[%s4922 + $0x30] sm:$0xff]
    %v4930 = vld [vmem:[%s4922 + $0x38] sm:$0xff]
    %v4931 = vld [vmem:[%s4922 + $0x40] sm:$0xff]
    %v4932 = vld [vmem:[%s4922 + $0x48] sm:$0xff]
    %v4933 = vld [vmem:[%s4922 + $0x50] sm:$0x33]
    %v4934 = vrot.slane %v4654, 2
    %v4935 = vrot.slane %v4655, 2
    %v4936 = vsel %vm3634, %v4934, %v4935
    %v4948 = vunpack.c.l.b16 %v4923
    %v4949 = vunpack.c.h.b16 %v4923
    %v4950 = vunpack.c.l.b16 %v4924
    %v4951 = vunpack.c.h.b16 %v4924
    %v4952 = vunpack.c.l.b16 %v4925
    %v4953 = vunpack.c.h.b16 %v4925
    %v4954 = vunpack.c.l.b16 %v4926
    %v4955 = vunpack.c.h.b16 %v4926
    %v4956 = vunpack.c.l.b16 %v4927
    %v4957 = vunpack.c.h.b16 %v4927
    %v4958 = vunpack.c.l.b16 %v4928
    %v4959 = vunpack.c.h.b16 %v4928
    %v4960 = vunpack.c.l.b16 %v4929
    %v4961 = vunpack.c.h.b16 %v4929
    %v4962 = vunpack.c.l.b16 %v4930
    %v4963 = vunpack.c.h.b16 %v4930
    %v4964 = vunpack.c.l.b16 %v4931
    %v4965 = vunpack.c.h.b16 %v4931
    %v4966 = vunpack.c.l.b16 %v4932
    %v4967 = vunpack.c.h.b16 %v4932
    %v4968 = vunpack.c.l.b16 %v4933
    %v4969 = vunpack.c.h.b16 %v4933
    %v4970 = vpack.c.b16 %v4950, %v4948
    %v4971 = vpack.c.b16 %v4951, %v4949
    %v4972 = vpack.c.b16 %v4954, %v4952
    %v4973 = vpack.c.b16 %v4955, %v4953
    %v4974 = vpack.c.b16 %v4958, %v4956
    %v4975 = vpack.c.b16 %v4959, %v4957
    %v4976 = vpack.c.b16 %v4962, %v4960
    %v4977 = vpack.c.b16 %v4963, %v4961
    %v4978 = vpack.c.b16 %v4966, %v4964
    %v4979 = vpack.c.b16 %v4967, %v4965
    %v4980 = vpack.c.b16 %v4968, %v4968
    %v4981 = vpack.c.b16 %v4969, %v4969
    %v4993 = vsel %vm4739, %v4936, 0
    %v4996 = vsel %vm4739, %v4935, 0
    %v4999 = vsel %vm4746, %v4980, 0
    %v5002 = vsel %vm4746, %v4981, 0
    %5004 = vmatprep.subr.bf16.mxu0 %v4971
    %5005 = vmatpush1.bf16.msra.mxu0 %v4970
    %5006 = vmatprep.subr.bf16.mxu0 %v4973
    %5007 = vmatpush1.bf16.msra.mxu0 %v4972
    %5008 = vmatprep.subr.bf16.mxu0 %v4975
    %5009 = vmatpush1.bf16.msra.mxu0 %v4974
    %5010 = vmatprep.subr.bf16.mxu0 %v4977
    %5011 = vmatpush1.bf16.msra.mxu0 %v4976
    %5012 = vmatprep.subr.bf16.mxu0 %v4979
    %5013 = vmatpush1.bf16.msra.mxu0 %v4978
    %5014 = vmatprep.subr.bf16.mxu0 %v5002
    %5015 = vmatpush1.bf16.msra.mxu0 %v4999
    %5016 = vmatprep.subr.bf16.mxu0 0
    %5017 = vmatpush1.bf16.msra.mxu0 0
    %5018 = vmatprep.subr.bf16.mxu0 0
    %5019 = vmatpush1.bf16.msra.mxu0 0
    %5020 = vmatprep.subr.bf16.mxu0 0
    %5021 = vmatpush1.bf16.msra.mxu0 0
    %5022 = vmatprep.subr.bf16.mxu0 0
    %5023 = vmatpush1.bf16.msra.mxu0 0
    %5024 = vmatprep.subr.bf16.mxu0 0
    %5025 = vmatpush1.bf16.msra.mxu0 0
    %5026 = vmatprep.subr.bf16.mxu0 0
    %5027 = vmatpush1.bf16.msra.mxu0 0
    %5028 = vmatprep.subr.bf16.mxu0 0
    %5029 = vmatpush1.bf16.msra.mxu0 0
    %5030 = vmatprep.subr.bf16.mxu0 0
    %5031 = vmatpush1.bf16.msra.mxu0 0
    %5032 = vmatprep.subr.bf16.mxu0 0
    %5033 = vmatpush1.bf16.msra.mxu0 0
    %5034 = vmatprep.subr.bf16.mxu0 0
    %5035 = vmatpush1.bf16.msra.mxu0 0
    %5036 = vmatprep.mubr.bf16.mxu0 0
    %5037 = vmatmul.mubr.bf16.gmra.mrb[0].mxu0 %v4993
    %v5038 = vpop.f32.mrb[0].mxu0
    %v5039 = vadd.f32 0.0, %v5038
    %v5040 = vpop.f32.mrb[0].mxu0
    %v5041 = vadd.f32 0.0, %v5040
    %v5042 = vpop.f32.mrb[0].mxu0
    %v5043 = vadd.f32 0.0, %v5042
    %v5044 = vpop.f32.mrb[0].mxu0
    %v5045 = vadd.f32 0.0, %v5044
    %5046 = vmatprep.mubr.bf16.mxu0 0
    %5047 = vmatmul.mubr.bf16.gmra.mrb[0].mxu0 %v4996
    %v5048 = vpop.f32.mrb[0].mxu0
    %v5049 = vadd.f32 0.0, %v5048
    %v5050 = vpop.f32.mrb[0].mxu0
    %v5051 = vadd.f32 0.0, %v5050
    %v5052 = vpop.f32.mrb[0].mxu0
    %v5053 = vpop.f32.mrb[0].mxu0
    %5054 = vdwg.mxu0
    %v5055 = vadd.f32 %v4906, %v5039
    %v5056 = vadd.f32 %v4908, %v5041
    %v5057 = vadd.f32 %v4910, %v5043
    %v5058 = vadd.f32 %v4912, %v5045
    %v5059 = vadd.f32 %v4916, %v5049
    %v5060 = vadd.f32 %v4918, %v5051
    %s5061 = scalar_lea.vmem %s9, 264
    %v5062 = vld [vmem:[%s5061] sm:$0xff]
    %v5063 = vld [vmem:[%s5061 + $0x8] sm:$0xff]
    %v5064 = vld [vmem:[%s5061 + $0x10] sm:$0xff]
    %v5065 = vld [vmem:[%s5061 + $0x18] sm:$0xff]
    %v5066 = vld [vmem:[%s5061 + $0x20] sm:$0xff]
    %v5067 = vld [vmem:[%s5061 + $0x28] sm:$0xff]
    %v5068 = vld [vmem:[%s5061 + $0x30] sm:$0xff]
    %v5069 = vld [vmem:[%s5061 + $0x38] sm:$0xff]
    %v5070 = vld [vmem:[%s5061 + $0x40] sm:$0xff]
    %v5071 = vld [vmem:[%s5061 + $0x48] sm:$0xff]
    %v5072 = vld [vmem:[%s5061 + $0x50] sm:$0x33]
    %v5073 = vrot.slane %v4654, 3
    %v5074 = vrot.slane %v4655, 3
    %v5075 = vsel %vm3812, %v5073, %v5074
    %v5087 = vunpack.c.l.b16 %v5062
    %v5088 = vunpack.c.h.b16 %v5062
    %v5089 = vunpack.c.l.b16 %v5063
    %v5090 = vunpack.c.h.b16 %v5063
    %v5091 = vunpack.c.l.b16 %v5064
    %v5092 = vunpack.c.h.b16 %v5064
    %v5093 = vunpack.c.l.b16 %v5065
    %v5094 = vunpack.c.h.b16 %v5065
    %v5095 = vunpack.c.l.b16 %v5066
    %v5096 = vunpack.c.h.b16 %v5066
    %v5097 = vunpack.c.l.b16 %v5067
    %v5098 = vunpack.c.h.b16 %v5067
    %v5099 = vunpack.c.l.b16 %v5068
    %v5100 = vunpack.c.h.b16 %v5068
    %v5101 = vunpack.c.l.b16 %v5069
    %v5102 = vunpack.c.h.b16 %v5069
    %v5103 = vunpack.c.l.b16 %v5070
    %v5104 = vunpack.c.h.b16 %v5070
    %v5105 = vunpack.c.l.b16 %v5071
    %v5106 = vunpack.c.h.b16 %v5071
    %v5107 = vunpack.c.l.b16 %v5072
    %v5108 = vunpack.c.h.b16 %v5072
    %v5109 = vpack.c.b16 %v5089, %v5087
    %v5110 = vpack.c.b16 %v5090, %v5088
    %v5111 = vpack.c.b16 %v5093, %v5091
    %v5112 = vpack.c.b16 %v5094, %v5092
    %v5113 = vpack.c.b16 %v5097, %v5095
    %v5114 = vpack.c.b16 %v5098, %v5096
    %v5115 = vpack.c.b16 %v5101, %v5099
    %v5116 = vpack.c.b16 %v5102, %v5100
    %v5117 = vpack.c.b16 %v5105, %v5103
    %v5118 = vpack.c.b16 %v5106, %v5104
    %v5119 = vpack.c.b16 %v5107, %v5107
    %v5120 = vpack.c.b16 %v5108, %v5108
    %v5132 = vsel %vm4739, %v5075, 0
    %v5135 = vsel %vm4739, %v5074, 0
    %v5138 = vsel %vm4746, %v5119, 0
    %v5141 = vsel %vm4746, %v5120, 0
    %5143 = vmatprep.subr.bf16.mxu0 %v5110
    %5144 = vmatpush1.bf16.msra.mxu0 %v5109
    %5145 = vmatprep.subr.bf16.mxu0 %v5112
    %5146 = vmatpush1.bf16.msra.mxu0 %v5111
    %5147 = vmatprep.subr.bf16.mxu0 %v5114
    %5148 = vmatpush1.bf16.msra.mxu0 %v5113
    %5149 = vmatprep.subr.bf16.mxu0 %v5116
    %5150 = vmatpush1.bf16.msra.mxu0 %v5115
    %5151 = vmatprep.subr.bf16.mxu0 %v5118
    %5152 = vmatpush1.bf16.msra.mxu0 %v5117
    %5153 = vmatprep.subr.bf16.mxu0 %v5141
    %5154 = vmatpush1.bf16.msra.mxu0 %v5138
    %5155 = vmatprep.subr.bf16.mxu0 0
    %5156 = vmatpush1.bf16.msra.mxu0 0
    %5157 = vmatprep.subr.bf16.mxu0 0
    %5158 = vmatpush1.bf16.msra.mxu0 0
    %5159 = vmatprep.subr.bf16.mxu0 0
    %5160 = vmatpush1.bf16.msra.mxu0 0
    %5161 = vmatprep.subr.bf16.mxu0 0
    %5162 = vmatpush1.bf16.msra.mxu0 0
    %5163 = vmatprep.subr.bf16.mxu0 0
    %5164 = vmatpush1.bf16.msra.mxu0 0
    %5165 = vmatprep.subr.bf16.mxu0 0
    %5166 = vmatpush1.bf16.msra.mxu0 0
    %5167 = vmatprep.subr.bf16.mxu0 0
    %5168 = vmatpush1.bf16.msra.mxu0 0
    %5169 = vmatprep.subr.bf16.mxu0 0
    %5170 = vmatpush1.bf16.msra.mxu0 0
    %5171 = vmatprep.subr.bf16.mxu0 0
    %5172 = vmatpush1.bf16.msra.mxu0 0
    %5173 = vmatprep.subr.bf16.mxu0 0
    %5174 = vmatpush1.bf16.msra.mxu0 0
    %5175 = vmatprep.mubr.bf16.mxu0 0
    %5176 = vmatmul.mubr.bf16.gmra.mrb[0].mxu0 %v5132
    %v5177 = vpop.f32.mrb[0].mxu0
    %v5178 = vadd.f32 0.0, %v5177
    %v5179 = vpop.f32.mrb[0].mxu0
    %v5180 = vadd.f32 0.0, %v5179
    %v5181 = vpop.f32.mrb[0].mxu0
    %v5182 = vadd.f32 0.0, %v5181
    %v5183 = vpop.f32.mrb[0].mxu0
    %v5184 = vadd.f32 0.0, %v5183
    %5185 = vmatprep.mubr.bf16.mxu0 0
    %5186 = vmatmul.mubr.bf16.gmra.mrb[0].mxu0 %v5135
    %v5187 = vpop.f32.mrb[0].mxu0
    %v5188 = vadd.f32 0.0, %v5187
    %v5189 = vpop.f32.mrb[0].mxu0
    %v5190 = vadd.f32 0.0, %v5189
    %v5191 = vpop.f32.mrb[0].mxu0
    %v5192 = vpop.f32.mrb[0].mxu0
    %5193 = vdwg.mxu0
    %v5194 = vadd.f32 %v5055, %v5178
    %v5195 = vadd.f32 %v5056, %v5180
    %v5196 = vadd.f32 %v5057, %v5182
    %v5197 = vadd.f32 %v5058, %v5184
    %v5198 = vadd.f32 %v5059, %v5188
    %v5199 = vadd.f32 %v5060, %v5190
    %s5200 = scalar_lea.vmem %s9, 352
    %v5201 = vld [vmem:[%s5200] sm:$0xff]
    %v5202 = vld [vmem:[%s5200 + $0x8] sm:$0xff]
    %v5203 = vld [vmem:[%s5200 + $0x10] sm:$0xff]
    %v5204 = vld [vmem:[%s5200 + $0x18] sm:$0xff]
    %v5205 = vld [vmem:[%s5200 + $0x20] sm:$0xff]
    %v5206 = vld [vmem:[%s5200 + $0x28] sm:$0xff]
    %v5207 = vld [vmem:[%s5200 + $0x30] sm:$0xff]
    %v5208 = vld [vmem:[%s5200 + $0x38] sm:$0xff]
    %v5209 = vld [vmem:[%s5200 + $0x40] sm:$0xff]
    %v5210 = vld [vmem:[%s5200 + $0x48] sm:$0xff]
    %v5211 = vld [vmem:[%s5200 + $0x50] sm:$0x33]
    %v5212 = vrot.slane %v4654, 4
    %v5213 = vrot.slane %v4655, 4
    %v5214 = vsel %vm3990, %v5212, %v5213
    %v5226 = vunpack.c.l.b16 %v5201
    %v5227 = vunpack.c.h.b16 %v5201
    %v5228 = vunpack.c.l.b16 %v5202
    %v5229 = vunpack.c.h.b16 %v5202
    %v5230 = vunpack.c.l.b16 %v5203
    %v5231 = vunpack.c.h.b16 %v5203
    %v5232 = vunpack.c.l.b16 %v5204
    %v5233 = vunpack.c.h.b16 %v5204
    %v5234 = vunpack.c.l.b16 %v5205
    %v5235 = vunpack.c.h.b16 %v5205
    %v5236 = vunpack.c.l.b16 %v5206
    %v5237 = vunpack.c.h.b16 %v5206
    %v5238 = vunpack.c.l.b16 %v5207
    %v5239 = vunpack.c.h.b16 %v5207
    %v5240 = vunpack.c.l.b16 %v5208
    %v5241 = vunpack.c.h.b16 %v5208
    %v5242 = vunpack.c.l.b16 %v5209
    %v5243 = vunpack.c.h.b16 %v5209
    %v5244 = vunpack.c.l.b16 %v5210
    %v5245 = vunpack.c.h.b16 %v5210
    %v5246 = vunpack.c.l.b16 %v5211
    %v5247 = vunpack.c.h.b16 %v5211
    %v5248 = vpack.c.b16 %v5228, %v5226
    %v5249 = vpack.c.b16 %v5229, %v5227
    %v5250 = vpack.c.b16 %v5232, %v5230
    %v5251 = vpack.c.b16 %v5233, %v5231
    %v5252 = vpack.c.b16 %v5236, %v5234
    %v5253 = vpack.c.b16 %v5237, %v5235
    %v5254 = vpack.c.b16 %v5240, %v5238
    %v5255 = vpack.c.b16 %v5241, %v5239
    %v5256 = vpack.c.b16 %v5244, %v5242
    %v5257 = vpack.c.b16 %v5245, %v5243
    %v5258 = vpack.c.b16 %v5246, %v5246
    %v5259 = vpack.c.b16 %v5247, %v5247
    %v5271 = vsel %vm4739, %v5214, 0
    %v5274 = vsel %vm4739, %v5213, 0
    %v5277 = vsel %vm4746, %v5258, 0
    %v5280 = vsel %vm4746, %v5259, 0
    %5282 = vmatprep.subr.bf16.mxu0 %v5249
    %5283 = vmatpush1.bf16.msra.mxu0 %v5248
    %5284 = vmatprep.subr.bf16.mxu0 %v5251
    %5285 = vmatpush1.bf16.msra.mxu0 %v5250
    %5286 = vmatprep.subr.bf16.mxu0 %v5253
    %5287 = vmatpush1.bf16.msra.mxu0 %v5252
    %5288 = vmatprep.subr.bf16.mxu0 %v5255
    %5289 = vmatpush1.bf16.msra.mxu0 %v5254
    %5290 = vmatprep.subr.bf16.mxu0 %v5257
    %5291 = vmatpush1.bf16.msra.mxu0 %v5256
    %5292 = vmatprep.subr.bf16.mxu0 %v5280
    %5293 = vmatpush1.bf16.msra.mxu0 %v5277
    %5294 = vmatprep.subr.bf16.mxu0 0
    %5295 = vmatpush1.bf16.msra.mxu0 0
    %5296 = vmatprep.subr.bf16.mxu0 0
    %5297 = vmatpush1.bf16.msra.mxu0 0
    %5298 = vmatprep.subr.bf16.mxu0 0
    %5299 = vmatpush1.bf16.msra.mxu0 0
    %5300 = vmatprep.subr.bf16.mxu0 0
    %5301 = vmatpush1.bf16.msra.mxu0 0
    %5302 = vmatprep.subr.bf16.mxu0 0
    %5303 = vmatpush1.bf16.msra.mxu0 0
    %5304 = vmatprep.subr.bf16.mxu0 0
    %5305 = vmatpush1.bf16.msra.mxu0 0
    %5306 = vmatprep.subr.bf16.mxu0 0
    %5307 = vmatpush1.bf16.msra.mxu0 0
    %5308 = vmatprep.subr.bf16.mxu0 0
    %5309 = vmatpush1.bf16.msra.mxu0 0
    %5310 = vmatprep.subr.bf16.mxu0 0
    %5311 = vmatpush1.bf16.msra.mxu0 0
    %5312 = vmatprep.subr.bf16.mxu0 0
    %5313 = vmatpush1.bf16.msra.mxu0 0
    %5314 = vmatprep.mubr.bf16.mxu0 0
    %5315 = vmatmul.mubr.bf16.gmra.mrb[0].mxu0 %v5271
    %v5316 = vpop.f32.mrb[0].mxu0
    %v5317 = vadd.f32 0.0, %v5316
    %v5318 = vpop.f32.mrb[0].mxu0
    %v5319 = vadd.f32 0.0, %v5318
    %v5320 = vpop.f32.mrb[0].mxu0
    %v5321 = vadd.f32 0.0, %v5320
    %v5322 = vpop.f32.mrb[0].mxu0
    %v5323 = vadd.f32 0.0, %v5322
    %5324 = vmatprep.mubr.bf16.mxu0 0
    %5325 = vmatmul.mubr.bf16.gmra.mrb[0].mxu0 %v5274
    %v5326 = vpop.f32.mrb[0].mxu0
    %v5327 = vadd.f32 0.0, %v5326
    %v5328 = vpop.f32.mrb[0].mxu0
    %v5329 = vadd.f32 0.0, %v5328
    %v5330 = vpop.f32.mrb[0].mxu0
    %v5331 = vpop.f32.mrb[0].mxu0
    %5332 = vdwg.mxu0
    %v5333 = vadd.f32 %v5194, %v5317
    %v5334 = vadd.f32 %v5195, %v5319
    %v5335 = vadd.f32 %v5196, %v5321
    %v5336 = vadd.f32 %v5197, %v5323
    %v5337 = vadd.f32 %v5198, %v5327
    %v5338 = vadd.f32 %v5199, %v5329
    %v5339 = vld [vmem:[#allocation5] sm:$0x3]
    %v5341 = vlaneseq
    %v5342 = vshrl.u32 %v5341, 7
    %v5343 = vsub.s32 0, %v5342
    %v5344 = vrot.slane %v5339, %v5343
    %v5345 = vlaneseq
    %v5346 = vshrl.u32 %v5345, 7
    %v5347 = vsub.s32 1, %v5346
    %v5348 = vrot.slane %v5339, %v5347
    %v5351 = vadd.f32 %v5333, %v5344
    %v5352 = vadd.f32 %v5334, %v5348
    %v5353 = vadd.f32 %v5335, %v5344
    %v5354 = vadd.f32 %v5336, %v5348
    %v5355 = vadd.f32 %v5337, %v5344
    %v5356 = vadd.f32 %v5338, %v5348
    %v5357 = vmax.f32 %v5351, 0.0
    %v5358 = vmax.f32 %v5352, 0.0
    %v5359 = vmax.f32 %v5353, 0.0
    %v5360 = vmax.f32 %v5354, 0.0
    %v5361 = vmax.f32 %v5355, 0.0
    %v5362 = vmax.f32 %v5356, 0.0
    %v5363 = vld [vmem:[%s11] sm:$0xf]
    %v5364 = vld [vmem:[%s11 + $0x4] sm:$0x1]
    %v5365 = vpack.c.bf16 %v5359, %v5357
    %v5366 = vpack.c.bf16 %v5360, %v5358
    %v5367 = vpack.c.bf16 %v5361, %v5361
    %v5368 = vpack.c.bf16 %v5362, %v5362
    %v5371 = vunpack.c.l.b16 %v5363
    %v5372 = vunpack.c.l.b16 %v5364
    %v5373 = vpack.c.b16 %v5372, %v5371
    %vm5374 = vcmask 162816
    %v5376 = vsel %vm5374, %v5373, 0
    %v5379 = vsel %vm4746, %v5367, 0
    %v5382 = vsel %vm4746, %v5368, 0
    %5384 = vmatprep.subr.bf16.mxu0 %v5366
    %5385 = vmatpush1.bf16.msra.mxu0 %v5365
    %5386 = vmatprep.subr.bf16.mxu0 %v5382
    %5387 = vmatpush1.bf16.msra.mxu0 %v5379
    %5388 = vmatprep.subr.bf16.mxu0 0
    %5389 = vmatpush1.bf16.msra.mxu0 0
    %5390 = vmatprep.subr.bf16.mxu0 0
    %5391 = vmatpush1.bf16.msra.mxu0 0
    %5392 = vmatprep.subr.bf16.mxu0 0
    %5393 = vmatpush1.bf16.msra.mxu0 0
    %5394 = vmatprep.subr.bf16.mxu0 0
    %5395 = vmatpush1.bf16.msra.mxu0 0
    %5396 = vmatprep.subr.bf16.mxu0 0
    %5397 = vmatpush1.bf16.msra.mxu0 0
    %5398 = vmatprep.subr.bf16.mxu0 0
    %5399 = vmatpush1.bf16.msra.mxu0 0
    %5400 = vmatprep.subr.bf16.mxu0 0
    %5401 = vmatpush1.bf16.msra.mxu0 0
    %5402 = vmatprep.subr.bf16.mxu0 0
    %5403 = vmatpush1.bf16.msra.mxu0 0
    %5404 = vmatprep.subr.bf16.mxu0 0
    %5405 = vmatpush1.bf16.msra.mxu0 0
    %5406 = vmatprep.subr.bf16.mxu0 0
    %5407 = vmatpush1.bf16.msra.mxu0 0
    %5408 = vmatprep.subr.bf16.mxu0 0
    %5409 = vmatpush1.bf16.msra.mxu0 0
    %5410 = vmatprep.subr.bf16.mxu0 0
    %5411 = vmatpush1.bf16.msra.mxu0 0
    %5412 = vmatprep.subr.bf16.mxu0 0
    %5413 = vmatpush1.bf16.msra.mxu0 0
    %5414 = vmatprep.subr.bf16.mxu0 0
    %5415 = vmatpush1.bf16.msra.mxu0 0
    %5416 = vmatprep.mubr.bf16.mxu0 0
    %5417 = vmatmul.mubr.bf16.gmra.mrb[0].mxu0 %v5376
    %v5418 = vpop.f32.mrb[0].mxu0
    %v5419 = vadd.f32 0.0, %v5418
    %v5420 = vpop.f32.mrb[0].mxu0
    %v5421 = vadd.f32 0.0, %v5420
    %v5422 = vpop.f32.mrb[0].mxu0
    %v5423 = vadd.f32 0.0, %v5422
    %v5424 = vpop.f32.mrb[0].mxu0
    %v5425 = vadd.f32 0.0, %v5424
    %5426 = vdwg.mxu0
    %s5427 = scalar_lea.vmem %s11, 8
    %v5428 = vld [vmem:[%s5427] sm:$0xf]
    %v5429 = vld [vmem:[%s5427 + $0x4] sm:$0x1]
    %v5432 = vunpack.c.l.b16 %v5428
    %v5433 = vunpack.c.l.b16 %v5429
    %v5434 = vpack.c.b16 %v5433, %v5432
    %v5436 = vsel %vm5374, %v5434, 0
    %5438 = vmatprep.subr.bf16.mxu0 %v5366
    %5439 = vmatpush1.bf16.msra.mxu0 %v5365
    %5440 = vmatprep.subr.bf16.mxu0 %v5382
    %5441 = vmatpush1.bf16.msra.mxu0 %v5379
    %5442 = vmatprep.subr.bf16.mxu0 0
    %5443 = vmatpush1.bf16.msra.mxu0 0
    %5444 = vmatprep.subr.bf16.mxu0 0
    %5445 = vmatpush1.bf16.msra.mxu0 0
    %5446 = vmatprep.subr.bf16.mxu0 0
    %5447 = vmatpush1.bf16.msra.mxu0 0
    %5448 = vmatprep.subr.bf16.mxu0 0
    %5449 = vmatpush1.bf16.msra.mxu0 0
    %5450 = vmatprep.subr.bf16.mxu0 0
    %5451 = vmatpush1.bf16.msra.mxu0 0
    %5452 = vmatprep.subr.bf16.mxu0 0
    %5453 = vmatpush1.bf16.msra.mxu0 0
    %5454 = vmatprep.subr.bf16.mxu0 0
    %5455 = vmatpush1.bf16.msra.mxu0 0
    %5456 = vmatprep.subr.bf16.mxu0 0
    %5457 = vmatpush1.bf16.msra.mxu0 0
    %5458 = vmatprep.subr.bf16.mxu0 0
    %5459 = vmatpush1.bf16.msra.mxu0 0
    %5460 = vmatprep.subr.bf16.mxu0 0
    %5461 = vmatpush1.bf16.msra.mxu0 0
    %5462 = vmatprep.subr.bf16.mxu0 0
    %5463 = vmatpush1.bf16.msra.mxu0 0
    %5464 = vmatprep.subr.bf16.mxu0 0
    %5465 = vmatpush1.bf16.msra.mxu0 0
    %5466 = vmatprep.subr.bf16.mxu0 0
    %5467 = vmatpush1.bf16.msra.mxu0 0
    %5468 = vmatprep.subr.bf16.mxu0 0
    %5469 = vmatpush1.bf16.msra.mxu0 0
    %5470 = vmatprep.mubr.bf16.mxu0 0
    %5471 = vmatmul.mubr.bf16.gmra.mrb[0].mxu0 %v5436
    %v5472 = vpop.f32.mrb[0].mxu0
    %v5473 = vadd.f32 0.0, %v5472
    %v5474 = vpop.f32.mrb[0].mxu0
    %v5475 = vadd.f32 0.0, %v5474
    %v5476 = vpop.f32.mrb[0].mxu0
    %v5477 = vadd.f32 0.0, %v5476
    %v5478 = vpop.f32.mrb[0].mxu0
    %v5479 = vadd.f32 0.0, %v5478
    %5480 = vdwg.mxu0
    %v5481 = vmax.f32 %v5419, %v5473
    %v5482 = vmax.f32 %v5421, %v5475
    %v5483 = vmax.f32 %v5423, %v5477
    %v5484 = vmax.f32 %v5425, %v5479
    %v5485 = vld [vmem:[%s12] sm:$0xf]
    %v5486 = vld [vmem:[%s12 + $0x4] sm:$0xf]
    %v5487 = vld [vmem:[%s12 + $0x8] sm:$0xf]
    %v5488 = vld [vmem:[%s12 + $0xc] sm:$0xf]
    %v5489 = vld [vmem:[%s12 + $0x10] sm:$0xf]
    %v5490 = vld [vmem:[%s12 + $0x14] sm:$0xf]
    %v5491 = vld [vmem:[%s12 + $0x18] sm:$0xf]
    %v5492 = vld [vmem:[%s12 + $0x1c] sm:$0xf]
    %v5493 = vld [vmem:[%s12 + $0x20] sm:$0xf]
    %v5494 = vld [vmem:[%s12 + $0x24] sm:$0xf]
    %v5495 = vld [vmem:[%s12 + $0x28] sm:$0xf]
    %v5496 = vld [vmem:[%s12 + $0x2c] sm:$0xf]
    %v5497 = vld [vmem:[%s12 + $0x30] sm:$0xf]
    %v5498 = vld [vmem:[%s12 + $0x34] sm:$0xf]
    %v5499 = vld [vmem:[%s12 + $0x38] sm:$0xf]
    %v5500 = vld [vmem:[%s12 + $0x3c] sm:$0xf]
    %v5501 = vld [vmem:[%s12 + $0x40] sm:$0xf]
    %v5502 = vld [vmem:[%s12 + $0x44] sm:$0xf]
    %v5503 = vld [vmem:[%s12 + $0x48] sm:$0xf]
    %v5504 = vld [vmem:[%s12 + $0x4c] sm:$0xf]
    %v5505 = vpack.c.bf16 %v5483, %v5481
    %v5506 = vpack.c.bf16 %v5484, %v5482
    %v5527 = vunpack.c.l.b16 %v5485
    %v5528 = vunpack.c.l.b16 %v5486
    %v5529 = vunpack.c.l.b16 %v5487
    %v5530 = vunpack.c.l.b16 %v5488
    %v5531 = vunpack.c.l.b16 %v5489
    %v5532 = vunpack.c.l.b16 %v5490
    %v5533 = vunpack.c.l.b16 %v5491
    %v5534 = vunpack.c.l.b16 %v5492
    %v5535 = vunpack.c.l.b16 %v5493
    %v5536 = vunpack.c.l.b16 %v5494
    %v5537 = vunpack.c.l.b16 %v5495
    %v5538 = vunpack.c.l.b16 %v5496
    %v5539 = vunpack.c.l.b16 %v5497
    %v5540 = vunpack.c.l.b16 %v5498
    %v5541 = vunpack.c.l.b16 %v5499
    %v5542 = vunpack.c.l.b16 %v5500
    %v5543 = vunpack.c.l.b16 %v5501
    %v5544 = vunpack.c.l.b16 %v5502
    %v5545 = vunpack.c.l.b16 %v5503
    %v5546 = vunpack.c.l.b16 %v5504
    %v5547 = vpack.c.b16 %v5528, %v5527
    %v5548 = vpack.c.b16 %v5530, %v5529
    %v5549 = vpack.c.b16 %v5532, %v5531
    %v5550 = vpack.c.b16 %v5534, %v5533
    %v5551 = vpack.c.b16 %v5536, %v5535
    %v5552 = vpack.c.b16 %v5538, %v5537
    %v5553 = vpack.c.b16 %v5540, %v5539
    %v5554 = vpack.c.b16 %v5542, %v5541
    %v5555 = vpack.c.b16 %v5544, %v5543
    %v5556 = vpack.c.b16 %v5546, %v5545
    %vm5567 = vcmask 261120
    %v5569 = vsel %vm5567, %v5506, 0
    %5571 = vmatprep.subr.bf16.mxu0 0
    %5572 = vmatpush1.bf16.msra.mxu0 %v5547
    %5573 = vmatprep.subr.bf16.mxu0 0
    %5574 = vmatpush1.bf16.msra.mxu0 %v5548
    %5575 = vmatprep.subr.bf16.mxu0 0
    %5576 = vmatpush1.bf16.msra.mxu0 %v5549
    %5577 = vmatprep.subr.bf16.mxu0 0
    %5578 = vmatpush1.bf16.msra.mxu0 %v5550
    %5579 = vmatprep.subr.bf16.mxu0 0
    %5580 = vmatpush1.bf16.msra.mxu0 %v5551
    %5581 = vmatprep.subr.bf16.mxu0 0
    %5582 = vmatpush1.bf16.msra.mxu0 %v5552
    %5583 = vmatprep.subr.bf16.mxu0 0
    %5584 = vmatpush1.bf16.msra.mxu0 %v5553
    %5585 = vmatprep.subr.bf16.mxu0 0
    %5586 = vmatpush1.bf16.msra.mxu0 %v5554
    %5587 = vmatprep.subr.bf16.mxu0 0
    %5588 = vmatpush1.bf16.msra.mxu0 %v5555
    %5589 = vmatprep.subr.bf16.mxu0 0
    %5590 = vmatpush1.bf16.msra.mxu0 %v5556
    %5591 = vmatprep.subr.bf16.mxu0 0
    %5592 = vmatpush1.bf16.msra.mxu0 0
    %5593 = vmatprep.subr.bf16.mxu0 0
    %5594 = vmatpush1.bf16.msra.mxu0 0
    %5595 = vmatprep.subr.bf16.mxu0 0
    %5596 = vmatpush1.bf16.msra.mxu0 0
    %5597 = vmatprep.subr.bf16.mxu0 0
    %5598 = vmatpush1.bf16.msra.mxu0 0
    %5599 = vmatprep.subr.bf16.mxu0 0
    %5600 = vmatpush1.bf16.msra.mxu0 0
    %5601 = vmatprep.subr.bf16.mxu0 0
    %5602 = vmatpush1.bf16.msra.mxu0 0
    %5603 = vmatprep.mubr.bf16.mxu0 %v5569
    %5604 = vmatmul.mubr.bf16.gmra.mrb[0].mxu0 %v5505
    %v5605 = vpop.f32.mrb[0].mxu0
    %v5606 = vadd.f32 0.0, %v5605
    %v5607 = vpop.f32.mrb[0].mxu0
    %v5608 = vpop.f32.mrb[0].mxu0
    %v5609 = vadd.f32 0.0, %v5608
    %v5610 = vpop.f32.mrb[0].mxu0
    %5611 = vdwg.mxu0
    %s5612 = scalar_lea.vmem %s12, 80
    %v5613 = vld [vmem:[%s5612] sm:$0xf]
    %v5614 = vld [vmem:[%s5612 + $0x4] sm:$0xf]
    %v5615 = vld [vmem:[%s5612 + $0x8] sm:$0xf]
    %v5616 = vld [vmem:[%s5612 + $0xc] sm:$0xf]
    %v5617 = vld [vmem:[%s5612 + $0x10] sm:$0xf]
    %v5618 = vld [vmem:[%s5612 + $0x14] sm:$0xf]
    %v5619 = vld [vmem:[%s5612 + $0x18] sm:$0xf]
    %v5620 = vld [vmem:[%s5612 + $0x1c] sm:$0xf]
    %v5621 = vld [vmem:[%s5612 + $0x20] sm:$0xf]
    %v5622 = vld [vmem:[%s5612 + $0x24] sm:$0xf]
    %v5623 = vld [vmem:[%s5612 + $0x28] sm:$0xf]
    %v5624 = vld [vmem:[%s5612 + $0x2c] sm:$0xf]
    %v5625 = vld [vmem:[%s5612 + $0x30] sm:$0xf]
    %v5626 = vld [vmem:[%s5612 + $0x34] sm:$0xf]
    %v5627 = vld [vmem:[%s5612 + $0x38] sm:$0xf]
    %v5628 = vld [vmem:[%s5612 + $0x3c] sm:$0xf]
    %v5629 = vld [vmem:[%s5612 + $0x40] sm:$0xf]
    %v5630 = vld [vmem:[%s5612 + $0x44] sm:$0xf]
    %v5631 = vld [vmem:[%s5612 + $0x48] sm:$0xf]
    %v5632 = vld [vmem:[%s5612 + $0x4c] sm:$0xf]
    %v5653 = vunpack.c.l.b16 %v5613
    %v5654 = vunpack.c.l.b16 %v5614
    %v5655 = vunpack.c.l.b16 %v5615
    %v5656 = vunpack.c.l.b16 %v5616
    %v5657 = vunpack.c.l.b16 %v5617
    %v5658 = vunpack.c.l.b16 %v5618
    %v5659 = vunpack.c.l.b16 %v5619
    %v5660 = vunpack.c.l.b16 %v5620
    %v5661 = vunpack.c.l.b16 %v5621
    %v5662 = vunpack.c.l.b16 %v5622
    %v5663 = vunpack.c.l.b16 %v5623
    %v5664 = vunpack.c.l.b16 %v5624
    %v5665 = vunpack.c.l.b16 %v5625
    %v5666 = vunpack.c.l.b16 %v5626
    %v5667 = vunpack.c.l.b16 %v5627
    %v5668 = vunpack.c.l.b16 %v5628
    %v5669 = vunpack.c.l.b16 %v5629
    %v5670 = vunpack.c.l.b16 %v5630
    %v5671 = vunpack.c.l.b16 %v5631
    %v5672 = vunpack.c.l.b16 %v5632
    %v5673 = vpack.c.b16 %v5654, %v5653
    %v5674 = vpack.c.b16 %v5656, %v5655
    %v5675 = vpack.c.b16 %v5658, %v5657
    %v5676 = vpack.c.b16 %v5660, %v5659
    %v5677 = vpack.c.b16 %v5662, %v5661
    %v5678 = vpack.c.b16 %v5664, %v5663
    %v5679 = vpack.c.b16 %v5666, %v5665
    %v5680 = vpack.c.b16 %v5668, %v5667
    %v5681 = vpack.c.b16 %v5670, %v5669
    %v5682 = vpack.c.b16 %v5672, %v5671
    %5693 = vmatprep.subr.bf16.mxu0 0
    %5694 = vmatpush1.bf16.msra.mxu0 %v5673
    %5695 = vmatprep.subr.bf16.mxu0 0
    %5696 = vmatpush1.bf16.msra.mxu0 %v5674
    %5697 = vmatprep.subr.bf16.mxu0 0
    %5698 = vmatpush1.bf16.msra.mxu0 %v5675
    %5699 = vmatprep.subr.bf16.mxu0 0
    %5700 = vmatpush1.bf16.msra.mxu0 %v5676
    %5701 = vmatprep.subr.bf16.mxu0 0
    %5702 = vmatpush1.bf16.msra.mxu0 %v5677
    %5703 = vmatprep.subr.bf16.mxu0 0
    %5704 = vmatpush1.bf16.msra.mxu0 %v5678
    %5705 = vmatprep.subr.bf16.mxu0 0
    %5706 = vmatpush1.bf16.msra.mxu0 %v5679
    %5707 = vmatprep.subr.bf16.mxu0 0
    %5708 = vmatpush1.bf16.msra.mxu0 %v5680
    %5709 = vmatprep.subr.bf16.mxu0 0
    %5710 = vmatpush1.bf16.msra.mxu0 %v5681
    %5711 = vmatprep.subr.bf16.mxu0 0
    %5712 = vmatpush1.bf16.msra.mxu0 %v5682
    %5713 = vmatprep.subr.bf16.mxu0 0
    %5714 = vmatpush1.bf16.msra.mxu0 0
    %5715 = vmatprep.subr.bf16.mxu0 0
    %5716 = vmatpush1.bf16.msra.mxu0 0
    %5717 = vmatprep.subr.bf16.mxu0 0
    %5718 = vmatpush1.bf16.msra.mxu0 0
    %5719 = vmatprep.subr.bf16.mxu0 0
    %5720 = vmatpush1.bf16.msra.mxu0 0
    %5721 = vmatprep.subr.bf16.mxu0 0
    %5722 = vmatpush1.bf16.msra.mxu0 0
    %5723 = vmatprep.subr.bf16.mxu0 0
    %5724 = vmatpush1.bf16.msra.mxu0 0
    %5725 = vmatprep.mubr.bf16.mxu0 %v5569
    %5726 = vmatmul.mubr.bf16.gmra.mrb[0].mxu0 %v5505
    %v5727 = vpop.f32.mrb[0].mxu0
    %v5728 = vadd.f32 0.0, %v5727
    %v5729 = vpop.f32.mrb[0].mxu0
    %v5730 = vpop.f32.mrb[0].mxu0
    %v5731 = vadd.f32 0.0, %v5730
    %v5732 = vpop.f32.mrb[0].mxu0
    %5733 = vdwg.mxu0
    %v5734 = vmax.f32 %v5606, %v5728
    %v5735 = vmax.f32 %v5609, %v5731
    %v5736 = vpack.c.bf16 %v5735, %v5734
    %v5737 = vld [vmem:[%s14] sm:$0x1]
    %v5738 = vld [vmem:[%s13] sm:$0xf]
    %v5739 = vld [vmem:[%s13 + $0x4] sm:$0xf]
    %v5740 = vld [vmem:[%s13 + $0x8] sm:$0xf]
    %v5741 = vld [vmem:[%s13 + $0xc] sm:$0xf]
    %v5742 = vld [vmem:[%s13 + $0x10] sm:$0xf]
    %v5743 = vld [vmem:[%s13 + $0x14] sm:$0xf]
    %v5744 = vld [vmem:[%s13 + $0x18] sm:$0xf]
    %v5745 = vld [vmem:[%s13 + $0x1c] sm:$0xf]
    %v5746 = vld [vmem:[%s13 + $0x20] sm:$0xf]
    %v5747 = vld [vmem:[%s13 + $0x24] sm:$0xf]
    %v5758 = vunpack.c.l.b16 %v5738
    %v5759 = vunpack.c.l.b16 %v5739
    %v5760 = vunpack.c.l.b16 %v5740
    %v5761 = vunpack.c.l.b16 %v5741
    %v5762 = vunpack.c.l.b16 %v5742
    %v5763 = vunpack.c.l.b16 %v5743
    %v5764 = vunpack.c.l.b16 %v5744
    %v5765 = vunpack.c.l.b16 %v5745
    %v5766 = vunpack.c.l.b16 %v5746
    %v5767 = vunpack.c.l.b16 %v5747
    %v5768 = vpack.c.b16 %v5759, %v5758
    %v5769 = vpack.c.b16 %v5761, %v5760
    %v5770 = vpack.c.b16 %v5763, %v5762
    %v5771 = vpack.c.b16 %v5765, %v5764
    %v5772 = vpack.c.b16 %v5767, %v5766
    %vm5778 = vcmask 654336
    %v5780 = vsel %vm5778, %v5736, 0
    %5782 = vmatprep.subr.bf16.mxu0 0
    %5783 = vmatpush1.bf16.msra.mxu0 %v5768
    %5784 = vmatprep.subr.bf16.mxu0 0
    %5785 = vmatpush1.bf16.msra.mxu0 %v5769
    %5786 = vmatprep.subr.bf16.mxu0 0
    %5787 = vmatpush1.bf16.msra.mxu0 %v5770
    %5788 = vmatprep.subr.bf16.mxu0 0
    %5789 = vmatpush1.bf16.msra.mxu0 %v5771
    %5790 = vmatprep.subr.bf16.mxu0 0
    %5791 = vmatpush1.bf16.msra.mxu0 %v5772
    %5792 = vmatprep.subr.bf16.mxu0 0
    %5793 = vmatpush1.bf16.msra.mxu0 0
    %5794 = vmatprep.subr.bf16.mxu0 0
    %5795 = vmatpush1.bf16.msra.mxu0 0
    %5796 = vmatprep.subr.bf16.mxu0 0
    %5797 = vmatpush1.bf16.msra.mxu0 0
    %5798 = vmatprep.subr.bf16.mxu0 0
    %5799 = vmatpush1.bf16.msra.mxu0 0
    %5800 = vmatprep.subr.bf16.mxu0 0
    %5801 = vmatpush1.bf16.msra.mxu0 0
    %5802 = vmatprep.subr.bf16.mxu0 0
    %5803 = vmatpush1.bf16.msra.mxu0 0
    %5804 = vmatprep.subr.bf16.mxu0 0
    %5805 = vmatpush1.bf16.msra.mxu0 0
    %5806 = vmatprep.subr.bf16.mxu0 0
    %5807 = vmatpush1.bf16.msra.mxu0 0
    %5808 = vmatprep.subr.bf16.mxu0 0
    %5809 = vmatpush1.bf16.msra.mxu0 0
    %5810 = vmatprep.subr.bf16.mxu0 0
    %5811 = vmatpush1.bf16.msra.mxu0 0
    %5812 = vmatprep.subr.bf16.mxu0 0
    %5813 = vmatpush1.bf16.msra.mxu0 0
    %5814 = vmatprep.mubr.bf16.mxu0 0
    %5815 = vmatmul.mubr.bf16.gmra.mrb[0].mxu0 %v5780
    %v5816 = vpop.f32.mrb[0].mxu0
    %v5817 = vadd.f32 0.0, %v5816
    %v5818 = vpop.f32.mrb[0].mxu0
    %v5819 = vpop.f32.mrb[0].mxu0
    %v5820 = vpop.f32.mrb[0].mxu0
    %5821 = vdwg.mxu0
    %v5823 = vlaneseq
    %v5824 = vshrl.u32 %v5823, 7
    %v5825 = vsub.s32 0, %v5824
    %v5826 = vrot.slane %v5737, %v5825
    %v5828 = vadd.f32 %v5826, %v5817
    %s5829 = scalar_lea.vmem %s13, 40
    %v5830 = vld [vmem:[%s5829] sm:$0xf]
    %v5831 = vld [vmem:[%s5829 + $0x4] sm:$0xf]
    %v5832 = vld [vmem:[%s5829 + $0x8] sm:$0xf]
    %v5833 = vld [vmem:[%s5829 + $0xc] sm:$0xf]
    %v5834 = vld [vmem:[%s5829 + $0x10] sm:$0xf]
    %v5835 = vld [vmem:[%s5829 + $0x14] sm:$0xf]
    %v5836 = vld [vmem:[%s5829 + $0x18] sm:$0xf]
    %v5837 = vld [vmem:[%s5829 + $0x1c] sm:$0xf]
    %v5838 = vld [vmem:[%s5829 + $0x20] sm:$0xf]
    %v5839 = vld [vmem:[%s5829 + $0x24] sm:$0xf]
    %v5841 = vrot.slane %v5736, 1
    %v5852 = vunpack.c.l.b16 %v5830
    %v5853 = vunpack.c.l.b16 %v5831
    %v5854 = vunpack.c.l.b16 %v5832
    %v5855 = vunpack.c.l.b16 %v5833
    %v5856 = vunpack.c.l.b16 %v5834
    %v5857 = vunpack.c.l.b16 %v5835
    %v5858 = vunpack.c.l.b16 %v5836
    %v5859 = vunpack.c.l.b16 %v5837
    %v5860 = vunpack.c.l.b16 %v5838
    %v5861 = vunpack.c.l.b16 %v5839
    %v5862 = vpack.c.b16 %v5853, %v5852
    %v5863 = vpack.c.b16 %v5855, %v5854
    %v5864 = vpack.c.b16 %v5857, %v5856
    %v5865 = vpack.c.b16 %v5859, %v5858
    %v5866 = vpack.c.b16 %v5861, %v5860
    %v5873 = vsel %vm5778, %v5841, 0
    %5875 = vmatprep.subr.bf16.mxu0 0
    %5876 = vmatpush1.bf16.msra.mxu0 %v5862
    %5877 = vmatprep.subr.bf16.mxu0 0
    %5878 = vmatpush1.bf16.msra.mxu0 %v5863
    %5879 = vmatprep.subr.bf16.mxu0 0
    %5880 = vmatpush1.bf16.msra.mxu0 %v5864
    %5881 = vmatprep.subr.bf16.mxu0 0
    %5882 = vmatpush1.bf16.msra.mxu0 %v5865
    %5883 = vmatprep.subr.bf16.mxu0 0
    %5884 = vmatpush1.bf16.msra.mxu0 %v5866
    %5885 = vmatprep.subr.bf16.mxu0 0
    %5886 = vmatpush1.bf16.msra.mxu0 0
    %5887 = vmatprep.subr.bf16.mxu0 0
    %5888 = vmatpush1.bf16.msra.mxu0 0
    %5889 = vmatprep.subr.bf16.mxu0 0
    %5890 = vmatpush1.bf16.msra.mxu0 0
    %5891 = vmatprep.subr.bf16.mxu0 0
    %5892 = vmatpush1.bf16.msra.mxu0 0
    %5893 = vmatprep.subr.bf16.mxu0 0
    %5894 = vmatpush1.bf16.msra.mxu0 0
    %5895 = vmatprep.subr.bf16.mxu0 0
    %5896 = vmatpush1.bf16.msra.mxu0 0
    %5897 = vmatprep.subr.bf16.mxu0 0
    %5898 = vmatpush1.bf16.msra.mxu0 0
    %5899 = vmatprep.subr.bf16.mxu0 0
    %5900 = vmatpush1.bf16.msra.mxu0 0
    %5901 = vmatprep.subr.bf16.mxu0 0
    %5902 = vmatpush1.bf16.msra.mxu0 0
    %5903 = vmatprep.subr.bf16.mxu0 0
    %5904 = vmatpush1.bf16.msra.mxu0 0
    %5905 = vmatprep.subr.bf16.mxu0 0
    %5906 = vmatpush1.bf16.msra.mxu0 0
    %5907 = vmatprep.mubr.bf16.mxu0 0
    %5908 = vmatmul.mubr.bf16.gmra.mrb[0].mxu0 %v5873
    %v5909 = vpop.f32.mrb[0].mxu0
    %v5910 = vadd.f32 0.0, %v5909
    %v5911 = vpop.f32.mrb[0].mxu0
    %v5912 = vpop.f32.mrb[0].mxu0
    %v5913 = vpop.f32.mrb[0].mxu0
    %5914 = vdwg.mxu0
    %v5915 = vadd.f32 %v5828, %v5910
    %s5916 = scalar_lea.vmem %s13, 80
    %v5917 = vld [vmem:[%s5916] sm:$0xf]
    %v5918 = vld [vmem:[%s5916 + $0x4] sm:$0xf]
    %v5919 = vld [vmem:[%s5916 + $0x8] sm:$0xf]
    %v5920 = vld [vmem:[%s5916 + $0xc] sm:$0xf]
    %v5921 = vld [vmem:[%s5916 + $0x10] sm:$0xf]
    %v5922 = vld [vmem:[%s5916 + $0x14] sm:$0xf]
    %v5923 = vld [vmem:[%s5916 + $0x18] sm:$0xf]
    %v5924 = vld [vmem:[%s5916 + $0x1c] sm:$0xf]
    %v5925 = vld [vmem:[%s5916 + $0x20] sm:$0xf]
    %v5926 = vld [vmem:[%s5916 + $0x24] sm:$0xf]
    %v5927 = vrot.slane %v5736, 2
    %v5938 = vunpack.c.l.b16 %v5917
    %v5939 = vunpack.c.l.b16 %v5918
    %v5940 = vunpack.c.l.b16 %v5919
    %v5941 = vunpack.c.l.b16 %v5920
    %v5942 = vunpack.c.l.b16 %v5921
    %v5943 = vunpack.c.l.b16 %v5922
    %v5944 = vunpack.c.l.b16 %v5923
    %v5945 = vunpack.c.l.b16 %v5924
    %v5946 = vunpack.c.l.b16 %v5925
    %v5947 = vunpack.c.l.b16 %v5926
    %v5948 = vpack.c.b16 %v5939, %v5938
    %v5949 = vpack.c.b16 %v5941, %v5940
    %v5950 = vpack.c.b16 %v5943, %v5942
    %v5951 = vpack.c.b16 %v5945, %v5944
    %v5952 = vpack.c.b16 %v5947, %v5946
    %v5959 = vsel %vm5778, %v5927, 0
    %5961 = vmatprep.subr.bf16.mxu0 0
    %5962 = vmatpush1.bf16.msra.mxu0 %v5948
    %5963 = vmatprep.subr.bf16.mxu0 0
    %5964 = vmatpush1.bf16.msra.mxu0 %v5949
    %5965 = vmatprep.subr.bf16.mxu0 0
    %5966 = vmatpush1.bf16.msra.mxu0 %v5950
    %5967 = vmatprep.subr.bf16.mxu0 0
    %5968 = vmatpush1.bf16.msra.mxu0 %v5951
    %5969 = vmatprep.subr.bf16.mxu0 0
    %5970 = vmatpush1.bf16.msra.mxu0 %v5952
    %5971 = vmatprep.subr.bf16.mxu0 0
    %5972 = vmatpush1.bf16.msra.mxu0 0
    %5973 = vmatprep.subr.bf16.mxu0 0
    %5974 = vmatpush1.bf16.msra.mxu0 0
    %5975 = vmatprep.subr.bf16.mxu0 0
    %5976 = vmatpush1.bf16.msra.mxu0 0
    %5977 = vmatprep.subr.bf16.mxu0 0
    %5978 = vmatpush1.bf16.msra.mxu0 0
    %5979 = vmatprep.subr.bf16.mxu0 0
    %5980 = vmatpush1.bf16.msra.mxu0 0
    %5981 = vmatprep.subr.bf16.mxu0 0
    %5982 = vmatpush1.bf16.msra.mxu0 0
    %5983 = vmatprep.subr.bf16.mxu0 0
    %5984 = vmatpush1.bf16.msra.mxu0 0
    %5985 = vmatprep.subr.bf16.mxu0 0
    %5986 = vmatpush1.bf16.msra.mxu0 0
    %5987 = vmatprep.subr.bf16.mxu0 0
    %5988 = vmatpush1.bf16.msra.mxu0 0
    %5989 = vmatprep.subr.bf16.mxu0 0
    %5990 = vmatpush1.bf16.msra.mxu0 0
    %5991 = vmatprep.subr.bf16.mxu0 0
    %5992 = vmatpush1.bf16.msra.mxu0 0
    %5993 = vmatprep.mubr.bf16.mxu0 0
    %5994 = vmatmul.mubr.bf16.gmra.mrb[0].mxu0 %v5959
    %v5995 = vpop.f32.mrb[0].mxu0
    %v5996 = vadd.f32 0.0, %v5995
    %v5997 = vpop.f32.mrb[0].mxu0
    %v5998 = vpop.f32.mrb[0].mxu0
    %v5999 = vpop.f32.mrb[0].mxu0
    %6000 = vdwg.mxu0
    %v6001 = vadd.f32 %v5915, %v5996
    %s6002 = scalar_lea.vmem %s13, 120
    %v6003 = vld [vmem:[%s6002] sm:$0xf]
    %v6004 = vld [vmem:[%s6002 + $0x4] sm:$0xf]
    %v6005 = vld [vmem:[%s6002 + $0x8] sm:$0xf]
    %v6006 = vld [vmem:[%s6002 + $0xc] sm:$0xf]
    %v6007 = vld [vmem:[%s6002 + $0x10] sm:$0xf]
    %v6008 = vld [vmem:[%s6002 + $0x14] sm:$0xf]
    %v6009 = vld [vmem:[%s6002 + $0x18] sm:$0xf]
    %v6010 = vld [vmem:[%s6002 + $0x1c] sm:$0xf]
    %v6011 = vld [vmem:[%s6002 + $0x20] sm:$0xf]
    %v6012 = vld [vmem:[%s6002 + $0x24] sm:$0xf]
    %v6013 = vrot.slane %v5736, 3
    %v6024 = vunpack.c.l.b16 %v6003
    %v6025 = vunpack.c.l.b16 %v6004
    %v6026 = vunpack.c.l.b16 %v6005
    %v6027 = vunpack.c.l.b16 %v6006
    %v6028 = vunpack.c.l.b16 %v6007
    %v6029 = vunpack.c.l.b16 %v6008
    %v6030 = vunpack.c.l.b16 %v6009
    %v6031 = vunpack.c.l.b16 %v6010
    %v6032 = vunpack.c.l.b16 %v6011
    %v6033 = vunpack.c.l.b16 %v6012
    %v6034 = vpack.c.b16 %v6025, %v6024
    %v6035 = vpack.c.b16 %v6027, %v6026
    %v6036 = vpack.c.b16 %v6029, %v6028
    %v6037 = vpack.c.b16 %v6031, %v6030
    %v6038 = vpack.c.b16 %v6033, %v6032
    %v6045 = vsel %vm5778, %v6013, 0
    %6047 = vmatprep.subr.bf16.mxu0 0
    %6048 = vmatpush1.bf16.msra.mxu0 %v6034
    %6049 = vmatprep.subr.bf16.mxu0 0
    %6050 = vmatpush1.bf16.msra.mxu0 %v6035
    %6051 = vmatprep.subr.bf16.mxu0 0
    %6052 = vmatpush1.bf16.msra.mxu0 %v6036
    %6053 = vmatprep.subr.bf16.mxu0 0
    %6054 = vmatpush1.bf16.msra.mxu0 %v6037
    %6055 = vmatprep.subr.bf16.mxu0 0
    %6056 = vmatpush1.bf16.msra.mxu0 %v6038
    %6057 = vmatprep.subr.bf16.mxu0 0
    %6058 = vmatpush1.bf16.msra.mxu0 0
    %6059 = vmatprep.subr.bf16.mxu0 0
    %6060 = vmatpush1.bf16.msra.mxu0 0
    %6061 = vmatprep.subr.bf16.mxu0 0
    %6062 = vmatpush1.bf16.msra.mxu0 0
    %6063 = vmatprep.subr.bf16.mxu0 0
    %6064 = vmatpush1.bf16.msra.mxu0 0
    %6065 = vmatprep.subr.bf16.mxu0 0
    %6066 = vmatpush1.bf16.msra.mxu0 0
    %6067 = vmatprep.subr.bf16.mxu0 0
    %6068 = vmatpush1.bf16.msra.mxu0 0
    %6069 = vmatprep.subr.bf16.mxu0 0
    %6070 = vmatpush1.bf16.msra.mxu0 0
    %6071 = vmatprep.subr.bf16.mxu0 0
    %6072 = vmatpush1.bf16.msra.mxu0 0
    %6073 = vmatprep.subr.bf16.mxu0 0
    %6074 = vmatpush1.bf16.msra.mxu0 0
    %6075 = vmatprep.subr.bf16.mxu0 0
    %6076 = vmatpush1.bf16.msra.mxu0 0
    %6077 = vmatprep.subr.bf16.mxu0 0
    %6078 = vmatpush1.bf16.msra.mxu0 0
    %6079 = vmatprep.mubr.bf16.mxu0 0
    %6080 = vmatmul.mubr.bf16.gmra.mrb[0].mxu0 %v6045
    %v6081 = vpop.f32.mrb[0].mxu0
    %v6082 = vadd.f32 0.0, %v6081
    %v6083 = vpop.f32.mrb[0].mxu0
    %v6084 = vpop.f32.mrb[0].mxu0
    %v6085 = vpop.f32.mrb[0].mxu0
    %6086 = vdwg.mxu0
    %v6087 = vadd.f32 %v6001, %v6082
    %s6088 = scalar_lea.vmem %s13, 160
    %v6089 = vld [vmem:[%s6088] sm:$0xf]
    %v6090 = vld [vmem:[%s6088 + $0x4] sm:$0xf]
    %v6091 = vld [vmem:[%s6088 + $0x8] sm:$0xf]
    %v6092 = vld [vmem:[%s6088 + $0xc] sm:$0xf]
    %v6093 = vld [vmem:[%s6088 + $0x10] sm:$0xf]
    %v6094 = vld [vmem:[%s6088 + $0x14] sm:$0xf]
    %v6095 = vld [vmem:[%s6088 + $0x18] sm:$0xf]
    %v6096 = vld [vmem:[%s6088 + $0x1c] sm:$0xf]
    %v6097 = vld [vmem:[%s6088 + $0x20] sm:$0xf]
    %v6098 = vld [vmem:[%s6088 + $0x24] sm:$0xf]
    %v6099 = vrot.slane %v5736, 4
    %v6110 = vunpack.c.l.b16 %v6089
    %v6111 = vunpack.c.l.b16 %v6090
    %v6112 = vunpack.c.l.b16 %v6091
    %v6113 = vunpack.c.l.b16 %v6092
    %v6114 = vunpack.c.l.b16 %v6093
    %v6115 = vunpack.c.l.b16 %v6094
    %v6116 = vunpack.c.l.b16 %v6095
    %v6117 = vunpack.c.l.b16 %v6096
    %v6118 = vunpack.c.l.b16 %v6097
    %v6119 = vunpack.c.l.b16 %v6098
    %v6120 = vpack.c.b16 %v6111, %v6110
    %v6121 = vpack.c.b16 %v6113, %v6112
    %v6122 = vpack.c.b16 %v6115, %v6114
    %v6123 = vpack.c.b16 %v6117, %v6116
    %v6124 = vpack.c.b16 %v6119, %v6118
    %v6131 = vsel %vm5778, %v6099, 0
    %6133 = vmatprep.subr.bf16.mxu0 0
    %6134 = vmatpush1.bf16.msra.mxu0 %v6120
    %6135 = vmatprep.subr.bf16.mxu0 0
    %6136 = vmatpush1.bf16.msra.mxu0 %v6121
    %6137 = vmatprep.subr.bf16.mxu0 0
    %6138 = vmatpush1.bf16.msra.mxu0 %v6122
    %6139 = vmatprep.subr.bf16.mxu0 0
    %6140 = vmatpush1.bf16.msra.mxu0 %v6123
    %6141 = vmatprep.subr.bf16.mxu0 0
    %6142 = vmatpush1.bf16.msra.mxu0 %v6124
    %6143 = vmatprep.subr.bf16.mxu0 0
    %6144 = vmatpush1.bf16.msra.mxu0 0
    %6145 = vmatprep.subr.bf16.mxu0 0
    %6146 = vmatpush1.bf16.msra.mxu0 0
    %6147 = vmatprep.subr.bf16.mxu0 0
    %6148 = vmatpush1.bf16.msra.mxu0 0
    %6149 = vmatprep.subr.bf16.mxu0 0
    %6150 = vmatpush1.bf16.msra.mxu0 0
    %6151 = vmatprep.subr.bf16.mxu0 0
    %6152 = vmatpush1.bf16.msra.mxu0 0
    %6153 = vmatprep.subr.bf16.mxu0 0
    %6154 = vmatpush1.bf16.msra.mxu0 0
    %6155 = vmatprep.subr.bf16.mxu0 0
    %6156 = vmatpush1.bf16.msra.mxu0 0
    %6157 = vmatprep.subr.bf16.mxu0 0
    %6158 = vmatpush1.bf16.msra.mxu0 0
    %6159 = vmatprep.subr.bf16.mxu0 0
    %6160 = vmatpush1.bf16.msra.mxu0 0
    %6161 = vmatprep.subr.bf16.mxu0 0
    %6162 = vmatpush1.bf16.msra.mxu0 0
    %6163 = vmatprep.subr.bf16.mxu0 0
    %6164 = vmatpush1.bf16.msra.mxu0 0
    %6165 = vmatprep.mubr.bf16.mxu0 0
    %6166 = vmatmul.mubr.bf16.gmra.mrb[0].mxu0 %v6131
    %v6167 = vpop.f32.mrb[0].mxu0
    %v6168 = vadd.f32 0.0, %v6167
    %v6169 = vpop.f32.mrb[0].mxu0
    %v6170 = vpop.f32.mrb[0].mxu0
    %v6171 = vpop.f32.mrb[0].mxu0
    %6172 = vdwg.mxu0
    %v6173 = vadd.f32 %v6087, %v6168
    %v6174 = vmax.f32 %v6173, 0.0
    %v6175 = vld [vmem:[%s15] sm:$0xf]
    %v6176 = vld [vmem:[%s15 + $0x4] sm:$0xf]
    %v6177 = vld [vmem:[%s15 + $0x8] sm:$0xf]
    %v6178 = vld [vmem:[%s15 + $0xc] sm:$0xf]
    %v6179 = vld [vmem:[%s15 + $0x10] sm:$0xf]
    %v6180 = vld [vmem:[%s15 + $0x14] sm:$0xf]
    %v6181 = vld [vmem:[%s15 + $0x18] sm:$0xf]
    %v6182 = vld [vmem:[%s15 + $0x1c] sm:$0xf]
    %v6183 = vld [vmem:[%s15 + $0x20] sm:$0xf]
    %v6184 = vld [vmem:[%s15 + $0x24] sm:$0xf]
    %v6185 = vld [vmem:[%s15 + $0x28] sm:$0xf]
    %v6186 = vld [vmem:[%s15 + $0x2c] sm:$0xf]
    %v6187 = vld [vmem:[%s15 + $0x30] sm:$0xf]
    %v6188 = vld [vmem:[%s15 + $0x34] sm:$0xf]
    %v6189 = vld [vmem:[%s15 + $0x38] sm:$0xf]
    %v6190 = vpack.c.bf16 %v6174, %v6174
    %v6191 = vld [vmem:[%s16] sm:$0xf]
    %v6192 = vld [vmem:[%s16 + $0x4] sm:$0xf]
    %v6193 = vld [vmem:[%s16 + $0x8] sm:$0xf]
    %v6194 = vld [vmem:[%s16 + $0xc] sm:$0xf]
    %v6195 = vld [vmem:[%s16 + $0x10] sm:$0xf]
    %v6196 = vld [vmem:[%s16 + $0x14] sm:$0xf]
    %v6197 = vld [vmem:[%s16 + $0x18] sm:$0xf]
    %v6198 = vld [vmem:[%s16 + $0x1c] sm:$0xf]
    %v6199 = vld [vmem:[%s16 + $0x20] sm:$0xf]
    %v6200 = vld [vmem:[%s16 + $0x24] sm:$0xf]
    %v6201 = vld [vmem:[%s16 + $0x28] sm:$0xf]
    %v6202 = vld [vmem:[%s16 + $0x2c] sm:$0xf]
    %v6203 = vld [vmem:[%s16 + $0x30] sm:$0xf]
    %v6204 = vld [vmem:[%s16 + $0x34] sm:$0xf]
    %v6205 = vld [vmem:[%s16 + $0x38] sm:$0xf]
    %v6206 = vld [vmem:[%s16 + $0x3c] sm:$0xf]
    %v6207 = vld [vmem:[%s16 + $0x40] sm:$0xf]
    %v6208 = vld [vmem:[%s16 + $0x44] sm:$0xf]
    %v6209 = vld [vmem:[%s16 + $0x48] sm:$0xf]
    %v6210 = vld [vmem:[%s16 + $0x4c] sm:$0xf]
    %v6211 = vld [vmem:[%s16 + $0x50] sm:$0xf]
    %v6212 = vld [vmem:[%s16 + $0x54] sm:$0xf]
    %v6213 = vld [vmem:[%s16 + $0x58] sm:$0xf]
    %v6214 = vld [vmem:[%s16 + $0x5c] sm:$0xf]
    %v6215 = vld [vmem:[%s16 + $0x60] sm:$0xf]
    %v6216 = vld [vmem:[%s16 + $0x64] sm:$0xf]
    %v6217 = vld [vmem:[%s16 + $0x68] sm:$0xf]
    %v6218 = vld [vmem:[%s16 + $0x6c] sm:$0xf]
    %v6219 = vld [vmem:[%s16 + $0x70] sm:$0xf]
    %v6220 = vld [vmem:[%s16 + $0x74] sm:$0xf]
    %v6221 = vld [vmem:[%s16 + $0x78] sm:$0xf]
    %v6222 = vld [vmem:[%s16 + $0x7c] sm:$0xf]
    %v6223 = vpack.c.bf16 %v3283, %v3283
    %v6224 = vpack.c.bf16 %v3284, %v3284
    %v6227 = vrot.slane %v6223, 3
    %v6228 = vrot.slane %v6224, 3
    %v6263 = vunpack.c.l.b16 %v6191
    %v6264 = vunpack.c.l.b16 %v6192
    %v6265 = vunpack.c.l.b16 %v6193
    %v6266 = vunpack.c.l.b16 %v6194
    %v6267 = vunpack.c.l.b16 %v6195
    %v6268 = vunpack.c.l.b16 %v6196
    %v6269 = vunpack.c.l.b16 %v6197
    %v6270 = vunpack.c.l.b16 %v6198
    %v6271 = vunpack.c.l.b16 %v6199
    %v6272 = vunpack.c.l.b16 %v6200
    %v6273 = vunpack.c.l.b16 %v6201
    %v6274 = vunpack.c.l.b16 %v6202
    %v6275 = vunpack.c.l.b16 %v6203
    %v6276 = vunpack.c.l.b16 %v6204
    %v6277 = vunpack.c.l.b16 %v6205
    %v6278 = vunpack.c.l.b16 %v6206
    %v6279 = vunpack.c.l.b16 %v6207
    %v6280 = vunpack.c.l.b16 %v6208
    %v6281 = vunpack.c.l.b16 %v6209
    %v6282 = vunpack.c.l.b16 %v6210
    %v6283 = vunpack.c.l.b16 %v6211
    %v6284 = vunpack.c.l.b16 %v6212
    %v6285 = vunpack.c.l.b16 %v6213
    %v6286 = vunpack.c.l.b16 %v6214
    %v6287 = vunpack.c.l.b16 %v6215
    %v6288 = vunpack.c.l.b16 %v6216
    %v6289 = vunpack.c.l.b16 %v6217
    %v6290 = vunpack.c.l.b16 %v6218
    %v6291 = vunpack.c.l.b16 %v6219
    %v6292 = vunpack.c.l.b16 %v6220
    %v6293 = vunpack.c.l.b16 %v6221
    %v6294 = vunpack.c.l.b16 %v6222
    %v6295 = vpack.c.b16 %v6264, %v6263
    %v6296 = vpack.c.b16 %v6266, %v6265
    %v6297 = vpack.c.b16 %v6268, %v6267
    %v6298 = vpack.c.b16 %v6270, %v6269
    %v6299 = vpack.c.b16 %v6272, %v6271
    %v6300 = vpack.c.b16 %v6274, %v6273
    %v6301 = vpack.c.b16 %v6276, %v6275
    %v6302 = vpack.c.b16 %v6278, %v6277
    %v6303 = vpack.c.b16 %v6280, %v6279
    %v6304 = vpack.c.b16 %v6282, %v6281
    %v6305 = vpack.c.b16 %v6284, %v6283
    %v6306 = vpack.c.b16 %v6286, %v6285
    %v6307 = vpack.c.b16 %v6288, %v6287
    %v6308 = vpack.c.b16 %v6290, %v6289
    %v6309 = vpack.c.b16 %v6292, %v6291
    %v6310 = vpack.c.b16 %v6294, %v6293
    %6327 = vmatprep.subr.bf16.mxu0 0
    %6328 = vmatpush1.bf16.msra.mxu0 %v6295
    %6329 = vmatprep.subr.bf16.mxu0 0
    %6330 = vmatpush1.bf16.msra.mxu0 %v6296
    %6331 = vmatprep.subr.bf16.mxu0 0
    %6332 = vmatpush1.bf16.msra.mxu0 %v6297
    %6333 = vmatprep.subr.bf16.mxu0 0
    %6334 = vmatpush1.bf16.msra.mxu0 %v6298
    %6335 = vmatprep.subr.bf16.mxu0 0
    %6336 = vmatpush1.bf16.msra.mxu0 %v6299
    %6337 = vmatprep.subr.bf16.mxu0 0
    %6338 = vmatpush1.bf16.msra.mxu0 %v6300
    %6339 = vmatprep.subr.bf16.mxu0 0
    %6340 = vmatpush1.bf16.msra.mxu0 %v6301
    %6341 = vmatprep.subr.bf16.mxu0 0
    %6342 = vmatpush1.bf16.msra.mxu0 %v6302
    %6343 = vmatprep.subr.bf16.mxu0 0
    %6344 = vmatpush1.bf16.msra.mxu0 %v6303
    %6345 = vmatprep.subr.bf16.mxu0 0
    %6346 = vmatpush1.bf16.msra.mxu0 %v6304
    %6347 = vmatprep.subr.bf16.mxu0 0
    %6348 = vmatpush1.bf16.msra.mxu0 %v6305
    %6349 = vmatprep.subr.bf16.mxu0 0
    %6350 = vmatpush1.bf16.msra.mxu0 %v6306
    %6351 = vmatprep.subr.bf16.mxu0 0
    %6352 = vmatpush1.bf16.msra.mxu0 %v6307
    %6353 = vmatprep.subr.bf16.mxu0 0
    %6354 = vmatpush1.bf16.msra.mxu0 %v6308
    %6355 = vmatprep.subr.bf16.mxu0 0
    %6356 = vmatpush1.bf16.msra.mxu0 %v6309
    %6357 = vmatprep.subr.bf16.mxu0 0
    %6358 = vmatpush1.bf16.msra.mxu0 %v6310
    %6359 = vmatprep.mubr.bf16.mxu0 %v6228
    %6360 = vmatmul.mubr.bf16.gmra.mrb[0].mxu0 %v6227
    %v6361 = vpop.f32.mrb[0].mxu0
    %v6362 = vadd.f32 0.0, %v6361
    %v6363 = vpop.f32.mrb[0].mxu0
    %v6364 = vpop.f32.mrb[0].mxu0
    %v6365 = vpop.f32.mrb[0].mxu0
    %6366 = vdwg.mxu0
    %v6382 = vunpack.c.l.b16 %v6175
    %v6383 = vunpack.c.l.b16 %v6176
    %v6384 = vunpack.c.l.b16 %v6177
    %v6385 = vunpack.c.l.b16 %v6178
    %v6386 = vunpack.c.l.b16 %v6179
    %v6387 = vunpack.c.l.b16 %v6180
    %v6388 = vunpack.c.l.b16 %v6181
    %v6389 = vunpack.c.l.b16 %v6182
    %v6390 = vunpack.c.l.b16 %v6183
    %v6391 = vunpack.c.l.b16 %v6184
    %v6392 = vunpack.c.l.b16 %v6185
    %v6393 = vunpack.c.l.b16 %v6186
    %v6394 = vunpack.c.l.b16 %v6187
    %v6395 = vunpack.c.l.b16 %v6188
    %v6396 = vunpack.c.l.b16 %v6189
    %v6397 = vpack.c.b16 %v6383, %v6382
    %v6398 = vpack.c.b16 %v6385, %v6384
    %v6399 = vpack.c.b16 %v6387, %v6386
    %v6400 = vpack.c.b16 %v6389, %v6388
    %v6401 = vpack.c.b16 %v6391, %v6390
    %v6402 = vpack.c.b16 %v6393, %v6392
    %v6403 = vpack.c.b16 %v6395, %v6394
    %v6404 = vpack.c.b16 %v6396, %v6396
    %vm6412 = vcmask 982016
    %v6414 = vsel %vm6412, %v6190, 0
    %v6417 = vsel %vm4224, %v6404, 0
    %6419 = vmatprep.subr.bf16.mxu0 0
    %6420 = vmatpush1.bf16.msra.mxu0 %v6397
    %6421 = vmatprep.subr.bf16.mxu0 0
    %6422 = vmatpush1.bf16.msra.mxu0 %v6398
    %6423 = vmatprep.subr.bf16.mxu0 0
    %6424 = vmatpush1.bf16.msra.mxu0 %v6399
    %6425 = vmatprep.subr.bf16.mxu0 0
    %6426 = vmatpush1.bf16.msra.mxu0 %v6400
    %6427 = vmatprep.subr.bf16.mxu0 0
    %6428 = vmatpush1.bf16.msra.mxu0 %v6401
    %6429 = vmatprep.subr.bf16.mxu0 0
    %6430 = vmatpush1.bf16.msra.mxu0 %v6402
    %6431 = vmatprep.subr.bf16.mxu0 0
    %6432 = vmatpush1.bf16.msra.mxu0 %v6403
    %6433 = vmatprep.subr.bf16.mxu0 0
    %6434 = vmatpush1.bf16.msra.mxu0 %v6417
    %6435 = vmatprep.subr.bf16.mxu0 0
    %6436 = vmatpush1.bf16.msra.mxu0 0
    %6437 = vmatprep.subr.bf16.mxu0 0
    %6438 = vmatpush1.bf16.msra.mxu0 0
    %6439 = vmatprep.subr.bf16.mxu0 0
    %6440 = vmatpush1.bf16.msra.mxu0 0
    %6441 = vmatprep.subr.bf16.mxu0 0
    %6442 = vmatpush1.bf16.msra.mxu0 0
    %6443 = vmatprep.subr.bf16.mxu0 0
    %6444 = vmatpush1.bf16.msra.mxu0 0
    %6445 = vmatprep.subr.bf16.mxu0 0
    %6446 = vmatpush1.bf16.msra.mxu0 0
    %6447 = vmatprep.subr.bf16.mxu0 0
    %6448 = vmatpush1.bf16.msra.mxu0 0
    %6449 = vmatprep.subr.bf16.mxu0 0
    %6450 = vmatpush1.bf16.msra.mxu0 0
    %6451 = vmatprep.mubr.bf16.mxu0 0
    %6452 = vmatmul.mubr.bf16.gmra.mrb[0].mxu0 %v6414
    %v6453 = vpop.f32.mrb[0].mxu0
    %v6454 = vadd.f32 %v6362, %v6453
    %v6455 = vpop.f32.mrb[0].mxu0
    %v6456 = vpop.f32.mrb[0].mxu0
    %v6457 = vpop.f32.mrb[0].mxu0
    %6458 = vdwg.mxu0
    %v6459 = vld [vmem:[#allocation7] sm:$0x1]
    %v6461 = vlaneseq
    %v6462 = vshrl.u32 %v6461, 7
    %v6463 = vsub.s32 0, %v6462
    %v6464 = vrot.slane %v6459, %v6463
    %v6466 = vadd.f32 %v6454, %v6464
    %v6467 = vmax.f32 %v6466, 0.0
    %v6468 = vld [vmem:[%s18] sm:$0xf]
    %v6469 = vld [vmem:[%s18 + $0x4] sm:$0xf]
    %v6470 = vld [vmem:[%s18 + $0x8] sm:$0xf]
    %v6471 = vld [vmem:[%s18 + $0xc] sm:$0xf]
    %v6472 = vld [vmem:[%s18 + $0x10] sm:$0xf]
    %v6473 = vld [vmem:[%s18 + $0x14] sm:$0xf]
    %v6474 = vld [vmem:[%s18 + $0x18] sm:$0xf]
    %v6475 = vld [vmem:[%s18 + $0x1c] sm:$0xf]
    %v6476 = vld [vmem:[%s18 + $0x20] sm:$0xf]
    %v6477 = vld [vmem:[%s18 + $0x24] sm:$0xf]
    %v6478 = vld [vmem:[%s18 + $0x28] sm:$0x3]
    %v6479 = vpack.c.bf16 %v6467, %v6467
    %v6480 = vld [vmem:[%s19] sm:$0x1]
    %v6482 = vlaneseq
    %v6483 = vshrl.u32 %v6482, 7
    %v6484 = vsub.s32 0, %v6483
    %v6485 = vrot.slane %v6480, %v6484
    %v6498 = vunpack.c.l.b16 %v6468
    %v6499 = vunpack.c.l.b16 %v6469
    %v6500 = vunpack.c.l.b16 %v6470
    %v6501 = vunpack.c.l.b16 %v6471
    %v6502 = vunpack.c.l.b16 %v6472
    %v6503 = vunpack.c.l.b16 %v6473
    %v6504 = vunpack.c.l.b16 %v6474
    %v6505 = vunpack.c.l.b16 %v6475
    %v6506 = vunpack.c.l.b16 %v6476
    %v6507 = vunpack.c.l.b16 %v6477
    %v6508 = vunpack.c.l.b16 %v6478
    %v6509 = vpack.c.b16 %v6499, %v6498
    %v6510 = vpack.c.b16 %v6501, %v6500
    %v6511 = vpack.c.b16 %v6503, %v6502
    %v6512 = vpack.c.b16 %v6505, %v6504
    %v6513 = vpack.c.b16 %v6507, %v6506
    %v6514 = vpack.c.b16 %v6508, %v6508
    %v6521 = vsel %vm4739, %v6479, 0
    %v6524 = vsel %vm4746, %v6514, 0
    %6526 = vmatprep.subr.bf16.mxu0 0
    %6527 = vmatpush1.bf16.msra.mxu0 %v6509
    %6528 = vmatprep.subr.bf16.mxu0 0
    %6529 = vmatpush1.bf16.msra.mxu0 %v6510
    %6530 = vmatprep.subr.bf16.mxu0 0
    %6531 = vmatpush1.bf16.msra.mxu0 %v6511
    %6532 = vmatprep.subr.bf16.mxu0 0
    %6533 = vmatpush1.bf16.msra.mxu0 %v6512
    %6534 = vmatprep.subr.bf16.mxu0 0
    %6535 = vmatpush1.bf16.msra.mxu0 %v6513
    %6536 = vmatprep.subr.bf16.mxu0 0
    %6537 = vmatpush1.bf16.msra.mxu0 %v6524
    %6538 = vmatprep.subr.bf16.mxu0 0
    %6539 = vmatpush1.bf16.msra.mxu0 0
    %6540 = vmatprep.subr.bf16.mxu0 0
    %6541 = vmatpush1.bf16.msra.mxu0 0
    %6542 = vmatprep.subr.bf16.mxu0 0
    %6543 = vmatpush1.bf16.msra.mxu0 0
    %6544 = vmatprep.subr.bf16.mxu0 0
    %6545 = vmatpush1.bf16.msra.mxu0 0
    %6546 = vmatprep.subr.bf16.mxu0 0
    %6547 = vmatpush1.bf16.msra.mxu0 0
    %6548 = vmatprep.subr.bf16.mxu0 0
    %6549 = vmatpush1.bf16.msra.mxu0 0
    %6550 = vmatprep.subr.bf16.mxu0 0
    %6551 = vmatpush1.bf16.msra.mxu0 0
    %6552 = vmatprep.subr.bf16.mxu0 0
    %6553 = vmatpush1.bf16.msra.mxu0 0
    %6554 = vmatprep.subr.bf16.mxu0 0
    %6555 = vmatpush1.bf16.msra.mxu0 0
    %6556 = vmatprep.subr.bf16.mxu0 0
    %6557 = vmatpush1.bf16.msra.mxu0 0
    %6558 = vmatprep.mubr.bf16.mxu0 0
    %6559 = vmatmul.mubr.bf16.gmra.mrb[0].mxu0 %v6521
    %v6560 = vpop.f32.mrb[0].mxu0
    %v6561 = vadd.f32 %v6485, %v6560
    %v6562 = vpop.f32.mrb[0].mxu0
    %v6563 = vpop.f32.mrb[0].mxu0
    %v6564 = vpop.f32.mrb[0].mxu0
    %6565 = vdwg.mxu0
    %vm6566 = vcmask 74752
    %6567 = vst.msk [vmem:[#allocation8] sm:$0x3] %vm6566, %v6561
    // Predicated region
    $region94: #{multimodal_forward.1} parent=1 // pred_check
      _
    $region95: #{multimodal_forward.1} parent=1 // pred_check_branch
      %6569 = sbr.rel (0) target = $region97
    $region96: #{multimodal_forward.1} parent=1 // pred_region
      %s6571 = ssub.s32 32, 32
      %6572 = vsyncadd [#allocation4], %s6571
      %s6574 = sshll.u32 [#allocation8], 4
      %s6575 = int_to_ptr.vmem [resolvable:$true] %s6574
      %6577 = dma.vmem_to_hbm [thread:$0]  %s6575, 32, %s20, [#allocation4]
    $region97: #{multimodal_forward.1} parent=1 // pred_fallthru
      _
    // Predicated region
    $region98: #{multimodal_forward.1} parent=1 // pred_check
      _
    $region99: #{multimodal_forward.1} parent=1 // pred_check_branch
      %6579 = sbr.rel (0) target = $region101
    $region100: #{multimodal_forward.1} parent=1 // pred_region
      %6580 = dma.done [#allocation4], 32
    $region101: #{multimodal_forward.1} parent=1 // pred_fallthru
      _
    %6581 = vsyncpa [#allocation3], 1
    %6582 = vsyncpa [#allocation6], 1
    %6583 = vsyncpa [#allocation4], 1

</llo_original>
